<compile_context>
chip_gen: v7x
topology: tpu7x:2x2x1
jax: 0.10.0
libtpu: 0.0.40
codegen_flags: <defaults>
</compile_context>

<pallas_src>
import functools

import jax
import jax.numpy as jnp
from jax import lax
from jax.experimental import pallas as pl
from jax.experimental.pallas import tpu as pltpu


# Packed shift-table layout: 4 rows per residual block (t1, t2, t3, t_sc),
# then one row for the final-conv bias.
_ROWS_PER_BLOCK = 4
_N_SHIFT_ROWS = 3 * _ROWS_PER_BLOCK + 1


# ----------------------------------------------------------------------------
# Fused whole-model kernel (one grid step = one batch row)
# ----------------------------------------------------------------------------
def _dcnn_kernel(x_ref,
                 w1_1, w2_1, w3_1, wsc_1,
                 w1_2, w2_2, w3_2, wsc_2,
                 w1_3, w2_3, w3_3, wsc_3,
                 w_fin, shifts_ref,
                 out_ref,
                 pad1a, pad1b, pad2a, pad2b, pad3a, pad3b,
                 *, compute_dtype):
    L = x_ref.shape[0]

    def shift(row, c):                                   # (1, c) f32 bias/BN shift
        return shifts_ref[row:row + 1, :c]

    def leaky(y):                                        # LeakyReLU(0.2), f32
        return jnp.where(y > 0.0, y, 0.2 * y)

    def conv_same(pad_ref, x, w_ref):
        """'same' 1-D conv as K lane-aligned accumulated MXU dots.

        pad_ref : (L + K - 1, C) VMEM scratch.  Data rows [p, p+L); the 2*p
                  halo rows are (re)zeroed here and ARE the 'same' padding.
        x       : (L, C) values in the MXU input dtype.
        w_ref   : (K, C, Cout) weights (BN scale already folded in).
        Returns (L, Cout) f32.
        """
        K = w_ref.shape[0]
        C = x.shape[1]
        p = (K - 1) // 2
        if p:                                            # halo rows only (cheap)
            halo = jnp.zeros((p, C), x.dtype)
            pad_ref[pl.ds(0, p), :] = halo
            pad_ref[pl.ds(p + L, p), :] = halo
        pad_ref[pl.ds(p, L), :] = x                      # full rows, lane offset 0
        acc = jnp.dot(pad_ref[pl.ds(0, L), :], w_ref[0],
                      preferred_element_type=jnp.float32)
        for k in range(1, K):                            # K is small & static
            acc = acc + jnp.dot(pad_ref[pl.ds(k, L), :], w_ref[k],
                                preferred_element_type=jnp.float32)
        return acc

    def res_block(x_cd, pad_a, pad_b, w1, w2, w3, wsc, row0):
        cout = w1.shape[-1]
        # Shortcut: 1x1 conv + folded BN, reusing the x tile already resident.
        res = jnp.dot(x_cd, wsc[...], preferred_element_type=jnp.float32)
        res = res + shift(row0 + 3, cout)
        h = leaky(conv_same(pad_a, x_cd, w1) + shift(row0 + 0, cout))
        # dropout1: identity in eval mode
        h = leaky(conv_same(pad_b, h.astype(compute_dtype), w2)
                  + shift(row0 + 1, cout))
        # dropout2: identity in eval mode
        h = conv_same(pad_b, h.astype(compute_dtype), w3) + shift(row0 + 2, cout)
        return leaky(h + res)                            # (L, cout) f32

    # In-kernel cast of the f32 input (no wrapper-side convert pass).
    x = x_ref[...].astype(compute_dtype)
    h = res_block(x, pad1a, pad1b, w1_1, w2_1, w3_1, wsc_1, row0=0)
    h = res_block(h.astype(compute_dtype), pad2a, pad2b,
                  w1_2, w2_2, w3_2, wsc_2, row0=_ROWS_PER_BLOCK)
    h = res_block(h.astype(compute_dtype), pad3a, pad3b,
                  w1_3, w2_3, w3_3, wsc_3, row0=2 * _ROWS_PER_BLOCK)
    # Final 'same' conv (K=3, bias only) fused; reuses block3's 128-wide scratch.
    y = conv_same(pad3b, h.astype(compute_dtype), w_fin)
    y = y + shift(_N_SHIFT_ROWS - 1, out_ref.shape[-1])
    out_ref[...] = y.astype(out_ref.dtype)


# ----------------------------------------------------------------------------
# Parameter prep: fold BN scales into weights, pack shifts into one table
# ----------------------------------------------------------------------------
def _prep_weights(params, compute_dtype):
    ws, trows = [], []
    for name in ('block1', 'block2', 'block3'):
        p = params[name]
        ws += [(p['w1'] * p['s1'][0]).astype(compute_dtype),          # (K, Ci, Co)
               (p['w2'] * p['s2'][0]).astype(compute_dtype),
               (p['w3'] * p['s3'][0]).astype(compute_dtype),
               (p['w_sc'][0] * p['s_sc'][0]).astype(compute_dtype)]   # (Ci, Co)
        trows += [p['t1'][0], p['t2'][0], p['t3'][0], p['t_sc'][0]]
    ws.append(params['wf'].astype(compute_dtype))                     # (Kf, C3, Cin)
    trows.append(params['bf'][0])

    max_c = max(t.shape[0] for t in trows)
    width = max(128, -(-max_c // 128) * 128)
    shifts = jnp.zeros((_N_SHIFT_ROWS, width), jnp.float32)
    for i, t in enumerate(trows):
        shifts = shifts.at[i, :t.shape[0]].set(t.astype(jnp.float32))
    return ws, shifts


# ----------------------------------------------------------------------------
# Model forward: a single fused pallas_call
# ----------------------------------------------------------------------------
def restnet_1d_dcnn_apply(x, params, compute_dtype=jnp.bfloat16):
    """x: (B, L, C_in) f32 -> (B, L, C_in) f32 (channels-last; permutes skipped)."""
    B, L, Cin = x.shape
    ws, shifts = _prep_weights(params, compute_dtype)
    inputs = [x] + ws + [shifts]

    K1, K2, K3 = (params[b]['w1'].shape[0] for b in ('block1', 'block2', 'block3'))
    C1, C2, C3 = (params[b]['w1'].shape[-1] for b in ('block1', 'block2', 'block3'))
    Kf = params['wf'].shape[0]
    # Final conv reuses block3's padded scratch -> same K and Cin required.
    assert Kf == K3 and params['wf'].shape[1] == C3

    def whole(a):                    # block-invariant: DMA'd into VMEM once
        nd = a.ndim
        return pl.BlockSpec(a.shape, lambda b: (0,) * nd)

    in_specs = ([pl.BlockSpec((None, L, Cin), lambda b: (b, 0, 0))]
                + [whole(a) for a in inputs[1:]])
    out_specs = pl.BlockSpec((None, L, Cin), lambda b: (b, 0, 0))

    scratch_defs = [
        (L + K1 - 1, Cin),   # block1 conv1 input
        (L + K1 - 1, C1),    # block1 conv2 / conv3 input
        (L + K2 - 1, C1),    # block2 conv1 input
        (L + K2 - 1, C2),    # block2 conv2 / conv3 input
        (L + K3 - 1, C2),    # block3 conv1 input
        (L + K3 - 1, C3),    # block3 conv2/3 + final conv input
    ]
    scratch_shapes = [pltpu.VMEM(s, compute_dtype) for s in scratch_defs]

    # ---- VMEM budget (v7x only has 64 MiB; leave headroom) ------------------
    def padded_bytes(shape, dtype):
        it = jnp.dtype(dtype).itemsize
        sub = 8 * max(1, 4 // it)                 # f32: 8, bf16: 16 sublanes/tile
        rows = -(-shape[-2] // sub) * sub
        lanes = -(-shape[-1] // 128) * 128
        lead = 1
        for d in shape[:-2]:
            lead *= d
        return lead * rows * lanes * it

    vmem_needed = (sum(padded_bytes(s, compute_dtype) for s in scratch_defs)
                   + 2 * 2 * padded_bytes((L, Cin), jnp.float32)        # x/out dbl-buf
                   + 2 * sum(padded_bytes(w.shape, compute_dtype) for w in ws)
                   + 2 * padded_bytes(shifts.shape, jnp.float32))
    assert vmem_needed <= 48 * 1024 * 1024, (
        "activation row does not fit VMEM; implement the L-tiling TODO")
    vmem_limit = int(min(48 * 1024 * 1024,
                         max(32 * 1024 * 1024, 1.25 * vmem_needed)))

    # ---- advisory cost estimate ---------------------------------------------
    mac = lambda K, ci, co: K * ci * co
    per_elem = (mac(1, Cin, C1) + mac(K1, Cin, C1) + 2 * mac(K1, C1, C1)
                + mac(1, C1, C2) + mac(K2, C1, C2) + 2 * mac(K2, C2, C2)
                + mac(1, C2, C3) + mac(K3, C2, C3) + 2 * mac(K3, C3, C3)
                + mac(Kf, C3, Cin))
    flops = 2 * B * L * per_elem
    bytes_accessed = (x.size * x.dtype.itemsize + B * L * Cin * 4
                      + sum(int(w.size) * w.dtype.itemsize for w in ws)
                      + int(shifts.size) * 4)

    kernel = functools.partial(_dcnn_kernel, compute_dtype=compute_dtype)
    return pl.pallas_call(
        kernel,
        grid=(B,),
        out_shape=jax.ShapeDtypeStruct((B, L, Cin), jnp.float32),
        in_specs=in_specs,
        out_specs=out_specs,
        scratch_shapes=scratch_shapes,
        compiler_params=pltpu.CompilerParams(
            # batch rows shard across the two TensorCores on v7x
            dimension_semantics=("parallel",),
            vmem_limit_bytes=vmem_limit),
        cost_estimate=pl.CostEstimate(flops=int(flops), transcendentals=0,
                                      bytes_accessed=int(bytes_accessed)),
    )(*inputs)


# ----------------------------------------------------------------------------
# Parameter init (deterministic, synthetic) + BN folding
# ----------------------------------------------------------------------------
def _init_conv(key, K, Cin, Cout):
    kw, kb = jax.random.split(key)
    w = jax.random.normal(kw, (K, Cin, Cout), jnp.float32) / jnp.sqrt(Cin * K)
    b = 0.1 * jax.random.normal(kb, (Cout,), jnp.float32)
    return w, b


def _init_bn(key, C):
    kg, kb = jax.random.split(key)
    gamma = 1.0 + 0.1 * jax.random.normal(kg, (C,), jnp.float32)
    beta = 0.1 * jax.random.normal(kb, (C,), jnp.float32)
    mean = jnp.zeros((C,), jnp.float32)   # running stats at init (eval mode)
    var = jnp.ones((C,), jnp.float32)
    return gamma, beta, mean, var


def _fuse_bias_bn(conv_b, gamma, beta, mean, var, eps=1e-5):
    scale = gamma / jnp.sqrt(var + eps)
    shift = beta + (conv_b - mean) * scale
    return scale[None, :], shift[None, :]


def init_block(key, Cin, Cout, K):
    ks = jax.random.split(key, 8)
    p = {}
    w1, b1 = _init_conv(ks[0], K, Cin, Cout)
    p['w1'] = w1
    p['s1'], p['t1'] = _fuse_bias_bn(b1, *_init_bn(ks[1], Cout))
    w2, b2 = _init_conv(ks[2], K, Cout, Cout)
    p['w2'] = w2
    p['s2'], p['t2'] = _fuse_bias_bn(b2, *_init_bn(ks[3], Cout))
    w3, b3 = _init_conv(ks[4], K, Cout, Cout)
    p['w3'] = w3
    p['s3'], p['t3'] = _fuse_bias_bn(b3, *_init_bn(ks[5], Cout))
    # shortcut = Conv1d(k=1) + BN (always taken: Cin != Cout for every block)
    wsc, bsc = _init_conv(ks[6], 1, Cin, Cout)
    p['w_sc'] = wsc
    p['s_sc'], p['t_sc'] = _fuse_bias_bn(bsc, *_init_bn(ks[7], Cout))
    return p


def init_params(key, input_channels):
    k1, k2, k3, k4 = jax.random.split(key, 4)
    params = {
        'block1': init_block(k1, input_channels, 32, 7),
        'block2': init_block(k2, 32, 64, 5),
        'block3': init_block(k3, 64, 128, 3),
    }
    wf, bf = _init_conv(k4, 3, 128, input_channels)   # final conv, no BN
    params['wf'] = wf
    params['bf'] = bf[None, :]
    return params


# ----------------------------------------------------------------------------
# Pure-JAX f32 reference (lax.conv) for correctness checking
# ----------------------------------------------------------------------------
def _ref_conv(x, w, scale, shift, residual=None, act=True):
    y = lax.conv_general_dilated(
        x, w, window_strides=(1,), padding='SAME',
        dimension_numbers=('NWC', 'WIO', 'NWC'),
        precision=lax.Precision.HIGHEST)
    if scale is not None:
        y = y * scale
    y = y + shift
    if residual is not None:
        y = y + residual
    if act:
        y = jnp.where(y > 0, y, 0.2 * y)
    return y


def ref_forward(x, params):
    def block(x, p):
        r = _ref_conv(x, p['w_sc'], p['s_sc'], p['t_sc'], act=False)
        o = _ref_conv(x, p['w1'], p['s1'], p['t1'], act=True)
        o = _ref_conv(o, p['w2'], p['s2'], p['t2'], act=True)
        o = _ref_conv(o, p['w3'], p['s3'], p['t3'], residual=r, act=True)
        return o
    x = block(x, params['block1'])
    x = block(x, params['block2'])
    x = block(x, params['block3'])
    x = _ref_conv(x, params['wf'], None, params['bf'], act=False)
    return x


# ----------------------------------------------------------------------------
if __name__ == "__main__":
    B, L, C_IN = 2, 16, 4

    key = jax.random.PRNGKey(0)
    kx, kp = jax.random.split(key)
    x = jax.random.normal(kx, (B, L, C_IN), jnp.float32)
    params = init_params(kp, C_IN)

    ref = jax.block_until_ready(ref_forward(x, params))
    ref_max = float(jnp.max(jnp.abs(ref)))

    # Exact-mode (f32) structural check: tap alignment, halos, BN folding.
    fwd_f32 = jax.jit(functools.partial(restnet_1d_dcnn_apply,
                                        compute_dtype=jnp.float32))
    out_f32 = jax.block_until_ready(fwd_f32(x, params))
    assert out_f32.shape == (B, L, C_IN), out_f32.shape
    f32_err = float(jnp.max(jnp.abs(out_f32 - ref)))
    assert f32_err < 5e-3 + 5e-3 * ref_max, (f32_err, ref_max)

    # Performance config: bf16 MXU inputs / activations, f32 accum + epilogue.
    fwd_bf16 = jax.jit(functools.partial(restnet_1d_dcnn_apply,
                                         compute_dtype=jnp.bfloat16))
    out_bf16 = jax.block_until_ready(fwd_bf16(x, params))
    assert out_bf16.shape == (B, L, C_IN), out_bf16.shape
    bf16_err = float(jnp.max(jnp.abs(out_bf16.astype(jnp.float32) - ref)))
    assert bf16_err < 0.05 + 0.05 * ref_max, (bf16_err, ref_max)

    print("KERNEL_OK")
</pallas_src>

<mosaic_0001>
module attributes {stable_mosaic.version = 11 : i64} {
  func.func @_dcnn_kernel(%arg0: i32, %arg1: memref<1x16x4xf32, #tpu.memory_space<vmem>>, %arg2: memref<7x4x32xf32, #tpu.memory_space<vmem>>, %arg3: memref<7x32x32xf32, #tpu.memory_space<vmem>>, %arg4: memref<7x32x32xf32, #tpu.memory_space<vmem>>, %arg5: memref<4x32xf32, #tpu.memory_space<vmem>>, %arg6: memref<5x32x64xf32, #tpu.memory_space<vmem>>, %arg7: memref<5x64x64xf32, #tpu.memory_space<vmem>>, %arg8: memref<5x64x64xf32, #tpu.memory_space<vmem>>, %arg9: memref<32x64xf32, #tpu.memory_space<vmem>>, %arg10: memref<3x64x128xf32, #tpu.memory_space<vmem>>, %arg11: memref<3x128x128xf32, #tpu.memory_space<vmem>>, %arg12: memref<3x128x128xf32, #tpu.memory_space<vmem>>, %arg13: memref<64x128xf32, #tpu.memory_space<vmem>>, %arg14: memref<3x128x4xf32, #tpu.memory_space<vmem>>, %arg15: memref<13x128xf32, #tpu.memory_space<vmem>>, %arg16: memref<1x16x4xf32, #tpu.memory_space<vmem>>, %arg17: memref<22x4xf32, #tpu.memory_space<vmem>>, %arg18: memref<22x32xf32, #tpu.memory_space<vmem>>, %arg19: memref<20x32xf32, #tpu.memory_space<vmem>>, %arg20: memref<20x64xf32, #tpu.memory_space<vmem>>, %arg21: memref<18x64xf32, #tpu.memory_space<vmem>>, %arg22: memref<18x128xf32, #tpu.memory_space<vmem>>) attributes {dimension_semantics = [#tpu.dimension_semantics<parallel>], iteration_bounds = array<i64: 2>, scalar_prefetch = 0 : i64, scratch_operands = 6 : i64, tpu.core_type = #tpu.core_type<tc>, window_params = [{transform_indices = @transform_0, window_bounds = array<i64: 1, 16, 4>}, {pipeline_mode = #tpu.pipeline_mode<synchronous>, transform_indices = @transform_1, window_bounds = array<i64: 7, 4, 32>}, {pipeline_mode = #tpu.pipeline_mode<synchronous>, transform_indices = @transform_2, window_bounds = array<i64: 7, 32, 32>}, {pipeline_mode = #tpu.pipeline_mode<synchronous>, transform_indices = @transform_3, window_bounds = array<i64: 7, 32, 32>}, {pipeline_mode = #tpu.pipeline_mode<synchronous>, transform_indices = @transform_4, window_bounds = array<i64: 4, 32>}, {pipeline_mode = #tpu.pipeline_mode<synchronous>, transform_indices = @transform_5, window_bounds = array<i64: 5, 32, 64>}, {pipeline_mode = #tpu.pipeline_mode<synchronous>, transform_indices = @transform_6, window_bounds = array<i64: 5, 64, 64>}, {pipeline_mode = #tpu.pipeline_mode<synchronous>, transform_indices = @transform_7, window_bounds = array<i64: 5, 64, 64>}, {pipeline_mode = #tpu.pipeline_mode<synchronous>, transform_indices = @transform_8, window_bounds = array<i64: 32, 64>}, {pipeline_mode = #tpu.pipeline_mode<synchronous>, transform_indices = @transform_9, window_bounds = array<i64: 3, 64, 128>}, {pipeline_mode = #tpu.pipeline_mode<synchronous>, transform_indices = @transform_10, window_bounds = array<i64: 3, 128, 128>}, {pipeline_mode = #tpu.pipeline_mode<synchronous>, transform_indices = @transform_11, window_bounds = array<i64: 3, 128, 128>}, {pipeline_mode = #tpu.pipeline_mode<synchronous>, transform_indices = @transform_12, window_bounds = array<i64: 64, 128>}, {pipeline_mode = #tpu.pipeline_mode<synchronous>, transform_indices = @transform_13, window_bounds = array<i64: 3, 128, 4>}, {pipeline_mode = #tpu.pipeline_mode<synchronous>, transform_indices = @transform_14, window_bounds = array<i64: 13, 128>}, {transform_indices = @transform_15, window_bounds = array<i64: 1, 16, 4>}]} {
    %c0 = arith.constant 0 : index
    %c0_0 = arith.constant 0 : index
    %c0_1 = arith.constant 0 : index
    %0 = vector.load %arg1[%c0, %c0_0, %c0_1] : memref<1x16x4xf32, #tpu.memory_space<vmem>>, vector<1x16x4xf32>
    %1 = vector.shape_cast %0 : vector<1x16x4xf32> to vector<16x4xf32>
    %c0_2 = arith.constant 0 : index
    %c0_3 = arith.constant 0 : index
    %2 = vector.load %arg5[%c0_2, %c0_3] : memref<4x32xf32, #tpu.memory_space<vmem>>, vector<4x32xf32>
    %cst = arith.constant dense<0.000000e+00> : vector<16x32xf32>
    %3 = tpu.matmul %1, %2, %cst {dimension_numbers = #tpu.dot_dimension_numbers<[1], [0], [0], [1], [0, 0, 1, 1], [], []>} : vector<16x4xf32>, vector<4x32xf32>, vector<16x32xf32> -> vector<16x32xf32>
    %c3 = arith.constant 3 : index
    %c0_4 = arith.constant 0 : index
    %4 = vector.load %arg15[%c3, %c0_4] : memref<13x128xf32, #tpu.memory_space<vmem>>, vector<1x32xf32>
    %5 = vector.broadcast %4 : vector<1x32xf32> to vector<16x32xf32>
    %6 = arith.addf %3, %5 : vector<16x32xf32>
    %cst_5 = arith.constant 0.000000e+00 : f32
    %7 = vector.broadcast %cst_5 : f32 to vector<3x4xf32>
    %c0_6 = arith.constant 0 : index
    %c0_7 = arith.constant 0 : index
    %8 = vector.load %arg17[%c0_6, %c0_7] : memref<22x4xf32, #tpu.memory_space<vmem>>, vector<3x4xf32>
    tpu.vector_store %arg17[%c0_6, %c0_7], %7 {strides = array<i32>} : memref<22x4xf32, #tpu.memory_space<vmem>>, vector<3x4xf32>,
    %c19 = arith.constant 19 : index
    %c0_8 = arith.constant 0 : index
    %9 = vector.load %arg17[%c19, %c0_8] : memref<22x4xf32, #tpu.memory_space<vmem>>, vector<3x4xf32>
    tpu.vector_store %arg17[%c19, %c0_8], %7 {strides = array<i32>} : memref<22x4xf32, #tpu.memory_space<vmem>>, vector<3x4xf32>,
    %c3_9 = arith.constant 3 : index
    %c0_10 = arith.constant 0 : index
    %10 = vector.load %arg17[%c3_9, %c0_10] : memref<22x4xf32, #tpu.memory_space<vmem>>, vector<16x4xf32>
    tpu.vector_store %arg17[%c3_9, %c0_10], %1 {strides = array<i32>} : memref<22x4xf32, #tpu.memory_space<vmem>>, vector<16x4xf32>,
    %c0_11 = arith.constant 0 : index
    %c0_12 = arith.constant 0 : index
    %11 = vector.load %arg17[%c0_11, %c0_12] : memref<22x4xf32, #tpu.memory_space<vmem>>, vector<16x4xf32>
    %c0_13 = arith.constant 0 : index
    %c0_14 = arith.constant 0 : index
    %c0_15 = arith.constant 0 : index
    %12 = vector.load %arg2[%c0_13, %c0_14, %c0_15] : memref<7x4x32xf32, #tpu.memory_space<vmem>>, vector<1x4x32xf32>
    %13 = vector.shape_cast %12 : vector<1x4x32xf32> to vector<4x32xf32>
    %cst_16 = arith.constant dense<0.000000e+00> : vector<16x32xf32>
    %14 = tpu.matmul %11, %13, %cst_16 {dimension_numbers = #tpu.dot_dimension_numbers<[1], [0], [0], [1], [0, 0, 1, 1], [], []>} : vector<16x4xf32>, vector<4x32xf32>, vector<16x32xf32> -> vector<16x32xf32>
    %c1 = arith.constant 1 : index
    %c0_17 = arith.constant 0 : index
    %15 = vector.load %arg17[%c1, %c0_17] : memref<22x4xf32, #tpu.memory_space<vmem>>, vector<16x4xf32>
    %c1_18 = arith.constant 1 : index
    %c0_19 = arith.constant 0 : index
    %c0_20 = arith.constant 0 : index
    %16 = vector.load %arg2[%c1_18, %c0_19, %c0_20] : memref<7x4x32xf32, #tpu.memory_space<vmem>>, vector<1x4x32xf32>
    %17 = vector.shape_cast %16 : vector<1x4x32xf32> to vector<4x32xf32>
    %cst_21 = arith.constant dense<0.000000e+00> : vector<16x32xf32>
    %18 = tpu.matmul %15, %17, %cst_21 {dimension_numbers = #tpu.dot_dimension_numbers<[1], [0], [0], [1], [0, 0, 1, 1], [], []>} : vector<16x4xf32>, vector<4x32xf32>, vector<16x32xf32> -> vector<16x32xf32>
    %19 = arith.addf %14, %18 : vector<16x32xf32>
    %c2 = arith.constant 2 : index
    %c0_22 = arith.constant 0 : index
    %20 = vector.load %arg17[%c2, %c0_22] : memref<22x4xf32, #tpu.memory_space<vmem>>, vector<16x4xf32>
    %c2_23 = arith.constant 2 : index
    %c0_24 = arith.constant 0 : index
    %c0_25 = arith.constant 0 : index
    %21 = vector.load %arg2[%c2_23, %c0_24, %c0_25] : memref<7x4x32xf32, #tpu.memory_space<vmem>>, vector<1x4x32xf32>
    %22 = vector.shape_cast %21 : vector<1x4x32xf32> to vector<4x32xf32>
    %cst_26 = arith.constant dense<0.000000e+00> : vector<16x32xf32>
    %23 = tpu.matmul %20, %22, %cst_26 {dimension_numbers = #tpu.dot_dimension_numbers<[1], [0], [0], [1], [0, 0, 1, 1], [], []>} : vector<16x4xf32>, vector<4x32xf32>, vector<16x32xf32> -> vector<16x32xf32>
    %24 = arith.addf %19, %23 : vector<16x32xf32>
    %c3_27 = arith.constant 3 : index
    %c0_28 = arith.constant 0 : index
    %25 = vector.load %arg17[%c3_27, %c0_28] : memref<22x4xf32, #tpu.memory_space<vmem>>, vector<16x4xf32>
    %c3_29 = arith.constant 3 : index
    %c0_30 = arith.constant 0 : index
    %c0_31 = arith.constant 0 : index
    %26 = vector.load %arg2[%c3_29, %c0_30, %c0_31] : memref<7x4x32xf32, #tpu.memory_space<vmem>>, vector<1x4x32xf32>
    %27 = vector.shape_cast %26 : vector<1x4x32xf32> to vector<4x32xf32>
    %cst_32 = arith.constant dense<0.000000e+00> : vector<16x32xf32>
    %28 = tpu.matmul %25, %27, %cst_32 {dimension_numbers = #tpu.dot_dimension_numbers<[1], [0], [0], [1], [0, 0, 1, 1], [], []>} : vector<16x4xf32>, vector<4x32xf32>, vector<16x32xf32> -> vector<16x32xf32>
    %29 = arith.addf %24, %28 : vector<16x32xf32>
    %c4 = arith.constant 4 : index
    %c0_33 = arith.constant 0 : index
    %30 = vector.load %arg17[%c4, %c0_33] : memref<22x4xf32, #tpu.memory_space<vmem>>, vector<16x4xf32>
    %c4_34 = arith.constant 4 : index
    %c0_35 = arith.constant 0 : index
    %c0_36 = arith.constant 0 : index
    %31 = vector.load %arg2[%c4_34, %c0_35, %c0_36] : memref<7x4x32xf32, #tpu.memory_space<vmem>>, vector<1x4x32xf32>
    %32 = vector.shape_cast %31 : vector<1x4x32xf32> to vector<4x32xf32>
    %cst_37 = arith.constant dense<0.000000e+00> : vector<16x32xf32>
    %33 = tpu.matmul %30, %32, %cst_37 {dimension_numbers = #tpu.dot_dimension_numbers<[1], [0], [0], [1], [0, 0, 1, 1], [], []>} : vector<16x4xf32>, vector<4x32xf32>, vector<16x32xf32> -> vector<16x32xf32>
    %34 = arith.addf %29, %33 : vector<16x32xf32>
    %c5 = arith.constant 5 : index
    %c0_38 = arith.constant 0 : index
    %35 = vector.load %arg17[%c5, %c0_38] : memref<22x4xf32, #tpu.memory_space<vmem>>, vector<16x4xf32>
    %c5_39 = arith.constant 5 : index
    %c0_40 = arith.constant 0 : index
    %c0_41 = arith.constant 0 : index
    %36 = vector.load %arg2[%c5_39, %c0_40, %c0_41] : memref<7x4x32xf32, #tpu.memory_space<vmem>>, vector<1x4x32xf32>
    %37 = vector.shape_cast %36 : vector<1x4x32xf32> to vector<4x32xf32>
    %cst_42 = arith.constant dense<0.000000e+00> : vector<16x32xf32>
    %38 = tpu.matmul %35, %37, %cst_42 {dimension_numbers = #tpu.dot_dimension_numbers<[1], [0], [0], [1], [0, 0, 1, 1], [], []>} : vector<16x4xf32>, vector<4x32xf32>, vector<16x32xf32> -> vector<16x32xf32>
    %39 = arith.addf %34, %38 : vector<16x32xf32>
    %c6 = arith.constant 6 : index
    %c0_43 = arith.constant 0 : index
    %40 = vector.load %arg17[%c6, %c0_43] : memref<22x4xf32, #tpu.memory_space<vmem>>, vector<16x4xf32>
    %c6_44 = arith.constant 6 : index
    %c0_45 = arith.constant 0 : index
    %c0_46 = arith.constant 0 : index
    %41 = vector.load %arg2[%c6_44, %c0_45, %c0_46] : memref<7x4x32xf32, #tpu.memory_space<vmem>>, vector<1x4x32xf32>
    %42 = vector.shape_cast %41 : vector<1x4x32xf32> to vector<4x32xf32>
    %cst_47 = arith.constant dense<0.000000e+00> : vector<16x32xf32>
    %43 = tpu.matmul %40, %42, %cst_47 {dimension_numbers = #tpu.dot_dimension_numbers<[1], [0], [0], [1], [0, 0, 1, 1], [], []>} : vector<16x4xf32>, vector<4x32xf32>, vector<16x32xf32> -> vector<16x32xf32>
    %44 = arith.addf %39, %43 : vector<16x32xf32>
    %c0_48 = arith.constant 0 : index
    %c0_49 = arith.constant 0 : index
    %45 = vector.load %arg15[%c0_48, %c0_49] : memref<13x128xf32, #tpu.memory_space<vmem>>, vector<1x32xf32>
    %46 = vector.broadcast %45 : vector<1x32xf32> to vector<16x32xf32>
    %47 = arith.addf %44, %46 : vector<16x32xf32>
    %cst_50 = arith.constant 0.000000e+00 : f32
    %48 = vector.broadcast %cst_50 : f32 to vector<16x32xf32>
    %49 = arith.cmpf ogt, %47, %48 : vector<16x32xf32>
    %cst_51 = arith.constant 2.000000e-01 : f32
    %50 = vector.broadcast %cst_51 : f32 to vector<16x32xf32>
    %51 = arith.mulf %50, %47 : vector<16x32xf32>
    %52 = arith.select %49, %47, %51 : vector<16x32xi1>, vector<16x32xf32>
    %cst_52 = arith.constant 0.000000e+00 : f32
    %53 = vector.broadcast %cst_52 : f32 to vector<3x32xf32>
    %c0_53 = arith.constant 0 : index
    %c0_54 = arith.constant 0 : index
    %54 = vector.load %arg18[%c0_53, %c0_54] : memref<22x32xf32, #tpu.memory_space<vmem>>, vector<3x32xf32>
    tpu.vector_store %arg18[%c0_53, %c0_54], %53 {strides = array<i32>} : memref<22x32xf32, #tpu.memory_space<vmem>>, vector<3x32xf32>,
    %c19_55 = arith.constant 19 : index
    %c0_56 = arith.constant 0 : index
    %55 = vector.load %arg18[%c19_55, %c0_56] : memref<22x32xf32, #tpu.memory_space<vmem>>, vector<3x32xf32>
    tpu.vector_store %arg18[%c19_55, %c0_56], %53 {strides = array<i32>} : memref<22x32xf32, #tpu.memory_space<vmem>>, vector<3x32xf32>,
    %c3_57 = arith.constant 3 : index
    %c0_58 = arith.constant 0 : index
    %56 = vector.load %arg18[%c3_57, %c0_58] : memref<22x32xf32, #tpu.memory_space<vmem>>, vector<16x32xf32>
    tpu.vector_store %arg18[%c3_57, %c0_58], %52 {strides = array<i32>} : memref<22x32xf32, #tpu.memory_space<vmem>>, vector<16x32xf32>,
    %c0_59 = arith.constant 0 : index
    %c0_60 = arith.constant 0 : index
    %57 = vector.load %arg18[%c0_59, %c0_60] : memref<22x32xf32, #tpu.memory_space<vmem>>, vector<16x32xf32>
    %c0_61 = arith.constant 0 : index
    %c0_62 = arith.constant 0 : index
    %c0_63 = arith.constant 0 : index
    %58 = vector.load %arg3[%c0_61, %c0_62, %c0_63] : memref<7x32x32xf32, #tpu.memory_space<vmem>>, vector<1x32x32xf32>
    %59 = vector.shape_cast %58 : vector<1x32x32xf32> to vector<32x32xf32>
    %cst_64 = arith.constant dense<0.000000e+00> : vector<16x32xf32>
    %60 = tpu.matmul %57, %59, %cst_64 {dimension_numbers = #tpu.dot_dimension_numbers<[1], [0], [0], [1], [0, 0, 1, 1], [], []>} : vector<16x32xf32>, vector<32x32xf32>, vector<16x32xf32> -> vector<16x32xf32>
    %c1_65 = arith.constant 1 : index
    %c0_66 = arith.constant 0 : index
    %61 = vector.load %arg18[%c1_65, %c0_66] : memref<22x32xf32, #tpu.memory_space<vmem>>, vector<16x32xf32>
    %c1_67 = arith.constant 1 : index
    %c0_68 = arith.constant 0 : index
    %c0_69 = arith.constant 0 : index
    %62 = vector.load %arg3[%c1_67, %c0_68, %c0_69] : memref<7x32x32xf32, #tpu.memory_space<vmem>>, vector<1x32x32xf32>
    %63 = vector.shape_cast %62 : vector<1x32x32xf32> to vector<32x32xf32>
    %cst_70 = arith.constant dense<0.000000e+00> : vector<16x32xf32>
    %64 = tpu.matmul %61, %63, %cst_70 {dimension_numbers = #tpu.dot_dimension_numbers<[1], [0], [0], [1], [0, 0, 1, 1], [], []>} : vector<16x32xf32>, vector<32x32xf32>, vector<16x32xf32> -> vector<16x32xf32>
    %65 = arith.addf %60, %64 : vector<16x32xf32>
    %c2_71 = arith.constant 2 : index
    %c0_72 = arith.constant 0 : index
    %66 = vector.load %arg18[%c2_71, %c0_72] : memref<22x32xf32, #tpu.memory_space<vmem>>, vector<16x32xf32>
    %c2_73 = arith.constant 2 : index
    %c0_74 = arith.constant 0 : index
    %c0_75 = arith.constant 0 : index
    %67 = vector.load %arg3[%c2_73, %c0_74, %c0_75] : memref<7x32x32xf32, #tpu.memory_space<vmem>>, vector<1x32x32xf32>
    %68 = vector.shape_cast %67 : vector<1x32x32xf32> to vector<32x32xf32>
    %cst_76 = arith.constant dense<0.000000e+00> : vector<16x32xf32>
    %69 = tpu.matmul %66, %68, %cst_76 {dimension_numbers = #tpu.dot_dimension_numbers<[1], [0], [0], [1], [0, 0, 1, 1], [], []>} : vector<16x32xf32>, vector<32x32xf32>, vector<16x32xf32> -> vector<16x32xf32>
    %70 = arith.addf %65, %69 : vector<16x32xf32>
    %c3_77 = arith.constant 3 : index
    %c0_78 = arith.constant 0 : index
    %71 = vector.load %arg18[%c3_77, %c0_78] : memref<22x32xf32, #tpu.memory_space<vmem>>, vector<16x32xf32>
    %c3_79 = arith.constant 3 : index
    %c0_80 = arith.constant 0 : index
    %c0_81 = arith.constant 0 : index
    %72 = vector.load %arg3[%c3_79, %c0_80, %c0_81] : memref<7x32x32xf32, #tpu.memory_space<vmem>>, vector<1x32x32xf32>
    %73 = vector.shape_cast %72 : vector<1x32x32xf32> to vector<32x32xf32>
    %cst_82 = arith.constant dense<0.000000e+00> : vector<16x32xf32>
    %74 = tpu.matmul %71, %73, %cst_82 {dimension_numbers = #tpu.dot_dimension_numbers<[1], [0], [0], [1], [0, 0, 1, 1], [], []>} : vector<16x32xf32>, vector<32x32xf32>, vector<16x32xf32> -> vector<16x32xf32>
    %75 = arith.addf %70, %74 : vector<16x32xf32>
    %c4_83 = arith.constant 4 : index
    %c0_84 = arith.constant 0 : index
    %76 = vector.load %arg18[%c4_83, %c0_84] : memref<22x32xf32, #tpu.memory_space<vmem>>, vector<16x32xf32>
    %c4_85 = arith.constant 4 : index
    %c0_86 = arith.constant 0 : index
    %c0_87 = arith.constant 0 : index
    %77 = vector.load %arg3[%c4_85, %c0_86, %c0_87] : memref<7x32x32xf32, #tpu.memory_space<vmem>>, vector<1x32x32xf32>
    %78 = vector.shape_cast %77 : vector<1x32x32xf32> to vector<32x32xf32>
    %cst_88 = arith.constant dense<0.000000e+00> : vector<16x32xf32>
    %79 = tpu.matmul %76, %78, %cst_88 {dimension_numbers = #tpu.dot_dimension_numbers<[1], [0], [0], [1], [0, 0, 1, 1], [], []>} : vector<16x32xf32>, vector<32x32xf32>, vector<16x32xf32> -> vector<16x32xf32>
    %80 = arith.addf %75, %79 : vector<16x32xf32>
    %c5_89 = arith.constant 5 : index
    %c0_90 = arith.constant 0 : index
    %81 = vector.load %arg18[%c5_89, %c0_90] : memref<22x32xf32, #tpu.memory_space<vmem>>, vector<16x32xf32>
    %c5_91 = arith.constant 5 : index
    %c0_92 = arith.constant 0 : index
    %c0_93 = arith.constant 0 : index
    %82 = vector.load %arg3[%c5_91, %c0_92, %c0_93] : memref<7x32x32xf32, #tpu.memory_space<vmem>>, vector<1x32x32xf32>
    %83 = vector.shape_cast %82 : vector<1x32x32xf32> to vector<32x32xf32>
    %cst_94 = arith.constant dense<0.000000e+00> : vector<16x32xf32>
    %84 = tpu.matmul %81, %83, %cst_94 {dimension_numbers = #tpu.dot_dimension_numbers<[1], [0], [0], [1], [0, 0, 1, 1], [], []>} : vector<16x32xf32>, vector<32x32xf32>, vector<16x32xf32> -> vector<16x32xf32>
    %85 = arith.addf %80, %84 : vector<16x32xf32>
    %c6_95 = arith.constant 6 : index
    %c0_96 = arith.constant 0 : index
    %86 = vector.load %arg18[%c6_95, %c0_96] : memref<22x32xf32, #tpu.memory_space<vmem>>, vector<16x32xf32>
    %c6_97 = arith.constant 6 : index
    %c0_98 = arith.constant 0 : index
    %c0_99 = arith.constant 0 : index
    %87 = vector.load %arg3[%c6_97, %c0_98, %c0_99] : memref<7x32x32xf32, #tpu.memory_space<vmem>>, vector<1x32x32xf32>
    %88 = vector.shape_cast %87 : vector<1x32x32xf32> to vector<32x32xf32>
    %cst_100 = arith.constant dense<0.000000e+00> : vector<16x32xf32>
    %89 = tpu.matmul %86, %88, %cst_100 {dimension_numbers = #tpu.dot_dimension_numbers<[1], [0], [0], [1], [0, 0, 1, 1], [], []>} : vector<16x32xf32>, vector<32x32xf32>, vector<16x32xf32> -> vector<16x32xf32>
    %90 = arith.addf %85, %89 : vector<16x32xf32>
    %c1_101 = arith.constant 1 : index
    %c0_102 = arith.constant 0 : index
    %91 = vector.load %arg15[%c1_101, %c0_102] : memref<13x128xf32, #tpu.memory_space<vmem>>, vector<1x32xf32>
    %92 = vector.broadcast %91 : vector<1x32xf32> to vector<16x32xf32>
    %93 = arith.addf %90, %92 : vector<16x32xf32>
    %cst_103 = arith.constant 0.000000e+00 : f32
    %94 = vector.broadcast %cst_103 : f32 to vector<16x32xf32>
    %95 = arith.cmpf ogt, %93, %94 : vector<16x32xf32>
    %cst_104 = arith.constant 2.000000e-01 : f32
    %96 = vector.broadcast %cst_104 : f32 to vector<16x32xf32>
    %97 = arith.mulf %96, %93 : vector<16x32xf32>
    %98 = arith.select %95, %93, %97 : vector<16x32xi1>, vector<16x32xf32>
    %cst_105 = arith.constant 0.000000e+00 : f32
    %99 = vector.broadcast %cst_105 : f32 to vector<3x32xf32>
    %c0_106 = arith.constant 0 : index
    %c0_107 = arith.constant 0 : index
    %100 = vector.load %arg18[%c0_106, %c0_107] : memref<22x32xf32, #tpu.memory_space<vmem>>, vector<3x32xf32>
    tpu.vector_store %arg18[%c0_106, %c0_107], %99 {strides = array<i32>} : memref<22x32xf32, #tpu.memory_space<vmem>>, vector<3x32xf32>,
    %c19_108 = arith.constant 19 : index
    %c0_109 = arith.constant 0 : index
    %101 = vector.load %arg18[%c19_108, %c0_109] : memref<22x32xf32, #tpu.memory_space<vmem>>, vector<3x32xf32>
    tpu.vector_store %arg18[%c19_108, %c0_109], %99 {strides = array<i32>} : memref<22x32xf32, #tpu.memory_space<vmem>>, vector<3x32xf32>,
    %c3_110 = arith.constant 3 : index
    %c0_111 = arith.constant 0 : index
    %102 = vector.load %arg18[%c3_110, %c0_111] : memref<22x32xf32, #tpu.memory_space<vmem>>, vector<16x32xf32>
    tpu.vector_store %arg18[%c3_110, %c0_111], %98 {strides = array<i32>} : memref<22x32xf32, #tpu.memory_space<vmem>>, vector<16x32xf32>,
    %c0_112 = arith.constant 0 : index
    %c0_113 = arith.constant 0 : index
    %103 = vector.load %arg18[%c0_112, %c0_113] : memref<22x32xf32, #tpu.memory_space<vmem>>, vector<16x32xf32>
    %c0_114 = arith.constant 0 : index
    %c0_115 = arith.constant 0 : index
    %c0_116 = arith.constant 0 : index
    %104 = vector.load %arg4[%c0_114, %c0_115, %c0_116] : memref<7x32x32xf32, #tpu.memory_space<vmem>>, vector<1x32x32xf32>
    %105 = vector.shape_cast %104 : vector<1x32x32xf32> to vector<32x32xf32>
    %cst_117 = arith.constant dense<0.000000e+00> : vector<16x32xf32>
    %106 = tpu.matmul %103, %105, %cst_117 {dimension_numbers = #tpu.dot_dimension_numbers<[1], [0], [0], [1], [0, 0, 1, 1], [], []>} : vector<16x32xf32>, vector<32x32xf32>, vector<16x32xf32> -> vector<16x32xf32>
    %c1_118 = arith.constant 1 : index
    %c0_119 = arith.constant 0 : index
    %107 = vector.load %arg18[%c1_118, %c0_119] : memref<22x32xf32, #tpu.memory_space<vmem>>, vector<16x32xf32>
    %c1_120 = arith.constant 1 : index
    %c0_121 = arith.constant 0 : index
    %c0_122 = arith.constant 0 : index
    %108 = vector.load %arg4[%c1_120, %c0_121, %c0_122] : memref<7x32x32xf32, #tpu.memory_space<vmem>>, vector<1x32x32xf32>
    %109 = vector.shape_cast %108 : vector<1x32x32xf32> to vector<32x32xf32>
    %cst_123 = arith.constant dense<0.000000e+00> : vector<16x32xf32>
    %110 = tpu.matmul %107, %109, %cst_123 {dimension_numbers = #tpu.dot_dimension_numbers<[1], [0], [0], [1], [0, 0, 1, 1], [], []>} : vector<16x32xf32>, vector<32x32xf32>, vector<16x32xf32> -> vector<16x32xf32>
    %111 = arith.addf %106, %110 : vector<16x32xf32>
    %c2_124 = arith.constant 2 : index
    %c0_125 = arith.constant 0 : index
    %112 = vector.load %arg18[%c2_124, %c0_125] : memref<22x32xf32, #tpu.memory_space<vmem>>, vector<16x32xf32>
    %c2_126 = arith.constant 2 : index
    %c0_127 = arith.constant 0 : index
    %c0_128 = arith.constant 0 : index
    %113 = vector.load %arg4[%c2_126, %c0_127, %c0_128] : memref<7x32x32xf32, #tpu.memory_space<vmem>>, vector<1x32x32xf32>
    %114 = vector.shape_cast %113 : vector<1x32x32xf32> to vector<32x32xf32>
    %cst_129 = arith.constant dense<0.000000e+00> : vector<16x32xf32>
    %115 = tpu.matmul %112, %114, %cst_129 {dimension_numbers = #tpu.dot_dimension_numbers<[1], [0], [0], [1], [0, 0, 1, 1], [], []>} : vector<16x32xf32>, vector<32x32xf32>, vector<16x32xf32> -> vector<16x32xf32>
    %116 = arith.addf %111, %115 : vector<16x32xf32>
    %c3_130 = arith.constant 3 : index
    %c0_131 = arith.constant 0 : index
    %117 = vector.load %arg18[%c3_130, %c0_131] : memref<22x32xf32, #tpu.memory_space<vmem>>, vector<16x32xf32>
    %c3_132 = arith.constant 3 : index
    %c0_133 = arith.constant 0 : index
    %c0_134 = arith.constant 0 : index
    %118 = vector.load %arg4[%c3_132, %c0_133, %c0_134] : memref<7x32x32xf32, #tpu.memory_space<vmem>>, vector<1x32x32xf32>
    %119 = vector.shape_cast %118 : vector<1x32x32xf32> to vector<32x32xf32>
    %cst_135 = arith.constant dense<0.000000e+00> : vector<16x32xf32>
    %120 = tpu.matmul %117, %119, %cst_135 {dimension_numbers = #tpu.dot_dimension_numbers<[1], [0], [0], [1], [0, 0, 1, 1], [], []>} : vector<16x32xf32>, vector<32x32xf32>, vector<16x32xf32> -> vector<16x32xf32>
    %121 = arith.addf %116, %120 : vector<16x32xf32>
    %c4_136 = arith.constant 4 : index
    %c0_137 = arith.constant 0 : index
    %122 = vector.load %arg18[%c4_136, %c0_137] : memref<22x32xf32, #tpu.memory_space<vmem>>, vector<16x32xf32>
    %c4_138 = arith.constant 4 : index
    %c0_139 = arith.constant 0 : index
    %c0_140 = arith.constant 0 : index
    %123 = vector.load %arg4[%c4_138, %c0_139, %c0_140] : memref<7x32x32xf32, #tpu.memory_space<vmem>>, vector<1x32x32xf32>
    %124 = vector.shape_cast %123 : vector<1x32x32xf32> to vector<32x32xf32>
    %cst_141 = arith.constant dense<0.000000e+00> : vector<16x32xf32>
    %125 = tpu.matmul %122, %124, %cst_141 {dimension_numbers = #tpu.dot_dimension_numbers<[1], [0], [0], [1], [0, 0, 1, 1], [], []>} : vector<16x32xf32>, vector<32x32xf32>, vector<16x32xf32> -> vector<16x32xf32>
    %126 = arith.addf %121, %125 : vector<16x32xf32>
    %c5_142 = arith.constant 5 : index
    %c0_143 = arith.constant 0 : index
    %127 = vector.load %arg18[%c5_142, %c0_143] : memref<22x32xf32, #tpu.memory_space<vmem>>, vector<16x32xf32>
    %c5_144 = arith.constant 5 : index
    %c0_145 = arith.constant 0 : index
    %c0_146 = arith.constant 0 : index
    %128 = vector.load %arg4[%c5_144, %c0_145, %c0_146] : memref<7x32x32xf32, #tpu.memory_space<vmem>>, vector<1x32x32xf32>
    %129 = vector.shape_cast %128 : vector<1x32x32xf32> to vector<32x32xf32>
    %cst_147 = arith.constant dense<0.000000e+00> : vector<16x32xf32>
    %130 = tpu.matmul %127, %129, %cst_147 {dimension_numbers = #tpu.dot_dimension_numbers<[1], [0], [0], [1], [0, 0, 1, 1], [], []>} : vector<16x32xf32>, vector<32x32xf32>, vector<16x32xf32> -> vector<16x32xf32>
    %131 = arith.addf %126, %130 : vector<16x32xf32>
    %c6_148 = arith.constant 6 : index
    %c0_149 = arith.constant 0 : index
    %132 = vector.load %arg18[%c6_148, %c0_149] : memref<22x32xf32, #tpu.memory_space<vmem>>, vector<16x32xf32>
    %c6_150 = arith.constant 6 : index
    %c0_151 = arith.constant 0 : index
    %c0_152 = arith.constant 0 : index
    %133 = vector.load %arg4[%c6_150, %c0_151, %c0_152] : memref<7x32x32xf32, #tpu.memory_space<vmem>>, vector<1x32x32xf32>
    %134 = vector.shape_cast %133 : vector<1x32x32xf32> to vector<32x32xf32>
    %cst_153 = arith.constant dense<0.000000e+00> : vector<16x32xf32>
    %135 = tpu.matmul %132, %134, %cst_153 {dimension_numbers = #tpu.dot_dimension_numbers<[1], [0], [0], [1], [0, 0, 1, 1], [], []>} : vector<16x32xf32>, vector<32x32xf32>, vector<16x32xf32> -> vector<16x32xf32>
    %136 = arith.addf %131, %135 : vector<16x32xf32>
    %c2_154 = arith.constant 2 : index
    %c0_155 = arith.constant 0 : index
    %137 = vector.load %arg15[%c2_154, %c0_155] : memref<13x128xf32, #tpu.memory_space<vmem>>, vector<1x32xf32>
    %138 = vector.broadcast %137 : vector<1x32xf32> to vector<16x32xf32>
    %139 = arith.addf %136, %138 : vector<16x32xf32>
    %140 = arith.addf %139, %6 : vector<16x32xf32>
    %cst_156 = arith.constant 0.000000e+00 : f32
    %141 = vector.broadcast %cst_156 : f32 to vector<16x32xf32>
    %142 = arith.cmpf ogt, %140, %141 : vector<16x32xf32>
    %cst_157 = arith.constant 2.000000e-01 : f32
    %143 = vector.broadcast %cst_157 : f32 to vector<16x32xf32>
    %144 = arith.mulf %143, %140 : vector<16x32xf32>
    %145 = arith.select %142, %140, %144 : vector<16x32xi1>, vector<16x32xf32>
    %c0_158 = arith.constant 0 : index
    %c0_159 = arith.constant 0 : index
    %146 = vector.load %arg9[%c0_158, %c0_159] : memref<32x64xf32, #tpu.memory_space<vmem>>, vector<32x64xf32>
    %cst_160 = arith.constant dense<0.000000e+00> : vector<16x64xf32>
    %147 = tpu.matmul %145, %146, %cst_160 {dimension_numbers = #tpu.dot_dimension_numbers<[1], [0], [0], [1], [0, 0, 1, 1], [], []>} : vector<16x32xf32>, vector<32x64xf32>, vector<16x64xf32> -> vector<16x64xf32>
    %c7 = arith.constant 7 : index
    %c0_161 = arith.constant 0 : index
    %148 = vector.load %arg15[%c7, %c0_161] : memref<13x128xf32, #tpu.memory_space<vmem>>, vector<1x64xf32>
    %149 = vector.broadcast %148 : vector<1x64xf32> to vector<16x64xf32>
    %150 = arith.addf %147, %149 : vector<16x64xf32>
    %cst_162 = arith.constant 0.000000e+00 : f32
    %151 = vector.broadcast %cst_162 : f32 to vector<2x32xf32>
    %c0_163 = arith.constant 0 : index
    %c0_164 = arith.constant 0 : index
    %152 = vector.load %arg19[%c0_163, %c0_164] : memref<20x32xf32, #tpu.memory_space<vmem>>, vector<2x32xf32>
    tpu.vector_store %arg19[%c0_163, %c0_164], %151 {strides = array<i32>} : memref<20x32xf32, #tpu.memory_space<vmem>>, vector<2x32xf32>,
    %c18 = arith.constant 18 : index
    %c0_165 = arith.constant 0 : index
    %153 = vector.load %arg19[%c18, %c0_165] : memref<20x32xf32, #tpu.memory_space<vmem>>, vector<2x32xf32>
    tpu.vector_store %arg19[%c18, %c0_165], %151 {strides = array<i32>} : memref<20x32xf32, #tpu.memory_space<vmem>>, vector<2x32xf32>,
    %c2_166 = arith.constant 2 : index
    %c0_167 = arith.constant 0 : index
    %154 = vector.load %arg19[%c2_166, %c0_167] : memref<20x32xf32, #tpu.memory_space<vmem>>, vector<16x32xf32>
    tpu.vector_store %arg19[%c2_166, %c0_167], %145 {strides = array<i32>} : memref<20x32xf32, #tpu.memory_space<vmem>>, vector<16x32xf32>,
    %c0_168 = arith.constant 0 : index
    %c0_169 = arith.constant 0 : index
    %155 = vector.load %arg19[%c0_168, %c0_169] : memref<20x32xf32, #tpu.memory_space<vmem>>, vector<16x32xf32>
    %c0_170 = arith.constant 0 : index
    %c0_171 = arith.constant 0 : index
    %c0_172 = arith.constant 0 : index
    %156 = vector.load %arg6[%c0_170, %c0_171, %c0_172] : memref<5x32x64xf32, #tpu.memory_space<vmem>>, vector<1x32x64xf32>
    %157 = vector.shape_cast %156 : vector<1x32x64xf32> to vector<32x64xf32>
    %cst_173 = arith.constant dense<0.000000e+00> : vector<16x64xf32>
    %158 = tpu.matmul %155, %157, %cst_173 {dimension_numbers = #tpu.dot_dimension_numbers<[1], [0], [0], [1], [0, 0, 1, 1], [], []>} : vector<16x32xf32>, vector<32x64xf32>, vector<16x64xf32> -> vector<16x64xf32>
    %c1_174 = arith.constant 1 : index
    %c0_175 = arith.constant 0 : index
    %159 = vector.load %arg19[%c1_174, %c0_175] : memref<20x32xf32, #tpu.memory_space<vmem>>, vector<16x32xf32>
    %c1_176 = arith.constant 1 : index
    %c0_177 = arith.constant 0 : index
    %c0_178 = arith.constant 0 : index
    %160 = vector.load %arg6[%c1_176, %c0_177, %c0_178] : memref<5x32x64xf32, #tpu.memory_space<vmem>>, vector<1x32x64xf32>
    %161 = vector.shape_cast %160 : vector<1x32x64xf32> to vector<32x64xf32>
    %cst_179 = arith.constant dense<0.000000e+00> : vector<16x64xf32>
    %162 = tpu.matmul %159, %161, %cst_179 {dimension_numbers = #tpu.dot_dimension_numbers<[1], [0], [0], [1], [0, 0, 1, 1], [], []>} : vector<16x32xf32>, vector<32x64xf32>, vector<16x64xf32> -> vector<16x64xf32>
    %163 = arith.addf %158, %162 : vector<16x64xf32>
    %c2_180 = arith.constant 2 : index
    %c0_181 = arith.constant 0 : index
    %164 = vector.load %arg19[%c2_180, %c0_181] : memref<20x32xf32, #tpu.memory_space<vmem>>, vector<16x32xf32>
    %c2_182 = arith.constant 2 : index
    %c0_183 = arith.constant 0 : index
    %c0_184 = arith.constant 0 : index
    %165 = vector.load %arg6[%c2_182, %c0_183, %c0_184] : memref<5x32x64xf32, #tpu.memory_space<vmem>>, vector<1x32x64xf32>
    %166 = vector.shape_cast %165 : vector<1x32x64xf32> to vector<32x64xf32>
    %cst_185 = arith.constant dense<0.000000e+00> : vector<16x64xf32>
    %167 = tpu.matmul %164, %166, %cst_185 {dimension_numbers = #tpu.dot_dimension_numbers<[1], [0], [0], [1], [0, 0, 1, 1], [], []>} : vector<16x32xf32>, vector<32x64xf32>, vector<16x64xf32> -> vector<16x64xf32>
    %168 = arith.addf %163, %167 : vector<16x64xf32>
    %c3_186 = arith.constant 3 : index
    %c0_187 = arith.constant 0 : index
    %169 = vector.load %arg19[%c3_186, %c0_187] : memref<20x32xf32, #tpu.memory_space<vmem>>, vector<16x32xf32>
    %c3_188 = arith.constant 3 : index
    %c0_189 = arith.constant 0 : index
    %c0_190 = arith.constant 0 : index
    %170 = vector.load %arg6[%c3_188, %c0_189, %c0_190] : memref<5x32x64xf32, #tpu.memory_space<vmem>>, vector<1x32x64xf32>
    %171 = vector.shape_cast %170 : vector<1x32x64xf32> to vector<32x64xf32>
    %cst_191 = arith.constant dense<0.000000e+00> : vector<16x64xf32>
    %172 = tpu.matmul %169, %171, %cst_191 {dimension_numbers = #tpu.dot_dimension_numbers<[1], [0], [0], [1], [0, 0, 1, 1], [], []>} : vector<16x32xf32>, vector<32x64xf32>, vector<16x64xf32> -> vector<16x64xf32>
    %173 = arith.addf %168, %172 : vector<16x64xf32>
    %c4_192 = arith.constant 4 : index
    %c0_193 = arith.constant 0 : index
    %174 = vector.load %arg19[%c4_192, %c0_193] : memref<20x32xf32, #tpu.memory_space<vmem>>, vector<16x32xf32>
    %c4_194 = arith.constant 4 : index
    %c0_195 = arith.constant 0 : index
    %c0_196 = arith.constant 0 : index
    %175 = vector.load %arg6[%c4_194, %c0_195, %c0_196] : memref<5x32x64xf32, #tpu.memory_space<vmem>>, vector<1x32x64xf32>
    %176 = vector.shape_cast %175 : vector<1x32x64xf32> to vector<32x64xf32>
    %cst_197 = arith.constant dense<0.000000e+00> : vector<16x64xf32>
    %177 = tpu.matmul %174, %176, %cst_197 {dimension_numbers = #tpu.dot_dimension_numbers<[1], [0], [0], [1], [0, 0, 1, 1], [], []>} : vector<16x32xf32>, vector<32x64xf32>, vector<16x64xf32> -> vector<16x64xf32>
    %178 = arith.addf %173, %177 : vector<16x64xf32>
    %c4_198 = arith.constant 4 : index
    %c0_199 = arith.constant 0 : index
    %179 = vector.load %arg15[%c4_198, %c0_199] : memref<13x128xf32, #tpu.memory_space<vmem>>, vector<1x64xf32>
    %180 = vector.broadcast %179 : vector<1x64xf32> to vector<16x64xf32>
    %181 = arith.addf %178, %180 : vector<16x64xf32>
    %cst_200 = arith.constant 0.000000e+00 : f32
    %182 = vector.broadcast %cst_200 : f32 to vector<16x64xf32>
    %183 = arith.cmpf ogt, %181, %182 : vector<16x64xf32>
    %cst_201 = arith.constant 2.000000e-01 : f32
    %184 = vector.broadcast %cst_201 : f32 to vector<16x64xf32>
    %185 = arith.mulf %184, %181 : vector<16x64xf32>
    %186 = arith.select %183, %181, %185 : vector<16x64xi1>, vector<16x64xf32>
    %cst_202 = arith.constant 0.000000e+00 : f32
    %187 = vector.broadcast %cst_202 : f32 to vector<2x64xf32>
    %c0_203 = arith.constant 0 : index
    %c0_204 = arith.constant 0 : index
    %188 = vector.load %arg20[%c0_203, %c0_204] : memref<20x64xf32, #tpu.memory_space<vmem>>, vector<2x64xf32>
    tpu.vector_store %arg20[%c0_203, %c0_204], %187 {strides = array<i32>} : memref<20x64xf32, #tpu.memory_space<vmem>>, vector<2x64xf32>,
    %c18_205 = arith.constant 18 : index
    %c0_206 = arith.constant 0 : index
    %189 = vector.load %arg20[%c18_205, %c0_206] : memref<20x64xf32, #tpu.memory_space<vmem>>, vector<2x64xf32>
    tpu.vector_store %arg20[%c18_205, %c0_206], %187 {strides = array<i32>} : memref<20x64xf32, #tpu.memory_space<vmem>>, vector<2x64xf32>,
    %c2_207 = arith.constant 2 : index
    %c0_208 = arith.constant 0 : index
    %190 = vector.load %arg20[%c2_207, %c0_208] : memref<20x64xf32, #tpu.memory_space<vmem>>, vector<16x64xf32>
    tpu.vector_store %arg20[%c2_207, %c0_208], %186 {strides = array<i32>} : memref<20x64xf32, #tpu.memory_space<vmem>>, vector<16x64xf32>,
    %c0_209 = arith.constant 0 : index
    %c0_210 = arith.constant 0 : index
    %191 = vector.load %arg20[%c0_209, %c0_210] : memref<20x64xf32, #tpu.memory_space<vmem>>, vector<16x64xf32>
    %c0_211 = arith.constant 0 : index
    %c0_212 = arith.constant 0 : index
    %c0_213 = arith.constant 0 : index
    %192 = vector.load %arg7[%c0_211, %c0_212, %c0_213] : memref<5x64x64xf32, #tpu.memory_space<vmem>>, vector<1x64x64xf32>
    %193 = vector.shape_cast %192 : vector<1x64x64xf32> to vector<64x64xf32>
    %cst_214 = arith.constant dense<0.000000e+00> : vector<16x64xf32>
    %194 = tpu.matmul %191, %193, %cst_214 {dimension_numbers = #tpu.dot_dimension_numbers<[1], [0], [0], [1], [0, 0, 1, 1], [], []>} : vector<16x64xf32>, vector<64x64xf32>, vector<16x64xf32> -> vector<16x64xf32>
    %c1_215 = arith.constant 1 : index
    %c0_216 = arith.constant 0 : index
    %195 = vector.load %arg20[%c1_215, %c0_216] : memref<20x64xf32, #tpu.memory_space<vmem>>, vector<16x64xf32>
    %c1_217 = arith.constant 1 : index
    %c0_218 = arith.constant 0 : index
    %c0_219 = arith.constant 0 : index
    %196 = vector.load %arg7[%c1_217, %c0_218, %c0_219] : memref<5x64x64xf32, #tpu.memory_space<vmem>>, vector<1x64x64xf32>
    %197 = vector.shape_cast %196 : vector<1x64x64xf32> to vector<64x64xf32>
    %cst_220 = arith.constant dense<0.000000e+00> : vector<16x64xf32>
    %198 = tpu.matmul %195, %197, %cst_220 {dimension_numbers = #tpu.dot_dimension_numbers<[1], [0], [0], [1], [0, 0, 1, 1], [], []>} : vector<16x64xf32>, vector<64x64xf32>, vector<16x64xf32> -> vector<16x64xf32>
    %199 = arith.addf %194, %198 : vector<16x64xf32>
    %c2_221 = arith.constant 2 : index
    %c0_222 = arith.constant 0 : index
    %200 = vector.load %arg20[%c2_221, %c0_222] : memref<20x64xf32, #tpu.memory_space<vmem>>, vector<16x64xf32>
    %c2_223 = arith.constant 2 : index
    %c0_224 = arith.constant 0 : index
    %c0_225 = arith.constant 0 : index
    %201 = vector.load %arg7[%c2_223, %c0_224, %c0_225] : memref<5x64x64xf32, #tpu.memory_space<vmem>>, vector<1x64x64xf32>
    %202 = vector.shape_cast %201 : vector<1x64x64xf32> to vector<64x64xf32>
    %cst_226 = arith.constant dense<0.000000e+00> : vector<16x64xf32>
    %203 = tpu.matmul %200, %202, %cst_226 {dimension_numbers = #tpu.dot_dimension_numbers<[1], [0], [0], [1], [0, 0, 1, 1], [], []>} : vector<16x64xf32>, vector<64x64xf32>, vector<16x64xf32> -> vector<16x64xf32>
    %204 = arith.addf %199, %203 : vector<16x64xf32>
    %c3_227 = arith.constant 3 : index
    %c0_228 = arith.constant 0 : index
    %205 = vector.load %arg20[%c3_227, %c0_228] : memref<20x64xf32, #tpu.memory_space<vmem>>, vector<16x64xf32>
    %c3_229 = arith.constant 3 : index
    %c0_230 = arith.constant 0 : index
    %c0_231 = arith.constant 0 : index
    %206 = vector.load %arg7[%c3_229, %c0_230, %c0_231] : memref<5x64x64xf32, #tpu.memory_space<vmem>>, vector<1x64x64xf32>
    %207 = vector.shape_cast %206 : vector<1x64x64xf32> to vector<64x64xf32>
    %cst_232 = arith.constant dense<0.000000e+00> : vector<16x64xf32>
    %208 = tpu.matmul %205, %207, %cst_232 {dimension_numbers = #tpu.dot_dimension_numbers<[1], [0], [0], [1], [0, 0, 1, 1], [], []>} : vector<16x64xf32>, vector<64x64xf32>, vector<16x64xf32> -> vector<16x64xf32>
    %209 = arith.addf %204, %208 : vector<16x64xf32>
    %c4_233 = arith.constant 4 : index
    %c0_234 = arith.constant 0 : index
    %210 = vector.load %arg20[%c4_233, %c0_234] : memref<20x64xf32, #tpu.memory_space<vmem>>, vector<16x64xf32>
    %c4_235 = arith.constant 4 : index
    %c0_236 = arith.constant 0 : index
    %c0_237 = arith.constant 0 : index
    %211 = vector.load %arg7[%c4_235, %c0_236, %c0_237] : memref<5x64x64xf32, #tpu.memory_space<vmem>>, vector<1x64x64xf32>
    %212 = vector.shape_cast %211 : vector<1x64x64xf32> to vector<64x64xf32>
    %cst_238 = arith.constant dense<0.000000e+00> : vector<16x64xf32>
    %213 = tpu.matmul %210, %212, %cst_238 {dimension_numbers = #tpu.dot_dimension_numbers<[1], [0], [0], [1], [0, 0, 1, 1], [], []>} : vector<16x64xf32>, vector<64x64xf32>, vector<16x64xf32> -> vector<16x64xf32>
    %214 = arith.addf %209, %213 : vector<16x64xf32>
    %c5_239 = arith.constant 5 : index
    %c0_240 = arith.constant 0 : index
    %215 = vector.load %arg15[%c5_239, %c0_240] : memref<13x128xf32, #tpu.memory_space<vmem>>, vector<1x64xf32>
    %216 = vector.broadcast %215 : vector<1x64xf32> to vector<16x64xf32>
    %217 = arith.addf %214, %216 : vector<16x64xf32>
    %cst_241 = arith.constant 0.000000e+00 : f32
    %218 = vector.broadcast %cst_241 : f32 to vector<16x64xf32>
    %219 = arith.cmpf ogt, %217, %218 : vector<16x64xf32>
    %cst_242 = arith.constant 2.000000e-01 : f32
    %220 = vector.broadcast %cst_242 : f32 to vector<16x64xf32>
    %221 = arith.mulf %220, %217 : vector<16x64xf32>
    %222 = arith.select %219, %217, %221 : vector<16x64xi1>, vector<16x64xf32>
    %cst_243 = arith.constant 0.000000e+00 : f32
    %223 = vector.broadcast %cst_243 : f32 to vector<2x64xf32>
    %c0_244 = arith.constant 0 : index
    %c0_245 = arith.constant 0 : index
    %224 = vector.load %arg20[%c0_244, %c0_245] : memref<20x64xf32, #tpu.memory_space<vmem>>, vector<2x64xf32>
    tpu.vector_store %arg20[%c0_244, %c0_245], %223 {strides = array<i32>} : memref<20x64xf32, #tpu.memory_space<vmem>>, vector<2x64xf32>,
    %c18_246 = arith.constant 18 : index
    %c0_247 = arith.constant 0 : index
    %225 = vector.load %arg20[%c18_246, %c0_247] : memref<20x64xf32, #tpu.memory_space<vmem>>, vector<2x64xf32>
    tpu.vector_store %arg20[%c18_246, %c0_247], %223 {strides = array<i32>} : memref<20x64xf32, #tpu.memory_space<vmem>>, vector<2x64xf32>,
    %c2_248 = arith.constant 2 : index
    %c0_249 = arith.constant 0 : index
    %226 = vector.load %arg20[%c2_248, %c0_249] : memref<20x64xf32, #tpu.memory_space<vmem>>, vector<16x64xf32>
    tpu.vector_store %arg20[%c2_248, %c0_249], %222 {strides = array<i32>} : memref<20x64xf32, #tpu.memory_space<vmem>>, vector<16x64xf32>,
    %c0_250 = arith.constant 0 : index
    %c0_251 = arith.constant 0 : index
    %227 = vector.load %arg20[%c0_250, %c0_251] : memref<20x64xf32, #tpu.memory_space<vmem>>, vector<16x64xf32>
    %c0_252 = arith.constant 0 : index
    %c0_253 = arith.constant 0 : index
    %c0_254 = arith.constant 0 : index
    %228 = vector.load %arg8[%c0_252, %c0_253, %c0_254] : memref<5x64x64xf32, #tpu.memory_space<vmem>>, vector<1x64x64xf32>
    %229 = vector.shape_cast %228 : vector<1x64x64xf32> to vector<64x64xf32>
    %cst_255 = arith.constant dense<0.000000e+00> : vector<16x64xf32>
    %230 = tpu.matmul %227, %229, %cst_255 {dimension_numbers = #tpu.dot_dimension_numbers<[1], [0], [0], [1], [0, 0, 1, 1], [], []>} : vector<16x64xf32>, vector<64x64xf32>, vector<16x64xf32> -> vector<16x64xf32>
    %c1_256 = arith.constant 1 : index
    %c0_257 = arith.constant 0 : index
    %231 = vector.load %arg20[%c1_256, %c0_257] : memref<20x64xf32, #tpu.memory_space<vmem>>, vector<16x64xf32>
    %c1_258 = arith.constant 1 : index
    %c0_259 = arith.constant 0 : index
    %c0_260 = arith.constant 0 : index
    %232 = vector.load %arg8[%c1_258, %c0_259, %c0_260] : memref<5x64x64xf32, #tpu.memory_space<vmem>>, vector<1x64x64xf32>
    %233 = vector.shape_cast %232 : vector<1x64x64xf32> to vector<64x64xf32>
    %cst_261 = arith.constant dense<0.000000e+00> : vector<16x64xf32>
    %234 = tpu.matmul %231, %233, %cst_261 {dimension_numbers = #tpu.dot_dimension_numbers<[1], [0], [0], [1], [0, 0, 1, 1], [], []>} : vector<16x64xf32>, vector<64x64xf32>, vector<16x64xf32> -> vector<16x64xf32>
    %235 = arith.addf %230, %234 : vector<16x64xf32>
    %c2_262 = arith.constant 2 : index
    %c0_263 = arith.constant 0 : index
    %236 = vector.load %arg20[%c2_262, %c0_263] : memref<20x64xf32, #tpu.memory_space<vmem>>, vector<16x64xf32>
    %c2_264 = arith.constant 2 : index
    %c0_265 = arith.constant 0 : index
    %c0_266 = arith.constant 0 : index
    %237 = vector.load %arg8[%c2_264, %c0_265, %c0_266] : memref<5x64x64xf32, #tpu.memory_space<vmem>>, vector<1x64x64xf32>
    %238 = vector.shape_cast %237 : vector<1x64x64xf32> to vector<64x64xf32>
    %cst_267 = arith.constant dense<0.000000e+00> : vector<16x64xf32>
    %239 = tpu.matmul %236, %238, %cst_267 {dimension_numbers = #tpu.dot_dimension_numbers<[1], [0], [0], [1], [0, 0, 1, 1], [], []>} : vector<16x64xf32>, vector<64x64xf32>, vector<16x64xf32> -> vector<16x64xf32>
    %240 = arith.addf %235, %239 : vector<16x64xf32>
    %c3_268 = arith.constant 3 : index
    %c0_269 = arith.constant 0 : index
    %241 = vector.load %arg20[%c3_268, %c0_269] : memref<20x64xf32, #tpu.memory_space<vmem>>, vector<16x64xf32>
    %c3_270 = arith.constant 3 : index
    %c0_271 = arith.constant 0 : index
    %c0_272 = arith.constant 0 : index
    %242 = vector.load %arg8[%c3_270, %c0_271, %c0_272] : memref<5x64x64xf32, #tpu.memory_space<vmem>>, vector<1x64x64xf32>
    %243 = vector.shape_cast %242 : vector<1x64x64xf32> to vector<64x64xf32>
    %cst_273 = arith.constant dense<0.000000e+00> : vector<16x64xf32>
    %244 = tpu.matmul %241, %243, %cst_273 {dimension_numbers = #tpu.dot_dimension_numbers<[1], [0], [0], [1], [0, 0, 1, 1], [], []>} : vector<16x64xf32>, vector<64x64xf32>, vector<16x64xf32> -> vector<16x64xf32>
    %245 = arith.addf %240, %244 : vector<16x64xf32>
    %c4_274 = arith.constant 4 : index
    %c0_275 = arith.constant 0 : index
    %246 = vector.load %arg20[%c4_274, %c0_275] : memref<20x64xf32, #tpu.memory_space<vmem>>, vector<16x64xf32>
    %c4_276 = arith.constant 4 : index
    %c0_277 = arith.constant 0 : index
    %c0_278 = arith.constant 0 : index
    %247 = vector.load %arg8[%c4_276, %c0_277, %c0_278] : memref<5x64x64xf32, #tpu.memory_space<vmem>>, vector<1x64x64xf32>
    %248 = vector.shape_cast %247 : vector<1x64x64xf32> to vector<64x64xf32>
    %cst_279 = arith.constant dense<0.000000e+00> : vector<16x64xf32>
    %249 = tpu.matmul %246, %248, %cst_279 {dimension_numbers = #tpu.dot_dimension_numbers<[1], [0], [0], [1], [0, 0, 1, 1], [], []>} : vector<16x64xf32>, vector<64x64xf32>, vector<16x64xf32> -> vector<16x64xf32>
    %250 = arith.addf %245, %249 : vector<16x64xf32>
    %c6_280 = arith.constant 6 : index
    %c0_281 = arith.constant 0 : index
    %251 = vector.load %arg15[%c6_280, %c0_281] : memref<13x128xf32, #tpu.memory_space<vmem>>, vector<1x64xf32>
    %252 = vector.broadcast %251 : vector<1x64xf32> to vector<16x64xf32>
    %253 = arith.addf %250, %252 : vector<16x64xf32>
    %254 = arith.addf %253, %150 : vector<16x64xf32>
    %cst_282 = arith.constant 0.000000e+00 : f32
    %255 = vector.broadcast %cst_282 : f32 to vector<16x64xf32>
    %256 = arith.cmpf ogt, %254, %255 : vector<16x64xf32>
    %cst_283 = arith.constant 2.000000e-01 : f32
    %257 = vector.broadcast %cst_283 : f32 to vector<16x64xf32>
    %258 = arith.mulf %257, %254 : vector<16x64xf32>
    %259 = arith.select %256, %254, %258 : vector<16x64xi1>, vector<16x64xf32>
    %c0_284 = arith.constant 0 : index
    %c0_285 = arith.constant 0 : index
    %260 = vector.load %arg13[%c0_284, %c0_285] : memref<64x128xf32, #tpu.memory_space<vmem>>, vector<64x128xf32>
    %cst_286 = arith.constant dense<0.000000e+00> : vector<16x128xf32>
    %261 = tpu.matmul %259, %260, %cst_286 {dimension_numbers = #tpu.dot_dimension_numbers<[1], [0], [0], [1], [0, 0, 1, 1], [], []>} : vector<16x64xf32>, vector<64x128xf32>, vector<16x128xf32> -> vector<16x128xf32>
    %c11 = arith.constant 11 : index
    %c0_287 = arith.constant 0 : index
    %262 = vector.load %arg15[%c11, %c0_287] : memref<13x128xf32, #tpu.memory_space<vmem>>, vector<1x128xf32>
    %263 = vector.broadcast %262 : vector<1x128xf32> to vector<16x128xf32>
    %264 = arith.addf %261, %263 : vector<16x128xf32>
    %cst_288 = arith.constant 0.000000e+00 : f32
    %265 = vector.broadcast %cst_288 : f32 to vector<1x64xf32>
    %c0_289 = arith.constant 0 : index
    %c0_290 = arith.constant 0 : index
    %266 = vector.load %arg21[%c0_289, %c0_290] : memref<18x64xf32, #tpu.memory_space<vmem>>, vector<1x64xf32>
    tpu.vector_store %arg21[%c0_289, %c0_290], %265 {strides = array<i32>} : memref<18x64xf32, #tpu.memory_space<vmem>>, vector<1x64xf32>,
    %c17 = arith.constant 17 : index
    %c0_291 = arith.constant 0 : index
    %267 = vector.load %arg21[%c17, %c0_291] : memref<18x64xf32, #tpu.memory_space<vmem>>, vector<1x64xf32>
    tpu.vector_store %arg21[%c17, %c0_291], %265 {strides = array<i32>} : memref<18x64xf32, #tpu.memory_space<vmem>>, vector<1x64xf32>,
    %c1_292 = arith.constant 1 : index
    %c0_293 = arith.constant 0 : index
    %268 = vector.load %arg21[%c1_292, %c0_293] : memref<18x64xf32, #tpu.memory_space<vmem>>, vector<16x64xf32>
    tpu.vector_store %arg21[%c1_292, %c0_293], %259 {strides = array<i32>} : memref<18x64xf32, #tpu.memory_space<vmem>>, vector<16x64xf32>,
    %c0_294 = arith.constant 0 : index
    %c0_295 = arith.constant 0 : index
    %269 = vector.load %arg21[%c0_294, %c0_295] : memref<18x64xf32, #tpu.memory_space<vmem>>, vector<16x64xf32>
    %c0_296 = arith.constant 0 : index
    %c0_297 = arith.constant 0 : index
    %c0_298 = arith.constant 0 : index
    %270 = vector.load %arg10[%c0_296, %c0_297, %c0_298] : memref<3x64x128xf32, #tpu.memory_space<vmem>>, vector<1x64x128xf32>
    %271 = vector.shape_cast %270 : vector<1x64x128xf32> to vector<64x128xf32>
    %cst_299 = arith.constant dense<0.000000e+00> : vector<16x128xf32>
    %272 = tpu.matmul %269, %271, %cst_299 {dimension_numbers = #tpu.dot_dimension_numbers<[1], [0], [0], [1], [0, 0, 1, 1], [], []>} : vector<16x64xf32>, vector<64x128xf32>, vector<16x128xf32> -> vector<16x128xf32>
    %c1_300 = arith.constant 1 : index
    %c0_301 = arith.constant 0 : index
    %273 = vector.load %arg21[%c1_300, %c0_301] : memref<18x64xf32, #tpu.memory_space<vmem>>, vector<16x64xf32>
    %c1_302 = arith.constant 1 : index
    %c0_303 = arith.constant 0 : index
    %c0_304 = arith.constant 0 : index
    %274 = vector.load %arg10[%c1_302, %c0_303, %c0_304] : memref<3x64x128xf32, #tpu.memory_space<vmem>>, vector<1x64x128xf32>
    %275 = vector.shape_cast %274 : vector<1x64x128xf32> to vector<64x128xf32>
    %cst_305 = arith.constant dense<0.000000e+00> : vector<16x128xf32>
    %276 = tpu.matmul %273, %275, %cst_305 {dimension_numbers = #tpu.dot_dimension_numbers<[1], [0], [0], [1], [0, 0, 1, 1], [], []>} : vector<16x64xf32>, vector<64x128xf32>, vector<16x128xf32> -> vector<16x128xf32>
    %277 = arith.addf %272, %276 : vector<16x128xf32>
    %c2_306 = arith.constant 2 : index
    %c0_307 = arith.constant 0 : index
    %278 = vector.load %arg21[%c2_306, %c0_307] : memref<18x64xf32, #tpu.memory_space<vmem>>, vector<16x64xf32>
    %c2_308 = arith.constant 2 : index
    %c0_309 = arith.constant 0 : index
    %c0_310 = arith.constant 0 : index
    %279 = vector.load %arg10[%c2_308, %c0_309, %c0_310] : memref<3x64x128xf32, #tpu.memory_space<vmem>>, vector<1x64x128xf32>
    %280 = vector.shape_cast %279 : vector<1x64x128xf32> to vector<64x128xf32>
    %cst_311 = arith.constant dense<0.000000e+00> : vector<16x128xf32>
    %281 = tpu.matmul %278, %280, %cst_311 {dimension_numbers = #tpu.dot_dimension_numbers<[1], [0], [0], [1], [0, 0, 1, 1], [], []>} : vector<16x64xf32>, vector<64x128xf32>, vector<16x128xf32> -> vector<16x128xf32>
    %282 = arith.addf %277, %281 : vector<16x128xf32>
    %c8 = arith.constant 8 : index
    %c0_312 = arith.constant 0 : index
    %283 = vector.load %arg15[%c8, %c0_312] : memref<13x128xf32, #tpu.memory_space<vmem>>, vector<1x128xf32>
    %284 = vector.broadcast %283 : vector<1x128xf32> to vector<16x128xf32>
    %285 = arith.addf %282, %284 : vector<16x128xf32>
    %cst_313 = arith.constant 0.000000e+00 : f32
    %286 = vector.broadcast %cst_313 : f32 to vector<16x128xf32>
    %287 = arith.cmpf ogt, %285, %286 : vector<16x128xf32>
    %cst_314 = arith.constant 2.000000e-01 : f32
    %288 = vector.broadcast %cst_314 : f32 to vector<16x128xf32>
    %289 = arith.mulf %288, %285 : vector<16x128xf32>
    %290 = arith.select %287, %285, %289 : vector<16x128xi1>, vector<16x128xf32>
    %cst_315 = arith.constant 0.000000e+00 : f32
    %291 = vector.broadcast %cst_315 : f32 to vector<1x128xf32>
    %c0_316 = arith.constant 0 : index
    %c0_317 = arith.constant 0 : index
    %292 = vector.load %arg22[%c0_316, %c0_317] : memref<18x128xf32, #tpu.memory_space<vmem>>, vector<1x128xf32>
    tpu.vector_store %arg22[%c0_316, %c0_317], %291 {strides = array<i32>} : memref<18x128xf32, #tpu.memory_space<vmem>>, vector<1x128xf32>,
    %c17_318 = arith.constant 17 : index
    %c0_319 = arith.constant 0 : index
    %293 = vector.load %arg22[%c17_318, %c0_319] : memref<18x128xf32, #tpu.memory_space<vmem>>, vector<1x128xf32>
    tpu.vector_store %arg22[%c17_318, %c0_319], %291 {strides = array<i32>} : memref<18x128xf32, #tpu.memory_space<vmem>>, vector<1x128xf32>,
    %c1_320 = arith.constant 1 : index
    %c0_321 = arith.constant 0 : index
    %294 = vector.load %arg22[%c1_320, %c0_321] : memref<18x128xf32, #tpu.memory_space<vmem>>, vector<16x128xf32>
    tpu.vector_store %arg22[%c1_320, %c0_321], %290 {strides = array<i32>} : memref<18x128xf32, #tpu.memory_space<vmem>>, vector<16x128xf32>,
    %c0_322 = arith.constant 0 : index
    %c0_323 = arith.constant 0 : index
    %295 = vector.load %arg22[%c0_322, %c0_323] : memref<18x128xf32, #tpu.memory_space<vmem>>, vector<16x128xf32>
    %c0_324 = arith.constant 0 : index
    %c0_325 = arith.constant 0 : index
    %c0_326 = arith.constant 0 : index
    %296 = vector.load %arg11[%c0_324, %c0_325, %c0_326] : memref<3x128x128xf32, #tpu.memory_space<vmem>>, vector<1x128x128xf32>
    %297 = vector.shape_cast %296 : vector<1x128x128xf32> to vector<128x128xf32>
    %cst_327 = arith.constant dense<0.000000e+00> : vector<16x128xf32>
    %298 = tpu.matmul %295, %297, %cst_327 {dimension_numbers = #tpu.dot_dimension_numbers<[1], [0], [0], [1], [0, 0, 1, 1], [], []>} : vector<16x128xf32>, vector<128x128xf32>, vector<16x128xf32> -> vector<16x128xf32>
    %c1_328 = arith.constant 1 : index
    %c0_329 = arith.constant 0 : index
    %299 = vector.load %arg22[%c1_328, %c0_329] : memref<18x128xf32, #tpu.memory_space<vmem>>, vector<16x128xf32>
    %c1_330 = arith.constant 1 : index
    %c0_331 = arith.constant 0 : index
    %c0_332 = arith.constant 0 : index
    %300 = vector.load %arg11[%c1_330, %c0_331, %c0_332] : memref<3x128x128xf32, #tpu.memory_space<vmem>>, vector<1x128x128xf32>
    %301 = vector.shape_cast %300 : vector<1x128x128xf32> to vector<128x128xf32>
    %cst_333 = arith.constant dense<0.000000e+00> : vector<16x128xf32>
    %302 = tpu.matmul %299, %301, %cst_333 {dimension_numbers = #tpu.dot_dimension_numbers<[1], [0], [0], [1], [0, 0, 1, 1], [], []>} : vector<16x128xf32>, vector<128x128xf32>, vector<16x128xf32> -> vector<16x128xf32>
    %303 = arith.addf %298, %302 : vector<16x128xf32>
    %c2_334 = arith.constant 2 : index
    %c0_335 = arith.constant 0 : index
    %304 = vector.load %arg22[%c2_334, %c0_335] : memref<18x128xf32, #tpu.memory_space<vmem>>, vector<16x128xf32>
    %c2_336 = arith.constant 2 : index
    %c0_337 = arith.constant 0 : index
    %c0_338 = arith.constant 0 : index
    %305 = vector.load %arg11[%c2_336, %c0_337, %c0_338] : memref<3x128x128xf32, #tpu.memory_space<vmem>>, vector<1x128x128xf32>
    %306 = vector.shape_cast %305 : vector<1x128x128xf32> to vector<128x128xf32>
    %cst_339 = arith.constant dense<0.000000e+00> : vector<16x128xf32>
    %307 = tpu.matmul %304, %306, %cst_339 {dimension_numbers = #tpu.dot_dimension_numbers<[1], [0], [0], [1], [0, 0, 1, 1], [], []>} : vector<16x128xf32>, vector<128x128xf32>, vector<16x128xf32> -> vector<16x128xf32>
    %308 = arith.addf %303, %307 : vector<16x128xf32>
    %c9 = arith.constant 9 : index
    %c0_340 = arith.constant 0 : index
    %309 = vector.load %arg15[%c9, %c0_340] : memref<13x128xf32, #tpu.memory_space<vmem>>, vector<1x128xf32>
    %310 = vector.broadcast %309 : vector<1x128xf32> to vector<16x128xf32>
    %311 = arith.addf %308, %310 : vector<16x128xf32>
    %cst_341 = arith.constant 0.000000e+00 : f32
    %312 = vector.broadcast %cst_341 : f32 to vector<16x128xf32>
    %313 = arith.cmpf ogt, %311, %312 : vector<16x128xf32>
    %cst_342 = arith.constant 2.000000e-01 : f32
    %314 = vector.broadcast %cst_342 : f32 to vector<16x128xf32>
    %315 = arith.mulf %314, %311 : vector<16x128xf32>
    %316 = arith.select %313, %311, %315 : vector<16x128xi1>, vector<16x128xf32>
    %cst_343 = arith.constant 0.000000e+00 : f32
    %317 = vector.broadcast %cst_343 : f32 to vector<1x128xf32>
    %c0_344 = arith.constant 0 : index
    %c0_345 = arith.constant 0 : index
    %318 = vector.load %arg22[%c0_344, %c0_345] : memref<18x128xf32, #tpu.memory_space<vmem>>, vector<1x128xf32>
    tpu.vector_store %arg22[%c0_344, %c0_345], %317 {strides = array<i32>} : memref<18x128xf32, #tpu.memory_space<vmem>>, vector<1x128xf32>,
    %c17_346 = arith.constant 17 : index
    %c0_347 = arith.constant 0 : index
    %319 = vector.load %arg22[%c17_346, %c0_347] : memref<18x128xf32, #tpu.memory_space<vmem>>, vector<1x128xf32>
    tpu.vector_store %arg22[%c17_346, %c0_347], %317 {strides = array<i32>} : memref<18x128xf32, #tpu.memory_space<vmem>>, vector<1x128xf32>,
    %c1_348 = arith.constant 1 : index
    %c0_349 = arith.constant 0 : index
    %320 = vector.load %arg22[%c1_348, %c0_349] : memref<18x128xf32, #tpu.memory_space<vmem>>, vector<16x128xf32>
    tpu.vector_store %arg22[%c1_348, %c0_349], %316 {strides = array<i32>} : memref<18x128xf32, #tpu.memory_space<vmem>>, vector<16x128xf32>,
    %c0_350 = arith.constant 0 : index
    %c0_351 = arith.constant 0 : index
    %321 = vector.load %arg22[%c0_350, %c0_351] : memref<18x128xf32, #tpu.memory_space<vmem>>, vector<16x128xf32>
    %c0_352 = arith.constant 0 : index
    %c0_353 = arith.constant 0 : index
    %c0_354 = arith.constant 0 : index
    %322 = vector.load %arg12[%c0_352, %c0_353, %c0_354] : memref<3x128x128xf32, #tpu.memory_space<vmem>>, vector<1x128x128xf32>
    %323 = vector.shape_cast %322 : vector<1x128x128xf32> to vector<128x128xf32>
    %cst_355 = arith.constant dense<0.000000e+00> : vector<16x128xf32>
    %324 = tpu.matmul %321, %323, %cst_355 {dimension_numbers = #tpu.dot_dimension_numbers<[1], [0], [0], [1], [0, 0, 1, 1], [], []>} : vector<16x128xf32>, vector<128x128xf32>, vector<16x128xf32> -> vector<16x128xf32>
    %c1_356 = arith.constant 1 : index
    %c0_357 = arith.constant 0 : index
    %325 = vector.load %arg22[%c1_356, %c0_357] : memref<18x128xf32, #tpu.memory_space<vmem>>, vector<16x128xf32>
    %c1_358 = arith.constant 1 : index
    %c0_359 = arith.constant 0 : index
    %c0_360 = arith.constant 0 : index
    %326 = vector.load %arg12[%c1_358, %c0_359, %c0_360] : memref<3x128x128xf32, #tpu.memory_space<vmem>>, vector<1x128x128xf32>
    %327 = vector.shape_cast %326 : vector<1x128x128xf32> to vector<128x128xf32>
    %cst_361 = arith.constant dense<0.000000e+00> : vector<16x128xf32>
    %328 = tpu.matmul %325, %327, %cst_361 {dimension_numbers = #tpu.dot_dimension_numbers<[1], [0], [0], [1], [0, 0, 1, 1], [], []>} : vector<16x128xf32>, vector<128x128xf32>, vector<16x128xf32> -> vector<16x128xf32>
    %329 = arith.addf %324, %328 : vector<16x128xf32>
    %c2_362 = arith.constant 2 : index
    %c0_363 = arith.constant 0 : index
    %330 = vector.load %arg22[%c2_362, %c0_363] : memref<18x128xf32, #tpu.memory_space<vmem>>, vector<16x128xf32>
    %c2_364 = arith.constant 2 : index
    %c0_365 = arith.constant 0 : index
    %c0_366 = arith.constant 0 : index
    %331 = vector.load %arg12[%c2_364, %c0_365, %c0_366] : memref<3x128x128xf32, #tpu.memory_space<vmem>>, vector<1x128x128xf32>
    %332 = vector.shape_cast %331 : vector<1x128x128xf32> to vector<128x128xf32>
    %cst_367 = arith.constant dense<0.000000e+00> : vector<16x128xf32>
    %333 = tpu.matmul %330, %332, %cst_367 {dimension_numbers = #tpu.dot_dimension_numbers<[1], [0], [0], [1], [0, 0, 1, 1], [], []>} : vector<16x128xf32>, vector<128x128xf32>, vector<16x128xf32> -> vector<16x128xf32>
    %334 = arith.addf %329, %333 : vector<16x128xf32>
    %c10 = arith.constant 10 : index
    %c0_368 = arith.constant 0 : index
    %335 = vector.load %arg15[%c10, %c0_368] : memref<13x128xf32, #tpu.memory_space<vmem>>, vector<1x128xf32>
    %336 = vector.broadcast %335 : vector<1x128xf32> to vector<16x128xf32>
    %337 = arith.addf %334, %336 : vector<16x128xf32>
    %338 = arith.addf %337, %264 : vector<16x128xf32>
    %cst_369 = arith.constant 0.000000e+00 : f32
    %339 = vector.broadcast %cst_369 : f32 to vector<16x128xf32>
    %340 = arith.cmpf ogt, %338, %339 : vector<16x128xf32>
    %cst_370 = arith.constant 2.000000e-01 : f32
    %341 = vector.broadcast %cst_370 : f32 to vector<16x128xf32>
    %342 = arith.mulf %341, %338 : vector<16x128xf32>
    %343 = arith.select %340, %338, %342 : vector<16x128xi1>, vector<16x128xf32>
    %cst_371 = arith.constant 0.000000e+00 : f32
    %344 = vector.broadcast %cst_371 : f32 to vector<1x128xf32>
    %c0_372 = arith.constant 0 : index
    %c0_373 = arith.constant 0 : index
    %345 = vector.load %arg22[%c0_372, %c0_373] : memref<18x128xf32, #tpu.memory_space<vmem>>, vector<1x128xf32>
    tpu.vector_store %arg22[%c0_372, %c0_373], %344 {strides = array<i32>} : memref<18x128xf32, #tpu.memory_space<vmem>>, vector<1x128xf32>,
    %c17_374 = arith.constant 17 : index
    %c0_375 = arith.constant 0 : index
    %346 = vector.load %arg22[%c17_374, %c0_375] : memref<18x128xf32, #tpu.memory_space<vmem>>, vector<1x128xf32>
    tpu.vector_store %arg22[%c17_374, %c0_375], %344 {strides = array<i32>} : memref<18x128xf32, #tpu.memory_space<vmem>>, vector<1x128xf32>,
    %c1_376 = arith.constant 1 : index
    %c0_377 = arith.constant 0 : index
    %347 = vector.load %arg22[%c1_376, %c0_377] : memref<18x128xf32, #tpu.memory_space<vmem>>, vector<16x128xf32>
    tpu.vector_store %arg22[%c1_376, %c0_377], %343 {strides = array<i32>} : memref<18x128xf32, #tpu.memory_space<vmem>>, vector<16x128xf32>,
    %c0_378 = arith.constant 0 : index
    %c0_379 = arith.constant 0 : index
    %348 = vector.load %arg22[%c0_378, %c0_379] : memref<18x128xf32, #tpu.memory_space<vmem>>, vector<16x128xf32>
    %c0_380 = arith.constant 0 : index
    %c0_381 = arith.constant 0 : index
    %c0_382 = arith.constant 0 : index
    %349 = vector.load %arg14[%c0_380, %c0_381, %c0_382] : memref<3x128x4xf32, #tpu.memory_space<vmem>>, vector<1x128x4xf32>
    %350 = vector.shape_cast %349 : vector<1x128x4xf32> to vector<128x4xf32>
    %cst_383 = arith.constant dense<0.000000e+00> : vector<16x4xf32>
    %351 = tpu.matmul %348, %350, %cst_383 {dimension_numbers = #tpu.dot_dimension_numbers<[1], [0], [0], [1], [0, 0, 1, 1], [], []>} : vector<16x128xf32>, vector<128x4xf32>, vector<16x4xf32> -> vector<16x4xf32>
    %c1_384 = arith.constant 1 : index
    %c0_385 = arith.constant 0 : index
    %352 = vector.load %arg22[%c1_384, %c0_385] : memref<18x128xf32, #tpu.memory_space<vmem>>, vector<16x128xf32>
    %c1_386 = arith.constant 1 : index
    %c0_387 = arith.constant 0 : index
    %c0_388 = arith.constant 0 : index
    %353 = vector.load %arg14[%c1_386, %c0_387, %c0_388] : memref<3x128x4xf32, #tpu.memory_space<vmem>>, vector<1x128x4xf32>
    %354 = vector.shape_cast %353 : vector<1x128x4xf32> to vector<128x4xf32>
    %cst_389 = arith.constant dense<0.000000e+00> : vector<16x4xf32>
    %355 = tpu.matmul %352, %354, %cst_389 {dimension_numbers = #tpu.dot_dimension_numbers<[1], [0], [0], [1], [0, 0, 1, 1], [], []>} : vector<16x128xf32>, vector<128x4xf32>, vector<16x4xf32> -> vector<16x4xf32>
    %356 = arith.addf %351, %355 : vector<16x4xf32>
    %c2_390 = arith.constant 2 : index
    %c0_391 = arith.constant 0 : index
    %357 = vector.load %arg22[%c2_390, %c0_391] : memref<18x128xf32, #tpu.memory_space<vmem>>, vector<16x128xf32>
    %c2_392 = arith.constant 2 : index
    %c0_393 = arith.constant 0 : index
    %c0_394 = arith.constant 0 : index
    %358 = vector.load %arg14[%c2_392, %c0_393, %c0_394] : memref<3x128x4xf32, #tpu.memory_space<vmem>>, vector<1x128x4xf32>
    %359 = vector.shape_cast %358 : vector<1x128x4xf32> to vector<128x4xf32>
    %cst_395 = arith.constant dense<0.000000e+00> : vector<16x4xf32>
    %360 = tpu.matmul %357, %359, %cst_395 {dimension_numbers = #tpu.dot_dimension_numbers<[1], [0], [0], [1], [0, 0, 1, 1], [], []>} : vector<16x128xf32>, vector<128x4xf32>, vector<16x4xf32> -> vector<16x4xf32>
    %361 = arith.addf %356, %360 : vector<16x4xf32>
    %c12 = arith.constant 12 : index
    %c0_396 = arith.constant 0 : index
    %362 = vector.load %arg15[%c12, %c0_396] : memref<13x128xf32, #tpu.memory_space<vmem>>, vector<1x4xf32>
    %363 = vector.broadcast %362 : vector<1x4xf32> to vector<16x4xf32>
    %364 = arith.addf %361, %363 : vector<16x4xf32>
    %c0_397 = arith.constant 0 : index
    %c0_398 = arith.constant 0 : index
    %c0_399 = arith.constant 0 : index
    %365 = vector.load %arg16[%c0_397, %c0_398, %c0_399] : memref<1x16x4xf32, #tpu.memory_space<vmem>>, vector<1x16x4xf32>
    %366 = vector.shape_cast %365 : vector<1x16x4xf32> to vector<16x4xf32>
    %367 = vector.shape_cast %364 : vector<16x4xf32> to vector<1x16x4xf32>
    tpu.vector_store %arg16[%c0_397, %c0_398, %c0_399], %367 {strides = array<i32>} : memref<1x16x4xf32, #tpu.memory_space<vmem>>, vector<1x16x4xf32>,
    return
  }
  func.func @transform_0(%arg0: i32) -> (i32, i32, i32) {
    %c0_i32 = arith.constant 0 : i32
    %c0_i32_0 = arith.constant 0 : i32
    %c0_i32_1 = arith.constant 0 : i32
    return %arg0, %c0_i32, %c0_i32_0 : i32, i32, i32
  }
  func.func @transform_1(%arg0: i32) -> (i32, i32, i32) {
    %c0_i32 = arith.constant 0 : i32
    %c0_i32_0 = arith.constant 0 : i32
    %c0_i32_1 = arith.constant 0 : i32
    %c0_i32_2 = arith.constant 0 : i32
    return %c0_i32, %c0_i32_0, %c0_i32_1 : i32, i32, i32
  }
  func.func @transform_2(%arg0: i32) -> (i32, i32, i32) {
    %c0_i32 = arith.constant 0 : i32
    %c0_i32_0 = arith.constant 0 : i32
    %c0_i32_1 = arith.constant 0 : i32
    %c0_i32_2 = arith.constant 0 : i32
    return %c0_i32, %c0_i32_0, %c0_i32_1 : i32, i32, i32
  }
  func.func @transform_3(%arg0: i32) -> (i32, i32, i32) {
    %c0_i32 = arith.constant 0 : i32
    %c0_i32_0 = arith.constant 0 : i32
    %c0_i32_1 = arith.constant 0 : i32
    %c0_i32_2 = arith.constant 0 : i32
    return %c0_i32, %c0_i32_0, %c0_i32_1 : i32, i32, i32
  }
  func.func @transform_4(%arg0: i32) -> (i32, i32) {
    %c0_i32 = arith.constant 0 : i32
    %c0_i32_0 = arith.constant 0 : i32
    %c0_i32_1 = arith.constant 0 : i32
    return %c0_i32, %c0_i32_0 : i32, i32
  }
  func.func @transform_5(%arg0: i32) -> (i32, i32, i32) {
    %c0_i32 = arith.constant 0 : i32
    %c0_i32_0 = arith.constant 0 : i32
    %c0_i32_1 = arith.constant 0 : i32
    %c0_i32_2 = arith.constant 0 : i32
    return %c0_i32, %c0_i32_0, %c0_i32_1 : i32, i32, i32
  }
  func.func @transform_6(%arg0: i32) -> (i32, i32, i32) {
    %c0_i32 = arith.constant 0 : i32
    %c0_i32_0 = arith.constant 0 : i32
    %c0_i32_1 = arith.constant 0 : i32
    %c0_i32_2 = arith.constant 0 : i32
    return %c0_i32, %c0_i32_0, %c0_i32_1 : i32, i32, i32
  }
  func.func @transform_7(%arg0: i32) -> (i32, i32, i32) {
    %c0_i32 = arith.constant 0 : i32
    %c0_i32_0 = arith.constant 0 : i32
    %c0_i32_1 = arith.constant 0 : i32
    %c0_i32_2 = arith.constant 0 : i32
    return %c0_i32, %c0_i32_0, %c0_i32_1 : i32, i32, i32
  }
  func.func @transform_8(%arg0: i32) -> (i32, i32) {
    %c0_i32 = arith.constant 0 : i32
    %c0_i32_0 = arith.constant 0 : i32
    %c0_i32_1 = arith.constant 0 : i32
    return %c0_i32, %c0_i32_0 : i32, i32
  }
  func.func @transform_9(%arg0: i32) -> (i32, i32, i32) {
    %c0_i32 = arith.constant 0 : i32
    %c0_i32_0 = arith.constant 0 : i32
    %c0_i32_1 = arith.constant 0 : i32
    %c0_i32_2 = arith.constant 0 : i32
    return %c0_i32, %c0_i32_0, %c0_i32_1 : i32, i32, i32
  }
  func.func @transform_10(%arg0: i32) -> (i32, i32, i32) {
    %c0_i32 = arith.constant 0 : i32
    %c0_i32_0 = arith.constant 0 : i32
    %c0_i32_1 = arith.constant 0 : i32
    %c0_i32_2 = arith.constant 0 : i32
    return %c0_i32, %c0_i32_0, %c0_i32_1 : i32, i32, i32
  }
  func.func @transform_11(%arg0: i32) -> (i32, i32, i32) {
    %c0_i32 = arith.constant 0 : i32
    %c0_i32_0 = arith.constant 0 : i32
    %c0_i32_1 = arith.constant 0 : i32
    %c0_i32_2 = arith.constant 0 : i32
    return %c0_i32, %c0_i32_0, %c0_i32_1 : i32, i32, i32
  }
  func.func @transform_12(%arg0: i32) -> (i32, i32) {
    %c0_i32 = arith.constant 0 : i32
    %c0_i32_0 = arith.constant 0 : i32
    %c0_i32_1 = arith.constant 0 : i32
    return %c0_i32, %c0_i32_0 : i32, i32
  }
  func.func @transform_13(%arg0: i32) -> (i32, i32, i32) {
    %c0_i32 = arith.constant 0 : i32
    %c0_i32_0 = arith.constant 0 : i32
    %c0_i32_1 = arith.constant 0 : i32
    %c0_i32_2 = arith.constant 0 : i32
    return %c0_i32, %c0_i32_0, %c0_i32_1 : i32, i32, i32
  }
  func.func @transform_14(%arg0: i32) -> (i32, i32) {
    %c0_i32 = arith.constant 0 : i32
    %c0_i32_0 = arith.constant 0 : i32
    %c0_i32_1 = arith.constant 0 : i32
    return %c0_i32, %c0_i32_0 : i32, i32
  }
  func.func @transform_15(%arg0: i32) -> (i32, i32, i32) {
    %c0_i32 = arith.constant 0 : i32
    %c0_i32_0 = arith.constant 0 : i32
    %c0_i32_1 = arith.constant 0 : i32
    return %arg0, %c0_i32, %c0_i32_0 : i32, i32, i32
  }
}

</mosaic_0001>

<llo_original>
// kernel: restnet_1d_dcnn_apply.1
$region0: #{restnet_1d_dcnn_apply.1}
  #allocation0 [shape = 'u32[]', space=smem, size = 0x4, offset = 0x4, fixed_abs, tag = 'smem constant byte address 0x4 - core index']
  #allocation1 [shape = 'u32[144,128]{1,0:T(1,128)}', space=vmem, size = 0x12000, scoped, tag = 'internal scratch']
  #allocation2 [shape = 'f32[22,4]{1,0:T(8,128)}', space=vmem, size = 0x3000, scoped, tag = 'scratch operand']
  #allocation3 [shape = 'f32[22,32]{1,0:T(8,128)}', space=vmem, size = 0x3000, scoped, tag = 'scratch operand']
  #allocation4 [shape = 'f32[20,32]{1,0:T(8,128)}', space=vmem, size = 0x3000, scoped, tag = 'scratch operand']
  #allocation5 [shape = 'f32[20,64]{1,0:T(8,128)}', space=vmem, size = 0x3000, scoped, tag = 'scratch operand']
  #allocation6 [shape = 'f32[18,64]{1,0:T(8,128)}', space=vmem, size = 0x3000, scoped, tag = 'scratch operand']
  #allocation7 [shape = 'f32[18,128]{1,0:T(8,128)}', space=vmem, size = 0x3000, scoped, tag = 'scratch operand']
  %s0 = inlined_call_operand.vmem [shape: f32[2,16,4], index: 0, kind: input, shape index: {}]
  %s1 = inlined_call_operand.vmem [shape: f32[7,4,32], index: 1, kind: input, shape index: {}]
  %s2 = inlined_call_operand.vmem [shape: f32[7,32,32], index: 2, kind: input, shape index: {}]
  %s3 = inlined_call_operand.vmem [shape: f32[7,32,32], index: 3, kind: input, shape index: {}]
  %s4 = inlined_call_operand.vmem [shape: f32[4,32], index: 4, kind: input, shape index: {}]
  %s5 = inlined_call_operand.vmem [shape: f32[5,32,64], index: 5, kind: input, shape index: {}]
  %s6 = inlined_call_operand.vmem [shape: f32[5,64,64], index: 6, kind: input, shape index: {}]
  %s7 = inlined_call_operand.vmem [shape: f32[5,64,64], index: 7, kind: input, shape index: {}]
  %s8 = inlined_call_operand.vmem [shape: f32[32,64], index: 8, kind: input, shape index: {}]
  %s9 = inlined_call_operand.vmem [shape: f32[3,64,128], index: 9, kind: input, shape index: {}]
  %s10 = inlined_call_operand.vmem [shape: f32[3,128,128], index: 10, kind: input, shape index: {}]
  %s11 = inlined_call_operand.vmem [shape: f32[3,128,128], index: 11, kind: input, shape index: {}]
  %s12 = inlined_call_operand.vmem [shape: f32[64,128], index: 12, kind: input, shape index: {}]
  %s13 = inlined_call_operand.vmem [shape: f32[3,128,4], index: 13, kind: input, shape index: {}]
  %s14 = inlined_call_operand.vmem [shape: f32[13,128], index: 14, kind: input, shape index: {}]
  %s15 = inlined_call_operand.vmem [shape: f32[2,16,4], index: 15, kind: output, shape index: {}]
  %s16 = sld [smem:[#allocation0]]
  $region93: #{restnet_1d_dcnn_apply.1} parent=0
    _
  %s18 = ssub.s32 1, %s16
  %s19 = scalar_select 0, %s18, %s16
  loop: start=0, step=1, limit=4
  $region2: #{restnet_1d_dcnn_apply.1} parent=0 // loop_pre_header
    _
  $region3: #{restnet_1d_dcnn_apply.1} parent=0 // loop_header
    %s21 = sphi 0, %s25
    %p22 = scmp.ge.s32.totalorder %s21, 4
    %s31 = sphi 0, %s33
    %s34 = sphi 0, %s31
    %s35 = sphi 0, %s34
    %s51 = sphi 0, %s35
    %s55 = sphi 0, %s55
    %s57 = sphi 0, %s55
    %s58 = sphi 0, %s57
    %s72 = sphi 0, %s58
    %s76 = sphi 0, %s76
    %s78 = sphi 0, %s76
    %s79 = sphi 0, %s78
    %s93 = sphi 0, %s79
    %s97 = sphi 0, %s97
    %s99 = sphi 0, %s97
    %s100 = sphi 0, %s99
    %s114 = sphi 0, %s100
    %s118 = sphi 0, %s118
    %s120 = sphi 0, %s118
    %s121 = sphi 0, %s120
    %s135 = sphi 0, %s121
    %s139 = sphi 0, %s139
    %s141 = sphi 0, %s139
    %s142 = sphi 0, %s141
    %s156 = sphi 0, %s142
    %s160 = sphi 0, %s160
    %s162 = sphi 0, %s160
    %s163 = sphi 0, %s162
    %s177 = sphi 0, %s163
    %s181 = sphi 0, %s181
    %s183 = sphi 0, %s181
    %s184 = sphi 0, %s183
    %s198 = sphi 0, %s184
    %s202 = sphi 0, %s202
    %s204 = sphi 0, %s202
    %s205 = sphi 0, %s204
    %s219 = sphi 0, %s205
    %s223 = sphi 0, %s223
    %s225 = sphi 0, %s223
    %s226 = sphi 0, %s225
    %s240 = sphi 0, %s226
    %s244 = sphi 0, %s244
    %s246 = sphi 0, %s244
    %s247 = sphi 0, %s246
    %s261 = sphi 0, %s247
    %s265 = sphi 0, %s265
    %s267 = sphi 0, %s265
    %s268 = sphi 0, %s267
    %s282 = sphi 0, %s268
    %s286 = sphi 0, %s286
    %s288 = sphi 0, %s286
    %s289 = sphi 0, %s288
    %s303 = sphi 0, %s289
    %s307 = sphi 0, %s307
    %s309 = sphi 0, %s307
    %s310 = sphi 0, %s309
    %s324 = sphi 0, %s310
    %s328 = sphi 0, %s328
    %s330 = sphi 0, %s328
    %s331 = sphi 0, %s330
    %s345 = sphi 0, %s331
    %s351 = sphi 0, %s353
    %s354 = sphi 0, %s351
    %s355 = sphi 0, %s354
    %s371 = sphi 0, %s355
  $region4: #{restnet_1d_dcnn_apply.1} parent=0 // loop_header_branch
    %24 = sbr.rel (%p22) target = $region8
  $region5: #{restnet_1d_dcnn_apply.1} parent=0 // loop_body
    %s26 = ssub.s32 %s21, 1
    %s27 = ssub.s32 %s21, 2
    %s28 = sadd.s32 %s21, 1
    %s29 = ssub.s32 %s21, %s28
    %p30 = scmp.eq.s32.totalorder %s29, 0
    %s32 = sadd.s32 %s31, 1
    %s33 = scalar_select %p30, %s31, %s32
    %p36 = pneg %p30
    %p37 = scmp.eq.s32.totalorder %s21, 1
    %p38 = por %p36, %p37
    %p39 = scmp.ne.s32.totalorder %s31, %s34
    %p40 = scmp.eq.s32.totalorder %s21, 0
    %p41 = por %p39, %p40
    %p42 = scmp.ne.s32.totalorder %s31, %s34
    %p43 = scmp.eq.s32.totalorder %s26, 1
    %p44 = por %p42, %p43
    %p45 = scmp.ne.s32.totalorder %s34, %s35
    %p46 = scmp.eq.s32.totalorder %s26, 0
    %p47 = por %p45, %p46
    %p48 = scmp.ne.s32.totalorder %s34, %s35
    %p49 = scmp.eq.s32.totalorder %s27, 1
    %p50 = por %p48, %p49
    %p52 = scmp.ne.s32.totalorder %s35, %s51
    %p53 = scmp.eq.s32.totalorder %s27, 0
    %p54 = por %p52, %p53
    %s56 = sadd.s32 %s55, 1
    %p59 = scmp.eq.s32.totalorder %s21, 1
    %p60 = scmp.ne.s32.totalorder %s55, %s57
    %p61 = scmp.eq.s32.totalorder %s21, 0
    %p62 = por %p60, %p61
    %p63 = scmp.ne.s32.totalorder %s55, %s57
    %p64 = scmp.eq.s32.totalorder %s26, 1
    %p65 = por %p63, %p64
    %p66 = scmp.ne.s32.totalorder %s57, %s58
    %p67 = scmp.eq.s32.totalorder %s26, 0
    %p68 = por %p66, %p67
    %p69 = scmp.ne.s32.totalorder %s57, %s58
    %p70 = scmp.eq.s32.totalorder %s27, 1
    %p71 = por %p69, %p70
    %p73 = scmp.ne.s32.totalorder %s58, %s72
    %p74 = scmp.eq.s32.totalorder %s27, 0
    %p75 = por %p73, %p74
    %s77 = sadd.s32 %s76, 1
    %p80 = scmp.eq.s32.totalorder %s21, 1
    %p81 = scmp.ne.s32.totalorder %s76, %s78
    %p82 = scmp.eq.s32.totalorder %s21, 0
    %p83 = por %p81, %p82
    %p84 = scmp.ne.s32.totalorder %s76, %s78
    %p85 = scmp.eq.s32.totalorder %s26, 1
    %p86 = por %p84, %p85
    %p87 = scmp.ne.s32.totalorder %s78, %s79
    %p88 = scmp.eq.s32.totalorder %s26, 0
    %p89 = por %p87, %p88
    %p90 = scmp.ne.s32.totalorder %s78, %s79
    %p91 = scmp.eq.s32.totalorder %s27, 1
    %p92 = por %p90, %p91
    %p94 = scmp.ne.s32.totalorder %s79, %s93
    %p95 = scmp.eq.s32.totalorder %s27, 0
    %p96 = por %p94, %p95
    %s98 = sadd.s32 %s97, 1
    %p101 = scmp.eq.s32.totalorder %s21, 1
    %p102 = scmp.ne.s32.totalorder %s97, %s99
    %p103 = scmp.eq.s32.totalorder %s21, 0
    %p104 = por %p102, %p103
    %p105 = scmp.ne.s32.totalorder %s97, %s99
    %p106 = scmp.eq.s32.totalorder %s26, 1
    %p107 = por %p105, %p106
    %p108 = scmp.ne.s32.totalorder %s99, %s100
    %p109 = scmp.eq.s32.totalorder %s26, 0
    %p110 = por %p108, %p109
    %p111 = scmp.ne.s32.totalorder %s99, %s100
    %p112 = scmp.eq.s32.totalorder %s27, 1
    %p113 = por %p111, %p112
    %p115 = scmp.ne.s32.totalorder %s100, %s114
    %p116 = scmp.eq.s32.totalorder %s27, 0
    %p117 = por %p115, %p116
    %s119 = sadd.s32 %s118, 1
    %p122 = scmp.eq.s32.totalorder %s21, 1
    %p123 = scmp.ne.s32.totalorder %s118, %s120
    %p124 = scmp.eq.s32.totalorder %s21, 0
    %p125 = por %p123, %p124
    %p126 = scmp.ne.s32.totalorder %s118, %s120
    %p127 = scmp.eq.s32.totalorder %s26, 1
    %p128 = por %p126, %p127
    %p129 = scmp.ne.s32.totalorder %s120, %s121
    %p130 = scmp.eq.s32.totalorder %s26, 0
    %p131 = por %p129, %p130
    %p132 = scmp.ne.s32.totalorder %s120, %s121
    %p133 = scmp.eq.s32.totalorder %s27, 1
    %p134 = por %p132, %p133
    %p136 = scmp.ne.s32.totalorder %s121, %s135
    %p137 = scmp.eq.s32.totalorder %s27, 0
    %p138 = por %p136, %p137
    %s140 = sadd.s32 %s139, 1
    %p143 = scmp.eq.s32.totalorder %s21, 1
    %p144 = scmp.ne.s32.totalorder %s139, %s141
    %p145 = scmp.eq.s32.totalorder %s21, 0
    %p146 = por %p144, %p145
    %p147 = scmp.ne.s32.totalorder %s139, %s141
    %p148 = scmp.eq.s32.totalorder %s26, 1
    %p149 = por %p147, %p148
    %p150 = scmp.ne.s32.totalorder %s141, %s142
    %p151 = scmp.eq.s32.totalorder %s26, 0
    %p152 = por %p150, %p151
    %p153 = scmp.ne.s32.totalorder %s141, %s142
    %p154 = scmp.eq.s32.totalorder %s27, 1
    %p155 = por %p153, %p154
    %p157 = scmp.ne.s32.totalorder %s142, %s156
    %p158 = scmp.eq.s32.totalorder %s27, 0
    %p159 = por %p157, %p158
    %s161 = sadd.s32 %s160, 1
    %p164 = scmp.eq.s32.totalorder %s21, 1
    %p165 = scmp.ne.s32.totalorder %s160, %s162
    %p166 = scmp.eq.s32.totalorder %s21, 0
    %p167 = por %p165, %p166
    %p168 = scmp.ne.s32.totalorder %s160, %s162
    %p169 = scmp.eq.s32.totalorder %s26, 1
    %p170 = por %p168, %p169
    %p171 = scmp.ne.s32.totalorder %s162, %s163
    %p172 = scmp.eq.s32.totalorder %s26, 0
    %p173 = por %p171, %p172
    %p174 = scmp.ne.s32.totalorder %s162, %s163
    %p175 = scmp.eq.s32.totalorder %s27, 1
    %p176 = por %p174, %p175
    %p178 = scmp.ne.s32.totalorder %s163, %s177
    %p179 = scmp.eq.s32.totalorder %s27, 0
    %p180 = por %p178, %p179
    %s182 = sadd.s32 %s181, 1
    %p185 = scmp.eq.s32.totalorder %s21, 1
    %p186 = scmp.ne.s32.totalorder %s181, %s183
    %p187 = scmp.eq.s32.totalorder %s21, 0
    %p188 = por %p186, %p187
    %p189 = scmp.ne.s32.totalorder %s181, %s183
    %p190 = scmp.eq.s32.totalorder %s26, 1
    %p191 = por %p189, %p190
    %p192 = scmp.ne.s32.totalorder %s183, %s184
    %p193 = scmp.eq.s32.totalorder %s26, 0
    %p194 = por %p192, %p193
    %p195 = scmp.ne.s32.totalorder %s183, %s184
    %p196 = scmp.eq.s32.totalorder %s27, 1
    %p197 = por %p195, %p196
    %p199 = scmp.ne.s32.totalorder %s184, %s198
    %p200 = scmp.eq.s32.totalorder %s27, 0
    %p201 = por %p199, %p200
    %s203 = sadd.s32 %s202, 1
    %p206 = scmp.eq.s32.totalorder %s21, 1
    %p207 = scmp.ne.s32.totalorder %s202, %s204
    %p208 = scmp.eq.s32.totalorder %s21, 0
    %p209 = por %p207, %p208
    %p210 = scmp.ne.s32.totalorder %s202, %s204
    %p211 = scmp.eq.s32.totalorder %s26, 1
    %p212 = por %p210, %p211
    %p213 = scmp.ne.s32.totalorder %s204, %s205
    %p214 = scmp.eq.s32.totalorder %s26, 0
    %p215 = por %p213, %p214
    %p216 = scmp.ne.s32.totalorder %s204, %s205
    %p217 = scmp.eq.s32.totalorder %s27, 1
    %p218 = por %p216, %p217
    %p220 = scmp.ne.s32.totalorder %s205, %s219
    %p221 = scmp.eq.s32.totalorder %s27, 0
    %p222 = por %p220, %p221
    %s224 = sadd.s32 %s223, 1
    %p227 = scmp.eq.s32.totalorder %s21, 1
    %p228 = scmp.ne.s32.totalorder %s223, %s225
    %p229 = scmp.eq.s32.totalorder %s21, 0
    %p230 = por %p228, %p229
    %p231 = scmp.ne.s32.totalorder %s223, %s225
    %p232 = scmp.eq.s32.totalorder %s26, 1
    %p233 = por %p231, %p232
    %p234 = scmp.ne.s32.totalorder %s225, %s226
    %p235 = scmp.eq.s32.totalorder %s26, 0
    %p236 = por %p234, %p235
    %p237 = scmp.ne.s32.totalorder %s225, %s226
    %p238 = scmp.eq.s32.totalorder %s27, 1
    %p239 = por %p237, %p238
    %p241 = scmp.ne.s32.totalorder %s226, %s240
    %p242 = scmp.eq.s32.totalorder %s27, 0
    %p243 = por %p241, %p242
    %s245 = sadd.s32 %s244, 1
    %p248 = scmp.eq.s32.totalorder %s21, 1
    %p249 = scmp.ne.s32.totalorder %s244, %s246
    %p250 = scmp.eq.s32.totalorder %s21, 0
    %p251 = por %p249, %p250
    %p252 = scmp.ne.s32.totalorder %s244, %s246
    %p253 = scmp.eq.s32.totalorder %s26, 1
    %p254 = por %p252, %p253
    %p255 = scmp.ne.s32.totalorder %s246, %s247
    %p256 = scmp.eq.s32.totalorder %s26, 0
    %p257 = por %p255, %p256
    %p258 = scmp.ne.s32.totalorder %s246, %s247
    %p259 = scmp.eq.s32.totalorder %s27, 1
    %p260 = por %p258, %p259
    %p262 = scmp.ne.s32.totalorder %s247, %s261
    %p263 = scmp.eq.s32.totalorder %s27, 0
    %p264 = por %p262, %p263
    %s266 = sadd.s32 %s265, 1
    %p269 = scmp.eq.s32.totalorder %s21, 1
    %p270 = scmp.ne.s32.totalorder %s265, %s267
    %p271 = scmp.eq.s32.totalorder %s21, 0
    %p272 = por %p270, %p271
    %p273 = scmp.ne.s32.totalorder %s265, %s267
    %p274 = scmp.eq.s32.totalorder %s26, 1
    %p275 = por %p273, %p274
    %p276 = scmp.ne.s32.totalorder %s267, %s268
    %p277 = scmp.eq.s32.totalorder %s26, 0
    %p278 = por %p276, %p277
    %p279 = scmp.ne.s32.totalorder %s267, %s268
    %p280 = scmp.eq.s32.totalorder %s27, 1
    %p281 = por %p279, %p280
    %p283 = scmp.ne.s32.totalorder %s268, %s282
    %p284 = scmp.eq.s32.totalorder %s27, 0
    %p285 = por %p283, %p284
    %s287 = sadd.s32 %s286, 1
    %p290 = scmp.eq.s32.totalorder %s21, 1
    %p291 = scmp.ne.s32.totalorder %s286, %s288
    %p292 = scmp.eq.s32.totalorder %s21, 0
    %p293 = por %p291, %p292
    %p294 = scmp.ne.s32.totalorder %s286, %s288
    %p295 = scmp.eq.s32.totalorder %s26, 1
    %p296 = por %p294, %p295
    %p297 = scmp.ne.s32.totalorder %s288, %s289
    %p298 = scmp.eq.s32.totalorder %s26, 0
    %p299 = por %p297, %p298
    %p300 = scmp.ne.s32.totalorder %s288, %s289
    %p301 = scmp.eq.s32.totalorder %s27, 1
    %p302 = por %p300, %p301
    %p304 = scmp.ne.s32.totalorder %s289, %s303
    %p305 = scmp.eq.s32.totalorder %s27, 0
    %p306 = por %p304, %p305
    %s308 = sadd.s32 %s307, 1
    %p311 = scmp.eq.s32.totalorder %s21, 1
    %p312 = scmp.ne.s32.totalorder %s307, %s309
    %p313 = scmp.eq.s32.totalorder %s21, 0
    %p314 = por %p312, %p313
    %p315 = scmp.ne.s32.totalorder %s307, %s309
    %p316 = scmp.eq.s32.totalorder %s26, 1
    %p317 = por %p315, %p316
    %p318 = scmp.ne.s32.totalorder %s309, %s310
    %p319 = scmp.eq.s32.totalorder %s26, 0
    %p320 = por %p318, %p319
    %p321 = scmp.ne.s32.totalorder %s309, %s310
    %p322 = scmp.eq.s32.totalorder %s27, 1
    %p323 = por %p321, %p322
    %p325 = scmp.ne.s32.totalorder %s310, %s324
    %p326 = scmp.eq.s32.totalorder %s27, 0
    %p327 = por %p325, %p326
    %s329 = sadd.s32 %s328, 1
    %p332 = scmp.eq.s32.totalorder %s21, 1
    %p333 = scmp.ne.s32.totalorder %s328, %s330
    %p334 = scmp.eq.s32.totalorder %s21, 0
    %p335 = por %p333, %p334
    %p336 = scmp.ne.s32.totalorder %s328, %s330
    %p337 = scmp.eq.s32.totalorder %s26, 1
    %p338 = por %p336, %p337
    %p339 = scmp.ne.s32.totalorder %s330, %s331
    %p340 = scmp.eq.s32.totalorder %s26, 0
    %p341 = por %p339, %p340
    %p342 = scmp.ne.s32.totalorder %s330, %s331
    %p343 = scmp.eq.s32.totalorder %s27, 1
    %p344 = por %p342, %p343
    %p346 = scmp.ne.s32.totalorder %s331, %s345
    %p347 = scmp.eq.s32.totalorder %s27, 0
    %p348 = por %p346, %p347
    %s349 = ssub.s32 %s21, %s28
    %p350 = scmp.eq.s32.totalorder %s349, 0
    %s352 = sadd.s32 %s351, 1
    %s353 = scalar_select %p350, %s351, %s352
    %p356 = pneg %p350
    %p357 = scmp.eq.s32.totalorder %s21, 1
    %p358 = por %p356, %p357
    %p359 = scmp.ne.s32.totalorder %s351, %s354
    %p360 = scmp.eq.s32.totalorder %s21, 0
    %p361 = por %p359, %p360
    %p362 = scmp.ne.s32.totalorder %s351, %s354
    %p363 = scmp.eq.s32.totalorder %s26, 1
    %p364 = por %p362, %p363
    %p365 = scmp.ne.s32.totalorder %s354, %s355
    %p366 = scmp.eq.s32.totalorder %s26, 0
    %p367 = por %p365, %p366
    %p368 = scmp.ne.s32.totalorder %s354, %s355
    %p369 = scmp.eq.s32.totalorder %s27, 1
    %p370 = por %p368, %p369
    %p372 = scmp.ne.s32.totalorder %s355, %s371
    %p373 = scmp.eq.s32.totalorder %s27, 0
    %p374 = por %p372, %p373
    %p375 = scmp.le.s32.totalorder 1, %s21
    %p376 = scmp.lt.s32.totalorder %s21, 3
    %p377 = pnand %p375, %p376
    %p378 = pneg %p377
    // Predicated region
    $region9: #{restnet_1d_dcnn_apply.1} parent=5 // pred_check
      _
    $region10: #{restnet_1d_dcnn_apply.1} parent=5 // pred_check_branch
      %380 = sbr.rel (%p377) target = $region12
    $region11: #{restnet_1d_dcnn_apply.1} parent=5 // pred_region
      %s381 = ssub.s32 %s21, 1
      // Predicated region
      $region13: #{restnet_1d_dcnn_apply.1} parent=11 // pred_check
        %p382 = pneg %p68
      $region14: #{restnet_1d_dcnn_apply.1} parent=11 // pred_check_branch
        %384 = sbr.rel (%p382) target = $region16
      $region15: #{restnet_1d_dcnn_apply.1} parent=11 // pred_region
        _
      $region16: #{restnet_1d_dcnn_apply.1} parent=11 // pred_fallthru
        _
      // Predicated region
      $region17: #{restnet_1d_dcnn_apply.1} parent=11 // pred_check
        %p385 = pneg %p89
      $region18: #{restnet_1d_dcnn_apply.1} parent=11 // pred_check_branch
        %387 = sbr.rel (%p385) target = $region20
      $region19: #{restnet_1d_dcnn_apply.1} parent=11 // pred_region
        _
      $region20: #{restnet_1d_dcnn_apply.1} parent=11 // pred_fallthru
        _
      // Predicated region
      $region21: #{restnet_1d_dcnn_apply.1} parent=11 // pred_check
        %p388 = pneg %p110
      $region22: #{restnet_1d_dcnn_apply.1} parent=11 // pred_check_branch
        %390 = sbr.rel (%p388) target = $region24
      $region23: #{restnet_1d_dcnn_apply.1} parent=11 // pred_region
        _
      $region24: #{restnet_1d_dcnn_apply.1} parent=11 // pred_fallthru
        _
      // Predicated region
      $region25: #{restnet_1d_dcnn_apply.1} parent=11 // pred_check
        %p391 = pneg %p131
      $region26: #{restnet_1d_dcnn_apply.1} parent=11 // pred_check_branch
        %393 = sbr.rel (%p391) target = $region28
      $region27: #{restnet_1d_dcnn_apply.1} parent=11 // pred_region
        _
      $region28: #{restnet_1d_dcnn_apply.1} parent=11 // pred_fallthru
        _
      // Predicated region
      $region29: #{restnet_1d_dcnn_apply.1} parent=11 // pred_check
        %p394 = pneg %p152
      $region30: #{restnet_1d_dcnn_apply.1} parent=11 // pred_check_branch
        %396 = sbr.rel (%p394) target = $region32
      $region31: #{restnet_1d_dcnn_apply.1} parent=11 // pred_region
        _
      $region32: #{restnet_1d_dcnn_apply.1} parent=11 // pred_fallthru
        _
      // Predicated region
      $region33: #{restnet_1d_dcnn_apply.1} parent=11 // pred_check
        %p397 = pneg %p173
      $region34: #{restnet_1d_dcnn_apply.1} parent=11 // pred_check_branch
        %399 = sbr.rel (%p397) target = $region36
      $region35: #{restnet_1d_dcnn_apply.1} parent=11 // pred_region
        _
      $region36: #{restnet_1d_dcnn_apply.1} parent=11 // pred_fallthru
        _
      // Predicated region
      $region37: #{restnet_1d_dcnn_apply.1} parent=11 // pred_check
        %p400 = pneg %p194
      $region38: #{restnet_1d_dcnn_apply.1} parent=11 // pred_check_branch
        %402 = sbr.rel (%p400) target = $region40
      $region39: #{restnet_1d_dcnn_apply.1} parent=11 // pred_region
        _
      $region40: #{restnet_1d_dcnn_apply.1} parent=11 // pred_fallthru
        _
      // Predicated region
      $region41: #{restnet_1d_dcnn_apply.1} parent=11 // pred_check
        %p403 = pneg %p215
      $region42: #{restnet_1d_dcnn_apply.1} parent=11 // pred_check_branch
        %405 = sbr.rel (%p403) target = $region44
      $region43: #{restnet_1d_dcnn_apply.1} parent=11 // pred_region
        _
      $region44: #{restnet_1d_dcnn_apply.1} parent=11 // pred_fallthru
        _
      // Predicated region
      $region45: #{restnet_1d_dcnn_apply.1} parent=11 // pred_check
        %p406 = pneg %p236
      $region46: #{restnet_1d_dcnn_apply.1} parent=11 // pred_check_branch
        %408 = sbr.rel (%p406) target = $region48
      $region47: #{restnet_1d_dcnn_apply.1} parent=11 // pred_region
        _
      $region48: #{restnet_1d_dcnn_apply.1} parent=11 // pred_fallthru
        _
      // Predicated region
      $region49: #{restnet_1d_dcnn_apply.1} parent=11 // pred_check
        %p409 = pneg %p257
      $region50: #{restnet_1d_dcnn_apply.1} parent=11 // pred_check_branch
        %411 = sbr.rel (%p409) target = $region52
      $region51: #{restnet_1d_dcnn_apply.1} parent=11 // pred_region
        _
      $region52: #{restnet_1d_dcnn_apply.1} parent=11 // pred_fallthru
        _
      // Predicated region
      $region53: #{restnet_1d_dcnn_apply.1} parent=11 // pred_check
        %p412 = pneg %p278
      $region54: #{restnet_1d_dcnn_apply.1} parent=11 // pred_check_branch
        %414 = sbr.rel (%p412) target = $region56
      $region55: #{restnet_1d_dcnn_apply.1} parent=11 // pred_region
        _
      $region56: #{restnet_1d_dcnn_apply.1} parent=11 // pred_fallthru
        _
      // Predicated region
      $region57: #{restnet_1d_dcnn_apply.1} parent=11 // pred_check
        %p415 = pneg %p299
      $region58: #{restnet_1d_dcnn_apply.1} parent=11 // pred_check_branch
        %417 = sbr.rel (%p415) target = $region60
      $region59: #{restnet_1d_dcnn_apply.1} parent=11 // pred_region
        _
      $region60: #{restnet_1d_dcnn_apply.1} parent=11 // pred_fallthru
        _
      // Predicated region
      $region61: #{restnet_1d_dcnn_apply.1} parent=11 // pred_check
        %p418 = pneg %p320
      $region62: #{restnet_1d_dcnn_apply.1} parent=11 // pred_check_branch
        %420 = sbr.rel (%p418) target = $region64
      $region63: #{restnet_1d_dcnn_apply.1} parent=11 // pred_region
        _
      $region64: #{restnet_1d_dcnn_apply.1} parent=11 // pred_fallthru
        _
      // Predicated region
      $region65: #{restnet_1d_dcnn_apply.1} parent=11 // pred_check
        %p421 = pneg %p341
      $region66: #{restnet_1d_dcnn_apply.1} parent=11 // pred_check_branch
        %423 = sbr.rel (%p421) target = $region68
      $region67: #{restnet_1d_dcnn_apply.1} parent=11 // pred_region
        _
      $region68: #{restnet_1d_dcnn_apply.1} parent=11 // pred_fallthru
        _
    $region12: #{restnet_1d_dcnn_apply.1} parent=5 // pred_fallthru
      _
    %p424 = scmp.lt.s32.totalorder %s21, 2
    // Predicated region
    $region69: #{restnet_1d_dcnn_apply.1} parent=5 // pred_check
      %p425 = pneg %p424
    $region70: #{restnet_1d_dcnn_apply.1} parent=5 // pred_check_branch
      %427 = sbr.rel (%p425) target = $region72
    $region71: #{restnet_1d_dcnn_apply.1} parent=5 // pred_region
      // Predicated region
      $region73: #{restnet_1d_dcnn_apply.1} parent=71 // pred_check
        %p428 = pneg %p41
      $region74: #{restnet_1d_dcnn_apply.1} parent=71 // pred_check_branch
        %430 = sbr.rel (%p428) target = $region76
      $region75: #{restnet_1d_dcnn_apply.1} parent=71 // pred_region
        %p431 = scmp.lt.s32.totalorder %s21, 1
        %s432 = scalar_select %p431, %s21, 1
        %s433 = smul.addr %s432, 2
        %s434 = smul.addr %s433, 8
        %s435 = scalar_lea.vmem %s0, %s434
      $region76: #{restnet_1d_dcnn_apply.1} parent=71 // pred_fallthru
        _
    $region72: #{restnet_1d_dcnn_apply.1} parent=5 // pred_fallthru
      _
    %p436 = scmp.le.s32.totalorder 1, %s21
    %p437 = scmp.lt.s32.totalorder %s21, 3
    %p438 = pnand %p436, %p437
    %p439 = pneg %p438
    // Predicated region
    $region77: #{restnet_1d_dcnn_apply.1} parent=5 // pred_check
      _
    $region78: #{restnet_1d_dcnn_apply.1} parent=5 // pred_check_branch
      %441 = sbr.rel (%p438) target = $region80
    $region79: #{restnet_1d_dcnn_apply.1} parent=5 // pred_region
      %s442 = ssub.s32 %s21, 1
      %p443 = scmp.lt.s32.totalorder %s26, 1
      %s444 = scalar_select %p443, %s26, 1
      %s445 = smul.addr %s444, 2
      %s446 = smul.addr %s445, 8
      %s447 = scalar_lea.vmem %s0, %s446
      %p448 = pneg %p47
      %p449 = pneg %p44
      %p450 = pneg %p68
      %p451 = pneg %p65
      %p452 = pneg %p89
      %p453 = pneg %p86
      %p454 = pneg %p110
      %p455 = pneg %p107
      %p456 = pneg %p131
      %p457 = pneg %p128
      %p458 = pneg %p152
      %p459 = pneg %p149
      %p460 = pneg %p173
      %p461 = pneg %p170
      %p462 = pneg %p194
      %p463 = pneg %p191
      %p464 = pneg %p215
      %p465 = pneg %p212
      %p466 = pneg %p236
      %p467 = pneg %p233
      %p468 = pneg %p257
      %p469 = pneg %p254
      %p470 = pneg %p278
      %p471 = pneg %p275
      %p472 = pneg %p299
      %p473 = pneg %p296
      %p474 = pneg %p320
      %p475 = pneg %p317
      %p476 = pneg %p341
      %p477 = pneg %p338
      %p478 = pneg %p367
      %p479 = pneg %p364
      %p480 = scmp.lt.s32.totalorder %s26, 1
      %s481 = scalar_select %p480, %s26, 1
      %s482 = smul.addr %s481, 2
      %s483 = smul.addr %s482, 8
      %s484 = scalar_lea.vmem %s15, %s483
      %p485 = scmp.lt.s32.totalorder %s26, 1
      %s486 = scalar_select %p485, %s26, 1
      %s487 = smul.addr %s486, 2
      %s488 = smul.addr %s487, 8
      %s489 = scalar_lea.vmem %s0, %s488
      %p490 = scmp.lt.s32.totalorder %s26, 1
      %s491 = scalar_select %p490, %s26, 1
      %s492 = smul.addr %s491, 2
      %s493 = smul.addr %s492, 8
      %s494 = scalar_lea.vmem %s15, %s493
      %v495 = vld [vmem:[%s489] sm:$0xff]
      %v496 = vld [vmem:[%s489 + $0x8] sm:$0xff]
      %v497 = vld [vmem:[%s4] sm:$0xf]
      %v498 = vld [vmem:[%s14 + $0x3] sm:$0x1]
      %v499 = vlaneseq
      %v500 = vshrl.u32 %v499, 7
      %v501 = vsub.s32 0, %v500
      %v502 = vrot.slane %v498, %v501
      %vm503 = vcmask 31744
      %v505 = vsel %vm503, %v495, 0
      %v508 = vsel %vm503, %v496, 0
      %vm510 = vcmask 1043456
      %v512 = vsel %vm510, %v497, 0
      %514 = vmatprep.subr.mxu0 0.0
      %515 = vmatpush1.msra.mxu0 %v512
      %516 = vmatprep.subr.mxu0 0.0
      %517 = vmatpush1.msra.mxu0 0.0
      %518 = vmatprep.subr.mxu0 0.0
      %519 = vmatpush1.msra.mxu0 0.0
      %520 = vmatprep.subr.mxu0 0.0
      %521 = vmatpush1.msra.mxu0 0.0
      %522 = vmatprep.subr.mxu0 0.0
      %523 = vmatpush1.msra.mxu0 0.0
      %524 = vmatprep.subr.mxu0 0.0
      %525 = vmatpush1.msra.mxu0 0.0
      %526 = vmatprep.subr.mxu0 0.0
      %527 = vmatpush1.msra.mxu0 0.0
      %528 = vmatprep.subr.mxu0 0.0
      %529 = vmatpush1.msra.mxu0 0.0
      %530 = vmatprep.subr.mxu0 0.0
      %531 = vmatpush1.msra.mxu0 0.0
      %532 = vmatprep.subr.mxu0 0.0
      %533 = vmatpush1.msra.mxu0 0.0
      %534 = vmatprep.subr.mxu0 0.0
      %535 = vmatpush1.msra.mxu0 0.0
      %536 = vmatprep.subr.mxu0 0.0
      %537 = vmatpush1.msra.mxu0 0.0
      %538 = vmatprep.subr.mxu0 0.0
      %539 = vmatpush1.msra.mxu0 0.0
      %540 = vmatprep.subr.mxu0 0.0
      %541 = vmatpush1.msra.mxu0 0.0
      %542 = vmatprep.subr.mxu0 0.0
      %543 = vmatpush1.msra.mxu0 0.0
      %544 = vmatprep.subr.mxu0 0.0
      %545 = vmatpush1.msra.mxu0 0.0
      %546 = vmatprep.subr.mxu0 0.0
      %547 = vmatpush1.msra.mxu0 0.0
      %548 = vmatprep.subr.mxu0 0.0
      %549 = vmatpush1.msra.mxu0 0.0
      %550 = vmatprep.subr.mxu0 0.0
      %551 = vmatpush1.msra.mxu0 0.0
      %552 = vmatprep.subr.mxu0 0.0
      %553 = vmatpush1.msra.mxu0 0.0
      %554 = vmatprep.subr.mxu0 0.0
      %555 = vmatpush1.msra.mxu0 0.0
      %556 = vmatprep.subr.mxu0 0.0
      %557 = vmatpush1.msra.mxu0 0.0
      %558 = vmatprep.subr.mxu0 0.0
      %559 = vmatpush1.msra.mxu0 0.0
      %560 = vmatprep.subr.mxu0 0.0
      %561 = vmatpush1.msra.mxu0 0.0
      %562 = vmatprep.subr.mxu0 0.0
      %563 = vmatpush1.msra.mxu0 0.0
      %564 = vmatprep.subr.mxu0 0.0
      %565 = vmatpush1.msra.mxu0 0.0
      %566 = vmatprep.subr.mxu0 0.0
      %567 = vmatpush1.msra.mxu0 0.0
      %568 = vmatprep.subr.mxu0 0.0
      %569 = vmatpush1.msra.mxu0 0.0
      %570 = vmatprep.subr.mxu0 0.0
      %571 = vmatpush1.msra.mxu0 0.0
      %572 = vmatprep.subr.mxu0 0.0
      %573 = vmatpush1.msra.mxu0 0.0
      %574 = vmatprep.subr.mxu0 0.0
      %575 = vmatpush1.msra.mxu0 0.0
      %576 = vmatprep.subr.mxu0 0.0
      %577 = vmatpush1.msra.mxu0 0.0
      %578 = vmatprep.mubr.f32.mxu0 0.0
      %579 = vmatmul.mubr.f32.gmra.mrb[0].mxu0 %v505
      %v580 = vpop.f32.mrb[0].mxu0
      %v581 = vadd.f32 %v502, %v580
      %v582 = vpop.f32.mrb[0].mxu0
      %583 = vmatprep.mubr.f32.mxu0 0.0
      %584 = vmatmul.mubr.f32.gmra.mrb[0].mxu0 %v508
      %v585 = vpop.f32.mrb[0].mxu0
      %v586 = vadd.f32 %v502, %v585
      %v587 = vpop.f32.mrb[0].mxu0
      %588 = vdwg.mxu0
      %vm589 = vcmask 26624
      %590 = vst.msk [vmem:[#allocation2] sm:$0x7] %vm589, 0.0
      %591 = vst.msk [vmem:[#allocation2 + $0x13] sm:$0x7] %vm589, 0.0
      %592 = vst.msk [vmem:[#allocation2 + $0x3] sm:$0xff] %vm503, %v495
      %593 = vst.msk [vmem:[#allocation2 + $0xb] sm:$0xff] %vm503, %v496
      %v594 = vld [vmem:[#allocation2] sm:$0xff]
      %v595 = vld [vmem:[#allocation2 + $0x8] sm:$0xff]
      %v596 = vld [vmem:[%s1] sm:$0xf]
      %v597 = vld [vmem:[#allocation2 + $0x1] sm:$0xff]
      %v598 = vld [vmem:[#allocation2 + $0x9] sm:$0xff]
      %s599 = scalar_lea.vmem %s1, 4
      %v600 = vld [vmem:[%s599] sm:$0xf]
      %v602 = vsel %vm503, %v597, 0
      %v605 = vsel %vm503, %v598, 0
      %v608 = vsel %vm510, %v600, 0
      %610 = vmatprep.subr.mxu0 0.0
      %611 = vmatpush1.msra.mxu0 %v608
      %612 = vmatprep.subr.mxu0 0.0
      %613 = vmatpush1.msra.mxu0 0.0
      %614 = vmatprep.subr.mxu0 0.0
      %615 = vmatpush1.msra.mxu0 0.0
      %616 = vmatprep.subr.mxu0 0.0
      %617 = vmatpush1.msra.mxu0 0.0
      %618 = vmatprep.subr.mxu0 0.0
      %619 = vmatpush1.msra.mxu0 0.0
      %620 = vmatprep.subr.mxu0 0.0
      %621 = vmatpush1.msra.mxu0 0.0
      %622 = vmatprep.subr.mxu0 0.0
      %623 = vmatpush1.msra.mxu0 0.0
      %624 = vmatprep.subr.mxu0 0.0
      %625 = vmatpush1.msra.mxu0 0.0
      %626 = vmatprep.subr.mxu0 0.0
      %627 = vmatpush1.msra.mxu0 0.0
      %628 = vmatprep.subr.mxu0 0.0
      %629 = vmatpush1.msra.mxu0 0.0
      %630 = vmatprep.subr.mxu0 0.0
      %631 = vmatpush1.msra.mxu0 0.0
      %632 = vmatprep.subr.mxu0 0.0
      %633 = vmatpush1.msra.mxu0 0.0
      %634 = vmatprep.subr.mxu0 0.0
      %635 = vmatpush1.msra.mxu0 0.0
      %636 = vmatprep.subr.mxu0 0.0
      %637 = vmatpush1.msra.mxu0 0.0
      %638 = vmatprep.subr.mxu0 0.0
      %639 = vmatpush1.msra.mxu0 0.0
      %640 = vmatprep.subr.mxu0 0.0
      %641 = vmatpush1.msra.mxu0 0.0
      %642 = vmatprep.subr.mxu0 0.0
      %643 = vmatpush1.msra.mxu0 0.0
      %644 = vmatprep.subr.mxu0 0.0
      %645 = vmatpush1.msra.mxu0 0.0
      %646 = vmatprep.subr.mxu0 0.0
      %647 = vmatpush1.msra.mxu0 0.0
      %648 = vmatprep.subr.mxu0 0.0
      %649 = vmatpush1.msra.mxu0 0.0
      %650 = vmatprep.subr.mxu0 0.0
      %651 = vmatpush1.msra.mxu0 0.0
      %652 = vmatprep.subr.mxu0 0.0
      %653 = vmatpush1.msra.mxu0 0.0
      %654 = vmatprep.subr.mxu0 0.0
      %655 = vmatpush1.msra.mxu0 0.0
      %656 = vmatprep.subr.mxu0 0.0
      %657 = vmatpush1.msra.mxu0 0.0
      %658 = vmatprep.subr.mxu0 0.0
      %659 = vmatpush1.msra.mxu0 0.0
      %660 = vmatprep.subr.mxu0 0.0
      %661 = vmatpush1.msra.mxu0 0.0
      %662 = vmatprep.subr.mxu0 0.0
      %663 = vmatpush1.msra.mxu0 0.0
      %664 = vmatprep.subr.mxu0 0.0
      %665 = vmatpush1.msra.mxu0 0.0
      %666 = vmatprep.subr.mxu0 0.0
      %667 = vmatpush1.msra.mxu0 0.0
      %668 = vmatprep.subr.mxu0 0.0
      %669 = vmatpush1.msra.mxu0 0.0
      %670 = vmatprep.subr.mxu0 0.0
      %671 = vmatpush1.msra.mxu0 0.0
      %672 = vmatprep.subr.mxu0 0.0
      %673 = vmatpush1.msra.mxu0 0.0
      %674 = vmatprep.mubr.f32.mxu0 0.0
      %675 = vmatmul.mubr.f32.gmra.mrb[0].mxu0 %v602
      %v676 = vpop.f32.mrb[0].mxu0
      %v677 = vadd.f32 0.0, %v676
      %v678 = vpop.f32.mrb[0].mxu0
      %679 = vmatprep.mubr.f32.mxu0 0.0
      %680 = vmatmul.mubr.f32.gmra.mrb[0].mxu0 %v605
      %v681 = vpop.f32.mrb[0].mxu0
      %v682 = vadd.f32 0.0, %v681
      %v683 = vpop.f32.mrb[0].mxu0
      %684 = vdwg.mxu0
      %v686 = vsel %vm503, %v594, 0
      %v689 = vsel %vm503, %v595, 0
      %v692 = vsel %vm510, %v596, 0
      %694 = vmatprep.subr.mxu0 0.0
      %695 = vmatpush1.msra.mxu0 %v692
      %696 = vmatprep.subr.mxu0 0.0
      %697 = vmatpush1.msra.mxu0 0.0
      %698 = vmatprep.subr.mxu0 0.0
      %699 = vmatpush1.msra.mxu0 0.0
      %700 = vmatprep.subr.mxu0 0.0
      %701 = vmatpush1.msra.mxu0 0.0
      %702 = vmatprep.subr.mxu0 0.0
      %703 = vmatpush1.msra.mxu0 0.0
      %704 = vmatprep.subr.mxu0 0.0
      %705 = vmatpush1.msra.mxu0 0.0
      %706 = vmatprep.subr.mxu0 0.0
      %707 = vmatpush1.msra.mxu0 0.0
      %708 = vmatprep.subr.mxu0 0.0
      %709 = vmatpush1.msra.mxu0 0.0
      %710 = vmatprep.subr.mxu0 0.0
      %711 = vmatpush1.msra.mxu0 0.0
      %712 = vmatprep.subr.mxu0 0.0
      %713 = vmatpush1.msra.mxu0 0.0
      %714 = vmatprep.subr.mxu0 0.0
      %715 = vmatpush1.msra.mxu0 0.0
      %716 = vmatprep.subr.mxu0 0.0
      %717 = vmatpush1.msra.mxu0 0.0
      %718 = vmatprep.subr.mxu0 0.0
      %719 = vmatpush1.msra.mxu0 0.0
      %720 = vmatprep.subr.mxu0 0.0
      %721 = vmatpush1.msra.mxu0 0.0
      %722 = vmatprep.subr.mxu0 0.0
      %723 = vmatpush1.msra.mxu0 0.0
      %724 = vmatprep.subr.mxu0 0.0
      %725 = vmatpush1.msra.mxu0 0.0
      %726 = vmatprep.subr.mxu0 0.0
      %727 = vmatpush1.msra.mxu0 0.0
      %728 = vmatprep.subr.mxu0 0.0
      %729 = vmatpush1.msra.mxu0 0.0
      %730 = vmatprep.subr.mxu0 0.0
      %731 = vmatpush1.msra.mxu0 0.0
      %732 = vmatprep.subr.mxu0 0.0
      %733 = vmatpush1.msra.mxu0 0.0
      %734 = vmatprep.subr.mxu0 0.0
      %735 = vmatpush1.msra.mxu0 0.0
      %736 = vmatprep.subr.mxu0 0.0
      %737 = vmatpush1.msra.mxu0 0.0
      %738 = vmatprep.subr.mxu0 0.0
      %739 = vmatpush1.msra.mxu0 0.0
      %740 = vmatprep.subr.mxu0 0.0
      %741 = vmatpush1.msra.mxu0 0.0
      %742 = vmatprep.subr.mxu0 0.0
      %743 = vmatpush1.msra.mxu0 0.0
      %744 = vmatprep.subr.mxu0 0.0
      %745 = vmatpush1.msra.mxu0 0.0
      %746 = vmatprep.subr.mxu0 0.0
      %747 = vmatpush1.msra.mxu0 0.0
      %748 = vmatprep.subr.mxu0 0.0
      %749 = vmatpush1.msra.mxu0 0.0
      %750 = vmatprep.subr.mxu0 0.0
      %751 = vmatpush1.msra.mxu0 0.0
      %752 = vmatprep.subr.mxu0 0.0
      %753 = vmatpush1.msra.mxu0 0.0
      %754 = vmatprep.subr.mxu0 0.0
      %755 = vmatpush1.msra.mxu0 0.0
      %756 = vmatprep.subr.mxu0 0.0
      %757 = vmatpush1.msra.mxu0 0.0
      %758 = vmatprep.mubr.f32.mxu0 0.0
      %759 = vmatmul.mubr.f32.gmra.mrb[0].mxu0 %v686
      %v760 = vpop.f32.mrb[0].mxu0
      %v761 = vadd.f32 %v677, %v760
      %v762 = vpop.f32.mrb[0].mxu0
      %763 = vmatprep.mubr.f32.mxu0 0.0
      %764 = vmatmul.mubr.f32.gmra.mrb[0].mxu0 %v689
      %v765 = vpop.f32.mrb[0].mxu0
      %v766 = vadd.f32 %v682, %v765
      %v767 = vpop.f32.mrb[0].mxu0
      %768 = vdwg.mxu0
      %v769 = vld [vmem:[#allocation2 + $0x2] sm:$0xff]
      %v770 = vld [vmem:[#allocation2 + $0xa] sm:$0xff]
      %s771 = scalar_lea.vmem %s1, 8
      %v772 = vld [vmem:[%s771] sm:$0xf]
      %v774 = vsel %vm503, %v769, 0
      %v777 = vsel %vm503, %v770, 0
      %v780 = vsel %vm510, %v772, 0
      %782 = vmatprep.subr.mxu0 0.0
      %783 = vmatpush1.msra.mxu0 %v780
      %784 = vmatprep.subr.mxu0 0.0
      %785 = vmatpush1.msra.mxu0 0.0
      %786 = vmatprep.subr.mxu0 0.0
      %787 = vmatpush1.msra.mxu0 0.0
      %788 = vmatprep.subr.mxu0 0.0
      %789 = vmatpush1.msra.mxu0 0.0
      %790 = vmatprep.subr.mxu0 0.0
      %791 = vmatpush1.msra.mxu0 0.0
      %792 = vmatprep.subr.mxu0 0.0
      %793 = vmatpush1.msra.mxu0 0.0
      %794 = vmatprep.subr.mxu0 0.0
      %795 = vmatpush1.msra.mxu0 0.0
      %796 = vmatprep.subr.mxu0 0.0
      %797 = vmatpush1.msra.mxu0 0.0
      %798 = vmatprep.subr.mxu0 0.0
      %799 = vmatpush1.msra.mxu0 0.0
      %800 = vmatprep.subr.mxu0 0.0
      %801 = vmatpush1.msra.mxu0 0.0
      %802 = vmatprep.subr.mxu0 0.0
      %803 = vmatpush1.msra.mxu0 0.0
      %804 = vmatprep.subr.mxu0 0.0
      %805 = vmatpush1.msra.mxu0 0.0
      %806 = vmatprep.subr.mxu0 0.0
      %807 = vmatpush1.msra.mxu0 0.0
      %808 = vmatprep.subr.mxu0 0.0
      %809 = vmatpush1.msra.mxu0 0.0
      %810 = vmatprep.subr.mxu0 0.0
      %811 = vmatpush1.msra.mxu0 0.0
      %812 = vmatprep.subr.mxu0 0.0
      %813 = vmatpush1.msra.mxu0 0.0
      %814 = vmatprep.subr.mxu0 0.0
      %815 = vmatpush1.msra.mxu0 0.0
      %816 = vmatprep.subr.mxu0 0.0
      %817 = vmatpush1.msra.mxu0 0.0
      %818 = vmatprep.subr.mxu0 0.0
      %819 = vmatpush1.msra.mxu0 0.0
      %820 = vmatprep.subr.mxu0 0.0
      %821 = vmatpush1.msra.mxu0 0.0
      %822 = vmatprep.subr.mxu0 0.0
      %823 = vmatpush1.msra.mxu0 0.0
      %824 = vmatprep.subr.mxu0 0.0
      %825 = vmatpush1.msra.mxu0 0.0
      %826 = vmatprep.subr.mxu0 0.0
      %827 = vmatpush1.msra.mxu0 0.0
      %828 = vmatprep.subr.mxu0 0.0
      %829 = vmatpush1.msra.mxu0 0.0
      %830 = vmatprep.subr.mxu0 0.0
      %831 = vmatpush1.msra.mxu0 0.0
      %832 = vmatprep.subr.mxu0 0.0
      %833 = vmatpush1.msra.mxu0 0.0
      %834 = vmatprep.subr.mxu0 0.0
      %835 = vmatpush1.msra.mxu0 0.0
      %836 = vmatprep.subr.mxu0 0.0
      %837 = vmatpush1.msra.mxu0 0.0
      %838 = vmatprep.subr.mxu0 0.0
      %839 = vmatpush1.msra.mxu0 0.0
      %840 = vmatprep.subr.mxu0 0.0
      %841 = vmatpush1.msra.mxu0 0.0
      %842 = vmatprep.subr.mxu0 0.0
      %843 = vmatpush1.msra.mxu0 0.0
      %844 = vmatprep.subr.mxu0 0.0
      %845 = vmatpush1.msra.mxu0 0.0
      %846 = vmatprep.mubr.f32.mxu0 0.0
      %847 = vmatmul.mubr.f32.gmra.mrb[0].mxu0 %v774
      %v848 = vpop.f32.mrb[0].mxu0
      %v849 = vadd.f32 0.0, %v848
      %v850 = vpop.f32.mrb[0].mxu0
      %851 = vmatprep.mubr.f32.mxu0 0.0
      %852 = vmatmul.mubr.f32.gmra.mrb[0].mxu0 %v777
      %v853 = vpop.f32.mrb[0].mxu0
      %v854 = vadd.f32 0.0, %v853
      %v855 = vpop.f32.mrb[0].mxu0
      %856 = vdwg.mxu0
      %v857 = vadd.f32 %v761, %v849
      %v858 = vadd.f32 %v766, %v854
      %v859 = vld [vmem:[#allocation2 + $0x3] sm:$0xff]
      %v860 = vld [vmem:[#allocation2 + $0xb] sm:$0xff]
      %s861 = scalar_lea.vmem %s1, 12
      %v862 = vld [vmem:[%s861] sm:$0xf]
      %v864 = vsel %vm503, %v859, 0
      %v867 = vsel %vm503, %v860, 0
      %v870 = vsel %vm510, %v862, 0
      %872 = vmatprep.subr.mxu0 0.0
      %873 = vmatpush1.msra.mxu0 %v870
      %874 = vmatprep.subr.mxu0 0.0
      %875 = vmatpush1.msra.mxu0 0.0
      %876 = vmatprep.subr.mxu0 0.0
      %877 = vmatpush1.msra.mxu0 0.0
      %878 = vmatprep.subr.mxu0 0.0
      %879 = vmatpush1.msra.mxu0 0.0
      %880 = vmatprep.subr.mxu0 0.0
      %881 = vmatpush1.msra.mxu0 0.0
      %882 = vmatprep.subr.mxu0 0.0
      %883 = vmatpush1.msra.mxu0 0.0
      %884 = vmatprep.subr.mxu0 0.0
      %885 = vmatpush1.msra.mxu0 0.0
      %886 = vmatprep.subr.mxu0 0.0
      %887 = vmatpush1.msra.mxu0 0.0
      %888 = vmatprep.subr.mxu0 0.0
      %889 = vmatpush1.msra.mxu0 0.0
      %890 = vmatprep.subr.mxu0 0.0
      %891 = vmatpush1.msra.mxu0 0.0
      %892 = vmatprep.subr.mxu0 0.0
      %893 = vmatpush1.msra.mxu0 0.0
      %894 = vmatprep.subr.mxu0 0.0
      %895 = vmatpush1.msra.mxu0 0.0
      %896 = vmatprep.subr.mxu0 0.0
      %897 = vmatpush1.msra.mxu0 0.0
      %898 = vmatprep.subr.mxu0 0.0
      %899 = vmatpush1.msra.mxu0 0.0
      %900 = vmatprep.subr.mxu0 0.0
      %901 = vmatpush1.msra.mxu0 0.0
      %902 = vmatprep.subr.mxu0 0.0
      %903 = vmatpush1.msra.mxu0 0.0
      %904 = vmatprep.subr.mxu0 0.0
      %905 = vmatpush1.msra.mxu0 0.0
      %906 = vmatprep.subr.mxu0 0.0
      %907 = vmatpush1.msra.mxu0 0.0
      %908 = vmatprep.subr.mxu0 0.0
      %909 = vmatpush1.msra.mxu0 0.0
      %910 = vmatprep.subr.mxu0 0.0
      %911 = vmatpush1.msra.mxu0 0.0
      %912 = vmatprep.subr.mxu0 0.0
      %913 = vmatpush1.msra.mxu0 0.0
      %914 = vmatprep.subr.mxu0 0.0
      %915 = vmatpush1.msra.mxu0 0.0
      %916 = vmatprep.subr.mxu0 0.0
      %917 = vmatpush1.msra.mxu0 0.0
      %918 = vmatprep.subr.mxu0 0.0
      %919 = vmatpush1.msra.mxu0 0.0
      %920 = vmatprep.subr.mxu0 0.0
      %921 = vmatpush1.msra.mxu0 0.0
      %922 = vmatprep.subr.mxu0 0.0
      %923 = vmatpush1.msra.mxu0 0.0
      %924 = vmatprep.subr.mxu0 0.0
      %925 = vmatpush1.msra.mxu0 0.0
      %926 = vmatprep.subr.mxu0 0.0
      %927 = vmatpush1.msra.mxu0 0.0
      %928 = vmatprep.subr.mxu0 0.0
      %929 = vmatpush1.msra.mxu0 0.0
      %930 = vmatprep.subr.mxu0 0.0
      %931 = vmatpush1.msra.mxu0 0.0
      %932 = vmatprep.subr.mxu0 0.0
      %933 = vmatpush1.msra.mxu0 0.0
      %934 = vmatprep.subr.mxu0 0.0
      %935 = vmatpush1.msra.mxu0 0.0
      %936 = vmatprep.mubr.f32.mxu0 0.0
      %937 = vmatmul.mubr.f32.gmra.mrb[0].mxu0 %v864
      %v938 = vpop.f32.mrb[0].mxu0
      %v939 = vadd.f32 0.0, %v938
      %v940 = vpop.f32.mrb[0].mxu0
      %941 = vmatprep.mubr.f32.mxu0 0.0
      %942 = vmatmul.mubr.f32.gmra.mrb[0].mxu0 %v867
      %v943 = vpop.f32.mrb[0].mxu0
      %v944 = vadd.f32 0.0, %v943
      %v945 = vpop.f32.mrb[0].mxu0
      %946 = vdwg.mxu0
      %v947 = vadd.f32 %v857, %v939
      %v948 = vadd.f32 %v858, %v944
      %v949 = vld [vmem:[#allocation2 + $0x4] sm:$0xff]
      %v950 = vld [vmem:[#allocation2 + $0xc] sm:$0xff]
      %s951 = scalar_lea.vmem %s1, 16
      %v952 = vld [vmem:[%s951] sm:$0xf]
      %v954 = vsel %vm503, %v949, 0
      %v957 = vsel %vm503, %v950, 0
      %v960 = vsel %vm510, %v952, 0
      %962 = vmatprep.subr.mxu0 0.0
      %963 = vmatpush1.msra.mxu0 %v960
      %964 = vmatprep.subr.mxu0 0.0
      %965 = vmatpush1.msra.mxu0 0.0
      %966 = vmatprep.subr.mxu0 0.0
      %967 = vmatpush1.msra.mxu0 0.0
      %968 = vmatprep.subr.mxu0 0.0
      %969 = vmatpush1.msra.mxu0 0.0
      %970 = vmatprep.subr.mxu0 0.0
      %971 = vmatpush1.msra.mxu0 0.0
      %972 = vmatprep.subr.mxu0 0.0
      %973 = vmatpush1.msra.mxu0 0.0
      %974 = vmatprep.subr.mxu0 0.0
      %975 = vmatpush1.msra.mxu0 0.0
      %976 = vmatprep.subr.mxu0 0.0
      %977 = vmatpush1.msra.mxu0 0.0
      %978 = vmatprep.subr.mxu0 0.0
      %979 = vmatpush1.msra.mxu0 0.0
      %980 = vmatprep.subr.mxu0 0.0
      %981 = vmatpush1.msra.mxu0 0.0
      %982 = vmatprep.subr.mxu0 0.0
      %983 = vmatpush1.msra.mxu0 0.0
      %984 = vmatprep.subr.mxu0 0.0
      %985 = vmatpush1.msra.mxu0 0.0
      %986 = vmatprep.subr.mxu0 0.0
      %987 = vmatpush1.msra.mxu0 0.0
      %988 = vmatprep.subr.mxu0 0.0
      %989 = vmatpush1.msra.mxu0 0.0
      %990 = vmatprep.subr.mxu0 0.0
      %991 = vmatpush1.msra.mxu0 0.0
      %992 = vmatprep.subr.mxu0 0.0
      %993 = vmatpush1.msra.mxu0 0.0
      %994 = vmatprep.subr.mxu0 0.0
      %995 = vmatpush1.msra.mxu0 0.0
      %996 = vmatprep.subr.mxu0 0.0
      %997 = vmatpush1.msra.mxu0 0.0
      %998 = vmatprep.subr.mxu0 0.0
      %999 = vmatpush1.msra.mxu0 0.0
      %1000 = vmatprep.subr.mxu0 0.0
      %1001 = vmatpush1.msra.mxu0 0.0
      %1002 = vmatprep.subr.mxu0 0.0
      %1003 = vmatpush1.msra.mxu0 0.0
      %1004 = vmatprep.subr.mxu0 0.0
      %1005 = vmatpush1.msra.mxu0 0.0
      %1006 = vmatprep.subr.mxu0 0.0
      %1007 = vmatpush1.msra.mxu0 0.0
      %1008 = vmatprep.subr.mxu0 0.0
      %1009 = vmatpush1.msra.mxu0 0.0
      %1010 = vmatprep.subr.mxu0 0.0
      %1011 = vmatpush1.msra.mxu0 0.0
      %1012 = vmatprep.subr.mxu0 0.0
      %1013 = vmatpush1.msra.mxu0 0.0
      %1014 = vmatprep.subr.mxu0 0.0
      %1015 = vmatpush1.msra.mxu0 0.0
      %1016 = vmatprep.subr.mxu0 0.0
      %1017 = vmatpush1.msra.mxu0 0.0
      %1018 = vmatprep.subr.mxu0 0.0
      %1019 = vmatpush1.msra.mxu0 0.0
      %1020 = vmatprep.subr.mxu0 0.0
      %1021 = vmatpush1.msra.mxu0 0.0
      %1022 = vmatprep.subr.mxu0 0.0
      %1023 = vmatpush1.msra.mxu0 0.0
      %1024 = vmatprep.subr.mxu0 0.0
      %1025 = vmatpush1.msra.mxu0 0.0
      %1026 = vmatprep.mubr.f32.mxu0 0.0
      %1027 = vmatmul.mubr.f32.gmra.mrb[0].mxu0 %v954
      %v1028 = vpop.f32.mrb[0].mxu0
      %v1029 = vadd.f32 0.0, %v1028
      %v1030 = vpop.f32.mrb[0].mxu0
      %1031 = vmatprep.mubr.f32.mxu0 0.0
      %1032 = vmatmul.mubr.f32.gmra.mrb[0].mxu0 %v957
      %v1033 = vpop.f32.mrb[0].mxu0
      %v1034 = vadd.f32 0.0, %v1033
      %v1035 = vpop.f32.mrb[0].mxu0
      %1036 = vdwg.mxu0
      %v1037 = vadd.f32 %v947, %v1029
      %v1038 = vadd.f32 %v948, %v1034
      %v1039 = vld [vmem:[#allocation2 + $0x5] sm:$0xff]
      %v1040 = vld [vmem:[#allocation2 + $0xd] sm:$0xff]
      %s1041 = scalar_lea.vmem %s1, 20
      %v1042 = vld [vmem:[%s1041] sm:$0xf]
      %v1044 = vsel %vm503, %v1039, 0
      %v1047 = vsel %vm503, %v1040, 0
      %v1050 = vsel %vm510, %v1042, 0
      %1052 = vmatprep.subr.mxu0 0.0
      %1053 = vmatpush1.msra.mxu0 %v1050
      %1054 = vmatprep.subr.mxu0 0.0
      %1055 = vmatpush1.msra.mxu0 0.0
      %1056 = vmatprep.subr.mxu0 0.0
      %1057 = vmatpush1.msra.mxu0 0.0
      %1058 = vmatprep.subr.mxu0 0.0
      %1059 = vmatpush1.msra.mxu0 0.0
      %1060 = vmatprep.subr.mxu0 0.0
      %1061 = vmatpush1.msra.mxu0 0.0
      %1062 = vmatprep.subr.mxu0 0.0
      %1063 = vmatpush1.msra.mxu0 0.0
      %1064 = vmatprep.subr.mxu0 0.0
      %1065 = vmatpush1.msra.mxu0 0.0
      %1066 = vmatprep.subr.mxu0 0.0
      %1067 = vmatpush1.msra.mxu0 0.0
      %1068 = vmatprep.subr.mxu0 0.0
      %1069 = vmatpush1.msra.mxu0 0.0
      %1070 = vmatprep.subr.mxu0 0.0
      %1071 = vmatpush1.msra.mxu0 0.0
      %1072 = vmatprep.subr.mxu0 0.0
      %1073 = vmatpush1.msra.mxu0 0.0
      %1074 = vmatprep.subr.mxu0 0.0
      %1075 = vmatpush1.msra.mxu0 0.0
      %1076 = vmatprep.subr.mxu0 0.0
      %1077 = vmatpush1.msra.mxu0 0.0
      %1078 = vmatprep.subr.mxu0 0.0
      %1079 = vmatpush1.msra.mxu0 0.0
      %1080 = vmatprep.subr.mxu0 0.0
      %1081 = vmatpush1.msra.mxu0 0.0
      %1082 = vmatprep.subr.mxu0 0.0
      %1083 = vmatpush1.msra.mxu0 0.0
      %1084 = vmatprep.subr.mxu0 0.0
      %1085 = vmatpush1.msra.mxu0 0.0
      %1086 = vmatprep.subr.mxu0 0.0
      %1087 = vmatpush1.msra.mxu0 0.0
      %1088 = vmatprep.subr.mxu0 0.0
      %1089 = vmatpush1.msra.mxu0 0.0
      %1090 = vmatprep.subr.mxu0 0.0
      %1091 = vmatpush1.msra.mxu0 0.0
      %1092 = vmatprep.subr.mxu0 0.0
      %1093 = vmatpush1.msra.mxu0 0.0
      %1094 = vmatprep.subr.mxu0 0.0
      %1095 = vmatpush1.msra.mxu0 0.0
      %1096 = vmatprep.subr.mxu0 0.0
      %1097 = vmatpush1.msra.mxu0 0.0
      %1098 = vmatprep.subr.mxu0 0.0
      %1099 = vmatpush1.msra.mxu0 0.0
      %1100 = vmatprep.subr.mxu0 0.0
      %1101 = vmatpush1.msra.mxu0 0.0
      %1102 = vmatprep.subr.mxu0 0.0
      %1103 = vmatpush1.msra.mxu0 0.0
      %1104 = vmatprep.subr.mxu0 0.0
      %1105 = vmatpush1.msra.mxu0 0.0
      %1106 = vmatprep.subr.mxu0 0.0
      %1107 = vmatpush1.msra.mxu0 0.0
      %1108 = vmatprep.subr.mxu0 0.0
      %1109 = vmatpush1.msra.mxu0 0.0
      %1110 = vmatprep.subr.mxu0 0.0
      %1111 = vmatpush1.msra.mxu0 0.0
      %1112 = vmatprep.subr.mxu0 0.0
      %1113 = vmatpush1.msra.mxu0 0.0
      %1114 = vmatprep.subr.mxu0 0.0
      %1115 = vmatpush1.msra.mxu0 0.0
      %1116 = vmatprep.mubr.f32.mxu0 0.0
      %1117 = vmatmul.mubr.f32.gmra.mrb[0].mxu0 %v1044
      %v1118 = vpop.f32.mrb[0].mxu0
      %v1119 = vadd.f32 0.0, %v1118
      %v1120 = vpop.f32.mrb[0].mxu0
      %1121 = vmatprep.mubr.f32.mxu0 0.0
      %1122 = vmatmul.mubr.f32.gmra.mrb[0].mxu0 %v1047
      %v1123 = vpop.f32.mrb[0].mxu0
      %v1124 = vadd.f32 0.0, %v1123
      %v1125 = vpop.f32.mrb[0].mxu0
      %1126 = vdwg.mxu0
      %v1127 = vadd.f32 %v1037, %v1119
      %v1128 = vadd.f32 %v1038, %v1124
      %v1129 = vld [vmem:[#allocation2 + $0x6] sm:$0xff]
      %v1130 = vld [vmem:[#allocation2 + $0xe] sm:$0xff]
      %s1131 = scalar_lea.vmem %s1, 24
      %v1132 = vld [vmem:[%s1131] sm:$0xf]
      %v1134 = vsel %vm503, %v1129, 0
      %v1137 = vsel %vm503, %v1130, 0
      %v1140 = vsel %vm510, %v1132, 0
      %1142 = vmatprep.subr.mxu0 0.0
      %1143 = vmatpush1.msra.mxu0 %v1140
      %1144 = vmatprep.subr.mxu0 0.0
      %1145 = vmatpush1.msra.mxu0 0.0
      %1146 = vmatprep.subr.mxu0 0.0
      %1147 = vmatpush1.msra.mxu0 0.0
      %1148 = vmatprep.subr.mxu0 0.0
      %1149 = vmatpush1.msra.mxu0 0.0
      %1150 = vmatprep.subr.mxu0 0.0
      %1151 = vmatpush1.msra.mxu0 0.0
      %1152 = vmatprep.subr.mxu0 0.0
      %1153 = vmatpush1.msra.mxu0 0.0
      %1154 = vmatprep.subr.mxu0 0.0
      %1155 = vmatpush1.msra.mxu0 0.0
      %1156 = vmatprep.subr.mxu0 0.0
      %1157 = vmatpush1.msra.mxu0 0.0
      %1158 = vmatprep.subr.mxu0 0.0
      %1159 = vmatpush1.msra.mxu0 0.0
      %1160 = vmatprep.subr.mxu0 0.0
      %1161 = vmatpush1.msra.mxu0 0.0
      %1162 = vmatprep.subr.mxu0 0.0
      %1163 = vmatpush1.msra.mxu0 0.0
      %1164 = vmatprep.subr.mxu0 0.0
      %1165 = vmatpush1.msra.mxu0 0.0
      %1166 = vmatprep.subr.mxu0 0.0
      %1167 = vmatpush1.msra.mxu0 0.0
      %1168 = vmatprep.subr.mxu0 0.0
      %1169 = vmatpush1.msra.mxu0 0.0
      %1170 = vmatprep.subr.mxu0 0.0
      %1171 = vmatpush1.msra.mxu0 0.0
      %1172 = vmatprep.subr.mxu0 0.0
      %1173 = vmatpush1.msra.mxu0 0.0
      %1174 = vmatprep.subr.mxu0 0.0
      %1175 = vmatpush1.msra.mxu0 0.0
      %1176 = vmatprep.subr.mxu0 0.0
      %1177 = vmatpush1.msra.mxu0 0.0
      %1178 = vmatprep.subr.mxu0 0.0
      %1179 = vmatpush1.msra.mxu0 0.0
      %1180 = vmatprep.subr.mxu0 0.0
      %1181 = vmatpush1.msra.mxu0 0.0
      %1182 = vmatprep.subr.mxu0 0.0
      %1183 = vmatpush1.msra.mxu0 0.0
      %1184 = vmatprep.subr.mxu0 0.0
      %1185 = vmatpush1.msra.mxu0 0.0
      %1186 = vmatprep.subr.mxu0 0.0
      %1187 = vmatpush1.msra.mxu0 0.0
      %1188 = vmatprep.subr.mxu0 0.0
      %1189 = vmatpush1.msra.mxu0 0.0
      %1190 = vmatprep.subr.mxu0 0.0
      %1191 = vmatpush1.msra.mxu0 0.0
      %1192 = vmatprep.subr.mxu0 0.0
      %1193 = vmatpush1.msra.mxu0 0.0
      %1194 = vmatprep.subr.mxu0 0.0
      %1195 = vmatpush1.msra.mxu0 0.0
      %1196 = vmatprep.subr.mxu0 0.0
      %1197 = vmatpush1.msra.mxu0 0.0
      %1198 = vmatprep.subr.mxu0 0.0
      %1199 = vmatpush1.msra.mxu0 0.0
      %1200 = vmatprep.subr.mxu0 0.0
      %1201 = vmatpush1.msra.mxu0 0.0
      %1202 = vmatprep.subr.mxu0 0.0
      %1203 = vmatpush1.msra.mxu0 0.0
      %1204 = vmatprep.subr.mxu0 0.0
      %1205 = vmatpush1.msra.mxu0 0.0
      %1206 = vmatprep.mubr.f32.mxu0 0.0
      %1207 = vmatmul.mubr.f32.gmra.mrb[0].mxu0 %v1134
      %v1208 = vpop.f32.mrb[0].mxu0
      %v1209 = vadd.f32 0.0, %v1208
      %v1210 = vpop.f32.mrb[0].mxu0
      %1211 = vmatprep.mubr.f32.mxu0 0.0
      %1212 = vmatmul.mubr.f32.gmra.mrb[0].mxu0 %v1137
      %v1213 = vpop.f32.mrb[0].mxu0
      %v1214 = vadd.f32 0.0, %v1213
      %v1215 = vpop.f32.mrb[0].mxu0
      %1216 = vdwg.mxu0
      %v1217 = vadd.f32 %v1127, %v1209
      %v1218 = vadd.f32 %v1128, %v1214
      %v1219 = vld [vmem:[%s14] sm:$0x1]
      %v1220 = vlaneseq
      %v1221 = vshrl.u32 %v1220, 7
      %v1222 = vsub.s32 0, %v1221
      %v1223 = vrot.slane %v1219, %v1222
      %v1224 = vadd.f32 %v1217, %v1223
      %v1225 = vadd.f32 %v1218, %v1223
      %vm1226 = vcmp.gt.f32.partialorder %v1224, 0.0
      %vm1227 = vcmp.gt.f32.partialorder %v1225, 0.0
      %v1228 = vmul.f32 %v1224, 0.2
      %v1229 = vmul.f32 %v1225, 0.2
      %v1230 = vsel %vm1226, %v1224, %v1228
      %v1231 = vsel %vm1227, %v1225, %v1229
      %vm1232 = vcmask 256000
      %1233 = vst.msk [vmem:[#allocation3] sm:$0x7] %vm1232, 0.0
      %1234 = vst.msk [vmem:[#allocation3 + $0x13] sm:$0x7] %vm1232, 0.0
      %vm1235 = vcmask 261120
      %1236 = vst.msk [vmem:[#allocation3 + $0x3] sm:$0xff] %vm1235, %v1230
      %1237 = vst.msk [vmem:[#allocation3 + $0xb] sm:$0xff] %vm1235, %v1231
      %v1238 = vld [vmem:[#allocation3] sm:$0xff]
      %v1239 = vld [vmem:[#allocation3 + $0x8] sm:$0xff]
      %v1240 = vld [vmem:[%s2] sm:$0xff]
      %v1241 = vld [vmem:[%s2 + $0x8] sm:$0xff]
      %v1242 = vld [vmem:[%s2 + $0x10] sm:$0xff]
      %v1243 = vld [vmem:[%s2 + $0x18] sm:$0xff]
      %v1244 = vld [vmem:[#allocation3 + $0x1] sm:$0xff]
      %v1245 = vld [vmem:[#allocation3 + $0x9] sm:$0xff]
      %s1246 = scalar_lea.vmem %s2, 32
      %v1247 = vld [vmem:[%s1246] sm:$0xff]
      %v1248 = vld [vmem:[%s1246 + $0x8] sm:$0xff]
      %v1249 = vld [vmem:[%s1246 + $0x10] sm:$0xff]
      %v1250 = vld [vmem:[%s1246 + $0x18] sm:$0xff]
      %v1252 = vsel %vm1235, %v1244, 0
      %v1255 = vsel %vm1235, %v1245, 0
      %1257 = vmatprep.subr.mxu0 0.0
      %1258 = vmatpush1.msra.mxu0 %v1247
      %1259 = vmatprep.subr.mxu0 0.0
      %1260 = vmatpush1.msra.mxu0 %v1248
      %1261 = vmatprep.subr.mxu0 0.0
      %1262 = vmatpush1.msra.mxu0 %v1249
      %1263 = vmatprep.subr.mxu0 0.0
      %1264 = vmatpush1.msra.mxu0 %v1250
      %1265 = vmatprep.subr.mxu0 0.0
      %1266 = vmatpush1.msra.mxu0 0.0
      %1267 = vmatprep.subr.mxu0 0.0
      %1268 = vmatpush1.msra.mxu0 0.0
      %1269 = vmatprep.subr.mxu0 0.0
      %1270 = vmatpush1.msra.mxu0 0.0
      %1271 = vmatprep.subr.mxu0 0.0
      %1272 = vmatpush1.msra.mxu0 0.0
      %1273 = vmatprep.subr.mxu0 0.0
      %1274 = vmatpush1.msra.mxu0 0.0
      %1275 = vmatprep.subr.mxu0 0.0
      %1276 = vmatpush1.msra.mxu0 0.0
      %1277 = vmatprep.subr.mxu0 0.0
      %1278 = vmatpush1.msra.mxu0 0.0
      %1279 = vmatprep.subr.mxu0 0.0
      %1280 = vmatpush1.msra.mxu0 0.0
      %1281 = vmatprep.subr.mxu0 0.0
      %1282 = vmatpush1.msra.mxu0 0.0
      %1283 = vmatprep.subr.mxu0 0.0
      %1284 = vmatpush1.msra.mxu0 0.0
      %1285 = vmatprep.subr.mxu0 0.0
      %1286 = vmatpush1.msra.mxu0 0.0
      %1287 = vmatprep.subr.mxu0 0.0
      %1288 = vmatpush1.msra.mxu0 0.0
      %1289 = vmatprep.subr.mxu0 0.0
      %1290 = vmatpush1.msra.mxu0 0.0
      %1291 = vmatprep.subr.mxu0 0.0
      %1292 = vmatpush1.msra.mxu0 0.0
      %1293 = vmatprep.subr.mxu0 0.0
      %1294 = vmatpush1.msra.mxu0 0.0
      %1295 = vmatprep.subr.mxu0 0.0
      %1296 = vmatpush1.msra.mxu0 0.0
      %1297 = vmatprep.subr.mxu0 0.0
      %1298 = vmatpush1.msra.mxu0 0.0
      %1299 = vmatprep.subr.mxu0 0.0
      %1300 = vmatpush1.msra.mxu0 0.0
      %1301 = vmatprep.subr.mxu0 0.0
      %1302 = vmatpush1.msra.mxu0 0.0
      %1303 = vmatprep.subr.mxu0 0.0
      %1304 = vmatpush1.msra.mxu0 0.0
      %1305 = vmatprep.subr.mxu0 0.0
      %1306 = vmatpush1.msra.mxu0 0.0
      %1307 = vmatprep.subr.mxu0 0.0
      %1308 = vmatpush1.msra.mxu0 0.0
      %1309 = vmatprep.subr.mxu0 0.0
      %1310 = vmatpush1.msra.mxu0 0.0
      %1311 = vmatprep.subr.mxu0 0.0
      %1312 = vmatpush1.msra.mxu0 0.0
      %1313 = vmatprep.subr.mxu0 0.0
      %1314 = vmatpush1.msra.mxu0 0.0
      %1315 = vmatprep.subr.mxu0 0.0
      %1316 = vmatpush1.msra.mxu0 0.0
      %1317 = vmatprep.subr.mxu0 0.0
      %1318 = vmatpush1.msra.mxu0 0.0
      %1319 = vmatprep.subr.mxu0 0.0
      %1320 = vmatpush1.msra.mxu0 0.0
      %1321 = vmatprep.mubr.f32.mxu0 0.0
      %1322 = vmatmul.mubr.f32.gmra.mrb[0].mxu0 %v1252
      %v1323 = vpop.f32.mrb[0].mxu0
      %v1324 = vadd.f32 0.0, %v1323
      %v1325 = vpop.f32.mrb[0].mxu0
      %1326 = vmatprep.mubr.f32.mxu0 0.0
      %1327 = vmatmul.mubr.f32.gmra.mrb[0].mxu0 %v1255
      %v1328 = vpop.f32.mrb[0].mxu0
      %v1329 = vadd.f32 0.0, %v1328
      %v1330 = vpop.f32.mrb[0].mxu0
      %1331 = vdwg.mxu0
      %v1333 = vsel %vm1235, %v1238, 0
      %v1336 = vsel %vm1235, %v1239, 0
      %1338 = vmatprep.subr.mxu0 0.0
      %1339 = vmatpush1.msra.mxu0 %v1240
      %1340 = vmatprep.subr.mxu0 0.0
      %1341 = vmatpush1.msra.mxu0 %v1241
      %1342 = vmatprep.subr.mxu0 0.0
      %1343 = vmatpush1.msra.mxu0 %v1242
      %1344 = vmatprep.subr.mxu0 0.0
      %1345 = vmatpush1.msra.mxu0 %v1243
      %1346 = vmatprep.subr.mxu0 0.0
      %1347 = vmatpush1.msra.mxu0 0.0
      %1348 = vmatprep.subr.mxu0 0.0
      %1349 = vmatpush1.msra.mxu0 0.0
      %1350 = vmatprep.subr.mxu0 0.0
      %1351 = vmatpush1.msra.mxu0 0.0
      %1352 = vmatprep.subr.mxu0 0.0
      %1353 = vmatpush1.msra.mxu0 0.0
      %1354 = vmatprep.subr.mxu0 0.0
      %1355 = vmatpush1.msra.mxu0 0.0
      %1356 = vmatprep.subr.mxu0 0.0
      %1357 = vmatpush1.msra.mxu0 0.0
      %1358 = vmatprep.subr.mxu0 0.0
      %1359 = vmatpush1.msra.mxu0 0.0
      %1360 = vmatprep.subr.mxu0 0.0
      %1361 = vmatpush1.msra.mxu0 0.0
      %1362 = vmatprep.subr.mxu0 0.0
      %1363 = vmatpush1.msra.mxu0 0.0
      %1364 = vmatprep.subr.mxu0 0.0
      %1365 = vmatpush1.msra.mxu0 0.0
      %1366 = vmatprep.subr.mxu0 0.0
      %1367 = vmatpush1.msra.mxu0 0.0
      %1368 = vmatprep.subr.mxu0 0.0
      %1369 = vmatpush1.msra.mxu0 0.0
      %1370 = vmatprep.subr.mxu0 0.0
      %1371 = vmatpush1.msra.mxu0 0.0
      %1372 = vmatprep.subr.mxu0 0.0
      %1373 = vmatpush1.msra.mxu0 0.0
      %1374 = vmatprep.subr.mxu0 0.0
      %1375 = vmatpush1.msra.mxu0 0.0
      %1376 = vmatprep.subr.mxu0 0.0
      %1377 = vmatpush1.msra.mxu0 0.0
      %1378 = vmatprep.subr.mxu0 0.0
      %1379 = vmatpush1.msra.mxu0 0.0
      %1380 = vmatprep.subr.mxu0 0.0
      %1381 = vmatpush1.msra.mxu0 0.0
      %1382 = vmatprep.subr.mxu0 0.0
      %1383 = vmatpush1.msra.mxu0 0.0
      %1384 = vmatprep.subr.mxu0 0.0
      %1385 = vmatpush1.msra.mxu0 0.0
      %1386 = vmatprep.subr.mxu0 0.0
      %1387 = vmatpush1.msra.mxu0 0.0
      %1388 = vmatprep.subr.mxu0 0.0
      %1389 = vmatpush1.msra.mxu0 0.0
      %1390 = vmatprep.subr.mxu0 0.0
      %1391 = vmatpush1.msra.mxu0 0.0
      %1392 = vmatprep.subr.mxu0 0.0
      %1393 = vmatpush1.msra.mxu0 0.0
      %1394 = vmatprep.subr.mxu0 0.0
      %1395 = vmatpush1.msra.mxu0 0.0
      %1396 = vmatprep.subr.mxu0 0.0
      %1397 = vmatpush1.msra.mxu0 0.0
      %1398 = vmatprep.subr.mxu0 0.0
      %1399 = vmatpush1.msra.mxu0 0.0
      %1400 = vmatprep.subr.mxu0 0.0
      %1401 = vmatpush1.msra.mxu0 0.0
      %1402 = vmatprep.mubr.f32.mxu0 0.0
      %1403 = vmatmul.mubr.f32.gmra.mrb[0].mxu0 %v1333
      %v1404 = vpop.f32.mrb[0].mxu0
      %v1405 = vadd.f32 %v1324, %v1404
      %v1406 = vpop.f32.mrb[0].mxu0
      %1407 = vmatprep.mubr.f32.mxu0 0.0
      %1408 = vmatmul.mubr.f32.gmra.mrb[0].mxu0 %v1336
      %v1409 = vpop.f32.mrb[0].mxu0
      %v1410 = vadd.f32 %v1329, %v1409
      %v1411 = vpop.f32.mrb[0].mxu0
      %1412 = vdwg.mxu0
      %v1413 = vld [vmem:[#allocation3 + $0x2] sm:$0xff]
      %v1414 = vld [vmem:[#allocation3 + $0xa] sm:$0xff]
      %s1415 = scalar_lea.vmem %s2, 64
      %v1416 = vld [vmem:[%s1415] sm:$0xff]
      %v1417 = vld [vmem:[%s1415 + $0x8] sm:$0xff]
      %v1418 = vld [vmem:[%s1415 + $0x10] sm:$0xff]
      %v1419 = vld [vmem:[%s1415 + $0x18] sm:$0xff]
      %v1421 = vsel %vm1235, %v1413, 0
      %v1424 = vsel %vm1235, %v1414, 0
      %1426 = vmatprep.subr.mxu0 0.0
      %1427 = vmatpush1.msra.mxu0 %v1416
      %1428 = vmatprep.subr.mxu0 0.0
      %1429 = vmatpush1.msra.mxu0 %v1417
      %1430 = vmatprep.subr.mxu0 0.0
      %1431 = vmatpush1.msra.mxu0 %v1418
      %1432 = vmatprep.subr.mxu0 0.0
      %1433 = vmatpush1.msra.mxu0 %v1419
      %1434 = vmatprep.subr.mxu0 0.0
      %1435 = vmatpush1.msra.mxu0 0.0
      %1436 = vmatprep.subr.mxu0 0.0
      %1437 = vmatpush1.msra.mxu0 0.0
      %1438 = vmatprep.subr.mxu0 0.0
      %1439 = vmatpush1.msra.mxu0 0.0
      %1440 = vmatprep.subr.mxu0 0.0
      %1441 = vmatpush1.msra.mxu0 0.0
      %1442 = vmatprep.subr.mxu0 0.0
      %1443 = vmatpush1.msra.mxu0 0.0
      %1444 = vmatprep.subr.mxu0 0.0
      %1445 = vmatpush1.msra.mxu0 0.0
      %1446 = vmatprep.subr.mxu0 0.0
      %1447 = vmatpush1.msra.mxu0 0.0
      %1448 = vmatprep.subr.mxu0 0.0
      %1449 = vmatpush1.msra.mxu0 0.0
      %1450 = vmatprep.subr.mxu0 0.0
      %1451 = vmatpush1.msra.mxu0 0.0
      %1452 = vmatprep.subr.mxu0 0.0
      %1453 = vmatpush1.msra.mxu0 0.0
      %1454 = vmatprep.subr.mxu0 0.0
      %1455 = vmatpush1.msra.mxu0 0.0
      %1456 = vmatprep.subr.mxu0 0.0
      %1457 = vmatpush1.msra.mxu0 0.0
      %1458 = vmatprep.subr.mxu0 0.0
      %1459 = vmatpush1.msra.mxu0 0.0
      %1460 = vmatprep.subr.mxu0 0.0
      %1461 = vmatpush1.msra.mxu0 0.0
      %1462 = vmatprep.subr.mxu0 0.0
      %1463 = vmatpush1.msra.mxu0 0.0
      %1464 = vmatprep.subr.mxu0 0.0
      %1465 = vmatpush1.msra.mxu0 0.0
      %1466 = vmatprep.subr.mxu0 0.0
      %1467 = vmatpush1.msra.mxu0 0.0
      %1468 = vmatprep.subr.mxu0 0.0
      %1469 = vmatpush1.msra.mxu0 0.0
      %1470 = vmatprep.subr.mxu0 0.0
      %1471 = vmatpush1.msra.mxu0 0.0
      %1472 = vmatprep.subr.mxu0 0.0
      %1473 = vmatpush1.msra.mxu0 0.0
      %1474 = vmatprep.subr.mxu0 0.0
      %1475 = vmatpush1.msra.mxu0 0.0
      %1476 = vmatprep.subr.mxu0 0.0
      %1477 = vmatpush1.msra.mxu0 0.0
      %1478 = vmatprep.subr.mxu0 0.0
      %1479 = vmatpush1.msra.mxu0 0.0
      %1480 = vmatprep.subr.mxu0 0.0
      %1481 = vmatpush1.msra.mxu0 0.0
      %1482 = vmatprep.subr.mxu0 0.0
      %1483 = vmatpush1.msra.mxu0 0.0
      %1484 = vmatprep.subr.mxu0 0.0
      %1485 = vmatpush1.msra.mxu0 0.0
      %1486 = vmatprep.subr.mxu0 0.0
      %1487 = vmatpush1.msra.mxu0 0.0
      %1488 = vmatprep.subr.mxu0 0.0
      %1489 = vmatpush1.msra.mxu0 0.0
      %1490 = vmatprep.mubr.f32.mxu0 0.0
      %1491 = vmatmul.mubr.f32.gmra.mrb[0].mxu0 %v1421
      %v1492 = vpop.f32.mrb[0].mxu0
      %v1493 = vadd.f32 0.0, %v1492
      %v1494 = vpop.f32.mrb[0].mxu0
      %1495 = vmatprep.mubr.f32.mxu0 0.0
      %1496 = vmatmul.mubr.f32.gmra.mrb[0].mxu0 %v1424
      %v1497 = vpop.f32.mrb[0].mxu0
      %v1498 = vadd.f32 0.0, %v1497
      %v1499 = vpop.f32.mrb[0].mxu0
      %1500 = vdwg.mxu0
      %v1501 = vadd.f32 %v1405, %v1493
      %v1502 = vadd.f32 %v1410, %v1498
      %v1503 = vld [vmem:[#allocation3 + $0x3] sm:$0xff]
      %v1504 = vld [vmem:[#allocation3 + $0xb] sm:$0xff]
      %s1505 = scalar_lea.vmem %s2, 96
      %v1506 = vld [vmem:[%s1505] sm:$0xff]
      %v1507 = vld [vmem:[%s1505 + $0x8] sm:$0xff]
      %v1508 = vld [vmem:[%s1505 + $0x10] sm:$0xff]
      %v1509 = vld [vmem:[%s1505 + $0x18] sm:$0xff]
      %v1511 = vsel %vm1235, %v1503, 0
      %v1514 = vsel %vm1235, %v1504, 0
      %1516 = vmatprep.subr.mxu0 0.0
      %1517 = vmatpush1.msra.mxu0 %v1506
      %1518 = vmatprep.subr.mxu0 0.0
      %1519 = vmatpush1.msra.mxu0 %v1507
      %1520 = vmatprep.subr.mxu0 0.0
      %1521 = vmatpush1.msra.mxu0 %v1508
      %1522 = vmatprep.subr.mxu0 0.0
      %1523 = vmatpush1.msra.mxu0 %v1509
      %1524 = vmatprep.subr.mxu0 0.0
      %1525 = vmatpush1.msra.mxu0 0.0
      %1526 = vmatprep.subr.mxu0 0.0
      %1527 = vmatpush1.msra.mxu0 0.0
      %1528 = vmatprep.subr.mxu0 0.0
      %1529 = vmatpush1.msra.mxu0 0.0
      %1530 = vmatprep.subr.mxu0 0.0
      %1531 = vmatpush1.msra.mxu0 0.0
      %1532 = vmatprep.subr.mxu0 0.0
      %1533 = vmatpush1.msra.mxu0 0.0
      %1534 = vmatprep.subr.mxu0 0.0
      %1535 = vmatpush1.msra.mxu0 0.0
      %1536 = vmatprep.subr.mxu0 0.0
      %1537 = vmatpush1.msra.mxu0 0.0
      %1538 = vmatprep.subr.mxu0 0.0
      %1539 = vmatpush1.msra.mxu0 0.0
      %1540 = vmatprep.subr.mxu0 0.0
      %1541 = vmatpush1.msra.mxu0 0.0
      %1542 = vmatprep.subr.mxu0 0.0
      %1543 = vmatpush1.msra.mxu0 0.0
      %1544 = vmatprep.subr.mxu0 0.0
      %1545 = vmatpush1.msra.mxu0 0.0
      %1546 = vmatprep.subr.mxu0 0.0
      %1547 = vmatpush1.msra.mxu0 0.0
      %1548 = vmatprep.subr.mxu0 0.0
      %1549 = vmatpush1.msra.mxu0 0.0
      %1550 = vmatprep.subr.mxu0 0.0
      %1551 = vmatpush1.msra.mxu0 0.0
      %1552 = vmatprep.subr.mxu0 0.0
      %1553 = vmatpush1.msra.mxu0 0.0
      %1554 = vmatprep.subr.mxu0 0.0
      %1555 = vmatpush1.msra.mxu0 0.0
      %1556 = vmatprep.subr.mxu0 0.0
      %1557 = vmatpush1.msra.mxu0 0.0
      %1558 = vmatprep.subr.mxu0 0.0
      %1559 = vmatpush1.msra.mxu0 0.0
      %1560 = vmatprep.subr.mxu0 0.0
      %1561 = vmatpush1.msra.mxu0 0.0
      %1562 = vmatprep.subr.mxu0 0.0
      %1563 = vmatpush1.msra.mxu0 0.0
      %1564 = vmatprep.subr.mxu0 0.0
      %1565 = vmatpush1.msra.mxu0 0.0
      %1566 = vmatprep.subr.mxu0 0.0
      %1567 = vmatpush1.msra.mxu0 0.0
      %1568 = vmatprep.subr.mxu0 0.0
      %1569 = vmatpush1.msra.mxu0 0.0
      %1570 = vmatprep.subr.mxu0 0.0
      %1571 = vmatpush1.msra.mxu0 0.0
      %1572 = vmatprep.subr.mxu0 0.0
      %1573 = vmatpush1.msra.mxu0 0.0
      %1574 = vmatprep.subr.mxu0 0.0
      %1575 = vmatpush1.msra.mxu0 0.0
      %1576 = vmatprep.subr.mxu0 0.0
      %1577 = vmatpush1.msra.mxu0 0.0
      %1578 = vmatprep.subr.mxu0 0.0
      %1579 = vmatpush1.msra.mxu0 0.0
      %1580 = vmatprep.mubr.f32.mxu0 0.0
      %1581 = vmatmul.mubr.f32.gmra.mrb[0].mxu0 %v1511
      %v1582 = vpop.f32.mrb[0].mxu0
      %v1583 = vadd.f32 0.0, %v1582
      %v1584 = vpop.f32.mrb[0].mxu0
      %1585 = vmatprep.mubr.f32.mxu0 0.0
      %1586 = vmatmul.mubr.f32.gmra.mrb[0].mxu0 %v1514
      %v1587 = vpop.f32.mrb[0].mxu0
      %v1588 = vadd.f32 0.0, %v1587
      %v1589 = vpop.f32.mrb[0].mxu0
      %1590 = vdwg.mxu0
      %v1591 = vadd.f32 %v1501, %v1583
      %v1592 = vadd.f32 %v1502, %v1588
      %v1593 = vld [vmem:[#allocation3 + $0x4] sm:$0xff]
      %v1594 = vld [vmem:[#allocation3 + $0xc] sm:$0xff]
      %s1595 = scalar_lea.vmem %s2, 128
      %v1596 = vld [vmem:[%s1595] sm:$0xff]
      %v1597 = vld [vmem:[%s1595 + $0x8] sm:$0xff]
      %v1598 = vld [vmem:[%s1595 + $0x10] sm:$0xff]
      %v1599 = vld [vmem:[%s1595 + $0x18] sm:$0xff]
      %v1601 = vsel %vm1235, %v1593, 0
      %v1604 = vsel %vm1235, %v1594, 0
      %1606 = vmatprep.subr.mxu0 0.0
      %1607 = vmatpush1.msra.mxu0 %v1596
      %1608 = vmatprep.subr.mxu0 0.0
      %1609 = vmatpush1.msra.mxu0 %v1597
      %1610 = vmatprep.subr.mxu0 0.0
      %1611 = vmatpush1.msra.mxu0 %v1598
      %1612 = vmatprep.subr.mxu0 0.0
      %1613 = vmatpush1.msra.mxu0 %v1599
      %1614 = vmatprep.subr.mxu0 0.0
      %1615 = vmatpush1.msra.mxu0 0.0
      %1616 = vmatprep.subr.mxu0 0.0
      %1617 = vmatpush1.msra.mxu0 0.0
      %1618 = vmatprep.subr.mxu0 0.0
      %1619 = vmatpush1.msra.mxu0 0.0
      %1620 = vmatprep.subr.mxu0 0.0
      %1621 = vmatpush1.msra.mxu0 0.0
      %1622 = vmatprep.subr.mxu0 0.0
      %1623 = vmatpush1.msra.mxu0 0.0
      %1624 = vmatprep.subr.mxu0 0.0
      %1625 = vmatpush1.msra.mxu0 0.0
      %1626 = vmatprep.subr.mxu0 0.0
      %1627 = vmatpush1.msra.mxu0 0.0
      %1628 = vmatprep.subr.mxu0 0.0
      %1629 = vmatpush1.msra.mxu0 0.0
      %1630 = vmatprep.subr.mxu0 0.0
      %1631 = vmatpush1.msra.mxu0 0.0
      %1632 = vmatprep.subr.mxu0 0.0
      %1633 = vmatpush1.msra.mxu0 0.0
      %1634 = vmatprep.subr.mxu0 0.0
      %1635 = vmatpush1.msra.mxu0 0.0
      %1636 = vmatprep.subr.mxu0 0.0
      %1637 = vmatpush1.msra.mxu0 0.0
      %1638 = vmatprep.subr.mxu0 0.0
      %1639 = vmatpush1.msra.mxu0 0.0
      %1640 = vmatprep.subr.mxu0 0.0
      %1641 = vmatpush1.msra.mxu0 0.0
      %1642 = vmatprep.subr.mxu0 0.0
      %1643 = vmatpush1.msra.mxu0 0.0
      %1644 = vmatprep.subr.mxu0 0.0
      %1645 = vmatpush1.msra.mxu0 0.0
      %1646 = vmatprep.subr.mxu0 0.0
      %1647 = vmatpush1.msra.mxu0 0.0
      %1648 = vmatprep.subr.mxu0 0.0
      %1649 = vmatpush1.msra.mxu0 0.0
      %1650 = vmatprep.subr.mxu0 0.0
      %1651 = vmatpush1.msra.mxu0 0.0
      %1652 = vmatprep.subr.mxu0 0.0
      %1653 = vmatpush1.msra.mxu0 0.0
      %1654 = vmatprep.subr.mxu0 0.0
      %1655 = vmatpush1.msra.mxu0 0.0
      %1656 = vmatprep.subr.mxu0 0.0
      %1657 = vmatpush1.msra.mxu0 0.0
      %1658 = vmatprep.subr.mxu0 0.0
      %1659 = vmatpush1.msra.mxu0 0.0
      %1660 = vmatprep.subr.mxu0 0.0
      %1661 = vmatpush1.msra.mxu0 0.0
      %1662 = vmatprep.subr.mxu0 0.0
      %1663 = vmatpush1.msra.mxu0 0.0
      %1664 = vmatprep.subr.mxu0 0.0
      %1665 = vmatpush1.msra.mxu0 0.0
      %1666 = vmatprep.subr.mxu0 0.0
      %1667 = vmatpush1.msra.mxu0 0.0
      %1668 = vmatprep.subr.mxu0 0.0
      %1669 = vmatpush1.msra.mxu0 0.0
      %1670 = vmatprep.mubr.f32.mxu0 0.0
      %1671 = vmatmul.mubr.f32.gmra.mrb[0].mxu0 %v1601
      %v1672 = vpop.f32.mrb[0].mxu0
      %v1673 = vadd.f32 0.0, %v1672
      %v1674 = vpop.f32.mrb[0].mxu0
      %1675 = vmatprep.mubr.f32.mxu0 0.0
      %1676 = vmatmul.mubr.f32.gmra.mrb[0].mxu0 %v1604
      %v1677 = vpop.f32.mrb[0].mxu0
      %v1678 = vadd.f32 0.0, %v1677
      %v1679 = vpop.f32.mrb[0].mxu0
      %1680 = vdwg.mxu0
      %v1681 = vadd.f32 %v1591, %v1673
      %v1682 = vadd.f32 %v1592, %v1678
      %v1683 = vld [vmem:[#allocation3 + $0x5] sm:$0xff]
      %v1684 = vld [vmem:[#allocation3 + $0xd] sm:$0xff]
      %s1685 = scalar_lea.vmem %s2, 160
      %v1686 = vld [vmem:[%s1685] sm:$0xff]
      %v1687 = vld [vmem:[%s1685 + $0x8] sm:$0xff]
      %v1688 = vld [vmem:[%s1685 + $0x10] sm:$0xff]
      %v1689 = vld [vmem:[%s1685 + $0x18] sm:$0xff]
      %v1691 = vsel %vm1235, %v1683, 0
      %v1694 = vsel %vm1235, %v1684, 0
      %1696 = vmatprep.subr.mxu0 0.0
      %1697 = vmatpush1.msra.mxu0 %v1686
      %1698 = vmatprep.subr.mxu0 0.0
      %1699 = vmatpush1.msra.mxu0 %v1687
      %1700 = vmatprep.subr.mxu0 0.0
      %1701 = vmatpush1.msra.mxu0 %v1688
      %1702 = vmatprep.subr.mxu0 0.0
      %1703 = vmatpush1.msra.mxu0 %v1689
      %1704 = vmatprep.subr.mxu0 0.0
      %1705 = vmatpush1.msra.mxu0 0.0
      %1706 = vmatprep.subr.mxu0 0.0
      %1707 = vmatpush1.msra.mxu0 0.0
      %1708 = vmatprep.subr.mxu0 0.0
      %1709 = vmatpush1.msra.mxu0 0.0
      %1710 = vmatprep.subr.mxu0 0.0
      %1711 = vmatpush1.msra.mxu0 0.0
      %1712 = vmatprep.subr.mxu0 0.0
      %1713 = vmatpush1.msra.mxu0 0.0
      %1714 = vmatprep.subr.mxu0 0.0
      %1715 = vmatpush1.msra.mxu0 0.0
      %1716 = vmatprep.subr.mxu0 0.0
      %1717 = vmatpush1.msra.mxu0 0.0
      %1718 = vmatprep.subr.mxu0 0.0
      %1719 = vmatpush1.msra.mxu0 0.0
      %1720 = vmatprep.subr.mxu0 0.0
      %1721 = vmatpush1.msra.mxu0 0.0
      %1722 = vmatprep.subr.mxu0 0.0
      %1723 = vmatpush1.msra.mxu0 0.0
      %1724 = vmatprep.subr.mxu0 0.0
      %1725 = vmatpush1.msra.mxu0 0.0
      %1726 = vmatprep.subr.mxu0 0.0
      %1727 = vmatpush1.msra.mxu0 0.0
      %1728 = vmatprep.subr.mxu0 0.0
      %1729 = vmatpush1.msra.mxu0 0.0
      %1730 = vmatprep.subr.mxu0 0.0
      %1731 = vmatpush1.msra.mxu0 0.0
      %1732 = vmatprep.subr.mxu0 0.0
      %1733 = vmatpush1.msra.mxu0 0.0
      %1734 = vmatprep.subr.mxu0 0.0
      %1735 = vmatpush1.msra.mxu0 0.0
      %1736 = vmatprep.subr.mxu0 0.0
      %1737 = vmatpush1.msra.mxu0 0.0
      %1738 = vmatprep.subr.mxu0 0.0
      %1739 = vmatpush1.msra.mxu0 0.0
      %1740 = vmatprep.subr.mxu0 0.0
      %1741 = vmatpush1.msra.mxu0 0.0
      %1742 = vmatprep.subr.mxu0 0.0
      %1743 = vmatpush1.msra.mxu0 0.0
      %1744 = vmatprep.subr.mxu0 0.0
      %1745 = vmatpush1.msra.mxu0 0.0
      %1746 = vmatprep.subr.mxu0 0.0
      %1747 = vmatpush1.msra.mxu0 0.0
      %1748 = vmatprep.subr.mxu0 0.0
      %1749 = vmatpush1.msra.mxu0 0.0
      %1750 = vmatprep.subr.mxu0 0.0
      %1751 = vmatpush1.msra.mxu0 0.0
      %1752 = vmatprep.subr.mxu0 0.0
      %1753 = vmatpush1.msra.mxu0 0.0
      %1754 = vmatprep.subr.mxu0 0.0
      %1755 = vmatpush1.msra.mxu0 0.0
      %1756 = vmatprep.subr.mxu0 0.0
      %1757 = vmatpush1.msra.mxu0 0.0
      %1758 = vmatprep.subr.mxu0 0.0
      %1759 = vmatpush1.msra.mxu0 0.0
      %1760 = vmatprep.mubr.f32.mxu0 0.0
      %1761 = vmatmul.mubr.f32.gmra.mrb[0].mxu0 %v1691
      %v1762 = vpop.f32.mrb[0].mxu0
      %v1763 = vadd.f32 0.0, %v1762
      %v1764 = vpop.f32.mrb[0].mxu0
      %1765 = vmatprep.mubr.f32.mxu0 0.0
      %1766 = vmatmul.mubr.f32.gmra.mrb[0].mxu0 %v1694
      %v1767 = vpop.f32.mrb[0].mxu0
      %v1768 = vadd.f32 0.0, %v1767
      %v1769 = vpop.f32.mrb[0].mxu0
      %1770 = vdwg.mxu0
      %v1771 = vadd.f32 %v1681, %v1763
      %v1772 = vadd.f32 %v1682, %v1768
      %v1773 = vld [vmem:[#allocation3 + $0x6] sm:$0xff]
      %v1774 = vld [vmem:[#allocation3 + $0xe] sm:$0xff]
      %s1775 = scalar_lea.vmem %s2, 192
      %v1776 = vld [vmem:[%s1775] sm:$0xff]
      %v1777 = vld [vmem:[%s1775 + $0x8] sm:$0xff]
      %v1778 = vld [vmem:[%s1775 + $0x10] sm:$0xff]
      %v1779 = vld [vmem:[%s1775 + $0x18] sm:$0xff]
      %v1781 = vsel %vm1235, %v1773, 0
      %v1784 = vsel %vm1235, %v1774, 0
      %1786 = vmatprep.subr.mxu0 0.0
      %1787 = vmatpush1.msra.mxu0 %v1776
      %1788 = vmatprep.subr.mxu0 0.0
      %1789 = vmatpush1.msra.mxu0 %v1777
      %1790 = vmatprep.subr.mxu0 0.0
      %1791 = vmatpush1.msra.mxu0 %v1778
      %1792 = vmatprep.subr.mxu0 0.0
      %1793 = vmatpush1.msra.mxu0 %v1779
      %1794 = vmatprep.subr.mxu0 0.0
      %1795 = vmatpush1.msra.mxu0 0.0
      %1796 = vmatprep.subr.mxu0 0.0
      %1797 = vmatpush1.msra.mxu0 0.0
      %1798 = vmatprep.subr.mxu0 0.0
      %1799 = vmatpush1.msra.mxu0 0.0
      %1800 = vmatprep.subr.mxu0 0.0
      %1801 = vmatpush1.msra.mxu0 0.0
      %1802 = vmatprep.subr.mxu0 0.0
      %1803 = vmatpush1.msra.mxu0 0.0
      %1804 = vmatprep.subr.mxu0 0.0
      %1805 = vmatpush1.msra.mxu0 0.0
      %1806 = vmatprep.subr.mxu0 0.0
      %1807 = vmatpush1.msra.mxu0 0.0
      %1808 = vmatprep.subr.mxu0 0.0
      %1809 = vmatpush1.msra.mxu0 0.0
      %1810 = vmatprep.subr.mxu0 0.0
      %1811 = vmatpush1.msra.mxu0 0.0
      %1812 = vmatprep.subr.mxu0 0.0
      %1813 = vmatpush1.msra.mxu0 0.0
      %1814 = vmatprep.subr.mxu0 0.0
      %1815 = vmatpush1.msra.mxu0 0.0
      %1816 = vmatprep.subr.mxu0 0.0
      %1817 = vmatpush1.msra.mxu0 0.0
      %1818 = vmatprep.subr.mxu0 0.0
      %1819 = vmatpush1.msra.mxu0 0.0
      %1820 = vmatprep.subr.mxu0 0.0
      %1821 = vmatpush1.msra.mxu0 0.0
      %1822 = vmatprep.subr.mxu0 0.0
      %1823 = vmatpush1.msra.mxu0 0.0
      %1824 = vmatprep.subr.mxu0 0.0
      %1825 = vmatpush1.msra.mxu0 0.0
      %1826 = vmatprep.subr.mxu0 0.0
      %1827 = vmatpush1.msra.mxu0 0.0
      %1828 = vmatprep.subr.mxu0 0.0
      %1829 = vmatpush1.msra.mxu0 0.0
      %1830 = vmatprep.subr.mxu0 0.0
      %1831 = vmatpush1.msra.mxu0 0.0
      %1832 = vmatprep.subr.mxu0 0.0
      %1833 = vmatpush1.msra.mxu0 0.0
      %1834 = vmatprep.subr.mxu0 0.0
      %1835 = vmatpush1.msra.mxu0 0.0
      %1836 = vmatprep.subr.mxu0 0.0
      %1837 = vmatpush1.msra.mxu0 0.0
      %1838 = vmatprep.subr.mxu0 0.0
      %1839 = vmatpush1.msra.mxu0 0.0
      %1840 = vmatprep.subr.mxu0 0.0
      %1841 = vmatpush1.msra.mxu0 0.0
      %1842 = vmatprep.subr.mxu0 0.0
      %1843 = vmatpush1.msra.mxu0 0.0
      %1844 = vmatprep.subr.mxu0 0.0
      %1845 = vmatpush1.msra.mxu0 0.0
      %1846 = vmatprep.subr.mxu0 0.0
      %1847 = vmatpush1.msra.mxu0 0.0
      %1848 = vmatprep.subr.mxu0 0.0
      %1849 = vmatpush1.msra.mxu0 0.0
      %1850 = vmatprep.mubr.f32.mxu0 0.0
      %1851 = vmatmul.mubr.f32.gmra.mrb[0].mxu0 %v1781
      %v1852 = vpop.f32.mrb[0].mxu0
      %v1853 = vadd.f32 0.0, %v1852
      %v1854 = vpop.f32.mrb[0].mxu0
      %1855 = vmatprep.mubr.f32.mxu0 0.0
      %1856 = vmatmul.mubr.f32.gmra.mrb[0].mxu0 %v1784
      %v1857 = vpop.f32.mrb[0].mxu0
      %v1858 = vadd.f32 0.0, %v1857
      %v1859 = vpop.f32.mrb[0].mxu0
      %1860 = vdwg.mxu0
      %v1861 = vadd.f32 %v1771, %v1853
      %v1862 = vadd.f32 %v1772, %v1858
      %v1863 = vld [vmem:[%s14 + $0x1] sm:$0x1]
      %v1864 = vlaneseq
      %v1865 = vshrl.u32 %v1864, 7
      %v1866 = vsub.s32 0, %v1865
      %v1867 = vrot.slane %v1863, %v1866
      %v1868 = vadd.f32 %v1861, %v1867
      %v1869 = vadd.f32 %v1862, %v1867
      %vm1870 = vcmp.gt.f32.partialorder %v1868, 0.0
      %vm1871 = vcmp.gt.f32.partialorder %v1869, 0.0
      %v1872 = vmul.f32 %v1868, 0.2
      %v1873 = vmul.f32 %v1869, 0.2
      %v1874 = vsel %vm1870, %v1868, %v1872
      %v1875 = vsel %vm1871, %v1869, %v1873
      %1876 = vst.msk [vmem:[#allocation3] sm:$0x7] %vm1232, 0.0
      %1877 = vst.msk [vmem:[#allocation3 + $0x13] sm:$0x7] %vm1232, 0.0
      %1878 = vst.msk [vmem:[#allocation3 + $0x3] sm:$0xff] %vm1235, %v1874
      %1879 = vst.msk [vmem:[#allocation3 + $0xb] sm:$0xff] %vm1235, %v1875
      %v1880 = vld [vmem:[#allocation3] sm:$0xff]
      %v1881 = vld [vmem:[#allocation3 + $0x8] sm:$0xff]
      %v1882 = vld [vmem:[%s3] sm:$0xff]
      %v1883 = vld [vmem:[%s3 + $0x8] sm:$0xff]
      %v1884 = vld [vmem:[%s3 + $0x10] sm:$0xff]
      %v1885 = vld [vmem:[%s3 + $0x18] sm:$0xff]
      %v1886 = vld [vmem:[#allocation3 + $0x1] sm:$0xff]
      %v1887 = vld [vmem:[#allocation3 + $0x9] sm:$0xff]
      %s1888 = scalar_lea.vmem %s3, 32
      %v1889 = vld [vmem:[%s1888] sm:$0xff]
      %v1890 = vld [vmem:[%s1888 + $0x8] sm:$0xff]
      %v1891 = vld [vmem:[%s1888 + $0x10] sm:$0xff]
      %v1892 = vld [vmem:[%s1888 + $0x18] sm:$0xff]
      %v1894 = vsel %vm1235, %v1886, 0
      %v1897 = vsel %vm1235, %v1887, 0
      %1899 = vmatprep.subr.mxu0 0.0
      %1900 = vmatpush1.msra.mxu0 %v1889
      %1901 = vmatprep.subr.mxu0 0.0
      %1902 = vmatpush1.msra.mxu0 %v1890
      %1903 = vmatprep.subr.mxu0 0.0
      %1904 = vmatpush1.msra.mxu0 %v1891
      %1905 = vmatprep.subr.mxu0 0.0
      %1906 = vmatpush1.msra.mxu0 %v1892
      %1907 = vmatprep.subr.mxu0 0.0
      %1908 = vmatpush1.msra.mxu0 0.0
      %1909 = vmatprep.subr.mxu0 0.0
      %1910 = vmatpush1.msra.mxu0 0.0
      %1911 = vmatprep.subr.mxu0 0.0
      %1912 = vmatpush1.msra.mxu0 0.0
      %1913 = vmatprep.subr.mxu0 0.0
      %1914 = vmatpush1.msra.mxu0 0.0
      %1915 = vmatprep.subr.mxu0 0.0
      %1916 = vmatpush1.msra.mxu0 0.0
      %1917 = vmatprep.subr.mxu0 0.0
      %1918 = vmatpush1.msra.mxu0 0.0
      %1919 = vmatprep.subr.mxu0 0.0
      %1920 = vmatpush1.msra.mxu0 0.0
      %1921 = vmatprep.subr.mxu0 0.0
      %1922 = vmatpush1.msra.mxu0 0.0
      %1923 = vmatprep.subr.mxu0 0.0
      %1924 = vmatpush1.msra.mxu0 0.0
      %1925 = vmatprep.subr.mxu0 0.0
      %1926 = vmatpush1.msra.mxu0 0.0
      %1927 = vmatprep.subr.mxu0 0.0
      %1928 = vmatpush1.msra.mxu0 0.0
      %1929 = vmatprep.subr.mxu0 0.0
      %1930 = vmatpush1.msra.mxu0 0.0
      %1931 = vmatprep.subr.mxu0 0.0
      %1932 = vmatpush1.msra.mxu0 0.0
      %1933 = vmatprep.subr.mxu0 0.0
      %1934 = vmatpush1.msra.mxu0 0.0
      %1935 = vmatprep.subr.mxu0 0.0
      %1936 = vmatpush1.msra.mxu0 0.0
      %1937 = vmatprep.subr.mxu0 0.0
      %1938 = vmatpush1.msra.mxu0 0.0
      %1939 = vmatprep.subr.mxu0 0.0
      %1940 = vmatpush1.msra.mxu0 0.0
      %1941 = vmatprep.subr.mxu0 0.0
      %1942 = vmatpush1.msra.mxu0 0.0
      %1943 = vmatprep.subr.mxu0 0.0
      %1944 = vmatpush1.msra.mxu0 0.0
      %1945 = vmatprep.subr.mxu0 0.0
      %1946 = vmatpush1.msra.mxu0 0.0
      %1947 = vmatprep.subr.mxu0 0.0
      %1948 = vmatpush1.msra.mxu0 0.0
      %1949 = vmatprep.subr.mxu0 0.0
      %1950 = vmatpush1.msra.mxu0 0.0
      %1951 = vmatprep.subr.mxu0 0.0
      %1952 = vmatpush1.msra.mxu0 0.0
      %1953 = vmatprep.subr.mxu0 0.0
      %1954 = vmatpush1.msra.mxu0 0.0
      %1955 = vmatprep.subr.mxu0 0.0
      %1956 = vmatpush1.msra.mxu0 0.0
      %1957 = vmatprep.subr.mxu0 0.0
      %1958 = vmatpush1.msra.mxu0 0.0
      %1959 = vmatprep.subr.mxu0 0.0
      %1960 = vmatpush1.msra.mxu0 0.0
      %1961 = vmatprep.subr.mxu0 0.0
      %1962 = vmatpush1.msra.mxu0 0.0
      %1963 = vmatprep.mubr.f32.mxu0 0.0
      %1964 = vmatmul.mubr.f32.gmra.mrb[0].mxu0 %v1894
      %v1965 = vpop.f32.mrb[0].mxu0
      %v1966 = vadd.f32 0.0, %v1965
      %v1967 = vpop.f32.mrb[0].mxu0
      %1968 = vmatprep.mubr.f32.mxu0 0.0
      %1969 = vmatmul.mubr.f32.gmra.mrb[0].mxu0 %v1897
      %v1970 = vpop.f32.mrb[0].mxu0
      %v1971 = vadd.f32 0.0, %v1970
      %v1972 = vpop.f32.mrb[0].mxu0
      %1973 = vdwg.mxu0
      %v1975 = vsel %vm1235, %v1880, 0
      %v1978 = vsel %vm1235, %v1881, 0
      %1980 = vmatprep.subr.mxu0 0.0
      %1981 = vmatpush1.msra.mxu0 %v1882
      %1982 = vmatprep.subr.mxu0 0.0
      %1983 = vmatpush1.msra.mxu0 %v1883
      %1984 = vmatprep.subr.mxu0 0.0
      %1985 = vmatpush1.msra.mxu0 %v1884
      %1986 = vmatprep.subr.mxu0 0.0
      %1987 = vmatpush1.msra.mxu0 %v1885
      %1988 = vmatprep.subr.mxu0 0.0
      %1989 = vmatpush1.msra.mxu0 0.0
      %1990 = vmatprep.subr.mxu0 0.0
      %1991 = vmatpush1.msra.mxu0 0.0
      %1992 = vmatprep.subr.mxu0 0.0
      %1993 = vmatpush1.msra.mxu0 0.0
      %1994 = vmatprep.subr.mxu0 0.0
      %1995 = vmatpush1.msra.mxu0 0.0
      %1996 = vmatprep.subr.mxu0 0.0
      %1997 = vmatpush1.msra.mxu0 0.0
      %1998 = vmatprep.subr.mxu0 0.0
      %1999 = vmatpush1.msra.mxu0 0.0
      %2000 = vmatprep.subr.mxu0 0.0
      %2001 = vmatpush1.msra.mxu0 0.0
      %2002 = vmatprep.subr.mxu0 0.0
      %2003 = vmatpush1.msra.mxu0 0.0
      %2004 = vmatprep.subr.mxu0 0.0
      %2005 = vmatpush1.msra.mxu0 0.0
      %2006 = vmatprep.subr.mxu0 0.0
      %2007 = vmatpush1.msra.mxu0 0.0
      %2008 = vmatprep.subr.mxu0 0.0
      %2009 = vmatpush1.msra.mxu0 0.0
      %2010 = vmatprep.subr.mxu0 0.0
      %2011 = vmatpush1.msra.mxu0 0.0
      %2012 = vmatprep.subr.mxu0 0.0
      %2013 = vmatpush1.msra.mxu0 0.0
      %2014 = vmatprep.subr.mxu0 0.0
      %2015 = vmatpush1.msra.mxu0 0.0
      %2016 = vmatprep.subr.mxu0 0.0
      %2017 = vmatpush1.msra.mxu0 0.0
      %2018 = vmatprep.subr.mxu0 0.0
      %2019 = vmatpush1.msra.mxu0 0.0
      %2020 = vmatprep.subr.mxu0 0.0
      %2021 = vmatpush1.msra.mxu0 0.0
      %2022 = vmatprep.subr.mxu0 0.0
      %2023 = vmatpush1.msra.mxu0 0.0
      %2024 = vmatprep.subr.mxu0 0.0
      %2025 = vmatpush1.msra.mxu0 0.0
      %2026 = vmatprep.subr.mxu0 0.0
      %2027 = vmatpush1.msra.mxu0 0.0
      %2028 = vmatprep.subr.mxu0 0.0
      %2029 = vmatpush1.msra.mxu0 0.0
      %2030 = vmatprep.subr.mxu0 0.0
      %2031 = vmatpush1.msra.mxu0 0.0
      %2032 = vmatprep.subr.mxu0 0.0
      %2033 = vmatpush1.msra.mxu0 0.0
      %2034 = vmatprep.subr.mxu0 0.0
      %2035 = vmatpush1.msra.mxu0 0.0
      %2036 = vmatprep.subr.mxu0 0.0
      %2037 = vmatpush1.msra.mxu0 0.0
      %2038 = vmatprep.subr.mxu0 0.0
      %2039 = vmatpush1.msra.mxu0 0.0
      %2040 = vmatprep.subr.mxu0 0.0
      %2041 = vmatpush1.msra.mxu0 0.0
      %2042 = vmatprep.subr.mxu0 0.0
      %2043 = vmatpush1.msra.mxu0 0.0
      %2044 = vmatprep.mubr.f32.mxu0 0.0
      %2045 = vmatmul.mubr.f32.gmra.mrb[0].mxu0 %v1975
      %v2046 = vpop.f32.mrb[0].mxu0
      %v2047 = vadd.f32 %v1966, %v2046
      %v2048 = vpop.f32.mrb[0].mxu0
      %2049 = vmatprep.mubr.f32.mxu0 0.0
      %2050 = vmatmul.mubr.f32.gmra.mrb[0].mxu0 %v1978
      %v2051 = vpop.f32.mrb[0].mxu0
      %v2052 = vadd.f32 %v1971, %v2051
      %v2053 = vpop.f32.mrb[0].mxu0
      %2054 = vdwg.mxu0
      %v2055 = vld [vmem:[#allocation3 + $0x2] sm:$0xff]
      %v2056 = vld [vmem:[#allocation3 + $0xa] sm:$0xff]
      %s2057 = scalar_lea.vmem %s3, 64
      %v2058 = vld [vmem:[%s2057] sm:$0xff]
      %v2059 = vld [vmem:[%s2057 + $0x8] sm:$0xff]
      %v2060 = vld [vmem:[%s2057 + $0x10] sm:$0xff]
      %v2061 = vld [vmem:[%s2057 + $0x18] sm:$0xff]
      %v2063 = vsel %vm1235, %v2055, 0
      %v2066 = vsel %vm1235, %v2056, 0
      %2068 = vmatprep.subr.mxu0 0.0
      %2069 = vmatpush1.msra.mxu0 %v2058
      %2070 = vmatprep.subr.mxu0 0.0
      %2071 = vmatpush1.msra.mxu0 %v2059
      %2072 = vmatprep.subr.mxu0 0.0
      %2073 = vmatpush1.msra.mxu0 %v2060
      %2074 = vmatprep.subr.mxu0 0.0
      %2075 = vmatpush1.msra.mxu0 %v2061
      %2076 = vmatprep.subr.mxu0 0.0
      %2077 = vmatpush1.msra.mxu0 0.0
      %2078 = vmatprep.subr.mxu0 0.0
      %2079 = vmatpush1.msra.mxu0 0.0
      %2080 = vmatprep.subr.mxu0 0.0
      %2081 = vmatpush1.msra.mxu0 0.0
      %2082 = vmatprep.subr.mxu0 0.0
      %2083 = vmatpush1.msra.mxu0 0.0
      %2084 = vmatprep.subr.mxu0 0.0
      %2085 = vmatpush1.msra.mxu0 0.0
      %2086 = vmatprep.subr.mxu0 0.0
      %2087 = vmatpush1.msra.mxu0 0.0
      %2088 = vmatprep.subr.mxu0 0.0
      %2089 = vmatpush1.msra.mxu0 0.0
      %2090 = vmatprep.subr.mxu0 0.0
      %2091 = vmatpush1.msra.mxu0 0.0
      %2092 = vmatprep.subr.mxu0 0.0
      %2093 = vmatpush1.msra.mxu0 0.0
      %2094 = vmatprep.subr.mxu0 0.0
      %2095 = vmatpush1.msra.mxu0 0.0
      %2096 = vmatprep.subr.mxu0 0.0
      %2097 = vmatpush1.msra.mxu0 0.0
      %2098 = vmatprep.subr.mxu0 0.0
      %2099 = vmatpush1.msra.mxu0 0.0
      %2100 = vmatprep.subr.mxu0 0.0
      %2101 = vmatpush1.msra.mxu0 0.0
      %2102 = vmatprep.subr.mxu0 0.0
      %2103 = vmatpush1.msra.mxu0 0.0
      %2104 = vmatprep.subr.mxu0 0.0
      %2105 = vmatpush1.msra.mxu0 0.0
      %2106 = vmatprep.subr.mxu0 0.0
      %2107 = vmatpush1.msra.mxu0 0.0
      %2108 = vmatprep.subr.mxu0 0.0
      %2109 = vmatpush1.msra.mxu0 0.0
      %2110 = vmatprep.subr.mxu0 0.0
      %2111 = vmatpush1.msra.mxu0 0.0
      %2112 = vmatprep.subr.mxu0 0.0
      %2113 = vmatpush1.msra.mxu0 0.0
      %2114 = vmatprep.subr.mxu0 0.0
      %2115 = vmatpush1.msra.mxu0 0.0
      %2116 = vmatprep.subr.mxu0 0.0
      %2117 = vmatpush1.msra.mxu0 0.0
      %2118 = vmatprep.subr.mxu0 0.0
      %2119 = vmatpush1.msra.mxu0 0.0
      %2120 = vmatprep.subr.mxu0 0.0
      %2121 = vmatpush1.msra.mxu0 0.0
      %2122 = vmatprep.subr.mxu0 0.0
      %2123 = vmatpush1.msra.mxu0 0.0
      %2124 = vmatprep.subr.mxu0 0.0
      %2125 = vmatpush1.msra.mxu0 0.0
      %2126 = vmatprep.subr.mxu0 0.0
      %2127 = vmatpush1.msra.mxu0 0.0
      %2128 = vmatprep.subr.mxu0 0.0
      %2129 = vmatpush1.msra.mxu0 0.0
      %2130 = vmatprep.subr.mxu0 0.0
      %2131 = vmatpush1.msra.mxu0 0.0
      %2132 = vmatprep.mubr.f32.mxu0 0.0
      %2133 = vmatmul.mubr.f32.gmra.mrb[0].mxu0 %v2063
      %v2134 = vpop.f32.mrb[0].mxu0
      %v2135 = vadd.f32 0.0, %v2134
      %v2136 = vpop.f32.mrb[0].mxu0
      %2137 = vmatprep.mubr.f32.mxu0 0.0
      %2138 = vmatmul.mubr.f32.gmra.mrb[0].mxu0 %v2066
      %v2139 = vpop.f32.mrb[0].mxu0
      %v2140 = vadd.f32 0.0, %v2139
      %v2141 = vpop.f32.mrb[0].mxu0
      %2142 = vdwg.mxu0
      %v2143 = vadd.f32 %v2047, %v2135
      %v2144 = vadd.f32 %v2052, %v2140
      %v2145 = vld [vmem:[#allocation3 + $0x3] sm:$0xff]
      %v2146 = vld [vmem:[#allocation3 + $0xb] sm:$0xff]
      %s2147 = scalar_lea.vmem %s3, 96
      %v2148 = vld [vmem:[%s2147] sm:$0xff]
      %v2149 = vld [vmem:[%s2147 + $0x8] sm:$0xff]
      %v2150 = vld [vmem:[%s2147 + $0x10] sm:$0xff]
      %v2151 = vld [vmem:[%s2147 + $0x18] sm:$0xff]
      %v2153 = vsel %vm1235, %v2145, 0
      %v2156 = vsel %vm1235, %v2146, 0
      %2158 = vmatprep.subr.mxu0 0.0
      %2159 = vmatpush1.msra.mxu0 %v2148
      %2160 = vmatprep.subr.mxu0 0.0
      %2161 = vmatpush1.msra.mxu0 %v2149
      %2162 = vmatprep.subr.mxu0 0.0
      %2163 = vmatpush1.msra.mxu0 %v2150
      %2164 = vmatprep.subr.mxu0 0.0
      %2165 = vmatpush1.msra.mxu0 %v2151
      %2166 = vmatprep.subr.mxu0 0.0
      %2167 = vmatpush1.msra.mxu0 0.0
      %2168 = vmatprep.subr.mxu0 0.0
      %2169 = vmatpush1.msra.mxu0 0.0
      %2170 = vmatprep.subr.mxu0 0.0
      %2171 = vmatpush1.msra.mxu0 0.0
      %2172 = vmatprep.subr.mxu0 0.0
      %2173 = vmatpush1.msra.mxu0 0.0
      %2174 = vmatprep.subr.mxu0 0.0
      %2175 = vmatpush1.msra.mxu0 0.0
      %2176 = vmatprep.subr.mxu0 0.0
      %2177 = vmatpush1.msra.mxu0 0.0
      %2178 = vmatprep.subr.mxu0 0.0
      %2179 = vmatpush1.msra.mxu0 0.0
      %2180 = vmatprep.subr.mxu0 0.0
      %2181 = vmatpush1.msra.mxu0 0.0
      %2182 = vmatprep.subr.mxu0 0.0
      %2183 = vmatpush1.msra.mxu0 0.0
      %2184 = vmatprep.subr.mxu0 0.0
      %2185 = vmatpush1.msra.mxu0 0.0
      %2186 = vmatprep.subr.mxu0 0.0
      %2187 = vmatpush1.msra.mxu0 0.0
      %2188 = vmatprep.subr.mxu0 0.0
      %2189 = vmatpush1.msra.mxu0 0.0
      %2190 = vmatprep.subr.mxu0 0.0
      %2191 = vmatpush1.msra.mxu0 0.0
      %2192 = vmatprep.subr.mxu0 0.0
      %2193 = vmatpush1.msra.mxu0 0.0
      %2194 = vmatprep.subr.mxu0 0.0
      %2195 = vmatpush1.msra.mxu0 0.0
      %2196 = vmatprep.subr.mxu0 0.0
      %2197 = vmatpush1.msra.mxu0 0.0
      %2198 = vmatprep.subr.mxu0 0.0
      %2199 = vmatpush1.msra.mxu0 0.0
      %2200 = vmatprep.subr.mxu0 0.0
      %2201 = vmatpush1.msra.mxu0 0.0
      %2202 = vmatprep.subr.mxu0 0.0
      %2203 = vmatpush1.msra.mxu0 0.0
      %2204 = vmatprep.subr.mxu0 0.0
      %2205 = vmatpush1.msra.mxu0 0.0
      %2206 = vmatprep.subr.mxu0 0.0
      %2207 = vmatpush1.msra.mxu0 0.0
      %2208 = vmatprep.subr.mxu0 0.0
      %2209 = vmatpush1.msra.mxu0 0.0
      %2210 = vmatprep.subr.mxu0 0.0
      %2211 = vmatpush1.msra.mxu0 0.0
      %2212 = vmatprep.subr.mxu0 0.0
      %2213 = vmatpush1.msra.mxu0 0.0
      %2214 = vmatprep.subr.mxu0 0.0
      %2215 = vmatpush1.msra.mxu0 0.0
      %2216 = vmatprep.subr.mxu0 0.0
      %2217 = vmatpush1.msra.mxu0 0.0
      %2218 = vmatprep.subr.mxu0 0.0
      %2219 = vmatpush1.msra.mxu0 0.0
      %2220 = vmatprep.subr.mxu0 0.0
      %2221 = vmatpush1.msra.mxu0 0.0
      %2222 = vmatprep.mubr.f32.mxu0 0.0
      %2223 = vmatmul.mubr.f32.gmra.mrb[0].mxu0 %v2153
      %v2224 = vpop.f32.mrb[0].mxu0
      %v2225 = vadd.f32 0.0, %v2224
      %v2226 = vpop.f32.mrb[0].mxu0
      %2227 = vmatprep.mubr.f32.mxu0 0.0
      %2228 = vmatmul.mubr.f32.gmra.mrb[0].mxu0 %v2156
      %v2229 = vpop.f32.mrb[0].mxu0
      %v2230 = vadd.f32 0.0, %v2229
      %v2231 = vpop.f32.mrb[0].mxu0
      %2232 = vdwg.mxu0
      %v2233 = vadd.f32 %v2143, %v2225
      %v2234 = vadd.f32 %v2144, %v2230
      %v2235 = vld [vmem:[#allocation3 + $0x4] sm:$0xff]
      %v2236 = vld [vmem:[#allocation3 + $0xc] sm:$0xff]
      %s2237 = scalar_lea.vmem %s3, 128
      %v2238 = vld [vmem:[%s2237] sm:$0xff]
      %v2239 = vld [vmem:[%s2237 + $0x8] sm:$0xff]
      %v2240 = vld [vmem:[%s2237 + $0x10] sm:$0xff]
      %v2241 = vld [vmem:[%s2237 + $0x18] sm:$0xff]
      %v2243 = vsel %vm1235, %v2235, 0
      %v2246 = vsel %vm1235, %v2236, 0
      %2248 = vmatprep.subr.mxu0 0.0
      %2249 = vmatpush1.msra.mxu0 %v2238
      %2250 = vmatprep.subr.mxu0 0.0
      %2251 = vmatpush1.msra.mxu0 %v2239
      %2252 = vmatprep.subr.mxu0 0.0
      %2253 = vmatpush1.msra.mxu0 %v2240
      %2254 = vmatprep.subr.mxu0 0.0
      %2255 = vmatpush1.msra.mxu0 %v2241
      %2256 = vmatprep.subr.mxu0 0.0
      %2257 = vmatpush1.msra.mxu0 0.0
      %2258 = vmatprep.subr.mxu0 0.0
      %2259 = vmatpush1.msra.mxu0 0.0
      %2260 = vmatprep.subr.mxu0 0.0
      %2261 = vmatpush1.msra.mxu0 0.0
      %2262 = vmatprep.subr.mxu0 0.0
      %2263 = vmatpush1.msra.mxu0 0.0
      %2264 = vmatprep.subr.mxu0 0.0
      %2265 = vmatpush1.msra.mxu0 0.0
      %2266 = vmatprep.subr.mxu0 0.0
      %2267 = vmatpush1.msra.mxu0 0.0
      %2268 = vmatprep.subr.mxu0 0.0
      %2269 = vmatpush1.msra.mxu0 0.0
      %2270 = vmatprep.subr.mxu0 0.0
      %2271 = vmatpush1.msra.mxu0 0.0
      %2272 = vmatprep.subr.mxu0 0.0
      %2273 = vmatpush1.msra.mxu0 0.0
      %2274 = vmatprep.subr.mxu0 0.0
      %2275 = vmatpush1.msra.mxu0 0.0
      %2276 = vmatprep.subr.mxu0 0.0
      %2277 = vmatpush1.msra.mxu0 0.0
      %2278 = vmatprep.subr.mxu0 0.0
      %2279 = vmatpush1.msra.mxu0 0.0
      %2280 = vmatprep.subr.mxu0 0.0
      %2281 = vmatpush1.msra.mxu0 0.0
      %2282 = vmatprep.subr.mxu0 0.0
      %2283 = vmatpush1.msra.mxu0 0.0
      %2284 = vmatprep.subr.mxu0 0.0
      %2285 = vmatpush1.msra.mxu0 0.0
      %2286 = vmatprep.subr.mxu0 0.0
      %2287 = vmatpush1.msra.mxu0 0.0
      %2288 = vmatprep.subr.mxu0 0.0
      %2289 = vmatpush1.msra.mxu0 0.0
      %2290 = vmatprep.subr.mxu0 0.0
      %2291 = vmatpush1.msra.mxu0 0.0
      %2292 = vmatprep.subr.mxu0 0.0
      %2293 = vmatpush1.msra.mxu0 0.0
      %2294 = vmatprep.subr.mxu0 0.0
      %2295 = vmatpush1.msra.mxu0 0.0
      %2296 = vmatprep.subr.mxu0 0.0
      %2297 = vmatpush1.msra.mxu0 0.0
      %2298 = vmatprep.subr.mxu0 0.0
      %2299 = vmatpush1.msra.mxu0 0.0
      %2300 = vmatprep.subr.mxu0 0.0
      %2301 = vmatpush1.msra.mxu0 0.0
      %2302 = vmatprep.subr.mxu0 0.0
      %2303 = vmatpush1.msra.mxu0 0.0
      %2304 = vmatprep.subr.mxu0 0.0
      %2305 = vmatpush1.msra.mxu0 0.0
      %2306 = vmatprep.subr.mxu0 0.0
      %2307 = vmatpush1.msra.mxu0 0.0
      %2308 = vmatprep.subr.mxu0 0.0
      %2309 = vmatpush1.msra.mxu0 0.0
      %2310 = vmatprep.subr.mxu0 0.0
      %2311 = vmatpush1.msra.mxu0 0.0
      %2312 = vmatprep.mubr.f32.mxu0 0.0
      %2313 = vmatmul.mubr.f32.gmra.mrb[0].mxu0 %v2243
      %v2314 = vpop.f32.mrb[0].mxu0
      %v2315 = vadd.f32 0.0, %v2314
      %v2316 = vpop.f32.mrb[0].mxu0
      %2317 = vmatprep.mubr.f32.mxu0 0.0
      %2318 = vmatmul.mubr.f32.gmra.mrb[0].mxu0 %v2246
      %v2319 = vpop.f32.mrb[0].mxu0
      %v2320 = vadd.f32 0.0, %v2319
      %v2321 = vpop.f32.mrb[0].mxu0
      %2322 = vdwg.mxu0
      %v2323 = vadd.f32 %v2233, %v2315
      %v2324 = vadd.f32 %v2234, %v2320
      %v2325 = vld [vmem:[#allocation3 + $0x5] sm:$0xff]
      %v2326 = vld [vmem:[#allocation3 + $0xd] sm:$0xff]
      %s2327 = scalar_lea.vmem %s3, 160
      %v2328 = vld [vmem:[%s2327] sm:$0xff]
      %v2329 = vld [vmem:[%s2327 + $0x8] sm:$0xff]
      %v2330 = vld [vmem:[%s2327 + $0x10] sm:$0xff]
      %v2331 = vld [vmem:[%s2327 + $0x18] sm:$0xff]
      %v2333 = vsel %vm1235, %v2325, 0
      %v2336 = vsel %vm1235, %v2326, 0
      %2338 = vmatprep.subr.mxu0 0.0
      %2339 = vmatpush1.msra.mxu0 %v2328
      %2340 = vmatprep.subr.mxu0 0.0
      %2341 = vmatpush1.msra.mxu0 %v2329
      %2342 = vmatprep.subr.mxu0 0.0
      %2343 = vmatpush1.msra.mxu0 %v2330
      %2344 = vmatprep.subr.mxu0 0.0
      %2345 = vmatpush1.msra.mxu0 %v2331
      %2346 = vmatprep.subr.mxu0 0.0
      %2347 = vmatpush1.msra.mxu0 0.0
      %2348 = vmatprep.subr.mxu0 0.0
      %2349 = vmatpush1.msra.mxu0 0.0
      %2350 = vmatprep.subr.mxu0 0.0
      %2351 = vmatpush1.msra.mxu0 0.0
      %2352 = vmatprep.subr.mxu0 0.0
      %2353 = vmatpush1.msra.mxu0 0.0
      %2354 = vmatprep.subr.mxu0 0.0
      %2355 = vmatpush1.msra.mxu0 0.0
      %2356 = vmatprep.subr.mxu0 0.0
      %2357 = vmatpush1.msra.mxu0 0.0
      %2358 = vmatprep.subr.mxu0 0.0
      %2359 = vmatpush1.msra.mxu0 0.0
      %2360 = vmatprep.subr.mxu0 0.0
      %2361 = vmatpush1.msra.mxu0 0.0
      %2362 = vmatprep.subr.mxu0 0.0
      %2363 = vmatpush1.msra.mxu0 0.0
      %2364 = vmatprep.subr.mxu0 0.0
      %2365 = vmatpush1.msra.mxu0 0.0
      %2366 = vmatprep.subr.mxu0 0.0
      %2367 = vmatpush1.msra.mxu0 0.0
      %2368 = vmatprep.subr.mxu0 0.0
      %2369 = vmatpush1.msra.mxu0 0.0
      %2370 = vmatprep.subr.mxu0 0.0
      %2371 = vmatpush1.msra.mxu0 0.0
      %2372 = vmatprep.subr.mxu0 0.0
      %2373 = vmatpush1.msra.mxu0 0.0
      %2374 = vmatprep.subr.mxu0 0.0
      %2375 = vmatpush1.msra.mxu0 0.0
      %2376 = vmatprep.subr.mxu0 0.0
      %2377 = vmatpush1.msra.mxu0 0.0
      %2378 = vmatprep.subr.mxu0 0.0
      %2379 = vmatpush1.msra.mxu0 0.0
      %2380 = vmatprep.subr.mxu0 0.0
      %2381 = vmatpush1.msra.mxu0 0.0
      %2382 = vmatprep.subr.mxu0 0.0
      %2383 = vmatpush1.msra.mxu0 0.0
      %2384 = vmatprep.subr.mxu0 0.0
      %2385 = vmatpush1.msra.mxu0 0.0
      %2386 = vmatprep.subr.mxu0 0.0
      %2387 = vmatpush1.msra.mxu0 0.0
      %2388 = vmatprep.subr.mxu0 0.0
      %2389 = vmatpush1.msra.mxu0 0.0
      %2390 = vmatprep.subr.mxu0 0.0
      %2391 = vmatpush1.msra.mxu0 0.0
      %2392 = vmatprep.subr.mxu0 0.0
      %2393 = vmatpush1.msra.mxu0 0.0
      %2394 = vmatprep.subr.mxu0 0.0
      %2395 = vmatpush1.msra.mxu0 0.0
      %2396 = vmatprep.subr.mxu0 0.0
      %2397 = vmatpush1.msra.mxu0 0.0
      %2398 = vmatprep.subr.mxu0 0.0
      %2399 = vmatpush1.msra.mxu0 0.0
      %2400 = vmatprep.subr.mxu0 0.0
      %2401 = vmatpush1.msra.mxu0 0.0
      %2402 = vmatprep.mubr.f32.mxu0 0.0
      %2403 = vmatmul.mubr.f32.gmra.mrb[0].mxu0 %v2333
      %v2404 = vpop.f32.mrb[0].mxu0
      %v2405 = vadd.f32 0.0, %v2404
      %v2406 = vpop.f32.mrb[0].mxu0
      %2407 = vmatprep.mubr.f32.mxu0 0.0
      %2408 = vmatmul.mubr.f32.gmra.mrb[0].mxu0 %v2336
      %v2409 = vpop.f32.mrb[0].mxu0
      %v2410 = vadd.f32 0.0, %v2409
      %v2411 = vpop.f32.mrb[0].mxu0
      %2412 = vdwg.mxu0
      %v2413 = vadd.f32 %v2323, %v2405
      %v2414 = vadd.f32 %v2324, %v2410
      %v2415 = vld [vmem:[#allocation3 + $0x6] sm:$0xff]
      %v2416 = vld [vmem:[#allocation3 + $0xe] sm:$0xff]
      %s2417 = scalar_lea.vmem %s3, 192
      %v2418 = vld [vmem:[%s2417] sm:$0xff]
      %v2419 = vld [vmem:[%s2417 + $0x8] sm:$0xff]
      %v2420 = vld [vmem:[%s2417 + $0x10] sm:$0xff]
      %v2421 = vld [vmem:[%s2417 + $0x18] sm:$0xff]
      %v2423 = vsel %vm1235, %v2415, 0
      %v2426 = vsel %vm1235, %v2416, 0
      %2428 = vmatprep.subr.mxu0 0.0
      %2429 = vmatpush1.msra.mxu0 %v2418
      %2430 = vmatprep.subr.mxu0 0.0
      %2431 = vmatpush1.msra.mxu0 %v2419
      %2432 = vmatprep.subr.mxu0 0.0
      %2433 = vmatpush1.msra.mxu0 %v2420
      %2434 = vmatprep.subr.mxu0 0.0
      %2435 = vmatpush1.msra.mxu0 %v2421
      %2436 = vmatprep.subr.mxu0 0.0
      %2437 = vmatpush1.msra.mxu0 0.0
      %2438 = vmatprep.subr.mxu0 0.0
      %2439 = vmatpush1.msra.mxu0 0.0
      %2440 = vmatprep.subr.mxu0 0.0
      %2441 = vmatpush1.msra.mxu0 0.0
      %2442 = vmatprep.subr.mxu0 0.0
      %2443 = vmatpush1.msra.mxu0 0.0
      %2444 = vmatprep.subr.mxu0 0.0
      %2445 = vmatpush1.msra.mxu0 0.0
      %2446 = vmatprep.subr.mxu0 0.0
      %2447 = vmatpush1.msra.mxu0 0.0
      %2448 = vmatprep.subr.mxu0 0.0
      %2449 = vmatpush1.msra.mxu0 0.0
      %2450 = vmatprep.subr.mxu0 0.0
      %2451 = vmatpush1.msra.mxu0 0.0
      %2452 = vmatprep.subr.mxu0 0.0
      %2453 = vmatpush1.msra.mxu0 0.0
      %2454 = vmatprep.subr.mxu0 0.0
      %2455 = vmatpush1.msra.mxu0 0.0
      %2456 = vmatprep.subr.mxu0 0.0
      %2457 = vmatpush1.msra.mxu0 0.0
      %2458 = vmatprep.subr.mxu0 0.0
      %2459 = vmatpush1.msra.mxu0 0.0
      %2460 = vmatprep.subr.mxu0 0.0
      %2461 = vmatpush1.msra.mxu0 0.0
      %2462 = vmatprep.subr.mxu0 0.0
      %2463 = vmatpush1.msra.mxu0 0.0
      %2464 = vmatprep.subr.mxu0 0.0
      %2465 = vmatpush1.msra.mxu0 0.0
      %2466 = vmatprep.subr.mxu0 0.0
      %2467 = vmatpush1.msra.mxu0 0.0
      %2468 = vmatprep.subr.mxu0 0.0
      %2469 = vmatpush1.msra.mxu0 0.0
      %2470 = vmatprep.subr.mxu0 0.0
      %2471 = vmatpush1.msra.mxu0 0.0
      %2472 = vmatprep.subr.mxu0 0.0
      %2473 = vmatpush1.msra.mxu0 0.0
      %2474 = vmatprep.subr.mxu0 0.0
      %2475 = vmatpush1.msra.mxu0 0.0
      %2476 = vmatprep.subr.mxu0 0.0
      %2477 = vmatpush1.msra.mxu0 0.0
      %2478 = vmatprep.subr.mxu0 0.0
      %2479 = vmatpush1.msra.mxu0 0.0
      %2480 = vmatprep.subr.mxu0 0.0
      %2481 = vmatpush1.msra.mxu0 0.0
      %2482 = vmatprep.subr.mxu0 0.0
      %2483 = vmatpush1.msra.mxu0 0.0
      %2484 = vmatprep.subr.mxu0 0.0
      %2485 = vmatpush1.msra.mxu0 0.0
      %2486 = vmatprep.subr.mxu0 0.0
      %2487 = vmatpush1.msra.mxu0 0.0
      %2488 = vmatprep.subr.mxu0 0.0
      %2489 = vmatpush1.msra.mxu0 0.0
      %2490 = vmatprep.subr.mxu0 0.0
      %2491 = vmatpush1.msra.mxu0 0.0
      %2492 = vmatprep.mubr.f32.mxu0 0.0
      %2493 = vmatmul.mubr.f32.gmra.mrb[0].mxu0 %v2423
      %v2494 = vpop.f32.mrb[0].mxu0
      %v2495 = vadd.f32 0.0, %v2494
      %v2496 = vpop.f32.mrb[0].mxu0
      %2497 = vmatprep.mubr.f32.mxu0 0.0
      %2498 = vmatmul.mubr.f32.gmra.mrb[0].mxu0 %v2426
      %v2499 = vpop.f32.mrb[0].mxu0
      %v2500 = vadd.f32 0.0, %v2499
      %v2501 = vpop.f32.mrb[0].mxu0
      %2502 = vdwg.mxu0
      %v2503 = vadd.f32 %v2413, %v2495
      %v2504 = vadd.f32 %v2414, %v2500
      %v2505 = vld [vmem:[%s14 + $0x2] sm:$0x1]
      %v2506 = vlaneseq
      %v2507 = vshrl.u32 %v2506, 7
      %v2508 = vsub.s32 0, %v2507
      %v2509 = vrot.slane %v2505, %v2508
      %v2510 = vadd.f32 %v2503, %v2509
      %v2511 = vadd.f32 %v2504, %v2509
      %v2512 = vadd.f32 %v2510, %v581
      %v2513 = vadd.f32 %v2511, %v586
      %vm2514 = vcmp.gt.f32.partialorder %v2512, 0.0
      %vm2515 = vcmp.gt.f32.partialorder %v2513, 0.0
      %v2516 = vmul.f32 %v2512, 0.2
      %v2517 = vmul.f32 %v2513, 0.2
      %v2518 = vsel %vm2514, %v2512, %v2516
      %v2519 = vsel %vm2515, %v2513, %v2517
      %v2520 = vld [vmem:[%s8] sm:$0xff]
      %v2521 = vld [vmem:[%s8 + $0x8] sm:$0xff]
      %v2522 = vld [vmem:[%s8 + $0x10] sm:$0xff]
      %v2523 = vld [vmem:[%s8 + $0x18] sm:$0xff]
      %v2524 = vld [vmem:[%s14 + $0x7] sm:$0x1]
      %v2525 = vlaneseq
      %v2526 = vshrl.u32 %v2525, 7
      %v2527 = vsub.s32 0, %v2526
      %v2528 = vrot.slane %v2524, %v2527
      %v2530 = vsel %vm1235, %v2518, 0
      %v2533 = vsel %vm1235, %v2519, 0
      %2535 = vmatprep.subr.mxu0 0.0
      %2536 = vmatpush1.msra.mxu0 %v2520
      %2537 = vmatprep.subr.mxu0 0.0
      %2538 = vmatpush1.msra.mxu0 %v2521
      %2539 = vmatprep.subr.mxu0 0.0
      %2540 = vmatpush1.msra.mxu0 %v2522
      %2541 = vmatprep.subr.mxu0 0.0
      %2542 = vmatpush1.msra.mxu0 %v2523
      %2543 = vmatprep.subr.mxu0 0.0
      %2544 = vmatpush1.msra.mxu0 0.0
      %2545 = vmatprep.subr.mxu0 0.0
      %2546 = vmatpush1.msra.mxu0 0.0
      %2547 = vmatprep.subr.mxu0 0.0
      %2548 = vmatpush1.msra.mxu0 0.0
      %2549 = vmatprep.subr.mxu0 0.0
      %2550 = vmatpush1.msra.mxu0 0.0
      %2551 = vmatprep.subr.mxu0 0.0
      %2552 = vmatpush1.msra.mxu0 0.0
      %2553 = vmatprep.subr.mxu0 0.0
      %2554 = vmatpush1.msra.mxu0 0.0
      %2555 = vmatprep.subr.mxu0 0.0
      %2556 = vmatpush1.msra.mxu0 0.0
      %2557 = vmatprep.subr.mxu0 0.0
      %2558 = vmatpush1.msra.mxu0 0.0
      %2559 = vmatprep.subr.mxu0 0.0
      %2560 = vmatpush1.msra.mxu0 0.0
      %2561 = vmatprep.subr.mxu0 0.0
      %2562 = vmatpush1.msra.mxu0 0.0
      %2563 = vmatprep.subr.mxu0 0.0
      %2564 = vmatpush1.msra.mxu0 0.0
      %2565 = vmatprep.subr.mxu0 0.0
      %2566 = vmatpush1.msra.mxu0 0.0
      %2567 = vmatprep.subr.mxu0 0.0
      %2568 = vmatpush1.msra.mxu0 0.0
      %2569 = vmatprep.subr.mxu0 0.0
      %2570 = vmatpush1.msra.mxu0 0.0
      %2571 = vmatprep.subr.mxu0 0.0
      %2572 = vmatpush1.msra.mxu0 0.0
      %2573 = vmatprep.subr.mxu0 0.0
      %2574 = vmatpush1.msra.mxu0 0.0
      %2575 = vmatprep.subr.mxu0 0.0
      %2576 = vmatpush1.msra.mxu0 0.0
      %2577 = vmatprep.subr.mxu0 0.0
      %2578 = vmatpush1.msra.mxu0 0.0
      %2579 = vmatprep.subr.mxu0 0.0
      %2580 = vmatpush1.msra.mxu0 0.0
      %2581 = vmatprep.subr.mxu0 0.0
      %2582 = vmatpush1.msra.mxu0 0.0
      %2583 = vmatprep.subr.mxu0 0.0
      %2584 = vmatpush1.msra.mxu0 0.0
      %2585 = vmatprep.subr.mxu0 0.0
      %2586 = vmatpush1.msra.mxu0 0.0
      %2587 = vmatprep.subr.mxu0 0.0
      %2588 = vmatpush1.msra.mxu0 0.0
      %2589 = vmatprep.subr.mxu0 0.0
      %2590 = vmatpush1.msra.mxu0 0.0
      %2591 = vmatprep.subr.mxu0 0.0
      %2592 = vmatpush1.msra.mxu0 0.0
      %2593 = vmatprep.subr.mxu0 0.0
      %2594 = vmatpush1.msra.mxu0 0.0
      %2595 = vmatprep.subr.mxu0 0.0
      %2596 = vmatpush1.msra.mxu0 0.0
      %2597 = vmatprep.subr.mxu0 0.0
      %2598 = vmatpush1.msra.mxu0 0.0
      %2599 = vmatprep.mubr.f32.mxu0 0.0
      %2600 = vmatmul.mubr.f32.gmra.mrb[0].mxu0 %v2530
      %v2601 = vpop.f32.mrb[0].mxu0
      %v2602 = vadd.f32 %v2528, %v2601
      %v2603 = vpop.f32.mrb[0].mxu0
      %2604 = vmatprep.mubr.f32.mxu0 0.0
      %2605 = vmatmul.mubr.f32.gmra.mrb[0].mxu0 %v2533
      %v2606 = vpop.f32.mrb[0].mxu0
      %v2607 = vadd.f32 %v2528, %v2606
      %v2608 = vpop.f32.mrb[0].mxu0
      %2609 = vdwg.mxu0
      %vm2610 = vcmask 254976
      %2611 = vst.msk [vmem:[#allocation4] sm:$0x3] %vm2610, 0.0
      %2612 = vst.msk [vmem:[#allocation4 + $0x12] sm:$0x3] %vm2610, 0.0
      %2613 = vst.msk [vmem:[#allocation4 + $0x2] sm:$0xff] %vm1235, %v2518
      %2614 = vst.msk [vmem:[#allocation4 + $0xa] sm:$0xff] %vm1235, %v2519
      %v2615 = vld [vmem:[#allocation4] sm:$0xff]
      %v2616 = vld [vmem:[#allocation4 + $0x8] sm:$0xff]
      %v2617 = vld [vmem:[%s5] sm:$0xff]
      %v2618 = vld [vmem:[%s5 + $0x8] sm:$0xff]
      %v2619 = vld [vmem:[%s5 + $0x10] sm:$0xff]
      %v2620 = vld [vmem:[%s5 + $0x18] sm:$0xff]
      %v2621 = vld [vmem:[#allocation4 + $0x1] sm:$0xff]
      %v2622 = vld [vmem:[#allocation4 + $0x9] sm:$0xff]
      %s2623 = scalar_lea.vmem %s5, 32
      %v2624 = vld [vmem:[%s2623] sm:$0xff]
      %v2625 = vld [vmem:[%s2623 + $0x8] sm:$0xff]
      %v2626 = vld [vmem:[%s2623 + $0x10] sm:$0xff]
      %v2627 = vld [vmem:[%s2623 + $0x18] sm:$0xff]
      %v2629 = vsel %vm1235, %v2621, 0
      %v2632 = vsel %vm1235, %v2622, 0
      %2634 = vmatprep.subr.mxu0 0.0
      %2635 = vmatpush1.msra.mxu0 %v2624
      %2636 = vmatprep.subr.mxu0 0.0
      %2637 = vmatpush1.msra.mxu0 %v2625
      %2638 = vmatprep.subr.mxu0 0.0
      %2639 = vmatpush1.msra.mxu0 %v2626
      %2640 = vmatprep.subr.mxu0 0.0
      %2641 = vmatpush1.msra.mxu0 %v2627
      %2642 = vmatprep.subr.mxu0 0.0
      %2643 = vmatpush1.msra.mxu0 0.0
      %2644 = vmatprep.subr.mxu0 0.0
      %2645 = vmatpush1.msra.mxu0 0.0
      %2646 = vmatprep.subr.mxu0 0.0
      %2647 = vmatpush1.msra.mxu0 0.0
      %2648 = vmatprep.subr.mxu0 0.0
      %2649 = vmatpush1.msra.mxu0 0.0
      %2650 = vmatprep.subr.mxu0 0.0
      %2651 = vmatpush1.msra.mxu0 0.0
      %2652 = vmatprep.subr.mxu0 0.0
      %2653 = vmatpush1.msra.mxu0 0.0
      %2654 = vmatprep.subr.mxu0 0.0
      %2655 = vmatpush1.msra.mxu0 0.0
      %2656 = vmatprep.subr.mxu0 0.0
      %2657 = vmatpush1.msra.mxu0 0.0
      %2658 = vmatprep.subr.mxu0 0.0
      %2659 = vmatpush1.msra.mxu0 0.0
      %2660 = vmatprep.subr.mxu0 0.0
      %2661 = vmatpush1.msra.mxu0 0.0
      %2662 = vmatprep.subr.mxu0 0.0
      %2663 = vmatpush1.msra.mxu0 0.0
      %2664 = vmatprep.subr.mxu0 0.0
      %2665 = vmatpush1.msra.mxu0 0.0
      %2666 = vmatprep.subr.mxu0 0.0
      %2667 = vmatpush1.msra.mxu0 0.0
      %2668 = vmatprep.subr.mxu0 0.0
      %2669 = vmatpush1.msra.mxu0 0.0
      %2670 = vmatprep.subr.mxu0 0.0
      %2671 = vmatpush1.msra.mxu0 0.0
      %2672 = vmatprep.subr.mxu0 0.0
      %2673 = vmatpush1.msra.mxu0 0.0
      %2674 = vmatprep.subr.mxu0 0.0
      %2675 = vmatpush1.msra.mxu0 0.0
      %2676 = vmatprep.subr.mxu0 0.0
      %2677 = vmatpush1.msra.mxu0 0.0
      %2678 = vmatprep.subr.mxu0 0.0
      %2679 = vmatpush1.msra.mxu0 0.0
      %2680 = vmatprep.subr.mxu0 0.0
      %2681 = vmatpush1.msra.mxu0 0.0
      %2682 = vmatprep.subr.mxu0 0.0
      %2683 = vmatpush1.msra.mxu0 0.0
      %2684 = vmatprep.subr.mxu0 0.0
      %2685 = vmatpush1.msra.mxu0 0.0
      %2686 = vmatprep.subr.mxu0 0.0
      %2687 = vmatpush1.msra.mxu0 0.0
      %2688 = vmatprep.subr.mxu0 0.0
      %2689 = vmatpush1.msra.mxu0 0.0
      %2690 = vmatprep.subr.mxu0 0.0
      %2691 = vmatpush1.msra.mxu0 0.0
      %2692 = vmatprep.subr.mxu0 0.0
      %2693 = vmatpush1.msra.mxu0 0.0
      %2694 = vmatprep.subr.mxu0 0.0
      %2695 = vmatpush1.msra.mxu0 0.0
      %2696 = vmatprep.subr.mxu0 0.0
      %2697 = vmatpush1.msra.mxu0 0.0
      %2698 = vmatprep.mubr.f32.mxu0 0.0
      %2699 = vmatmul.mubr.f32.gmra.mrb[0].mxu0 %v2629
      %v2700 = vpop.f32.mrb[0].mxu0
      %v2701 = vadd.f32 0.0, %v2700
      %v2702 = vpop.f32.mrb[0].mxu0
      %2703 = vmatprep.mubr.f32.mxu0 0.0
      %2704 = vmatmul.mubr.f32.gmra.mrb[0].mxu0 %v2632
      %v2705 = vpop.f32.mrb[0].mxu0
      %v2706 = vadd.f32 0.0, %v2705
      %v2707 = vpop.f32.mrb[0].mxu0
      %2708 = vdwg.mxu0
      %v2710 = vsel %vm1235, %v2615, 0
      %v2713 = vsel %vm1235, %v2616, 0
      %2715 = vmatprep.subr.mxu0 0.0
      %2716 = vmatpush1.msra.mxu0 %v2617
      %2717 = vmatprep.subr.mxu0 0.0
      %2718 = vmatpush1.msra.mxu0 %v2618
      %2719 = vmatprep.subr.mxu0 0.0
      %2720 = vmatpush1.msra.mxu0 %v2619
      %2721 = vmatprep.subr.mxu0 0.0
      %2722 = vmatpush1.msra.mxu0 %v2620
      %2723 = vmatprep.subr.mxu0 0.0
      %2724 = vmatpush1.msra.mxu0 0.0
      %2725 = vmatprep.subr.mxu0 0.0
      %2726 = vmatpush1.msra.mxu0 0.0
      %2727 = vmatprep.subr.mxu0 0.0
      %2728 = vmatpush1.msra.mxu0 0.0
      %2729 = vmatprep.subr.mxu0 0.0
      %2730 = vmatpush1.msra.mxu0 0.0
      %2731 = vmatprep.subr.mxu0 0.0
      %2732 = vmatpush1.msra.mxu0 0.0
      %2733 = vmatprep.subr.mxu0 0.0
      %2734 = vmatpush1.msra.mxu0 0.0
      %2735 = vmatprep.subr.mxu0 0.0
      %2736 = vmatpush1.msra.mxu0 0.0
      %2737 = vmatprep.subr.mxu0 0.0
      %2738 = vmatpush1.msra.mxu0 0.0
      %2739 = vmatprep.subr.mxu0 0.0
      %2740 = vmatpush1.msra.mxu0 0.0
      %2741 = vmatprep.subr.mxu0 0.0
      %2742 = vmatpush1.msra.mxu0 0.0
      %2743 = vmatprep.subr.mxu0 0.0
      %2744 = vmatpush1.msra.mxu0 0.0
      %2745 = vmatprep.subr.mxu0 0.0
      %2746 = vmatpush1.msra.mxu0 0.0
      %2747 = vmatprep.subr.mxu0 0.0
      %2748 = vmatpush1.msra.mxu0 0.0
      %2749 = vmatprep.subr.mxu0 0.0
      %2750 = vmatpush1.msra.mxu0 0.0
      %2751 = vmatprep.subr.mxu0 0.0
      %2752 = vmatpush1.msra.mxu0 0.0
      %2753 = vmatprep.subr.mxu0 0.0
      %2754 = vmatpush1.msra.mxu0 0.0
      %2755 = vmatprep.subr.mxu0 0.0
      %2756 = vmatpush1.msra.mxu0 0.0
      %2757 = vmatprep.subr.mxu0 0.0
      %2758 = vmatpush1.msra.mxu0 0.0
      %2759 = vmatprep.subr.mxu0 0.0
      %2760 = vmatpush1.msra.mxu0 0.0
      %2761 = vmatprep.subr.mxu0 0.0
      %2762 = vmatpush1.msra.mxu0 0.0
      %2763 = vmatprep.subr.mxu0 0.0
      %2764 = vmatpush1.msra.mxu0 0.0
      %2765 = vmatprep.subr.mxu0 0.0
      %2766 = vmatpush1.msra.mxu0 0.0
      %2767 = vmatprep.subr.mxu0 0.0
      %2768 = vmatpush1.msra.mxu0 0.0
      %2769 = vmatprep.subr.mxu0 0.0
      %2770 = vmatpush1.msra.mxu0 0.0
      %2771 = vmatprep.subr.mxu0 0.0
      %2772 = vmatpush1.msra.mxu0 0.0
      %2773 = vmatprep.subr.mxu0 0.0
      %2774 = vmatpush1.msra.mxu0 0.0
      %2775 = vmatprep.subr.mxu0 0.0
      %2776 = vmatpush1.msra.mxu0 0.0
      %2777 = vmatprep.subr.mxu0 0.0
      %2778 = vmatpush1.msra.mxu0 0.0
      %2779 = vmatprep.mubr.f32.mxu0 0.0
      %2780 = vmatmul.mubr.f32.gmra.mrb[0].mxu0 %v2710
      %v2781 = vpop.f32.mrb[0].mxu0
      %v2782 = vadd.f32 %v2701, %v2781
      %v2783 = vpop.f32.mrb[0].mxu0
      %2784 = vmatprep.mubr.f32.mxu0 0.0
      %2785 = vmatmul.mubr.f32.gmra.mrb[0].mxu0 %v2713
      %v2786 = vpop.f32.mrb[0].mxu0
      %v2787 = vadd.f32 %v2706, %v2786
      %v2788 = vpop.f32.mrb[0].mxu0
      %2789 = vdwg.mxu0
      %v2790 = vld [vmem:[#allocation4 + $0x2] sm:$0xff]
      %v2791 = vld [vmem:[#allocation4 + $0xa] sm:$0xff]
      %s2792 = scalar_lea.vmem %s5, 64
      %v2793 = vld [vmem:[%s2792] sm:$0xff]
      %v2794 = vld [vmem:[%s2792 + $0x8] sm:$0xff]
      %v2795 = vld [vmem:[%s2792 + $0x10] sm:$0xff]
      %v2796 = vld [vmem:[%s2792 + $0x18] sm:$0xff]
      %v2798 = vsel %vm1235, %v2790, 0
      %v2801 = vsel %vm1235, %v2791, 0
      %2803 = vmatprep.subr.mxu0 0.0
      %2804 = vmatpush1.msra.mxu0 %v2793
      %2805 = vmatprep.subr.mxu0 0.0
      %2806 = vmatpush1.msra.mxu0 %v2794
      %2807 = vmatprep.subr.mxu0 0.0
      %2808 = vmatpush1.msra.mxu0 %v2795
      %2809 = vmatprep.subr.mxu0 0.0
      %2810 = vmatpush1.msra.mxu0 %v2796
      %2811 = vmatprep.subr.mxu0 0.0
      %2812 = vmatpush1.msra.mxu0 0.0
      %2813 = vmatprep.subr.mxu0 0.0
      %2814 = vmatpush1.msra.mxu0 0.0
      %2815 = vmatprep.subr.mxu0 0.0
      %2816 = vmatpush1.msra.mxu0 0.0
      %2817 = vmatprep.subr.mxu0 0.0
      %2818 = vmatpush1.msra.mxu0 0.0
      %2819 = vmatprep.subr.mxu0 0.0
      %2820 = vmatpush1.msra.mxu0 0.0
      %2821 = vmatprep.subr.mxu0 0.0
      %2822 = vmatpush1.msra.mxu0 0.0
      %2823 = vmatprep.subr.mxu0 0.0
      %2824 = vmatpush1.msra.mxu0 0.0
      %2825 = vmatprep.subr.mxu0 0.0
      %2826 = vmatpush1.msra.mxu0 0.0
      %2827 = vmatprep.subr.mxu0 0.0
      %2828 = vmatpush1.msra.mxu0 0.0
      %2829 = vmatprep.subr.mxu0 0.0
      %2830 = vmatpush1.msra.mxu0 0.0
      %2831 = vmatprep.subr.mxu0 0.0
      %2832 = vmatpush1.msra.mxu0 0.0
      %2833 = vmatprep.subr.mxu0 0.0
      %2834 = vmatpush1.msra.mxu0 0.0
      %2835 = vmatprep.subr.mxu0 0.0
      %2836 = vmatpush1.msra.mxu0 0.0
      %2837 = vmatprep.subr.mxu0 0.0
      %2838 = vmatpush1.msra.mxu0 0.0
      %2839 = vmatprep.subr.mxu0 0.0
      %2840 = vmatpush1.msra.mxu0 0.0
      %2841 = vmatprep.subr.mxu0 0.0
      %2842 = vmatpush1.msra.mxu0 0.0
      %2843 = vmatprep.subr.mxu0 0.0
      %2844 = vmatpush1.msra.mxu0 0.0
      %2845 = vmatprep.subr.mxu0 0.0
      %2846 = vmatpush1.msra.mxu0 0.0
      %2847 = vmatprep.subr.mxu0 0.0
      %2848 = vmatpush1.msra.mxu0 0.0
      %2849 = vmatprep.subr.mxu0 0.0
      %2850 = vmatpush1.msra.mxu0 0.0
      %2851 = vmatprep.subr.mxu0 0.0
      %2852 = vmatpush1.msra.mxu0 0.0
      %2853 = vmatprep.subr.mxu0 0.0
      %2854 = vmatpush1.msra.mxu0 0.0
      %2855 = vmatprep.subr.mxu0 0.0
      %2856 = vmatpush1.msra.mxu0 0.0
      %2857 = vmatprep.subr.mxu0 0.0
      %2858 = vmatpush1.msra.mxu0 0.0
      %2859 = vmatprep.subr.mxu0 0.0
      %2860 = vmatpush1.msra.mxu0 0.0
      %2861 = vmatprep.subr.mxu0 0.0
      %2862 = vmatpush1.msra.mxu0 0.0
      %2863 = vmatprep.subr.mxu0 0.0
      %2864 = vmatpush1.msra.mxu0 0.0
      %2865 = vmatprep.subr.mxu0 0.0
      %2866 = vmatpush1.msra.mxu0 0.0
      %2867 = vmatprep.mubr.f32.mxu0 0.0
      %2868 = vmatmul.mubr.f32.gmra.mrb[0].mxu0 %v2798
      %v2869 = vpop.f32.mrb[0].mxu0
      %v2870 = vadd.f32 0.0, %v2869
      %v2871 = vpop.f32.mrb[0].mxu0
      %2872 = vmatprep.mubr.f32.mxu0 0.0
      %2873 = vmatmul.mubr.f32.gmra.mrb[0].mxu0 %v2801
      %v2874 = vpop.f32.mrb[0].mxu0
      %v2875 = vadd.f32 0.0, %v2874
      %v2876 = vpop.f32.mrb[0].mxu0
      %2877 = vdwg.mxu0
      %v2878 = vadd.f32 %v2782, %v2870
      %v2879 = vadd.f32 %v2787, %v2875
      %v2880 = vld [vmem:[#allocation4 + $0x3] sm:$0xff]
      %v2881 = vld [vmem:[#allocation4 + $0xb] sm:$0xff]
      %s2882 = scalar_lea.vmem %s5, 96
      %v2883 = vld [vmem:[%s2882] sm:$0xff]
      %v2884 = vld [vmem:[%s2882 + $0x8] sm:$0xff]
      %v2885 = vld [vmem:[%s2882 + $0x10] sm:$0xff]
      %v2886 = vld [vmem:[%s2882 + $0x18] sm:$0xff]
      %v2888 = vsel %vm1235, %v2880, 0
      %v2891 = vsel %vm1235, %v2881, 0
      %2893 = vmatprep.subr.mxu0 0.0
      %2894 = vmatpush1.msra.mxu0 %v2883
      %2895 = vmatprep.subr.mxu0 0.0
      %2896 = vmatpush1.msra.mxu0 %v2884
      %2897 = vmatprep.subr.mxu0 0.0
      %2898 = vmatpush1.msra.mxu0 %v2885
      %2899 = vmatprep.subr.mxu0 0.0
      %2900 = vmatpush1.msra.mxu0 %v2886
      %2901 = vmatprep.subr.mxu0 0.0
      %2902 = vmatpush1.msra.mxu0 0.0
      %2903 = vmatprep.subr.mxu0 0.0
      %2904 = vmatpush1.msra.mxu0 0.0
      %2905 = vmatprep.subr.mxu0 0.0
      %2906 = vmatpush1.msra.mxu0 0.0
      %2907 = vmatprep.subr.mxu0 0.0
      %2908 = vmatpush1.msra.mxu0 0.0
      %2909 = vmatprep.subr.mxu0 0.0
      %2910 = vmatpush1.msra.mxu0 0.0
      %2911 = vmatprep.subr.mxu0 0.0
      %2912 = vmatpush1.msra.mxu0 0.0
      %2913 = vmatprep.subr.mxu0 0.0
      %2914 = vmatpush1.msra.mxu0 0.0
      %2915 = vmatprep.subr.mxu0 0.0
      %2916 = vmatpush1.msra.mxu0 0.0
      %2917 = vmatprep.subr.mxu0 0.0
      %2918 = vmatpush1.msra.mxu0 0.0
      %2919 = vmatprep.subr.mxu0 0.0
      %2920 = vmatpush1.msra.mxu0 0.0
      %2921 = vmatprep.subr.mxu0 0.0
      %2922 = vmatpush1.msra.mxu0 0.0
      %2923 = vmatprep.subr.mxu0 0.0
      %2924 = vmatpush1.msra.mxu0 0.0
      %2925 = vmatprep.subr.mxu0 0.0
      %2926 = vmatpush1.msra.mxu0 0.0
      %2927 = vmatprep.subr.mxu0 0.0
      %2928 = vmatpush1.msra.mxu0 0.0
      %2929 = vmatprep.subr.mxu0 0.0
      %2930 = vmatpush1.msra.mxu0 0.0
      %2931 = vmatprep.subr.mxu0 0.0
      %2932 = vmatpush1.msra.mxu0 0.0
      %2933 = vmatprep.subr.mxu0 0.0
      %2934 = vmatpush1.msra.mxu0 0.0
      %2935 = vmatprep.subr.mxu0 0.0
      %2936 = vmatpush1.msra.mxu0 0.0
      %2937 = vmatprep.subr.mxu0 0.0
      %2938 = vmatpush1.msra.mxu0 0.0
      %2939 = vmatprep.subr.mxu0 0.0
      %2940 = vmatpush1.msra.mxu0 0.0
      %2941 = vmatprep.subr.mxu0 0.0
      %2942 = vmatpush1.msra.mxu0 0.0
      %2943 = vmatprep.subr.mxu0 0.0
      %2944 = vmatpush1.msra.mxu0 0.0
      %2945 = vmatprep.subr.mxu0 0.0
      %2946 = vmatpush1.msra.mxu0 0.0
      %2947 = vmatprep.subr.mxu0 0.0
      %2948 = vmatpush1.msra.mxu0 0.0
      %2949 = vmatprep.subr.mxu0 0.0
      %2950 = vmatpush1.msra.mxu0 0.0
      %2951 = vmatprep.subr.mxu0 0.0
      %2952 = vmatpush1.msra.mxu0 0.0
      %2953 = vmatprep.subr.mxu0 0.0
      %2954 = vmatpush1.msra.mxu0 0.0
      %2955 = vmatprep.subr.mxu0 0.0
      %2956 = vmatpush1.msra.mxu0 0.0
      %2957 = vmatprep.mubr.f32.mxu0 0.0
      %2958 = vmatmul.mubr.f32.gmra.mrb[0].mxu0 %v2888
      %v2959 = vpop.f32.mrb[0].mxu0
      %v2960 = vadd.f32 0.0, %v2959
      %v2961 = vpop.f32.mrb[0].mxu0
      %2962 = vmatprep.mubr.f32.mxu0 0.0
      %2963 = vmatmul.mubr.f32.gmra.mrb[0].mxu0 %v2891
      %v2964 = vpop.f32.mrb[0].mxu0
      %v2965 = vadd.f32 0.0, %v2964
      %v2966 = vpop.f32.mrb[0].mxu0
      %2967 = vdwg.mxu0
      %v2968 = vadd.f32 %v2878, %v2960
      %v2969 = vadd.f32 %v2879, %v2965
      %v2970 = vld [vmem:[#allocation4 + $0x4] sm:$0xff]
      %v2971 = vld [vmem:[#allocation4 + $0xc] sm:$0xff]
      %s2972 = scalar_lea.vmem %s5, 128
      %v2973 = vld [vmem:[%s2972] sm:$0xff]
      %v2974 = vld [vmem:[%s2972 + $0x8] sm:$0xff]
      %v2975 = vld [vmem:[%s2972 + $0x10] sm:$0xff]
      %v2976 = vld [vmem:[%s2972 + $0x18] sm:$0xff]
      %v2978 = vsel %vm1235, %v2970, 0
      %v2981 = vsel %vm1235, %v2971, 0
      %2983 = vmatprep.subr.mxu0 0.0
      %2984 = vmatpush1.msra.mxu0 %v2973
      %2985 = vmatprep.subr.mxu0 0.0
      %2986 = vmatpush1.msra.mxu0 %v2974
      %2987 = vmatprep.subr.mxu0 0.0
      %2988 = vmatpush1.msra.mxu0 %v2975
      %2989 = vmatprep.subr.mxu0 0.0
      %2990 = vmatpush1.msra.mxu0 %v2976
      %2991 = vmatprep.subr.mxu0 0.0
      %2992 = vmatpush1.msra.mxu0 0.0
      %2993 = vmatprep.subr.mxu0 0.0
      %2994 = vmatpush1.msra.mxu0 0.0
      %2995 = vmatprep.subr.mxu0 0.0
      %2996 = vmatpush1.msra.mxu0 0.0
      %2997 = vmatprep.subr.mxu0 0.0
      %2998 = vmatpush1.msra.mxu0 0.0
      %2999 = vmatprep.subr.mxu0 0.0
      %3000 = vmatpush1.msra.mxu0 0.0
      %3001 = vmatprep.subr.mxu0 0.0
      %3002 = vmatpush1.msra.mxu0 0.0
      %3003 = vmatprep.subr.mxu0 0.0
      %3004 = vmatpush1.msra.mxu0 0.0
      %3005 = vmatprep.subr.mxu0 0.0
      %3006 = vmatpush1.msra.mxu0 0.0
      %3007 = vmatprep.subr.mxu0 0.0
      %3008 = vmatpush1.msra.mxu0 0.0
      %3009 = vmatprep.subr.mxu0 0.0
      %3010 = vmatpush1.msra.mxu0 0.0
      %3011 = vmatprep.subr.mxu0 0.0
      %3012 = vmatpush1.msra.mxu0 0.0
      %3013 = vmatprep.subr.mxu0 0.0
      %3014 = vmatpush1.msra.mxu0 0.0
      %3015 = vmatprep.subr.mxu0 0.0
      %3016 = vmatpush1.msra.mxu0 0.0
      %3017 = vmatprep.subr.mxu0 0.0
      %3018 = vmatpush1.msra.mxu0 0.0
      %3019 = vmatprep.subr.mxu0 0.0
      %3020 = vmatpush1.msra.mxu0 0.0
      %3021 = vmatprep.subr.mxu0 0.0
      %3022 = vmatpush1.msra.mxu0 0.0
      %3023 = vmatprep.subr.mxu0 0.0
      %3024 = vmatpush1.msra.mxu0 0.0
      %3025 = vmatprep.subr.mxu0 0.0
      %3026 = vmatpush1.msra.mxu0 0.0
      %3027 = vmatprep.subr.mxu0 0.0
      %3028 = vmatpush1.msra.mxu0 0.0
      %3029 = vmatprep.subr.mxu0 0.0
      %3030 = vmatpush1.msra.mxu0 0.0
      %3031 = vmatprep.subr.mxu0 0.0
      %3032 = vmatpush1.msra.mxu0 0.0
      %3033 = vmatprep.subr.mxu0 0.0
      %3034 = vmatpush1.msra.mxu0 0.0
      %3035 = vmatprep.subr.mxu0 0.0
      %3036 = vmatpush1.msra.mxu0 0.0
      %3037 = vmatprep.subr.mxu0 0.0
      %3038 = vmatpush1.msra.mxu0 0.0
      %3039 = vmatprep.subr.mxu0 0.0
      %3040 = vmatpush1.msra.mxu0 0.0
      %3041 = vmatprep.subr.mxu0 0.0
      %3042 = vmatpush1.msra.mxu0 0.0
      %3043 = vmatprep.subr.mxu0 0.0
      %3044 = vmatpush1.msra.mxu0 0.0
      %3045 = vmatprep.subr.mxu0 0.0
      %3046 = vmatpush1.msra.mxu0 0.0
      %3047 = vmatprep.mubr.f32.mxu0 0.0
      %3048 = vmatmul.mubr.f32.gmra.mrb[0].mxu0 %v2978
      %v3049 = vpop.f32.mrb[0].mxu0
      %v3050 = vadd.f32 0.0, %v3049
      %v3051 = vpop.f32.mrb[0].mxu0
      %3052 = vmatprep.mubr.f32.mxu0 0.0
      %3053 = vmatmul.mubr.f32.gmra.mrb[0].mxu0 %v2981
      %v3054 = vpop.f32.mrb[0].mxu0
      %v3055 = vadd.f32 0.0, %v3054
      %v3056 = vpop.f32.mrb[0].mxu0
      %3057 = vdwg.mxu0
      %v3058 = vadd.f32 %v2968, %v3050
      %v3059 = vadd.f32 %v2969, %v3055
      %v3060 = vld [vmem:[%s14 + $0x4] sm:$0x1]
      %v3061 = vlaneseq
      %v3062 = vshrl.u32 %v3061, 7
      %v3063 = vsub.s32 0, %v3062
      %v3064 = vrot.slane %v3060, %v3063
      %v3065 = vadd.f32 %v3058, %v3064
      %v3066 = vadd.f32 %v3059, %v3064
      %vm3067 = vcmp.gt.f32.partialorder %v3065, 0.0
      %vm3068 = vcmp.gt.f32.partialorder %v3066, 0.0
      %v3069 = vmul.f32 %v3065, 0.2
      %v3070 = vmul.f32 %v3066, 0.2
      %v3071 = vsel %vm3067, %v3065, %v3069
      %v3072 = vsel %vm3068, %v3066, %v3070
      %vm3073 = vcmask 517120
      %3074 = vst.msk [vmem:[#allocation5] sm:$0x3] %vm3073, 0.0
      %3075 = vst.msk [vmem:[#allocation5 + $0x12] sm:$0x3] %vm3073, 0.0
      %vm3076 = vcmask 523264
      %3077 = vst.msk [vmem:[#allocation5 + $0x2] sm:$0xff] %vm3076, %v3071
      %3078 = vst.msk [vmem:[#allocation5 + $0xa] sm:$0xff] %vm3076, %v3072
      %v3079 = vld [vmem:[#allocation5] sm:$0xff]
      %v3080 = vld [vmem:[#allocation5 + $0x8] sm:$0xff]
      %v3081 = vld [vmem:[%s6] sm:$0xff]
      %v3082 = vld [vmem:[%s6 + $0x8] sm:$0xff]
      %v3083 = vld [vmem:[%s6 + $0x10] sm:$0xff]
      %v3084 = vld [vmem:[%s6 + $0x18] sm:$0xff]
      %v3085 = vld [vmem:[%s6 + $0x20] sm:$0xff]
      %v3086 = vld [vmem:[%s6 + $0x28] sm:$0xff]
      %v3087 = vld [vmem:[%s6 + $0x30] sm:$0xff]
      %v3088 = vld [vmem:[%s6 + $0x38] sm:$0xff]
      %v3089 = vld [vmem:[#allocation5 + $0x1] sm:$0xff]
      %v3090 = vld [vmem:[#allocation5 + $0x9] sm:$0xff]
      %s3091 = scalar_lea.vmem %s6, 64
      %v3092 = vld [vmem:[%s3091] sm:$0xff]
      %v3093 = vld [vmem:[%s3091 + $0x8] sm:$0xff]
      %v3094 = vld [vmem:[%s3091 + $0x10] sm:$0xff]
      %v3095 = vld [vmem:[%s3091 + $0x18] sm:$0xff]
      %v3096 = vld [vmem:[%s3091 + $0x20] sm:$0xff]
      %v3097 = vld [vmem:[%s3091 + $0x28] sm:$0xff]
      %v3098 = vld [vmem:[%s3091 + $0x30] sm:$0xff]
      %v3099 = vld [vmem:[%s3091 + $0x38] sm:$0xff]
      %v3101 = vsel %vm3076, %v3089, 0
      %v3104 = vsel %vm3076, %v3090, 0
      %3106 = vmatprep.subr.mxu0 0.0
      %3107 = vmatpush1.msra.mxu0 %v3092
      %3108 = vmatprep.subr.mxu0 0.0
      %3109 = vmatpush1.msra.mxu0 %v3093
      %3110 = vmatprep.subr.mxu0 0.0
      %3111 = vmatpush1.msra.mxu0 %v3094
      %3112 = vmatprep.subr.mxu0 0.0
      %3113 = vmatpush1.msra.mxu0 %v3095
      %3114 = vmatprep.subr.mxu0 0.0
      %3115 = vmatpush1.msra.mxu0 %v3096
      %3116 = vmatprep.subr.mxu0 0.0
      %3117 = vmatpush1.msra.mxu0 %v3097
      %3118 = vmatprep.subr.mxu0 0.0
      %3119 = vmatpush1.msra.mxu0 %v3098
      %3120 = vmatprep.subr.mxu0 0.0
      %3121 = vmatpush1.msra.mxu0 %v3099
      %3122 = vmatprep.subr.mxu0 0.0
      %3123 = vmatpush1.msra.mxu0 0.0
      %3124 = vmatprep.subr.mxu0 0.0
      %3125 = vmatpush1.msra.mxu0 0.0
      %3126 = vmatprep.subr.mxu0 0.0
      %3127 = vmatpush1.msra.mxu0 0.0
      %3128 = vmatprep.subr.mxu0 0.0
      %3129 = vmatpush1.msra.mxu0 0.0
      %3130 = vmatprep.subr.mxu0 0.0
      %3131 = vmatpush1.msra.mxu0 0.0
      %3132 = vmatprep.subr.mxu0 0.0
      %3133 = vmatpush1.msra.mxu0 0.0
      %3134 = vmatprep.subr.mxu0 0.0
      %3135 = vmatpush1.msra.mxu0 0.0
      %3136 = vmatprep.subr.mxu0 0.0
      %3137 = vmatpush1.msra.mxu0 0.0
      %3138 = vmatprep.subr.mxu0 0.0
      %3139 = vmatpush1.msra.mxu0 0.0
      %3140 = vmatprep.subr.mxu0 0.0
      %3141 = vmatpush1.msra.mxu0 0.0
      %3142 = vmatprep.subr.mxu0 0.0
      %3143 = vmatpush1.msra.mxu0 0.0
      %3144 = vmatprep.subr.mxu0 0.0
      %3145 = vmatpush1.msra.mxu0 0.0
      %3146 = vmatprep.subr.mxu0 0.0
      %3147 = vmatpush1.msra.mxu0 0.0
      %3148 = vmatprep.subr.mxu0 0.0
      %3149 = vmatpush1.msra.mxu0 0.0
      %3150 = vmatprep.subr.mxu0 0.0
      %3151 = vmatpush1.msra.mxu0 0.0
      %3152 = vmatprep.subr.mxu0 0.0
      %3153 = vmatpush1.msra.mxu0 0.0
      %3154 = vmatprep.subr.mxu0 0.0
      %3155 = vmatpush1.msra.mxu0 0.0
      %3156 = vmatprep.subr.mxu0 0.0
      %3157 = vmatpush1.msra.mxu0 0.0
      %3158 = vmatprep.subr.mxu0 0.0
      %3159 = vmatpush1.msra.mxu0 0.0
      %3160 = vmatprep.subr.mxu0 0.0
      %3161 = vmatpush1.msra.mxu0 0.0
      %3162 = vmatprep.subr.mxu0 0.0
      %3163 = vmatpush1.msra.mxu0 0.0
      %3164 = vmatprep.subr.mxu0 0.0
      %3165 = vmatpush1.msra.mxu0 0.0
      %3166 = vmatprep.subr.mxu0 0.0
      %3167 = vmatpush1.msra.mxu0 0.0
      %3168 = vmatprep.subr.mxu0 0.0
      %3169 = vmatpush1.msra.mxu0 0.0
      %3170 = vmatprep.mubr.f32.mxu0 0.0
      %3171 = vmatmul.mubr.f32.gmra.mrb[0].mxu0 %v3101
      %v3172 = vpop.f32.mrb[0].mxu0
      %v3173 = vadd.f32 0.0, %v3172
      %v3174 = vpop.f32.mrb[0].mxu0
      %3175 = vmatprep.mubr.f32.mxu0 0.0
      %3176 = vmatmul.mubr.f32.gmra.mrb[0].mxu0 %v3104
      %v3177 = vpop.f32.mrb[0].mxu0
      %v3178 = vadd.f32 0.0, %v3177
      %v3179 = vpop.f32.mrb[0].mxu0
      %3180 = vdwg.mxu0
      %v3182 = vsel %vm3076, %v3079, 0
      %v3185 = vsel %vm3076, %v3080, 0
      %3187 = vmatprep.subr.mxu0 0.0
      %3188 = vmatpush1.msra.mxu0 %v3081
      %3189 = vmatprep.subr.mxu0 0.0
      %3190 = vmatpush1.msra.mxu0 %v3082
      %3191 = vmatprep.subr.mxu0 0.0
      %3192 = vmatpush1.msra.mxu0 %v3083
      %3193 = vmatprep.subr.mxu0 0.0
      %3194 = vmatpush1.msra.mxu0 %v3084
      %3195 = vmatprep.subr.mxu0 0.0
      %3196 = vmatpush1.msra.mxu0 %v3085
      %3197 = vmatprep.subr.mxu0 0.0
      %3198 = vmatpush1.msra.mxu0 %v3086
      %3199 = vmatprep.subr.mxu0 0.0
      %3200 = vmatpush1.msra.mxu0 %v3087
      %3201 = vmatprep.subr.mxu0 0.0
      %3202 = vmatpush1.msra.mxu0 %v3088
      %3203 = vmatprep.subr.mxu0 0.0
      %3204 = vmatpush1.msra.mxu0 0.0
      %3205 = vmatprep.subr.mxu0 0.0
      %3206 = vmatpush1.msra.mxu0 0.0
      %3207 = vmatprep.subr.mxu0 0.0
      %3208 = vmatpush1.msra.mxu0 0.0
      %3209 = vmatprep.subr.mxu0 0.0
      %3210 = vmatpush1.msra.mxu0 0.0
      %3211 = vmatprep.subr.mxu0 0.0
      %3212 = vmatpush1.msra.mxu0 0.0
      %3213 = vmatprep.subr.mxu0 0.0
      %3214 = vmatpush1.msra.mxu0 0.0
      %3215 = vmatprep.subr.mxu0 0.0
      %3216 = vmatpush1.msra.mxu0 0.0
      %3217 = vmatprep.subr.mxu0 0.0
      %3218 = vmatpush1.msra.mxu0 0.0
      %3219 = vmatprep.subr.mxu0 0.0
      %3220 = vmatpush1.msra.mxu0 0.0
      %3221 = vmatprep.subr.mxu0 0.0
      %3222 = vmatpush1.msra.mxu0 0.0
      %3223 = vmatprep.subr.mxu0 0.0
      %3224 = vmatpush1.msra.mxu0 0.0
      %3225 = vmatprep.subr.mxu0 0.0
      %3226 = vmatpush1.msra.mxu0 0.0
      %3227 = vmatprep.subr.mxu0 0.0
      %3228 = vmatpush1.msra.mxu0 0.0
      %3229 = vmatprep.subr.mxu0 0.0
      %3230 = vmatpush1.msra.mxu0 0.0
      %3231 = vmatprep.subr.mxu0 0.0
      %3232 = vmatpush1.msra.mxu0 0.0
      %3233 = vmatprep.subr.mxu0 0.0
      %3234 = vmatpush1.msra.mxu0 0.0
      %3235 = vmatprep.subr.mxu0 0.0
      %3236 = vmatpush1.msra.mxu0 0.0
      %3237 = vmatprep.subr.mxu0 0.0
      %3238 = vmatpush1.msra.mxu0 0.0
      %3239 = vmatprep.subr.mxu0 0.0
      %3240 = vmatpush1.msra.mxu0 0.0
      %3241 = vmatprep.subr.mxu0 0.0
      %3242 = vmatpush1.msra.mxu0 0.0
      %3243 = vmatprep.subr.mxu0 0.0
      %3244 = vmatpush1.msra.mxu0 0.0
      %3245 = vmatprep.subr.mxu0 0.0
      %3246 = vmatpush1.msra.mxu0 0.0
      %3247 = vmatprep.subr.mxu0 0.0
      %3248 = vmatpush1.msra.mxu0 0.0
      %3249 = vmatprep.subr.mxu0 0.0
      %3250 = vmatpush1.msra.mxu0 0.0
      %3251 = vmatprep.mubr.f32.mxu0 0.0
      %3252 = vmatmul.mubr.f32.gmra.mrb[0].mxu0 %v3182
      %v3253 = vpop.f32.mrb[0].mxu0
      %v3254 = vadd.f32 %v3173, %v3253
      %v3255 = vpop.f32.mrb[0].mxu0
      %3256 = vmatprep.mubr.f32.mxu0 0.0
      %3257 = vmatmul.mubr.f32.gmra.mrb[0].mxu0 %v3185
      %v3258 = vpop.f32.mrb[0].mxu0
      %v3259 = vadd.f32 %v3178, %v3258
      %v3260 = vpop.f32.mrb[0].mxu0
      %3261 = vdwg.mxu0
      %v3262 = vld [vmem:[#allocation5 + $0x2] sm:$0xff]
      %v3263 = vld [vmem:[#allocation5 + $0xa] sm:$0xff]
      %s3264 = scalar_lea.vmem %s6, 128
      %v3265 = vld [vmem:[%s3264] sm:$0xff]
      %v3266 = vld [vmem:[%s3264 + $0x8] sm:$0xff]
      %v3267 = vld [vmem:[%s3264 + $0x10] sm:$0xff]
      %v3268 = vld [vmem:[%s3264 + $0x18] sm:$0xff]
      %v3269 = vld [vmem:[%s3264 + $0x20] sm:$0xff]
      %v3270 = vld [vmem:[%s3264 + $0x28] sm:$0xff]
      %v3271 = vld [vmem:[%s3264 + $0x30] sm:$0xff]
      %v3272 = vld [vmem:[%s3264 + $0x38] sm:$0xff]
      %v3274 = vsel %vm3076, %v3262, 0
      %v3277 = vsel %vm3076, %v3263, 0
      %3279 = vmatprep.subr.mxu0 0.0
      %3280 = vmatpush1.msra.mxu0 %v3265
      %3281 = vmatprep.subr.mxu0 0.0
      %3282 = vmatpush1.msra.mxu0 %v3266
      %3283 = vmatprep.subr.mxu0 0.0
      %3284 = vmatpush1.msra.mxu0 %v3267
      %3285 = vmatprep.subr.mxu0 0.0
      %3286 = vmatpush1.msra.mxu0 %v3268
      %3287 = vmatprep.subr.mxu0 0.0
      %3288 = vmatpush1.msra.mxu0 %v3269
      %3289 = vmatprep.subr.mxu0 0.0
      %3290 = vmatpush1.msra.mxu0 %v3270
      %3291 = vmatprep.subr.mxu0 0.0
      %3292 = vmatpush1.msra.mxu0 %v3271
      %3293 = vmatprep.subr.mxu0 0.0
      %3294 = vmatpush1.msra.mxu0 %v3272
      %3295 = vmatprep.subr.mxu0 0.0
      %3296 = vmatpush1.msra.mxu0 0.0
      %3297 = vmatprep.subr.mxu0 0.0
      %3298 = vmatpush1.msra.mxu0 0.0
      %3299 = vmatprep.subr.mxu0 0.0
      %3300 = vmatpush1.msra.mxu0 0.0
      %3301 = vmatprep.subr.mxu0 0.0
      %3302 = vmatpush1.msra.mxu0 0.0
      %3303 = vmatprep.subr.mxu0 0.0
      %3304 = vmatpush1.msra.mxu0 0.0
      %3305 = vmatprep.subr.mxu0 0.0
      %3306 = vmatpush1.msra.mxu0 0.0
      %3307 = vmatprep.subr.mxu0 0.0
      %3308 = vmatpush1.msra.mxu0 0.0
      %3309 = vmatprep.subr.mxu0 0.0
      %3310 = vmatpush1.msra.mxu0 0.0
      %3311 = vmatprep.subr.mxu0 0.0
      %3312 = vmatpush1.msra.mxu0 0.0
      %3313 = vmatprep.subr.mxu0 0.0
      %3314 = vmatpush1.msra.mxu0 0.0
      %3315 = vmatprep.subr.mxu0 0.0
      %3316 = vmatpush1.msra.mxu0 0.0
      %3317 = vmatprep.subr.mxu0 0.0
      %3318 = vmatpush1.msra.mxu0 0.0
      %3319 = vmatprep.subr.mxu0 0.0
      %3320 = vmatpush1.msra.mxu0 0.0
      %3321 = vmatprep.subr.mxu0 0.0
      %3322 = vmatpush1.msra.mxu0 0.0
      %3323 = vmatprep.subr.mxu0 0.0
      %3324 = vmatpush1.msra.mxu0 0.0
      %3325 = vmatprep.subr.mxu0 0.0
      %3326 = vmatpush1.msra.mxu0 0.0
      %3327 = vmatprep.subr.mxu0 0.0
      %3328 = vmatpush1.msra.mxu0 0.0
      %3329 = vmatprep.subr.mxu0 0.0
      %3330 = vmatpush1.msra.mxu0 0.0
      %3331 = vmatprep.subr.mxu0 0.0
      %3332 = vmatpush1.msra.mxu0 0.0
      %3333 = vmatprep.subr.mxu0 0.0
      %3334 = vmatpush1.msra.mxu0 0.0
      %3335 = vmatprep.subr.mxu0 0.0
      %3336 = vmatpush1.msra.mxu0 0.0
      %3337 = vmatprep.subr.mxu0 0.0
      %3338 = vmatpush1.msra.mxu0 0.0
      %3339 = vmatprep.subr.mxu0 0.0
      %3340 = vmatpush1.msra.mxu0 0.0
      %3341 = vmatprep.subr.mxu0 0.0
      %3342 = vmatpush1.msra.mxu0 0.0
      %3343 = vmatprep.mubr.f32.mxu0 0.0
      %3344 = vmatmul.mubr.f32.gmra.mrb[0].mxu0 %v3274
      %v3345 = vpop.f32.mrb[0].mxu0
      %v3346 = vadd.f32 0.0, %v3345
      %v3347 = vpop.f32.mrb[0].mxu0
      %3348 = vmatprep.mubr.f32.mxu0 0.0
      %3349 = vmatmul.mubr.f32.gmra.mrb[0].mxu0 %v3277
      %v3350 = vpop.f32.mrb[0].mxu0
      %v3351 = vadd.f32 0.0, %v3350
      %v3352 = vpop.f32.mrb[0].mxu0
      %3353 = vdwg.mxu0
      %v3354 = vadd.f32 %v3254, %v3346
      %v3355 = vadd.f32 %v3259, %v3351
      %v3356 = vld [vmem:[#allocation5 + $0x3] sm:$0xff]
      %v3357 = vld [vmem:[#allocation5 + $0xb] sm:$0xff]
      %s3358 = scalar_lea.vmem %s6, 192
      %v3359 = vld [vmem:[%s3358] sm:$0xff]
      %v3360 = vld [vmem:[%s3358 + $0x8] sm:$0xff]
      %v3361 = vld [vmem:[%s3358 + $0x10] sm:$0xff]
      %v3362 = vld [vmem:[%s3358 + $0x18] sm:$0xff]
      %v3363 = vld [vmem:[%s3358 + $0x20] sm:$0xff]
      %v3364 = vld [vmem:[%s3358 + $0x28] sm:$0xff]
      %v3365 = vld [vmem:[%s3358 + $0x30] sm:$0xff]
      %v3366 = vld [vmem:[%s3358 + $0x38] sm:$0xff]
      %v3368 = vsel %vm3076, %v3356, 0
      %v3371 = vsel %vm3076, %v3357, 0
      %3373 = vmatprep.subr.mxu0 0.0
      %3374 = vmatpush1.msra.mxu0 %v3359
      %3375 = vmatprep.subr.mxu0 0.0
      %3376 = vmatpush1.msra.mxu0 %v3360
      %3377 = vmatprep.subr.mxu0 0.0
      %3378 = vmatpush1.msra.mxu0 %v3361
      %3379 = vmatprep.subr.mxu0 0.0
      %3380 = vmatpush1.msra.mxu0 %v3362
      %3381 = vmatprep.subr.mxu0 0.0
      %3382 = vmatpush1.msra.mxu0 %v3363
      %3383 = vmatprep.subr.mxu0 0.0
      %3384 = vmatpush1.msra.mxu0 %v3364
      %3385 = vmatprep.subr.mxu0 0.0
      %3386 = vmatpush1.msra.mxu0 %v3365
      %3387 = vmatprep.subr.mxu0 0.0
      %3388 = vmatpush1.msra.mxu0 %v3366
      %3389 = vmatprep.subr.mxu0 0.0
      %3390 = vmatpush1.msra.mxu0 0.0
      %3391 = vmatprep.subr.mxu0 0.0
      %3392 = vmatpush1.msra.mxu0 0.0
      %3393 = vmatprep.subr.mxu0 0.0
      %3394 = vmatpush1.msra.mxu0 0.0
      %3395 = vmatprep.subr.mxu0 0.0
      %3396 = vmatpush1.msra.mxu0 0.0
      %3397 = vmatprep.subr.mxu0 0.0
      %3398 = vmatpush1.msra.mxu0 0.0
      %3399 = vmatprep.subr.mxu0 0.0
      %3400 = vmatpush1.msra.mxu0 0.0
      %3401 = vmatprep.subr.mxu0 0.0
      %3402 = vmatpush1.msra.mxu0 0.0
      %3403 = vmatprep.subr.mxu0 0.0
      %3404 = vmatpush1.msra.mxu0 0.0
      %3405 = vmatprep.subr.mxu0 0.0
      %3406 = vmatpush1.msra.mxu0 0.0
      %3407 = vmatprep.subr.mxu0 0.0
      %3408 = vmatpush1.msra.mxu0 0.0
      %3409 = vmatprep.subr.mxu0 0.0
      %3410 = vmatpush1.msra.mxu0 0.0
      %3411 = vmatprep.subr.mxu0 0.0
      %3412 = vmatpush1.msra.mxu0 0.0
      %3413 = vmatprep.subr.mxu0 0.0
      %3414 = vmatpush1.msra.mxu0 0.0
      %3415 = vmatprep.subr.mxu0 0.0
      %3416 = vmatpush1.msra.mxu0 0.0
      %3417 = vmatprep.subr.mxu0 0.0
      %3418 = vmatpush1.msra.mxu0 0.0
      %3419 = vmatprep.subr.mxu0 0.0
      %3420 = vmatpush1.msra.mxu0 0.0
      %3421 = vmatprep.subr.mxu0 0.0
      %3422 = vmatpush1.msra.mxu0 0.0
      %3423 = vmatprep.subr.mxu0 0.0
      %3424 = vmatpush1.msra.mxu0 0.0
      %3425 = vmatprep.subr.mxu0 0.0
      %3426 = vmatpush1.msra.mxu0 0.0
      %3427 = vmatprep.subr.mxu0 0.0
      %3428 = vmatpush1.msra.mxu0 0.0
      %3429 = vmatprep.subr.mxu0 0.0
      %3430 = vmatpush1.msra.mxu0 0.0
      %3431 = vmatprep.subr.mxu0 0.0
      %3432 = vmatpush1.msra.mxu0 0.0
      %3433 = vmatprep.subr.mxu0 0.0
      %3434 = vmatpush1.msra.mxu0 0.0
      %3435 = vmatprep.subr.mxu0 0.0
      %3436 = vmatpush1.msra.mxu0 0.0
      %3437 = vmatprep.mubr.f32.mxu0 0.0
      %3438 = vmatmul.mubr.f32.gmra.mrb[0].mxu0 %v3368
      %v3439 = vpop.f32.mrb[0].mxu0
      %v3440 = vadd.f32 0.0, %v3439
      %v3441 = vpop.f32.mrb[0].mxu0
      %3442 = vmatprep.mubr.f32.mxu0 0.0
      %3443 = vmatmul.mubr.f32.gmra.mrb[0].mxu0 %v3371
      %v3444 = vpop.f32.mrb[0].mxu0
      %v3445 = vadd.f32 0.0, %v3444
      %v3446 = vpop.f32.mrb[0].mxu0
      %3447 = vdwg.mxu0
      %v3448 = vadd.f32 %v3354, %v3440
      %v3449 = vadd.f32 %v3355, %v3445
      %v3450 = vld [vmem:[#allocation5 + $0x4] sm:$0xff]
      %v3451 = vld [vmem:[#allocation5 + $0xc] sm:$0xff]
      %s3452 = scalar_lea.vmem %s6, 256
      %v3453 = vld [vmem:[%s3452] sm:$0xff]
      %v3454 = vld [vmem:[%s3452 + $0x8] sm:$0xff]
      %v3455 = vld [vmem:[%s3452 + $0x10] sm:$0xff]
      %v3456 = vld [vmem:[%s3452 + $0x18] sm:$0xff]
      %v3457 = vld [vmem:[%s3452 + $0x20] sm:$0xff]
      %v3458 = vld [vmem:[%s3452 + $0x28] sm:$0xff]
      %v3459 = vld [vmem:[%s3452 + $0x30] sm:$0xff]
      %v3460 = vld [vmem:[%s3452 + $0x38] sm:$0xff]
      %v3462 = vsel %vm3076, %v3450, 0
      %v3465 = vsel %vm3076, %v3451, 0
      %3467 = vmatprep.subr.mxu0 0.0
      %3468 = vmatpush1.msra.mxu0 %v3453
      %3469 = vmatprep.subr.mxu0 0.0
      %3470 = vmatpush1.msra.mxu0 %v3454
      %3471 = vmatprep.subr.mxu0 0.0
      %3472 = vmatpush1.msra.mxu0 %v3455
      %3473 = vmatprep.subr.mxu0 0.0
      %3474 = vmatpush1.msra.mxu0 %v3456
      %3475 = vmatprep.subr.mxu0 0.0
      %3476 = vmatpush1.msra.mxu0 %v3457
      %3477 = vmatprep.subr.mxu0 0.0
      %3478 = vmatpush1.msra.mxu0 %v3458
      %3479 = vmatprep.subr.mxu0 0.0
      %3480 = vmatpush1.msra.mxu0 %v3459
      %3481 = vmatprep.subr.mxu0 0.0
      %3482 = vmatpush1.msra.mxu0 %v3460
      %3483 = vmatprep.subr.mxu0 0.0
      %3484 = vmatpush1.msra.mxu0 0.0
      %3485 = vmatprep.subr.mxu0 0.0
      %3486 = vmatpush1.msra.mxu0 0.0
      %3487 = vmatprep.subr.mxu0 0.0
      %3488 = vmatpush1.msra.mxu0 0.0
      %3489 = vmatprep.subr.mxu0 0.0
      %3490 = vmatpush1.msra.mxu0 0.0
      %3491 = vmatprep.subr.mxu0 0.0
      %3492 = vmatpush1.msra.mxu0 0.0
      %3493 = vmatprep.subr.mxu0 0.0
      %3494 = vmatpush1.msra.mxu0 0.0
      %3495 = vmatprep.subr.mxu0 0.0
      %3496 = vmatpush1.msra.mxu0 0.0
      %3497 = vmatprep.subr.mxu0 0.0
      %3498 = vmatpush1.msra.mxu0 0.0
      %3499 = vmatprep.subr.mxu0 0.0
      %3500 = vmatpush1.msra.mxu0 0.0
      %3501 = vmatprep.subr.mxu0 0.0
      %3502 = vmatpush1.msra.mxu0 0.0
      %3503 = vmatprep.subr.mxu0 0.0
      %3504 = vmatpush1.msra.mxu0 0.0
      %3505 = vmatprep.subr.mxu0 0.0
      %3506 = vmatpush1.msra.mxu0 0.0
      %3507 = vmatprep.subr.mxu0 0.0
      %3508 = vmatpush1.msra.mxu0 0.0
      %3509 = vmatprep.subr.mxu0 0.0
      %3510 = vmatpush1.msra.mxu0 0.0
      %3511 = vmatprep.subr.mxu0 0.0
      %3512 = vmatpush1.msra.mxu0 0.0
      %3513 = vmatprep.subr.mxu0 0.0
      %3514 = vmatpush1.msra.mxu0 0.0
      %3515 = vmatprep.subr.mxu0 0.0
      %3516 = vmatpush1.msra.mxu0 0.0
      %3517 = vmatprep.subr.mxu0 0.0
      %3518 = vmatpush1.msra.mxu0 0.0
      %3519 = vmatprep.subr.mxu0 0.0
      %3520 = vmatpush1.msra.mxu0 0.0
      %3521 = vmatprep.subr.mxu0 0.0
      %3522 = vmatpush1.msra.mxu0 0.0
      %3523 = vmatprep.subr.mxu0 0.0
      %3524 = vmatpush1.msra.mxu0 0.0
      %3525 = vmatprep.subr.mxu0 0.0
      %3526 = vmatpush1.msra.mxu0 0.0
      %3527 = vmatprep.subr.mxu0 0.0
      %3528 = vmatpush1.msra.mxu0 0.0
      %3529 = vmatprep.subr.mxu0 0.0
      %3530 = vmatpush1.msra.mxu0 0.0
      %3531 = vmatprep.mubr.f32.mxu0 0.0
      %3532 = vmatmul.mubr.f32.gmra.mrb[0].mxu0 %v3462
      %v3533 = vpop.f32.mrb[0].mxu0
      %v3534 = vadd.f32 0.0, %v3533
      %v3535 = vpop.f32.mrb[0].mxu0
      %3536 = vmatprep.mubr.f32.mxu0 0.0
      %3537 = vmatmul.mubr.f32.gmra.mrb[0].mxu0 %v3465
      %v3538 = vpop.f32.mrb[0].mxu0
      %v3539 = vadd.f32 0.0, %v3538
      %v3540 = vpop.f32.mrb[0].mxu0
      %3541 = vdwg.mxu0
      %v3542 = vadd.f32 %v3448, %v3534
      %v3543 = vadd.f32 %v3449, %v3539
      %v3544 = vld [vmem:[%s14 + $0x5] sm:$0x1]
      %v3545 = vlaneseq
      %v3546 = vshrl.u32 %v3545, 7
      %v3547 = vsub.s32 0, %v3546
      %v3548 = vrot.slane %v3544, %v3547
      %v3549 = vadd.f32 %v3542, %v3548
      %v3550 = vadd.f32 %v3543, %v3548
      %vm3551 = vcmp.gt.f32.partialorder %v3549, 0.0
      %vm3552 = vcmp.gt.f32.partialorder %v3550, 0.0
      %v3553 = vmul.f32 %v3549, 0.2
      %v3554 = vmul.f32 %v3550, 0.2
      %v3555 = vsel %vm3551, %v3549, %v3553
      %v3556 = vsel %vm3552, %v3550, %v3554
      %3557 = vst.msk [vmem:[#allocation5] sm:$0x3] %vm3073, 0.0
      %3558 = vst.msk [vmem:[#allocation5 + $0x12] sm:$0x3] %vm3073, 0.0
      %3559 = vst.msk [vmem:[#allocation5 + $0x2] sm:$0xff] %vm3076, %v3555
      %3560 = vst.msk [vmem:[#allocation5 + $0xa] sm:$0xff] %vm3076, %v3556
      %v3561 = vld [vmem:[#allocation5] sm:$0xff]
      %v3562 = vld [vmem:[#allocation5 + $0x8] sm:$0xff]
      %v3563 = vld [vmem:[%s7] sm:$0xff]
      %v3564 = vld [vmem:[%s7 + $0x8] sm:$0xff]
      %v3565 = vld [vmem:[%s7 + $0x10] sm:$0xff]
      %v3566 = vld [vmem:[%s7 + $0x18] sm:$0xff]
      %v3567 = vld [vmem:[%s7 + $0x20] sm:$0xff]
      %v3568 = vld [vmem:[%s7 + $0x28] sm:$0xff]
      %v3569 = vld [vmem:[%s7 + $0x30] sm:$0xff]
      %v3570 = vld [vmem:[%s7 + $0x38] sm:$0xff]
      %v3571 = vld [vmem:[#allocation5 + $0x1] sm:$0xff]
      %v3572 = vld [vmem:[#allocation5 + $0x9] sm:$0xff]
      %s3573 = scalar_lea.vmem %s7, 64
      %v3574 = vld [vmem:[%s3573] sm:$0xff]
      %v3575 = vld [vmem:[%s3573 + $0x8] sm:$0xff]
      %v3576 = vld [vmem:[%s3573 + $0x10] sm:$0xff]
      %v3577 = vld [vmem:[%s3573 + $0x18] sm:$0xff]
      %v3578 = vld [vmem:[%s3573 + $0x20] sm:$0xff]
      %v3579 = vld [vmem:[%s3573 + $0x28] sm:$0xff]
      %v3580 = vld [vmem:[%s3573 + $0x30] sm:$0xff]
      %v3581 = vld [vmem:[%s3573 + $0x38] sm:$0xff]
      %v3583 = vsel %vm3076, %v3571, 0
      %v3586 = vsel %vm3076, %v3572, 0
      %3588 = vmatprep.subr.mxu0 0.0
      %3589 = vmatpush1.msra.mxu0 %v3574
      %3590 = vmatprep.subr.mxu0 0.0
      %3591 = vmatpush1.msra.mxu0 %v3575
      %3592 = vmatprep.subr.mxu0 0.0
      %3593 = vmatpush1.msra.mxu0 %v3576
      %3594 = vmatprep.subr.mxu0 0.0
      %3595 = vmatpush1.msra.mxu0 %v3577
      %3596 = vmatprep.subr.mxu0 0.0
      %3597 = vmatpush1.msra.mxu0 %v3578
      %3598 = vmatprep.subr.mxu0 0.0
      %3599 = vmatpush1.msra.mxu0 %v3579
      %3600 = vmatprep.subr.mxu0 0.0
      %3601 = vmatpush1.msra.mxu0 %v3580
      %3602 = vmatprep.subr.mxu0 0.0
      %3603 = vmatpush1.msra.mxu0 %v3581
      %3604 = vmatprep.subr.mxu0 0.0
      %3605 = vmatpush1.msra.mxu0 0.0
      %3606 = vmatprep.subr.mxu0 0.0
      %3607 = vmatpush1.msra.mxu0 0.0
      %3608 = vmatprep.subr.mxu0 0.0
      %3609 = vmatpush1.msra.mxu0 0.0
      %3610 = vmatprep.subr.mxu0 0.0
      %3611 = vmatpush1.msra.mxu0 0.0
      %3612 = vmatprep.subr.mxu0 0.0
      %3613 = vmatpush1.msra.mxu0 0.0
      %3614 = vmatprep.subr.mxu0 0.0
      %3615 = vmatpush1.msra.mxu0 0.0
      %3616 = vmatprep.subr.mxu0 0.0
      %3617 = vmatpush1.msra.mxu0 0.0
      %3618 = vmatprep.subr.mxu0 0.0
      %3619 = vmatpush1.msra.mxu0 0.0
      %3620 = vmatprep.subr.mxu0 0.0
      %3621 = vmatpush1.msra.mxu0 0.0
      %3622 = vmatprep.subr.mxu0 0.0
      %3623 = vmatpush1.msra.mxu0 0.0
      %3624 = vmatprep.subr.mxu0 0.0
      %3625 = vmatpush1.msra.mxu0 0.0
      %3626 = vmatprep.subr.mxu0 0.0
      %3627 = vmatpush1.msra.mxu0 0.0
      %3628 = vmatprep.subr.mxu0 0.0
      %3629 = vmatpush1.msra.mxu0 0.0
      %3630 = vmatprep.subr.mxu0 0.0
      %3631 = vmatpush1.msra.mxu0 0.0
      %3632 = vmatprep.subr.mxu0 0.0
      %3633 = vmatpush1.msra.mxu0 0.0
      %3634 = vmatprep.subr.mxu0 0.0
      %3635 = vmatpush1.msra.mxu0 0.0
      %3636 = vmatprep.subr.mxu0 0.0
      %3637 = vmatpush1.msra.mxu0 0.0
      %3638 = vmatprep.subr.mxu0 0.0
      %3639 = vmatpush1.msra.mxu0 0.0
      %3640 = vmatprep.subr.mxu0 0.0
      %3641 = vmatpush1.msra.mxu0 0.0
      %3642 = vmatprep.subr.mxu0 0.0
      %3643 = vmatpush1.msra.mxu0 0.0
      %3644 = vmatprep.subr.mxu0 0.0
      %3645 = vmatpush1.msra.mxu0 0.0
      %3646 = vmatprep.subr.mxu0 0.0
      %3647 = vmatpush1.msra.mxu0 0.0
      %3648 = vmatprep.subr.mxu0 0.0
      %3649 = vmatpush1.msra.mxu0 0.0
      %3650 = vmatprep.subr.mxu0 0.0
      %3651 = vmatpush1.msra.mxu0 0.0
      %3652 = vmatprep.mubr.f32.mxu0 0.0
      %3653 = vmatmul.mubr.f32.gmra.mrb[0].mxu0 %v3583
      %v3654 = vpop.f32.mrb[0].mxu0
      %v3655 = vadd.f32 0.0, %v3654
      %v3656 = vpop.f32.mrb[0].mxu0
      %3657 = vmatprep.mubr.f32.mxu0 0.0
      %3658 = vmatmul.mubr.f32.gmra.mrb[0].mxu0 %v3586
      %v3659 = vpop.f32.mrb[0].mxu0
      %v3660 = vadd.f32 0.0, %v3659
      %v3661 = vpop.f32.mrb[0].mxu0
      %3662 = vdwg.mxu0
      %v3664 = vsel %vm3076, %v3561, 0
      %v3667 = vsel %vm3076, %v3562, 0
      %3669 = vmatprep.subr.mxu0 0.0
      %3670 = vmatpush1.msra.mxu0 %v3563
      %3671 = vmatprep.subr.mxu0 0.0
      %3672 = vmatpush1.msra.mxu0 %v3564
      %3673 = vmatprep.subr.mxu0 0.0
      %3674 = vmatpush1.msra.mxu0 %v3565
      %3675 = vmatprep.subr.mxu0 0.0
      %3676 = vmatpush1.msra.mxu0 %v3566
      %3677 = vmatprep.subr.mxu0 0.0
      %3678 = vmatpush1.msra.mxu0 %v3567
      %3679 = vmatprep.subr.mxu0 0.0
      %3680 = vmatpush1.msra.mxu0 %v3568
      %3681 = vmatprep.subr.mxu0 0.0
      %3682 = vmatpush1.msra.mxu0 %v3569
      %3683 = vmatprep.subr.mxu0 0.0
      %3684 = vmatpush1.msra.mxu0 %v3570
      %3685 = vmatprep.subr.mxu0 0.0
      %3686 = vmatpush1.msra.mxu0 0.0
      %3687 = vmatprep.subr.mxu0 0.0
      %3688 = vmatpush1.msra.mxu0 0.0
      %3689 = vmatprep.subr.mxu0 0.0
      %3690 = vmatpush1.msra.mxu0 0.0
      %3691 = vmatprep.subr.mxu0 0.0
      %3692 = vmatpush1.msra.mxu0 0.0
      %3693 = vmatprep.subr.mxu0 0.0
      %3694 = vmatpush1.msra.mxu0 0.0
      %3695 = vmatprep.subr.mxu0 0.0
      %3696 = vmatpush1.msra.mxu0 0.0
      %3697 = vmatprep.subr.mxu0 0.0
      %3698 = vmatpush1.msra.mxu0 0.0
      %3699 = vmatprep.subr.mxu0 0.0
      %3700 = vmatpush1.msra.mxu0 0.0
      %3701 = vmatprep.subr.mxu0 0.0
      %3702 = vmatpush1.msra.mxu0 0.0
      %3703 = vmatprep.subr.mxu0 0.0
      %3704 = vmatpush1.msra.mxu0 0.0
      %3705 = vmatprep.subr.mxu0 0.0
      %3706 = vmatpush1.msra.mxu0 0.0
      %3707 = vmatprep.subr.mxu0 0.0
      %3708 = vmatpush1.msra.mxu0 0.0
      %3709 = vmatprep.subr.mxu0 0.0
      %3710 = vmatpush1.msra.mxu0 0.0
      %3711 = vmatprep.subr.mxu0 0.0
      %3712 = vmatpush1.msra.mxu0 0.0
      %3713 = vmatprep.subr.mxu0 0.0
      %3714 = vmatpush1.msra.mxu0 0.0
      %3715 = vmatprep.subr.mxu0 0.0
      %3716 = vmatpush1.msra.mxu0 0.0
      %3717 = vmatprep.subr.mxu0 0.0
      %3718 = vmatpush1.msra.mxu0 0.0
      %3719 = vmatprep.subr.mxu0 0.0
      %3720 = vmatpush1.msra.mxu0 0.0
      %3721 = vmatprep.subr.mxu0 0.0
      %3722 = vmatpush1.msra.mxu0 0.0
      %3723 = vmatprep.subr.mxu0 0.0
      %3724 = vmatpush1.msra.mxu0 0.0
      %3725 = vmatprep.subr.mxu0 0.0
      %3726 = vmatpush1.msra.mxu0 0.0
      %3727 = vmatprep.subr.mxu0 0.0
      %3728 = vmatpush1.msra.mxu0 0.0
      %3729 = vmatprep.subr.mxu0 0.0
      %3730 = vmatpush1.msra.mxu0 0.0
      %3731 = vmatprep.subr.mxu0 0.0
      %3732 = vmatpush1.msra.mxu0 0.0
      %3733 = vmatprep.mubr.f32.mxu0 0.0
      %3734 = vmatmul.mubr.f32.gmra.mrb[0].mxu0 %v3664
      %v3735 = vpop.f32.mrb[0].mxu0
      %v3736 = vadd.f32 %v3655, %v3735
      %v3737 = vpop.f32.mrb[0].mxu0
      %3738 = vmatprep.mubr.f32.mxu0 0.0
      %3739 = vmatmul.mubr.f32.gmra.mrb[0].mxu0 %v3667
      %v3740 = vpop.f32.mrb[0].mxu0
      %v3741 = vadd.f32 %v3660, %v3740
      %v3742 = vpop.f32.mrb[0].mxu0
      %3743 = vdwg.mxu0
      %v3744 = vld [vmem:[#allocation5 + $0x2] sm:$0xff]
      %v3745 = vld [vmem:[#allocation5 + $0xa] sm:$0xff]
      %s3746 = scalar_lea.vmem %s7, 128
      %v3747 = vld [vmem:[%s3746] sm:$0xff]
      %v3748 = vld [vmem:[%s3746 + $0x8] sm:$0xff]
      %v3749 = vld [vmem:[%s3746 + $0x10] sm:$0xff]
      %v3750 = vld [vmem:[%s3746 + $0x18] sm:$0xff]
      %v3751 = vld [vmem:[%s3746 + $0x20] sm:$0xff]
      %v3752 = vld [vmem:[%s3746 + $0x28] sm:$0xff]
      %v3753 = vld [vmem:[%s3746 + $0x30] sm:$0xff]
      %v3754 = vld [vmem:[%s3746 + $0x38] sm:$0xff]
      %v3756 = vsel %vm3076, %v3744, 0
      %v3759 = vsel %vm3076, %v3745, 0
      %3761 = vmatprep.subr.mxu0 0.0
      %3762 = vmatpush1.msra.mxu0 %v3747
      %3763 = vmatprep.subr.mxu0 0.0
      %3764 = vmatpush1.msra.mxu0 %v3748
      %3765 = vmatprep.subr.mxu0 0.0
      %3766 = vmatpush1.msra.mxu0 %v3749
      %3767 = vmatprep.subr.mxu0 0.0
      %3768 = vmatpush1.msra.mxu0 %v3750
      %3769 = vmatprep.subr.mxu0 0.0
      %3770 = vmatpush1.msra.mxu0 %v3751
      %3771 = vmatprep.subr.mxu0 0.0
      %3772 = vmatpush1.msra.mxu0 %v3752
      %3773 = vmatprep.subr.mxu0 0.0
      %3774 = vmatpush1.msra.mxu0 %v3753
      %3775 = vmatprep.subr.mxu0 0.0
      %3776 = vmatpush1.msra.mxu0 %v3754
      %3777 = vmatprep.subr.mxu0 0.0
      %3778 = vmatpush1.msra.mxu0 0.0
      %3779 = vmatprep.subr.mxu0 0.0
      %3780 = vmatpush1.msra.mxu0 0.0
      %3781 = vmatprep.subr.mxu0 0.0
      %3782 = vmatpush1.msra.mxu0 0.0
      %3783 = vmatprep.subr.mxu0 0.0
      %3784 = vmatpush1.msra.mxu0 0.0
      %3785 = vmatprep.subr.mxu0 0.0
      %3786 = vmatpush1.msra.mxu0 0.0
      %3787 = vmatprep.subr.mxu0 0.0
      %3788 = vmatpush1.msra.mxu0 0.0
      %3789 = vmatprep.subr.mxu0 0.0
      %3790 = vmatpush1.msra.mxu0 0.0
      %3791 = vmatprep.subr.mxu0 0.0
      %3792 = vmatpush1.msra.mxu0 0.0
      %3793 = vmatprep.subr.mxu0 0.0
      %3794 = vmatpush1.msra.mxu0 0.0
      %3795 = vmatprep.subr.mxu0 0.0
      %3796 = vmatpush1.msra.mxu0 0.0
      %3797 = vmatprep.subr.mxu0 0.0
      %3798 = vmatpush1.msra.mxu0 0.0
      %3799 = vmatprep.subr.mxu0 0.0
      %3800 = vmatpush1.msra.mxu0 0.0
      %3801 = vmatprep.subr.mxu0 0.0
      %3802 = vmatpush1.msra.mxu0 0.0
      %3803 = vmatprep.subr.mxu0 0.0
      %3804 = vmatpush1.msra.mxu0 0.0
      %3805 = vmatprep.subr.mxu0 0.0
      %3806 = vmatpush1.msra.mxu0 0.0
      %3807 = vmatprep.subr.mxu0 0.0
      %3808 = vmatpush1.msra.mxu0 0.0
      %3809 = vmatprep.subr.mxu0 0.0
      %3810 = vmatpush1.msra.mxu0 0.0
      %3811 = vmatprep.subr.mxu0 0.0
      %3812 = vmatpush1.msra.mxu0 0.0
      %3813 = vmatprep.subr.mxu0 0.0
      %3814 = vmatpush1.msra.mxu0 0.0
      %3815 = vmatprep.subr.mxu0 0.0
      %3816 = vmatpush1.msra.mxu0 0.0
      %3817 = vmatprep.subr.mxu0 0.0
      %3818 = vmatpush1.msra.mxu0 0.0
      %3819 = vmatprep.subr.mxu0 0.0
      %3820 = vmatpush1.msra.mxu0 0.0
      %3821 = vmatprep.subr.mxu0 0.0
      %3822 = vmatpush1.msra.mxu0 0.0
      %3823 = vmatprep.subr.mxu0 0.0
      %3824 = vmatpush1.msra.mxu0 0.0
      %3825 = vmatprep.mubr.f32.mxu0 0.0
      %3826 = vmatmul.mubr.f32.gmra.mrb[0].mxu0 %v3756
      %v3827 = vpop.f32.mrb[0].mxu0
      %v3828 = vadd.f32 0.0, %v3827
      %v3829 = vpop.f32.mrb[0].mxu0
      %3830 = vmatprep.mubr.f32.mxu0 0.0
      %3831 = vmatmul.mubr.f32.gmra.mrb[0].mxu0 %v3759
      %v3832 = vpop.f32.mrb[0].mxu0
      %v3833 = vadd.f32 0.0, %v3832
      %v3834 = vpop.f32.mrb[0].mxu0
      %3835 = vdwg.mxu0
      %v3836 = vadd.f32 %v3736, %v3828
      %v3837 = vadd.f32 %v3741, %v3833
      %v3838 = vld [vmem:[#allocation5 + $0x3] sm:$0xff]
      %v3839 = vld [vmem:[#allocation5 + $0xb] sm:$0xff]
      %s3840 = scalar_lea.vmem %s7, 192
      %v3841 = vld [vmem:[%s3840] sm:$0xff]
      %v3842 = vld [vmem:[%s3840 + $0x8] sm:$0xff]
      %v3843 = vld [vmem:[%s3840 + $0x10] sm:$0xff]
      %v3844 = vld [vmem:[%s3840 + $0x18] sm:$0xff]
      %v3845 = vld [vmem:[%s3840 + $0x20] sm:$0xff]
      %v3846 = vld [vmem:[%s3840 + $0x28] sm:$0xff]
      %v3847 = vld [vmem:[%s3840 + $0x30] sm:$0xff]
      %v3848 = vld [vmem:[%s3840 + $0x38] sm:$0xff]
      %v3850 = vsel %vm3076, %v3838, 0
      %v3853 = vsel %vm3076, %v3839, 0
      %3855 = vmatprep.subr.mxu0 0.0
      %3856 = vmatpush1.msra.mxu0 %v3841
      %3857 = vmatprep.subr.mxu0 0.0
      %3858 = vmatpush1.msra.mxu0 %v3842
      %3859 = vmatprep.subr.mxu0 0.0
      %3860 = vmatpush1.msra.mxu0 %v3843
      %3861 = vmatprep.subr.mxu0 0.0
      %3862 = vmatpush1.msra.mxu0 %v3844
      %3863 = vmatprep.subr.mxu0 0.0
      %3864 = vmatpush1.msra.mxu0 %v3845
      %3865 = vmatprep.subr.mxu0 0.0
      %3866 = vmatpush1.msra.mxu0 %v3846
      %3867 = vmatprep.subr.mxu0 0.0
      %3868 = vmatpush1.msra.mxu0 %v3847
      %3869 = vmatprep.subr.mxu0 0.0
      %3870 = vmatpush1.msra.mxu0 %v3848
      %3871 = vmatprep.subr.mxu0 0.0
      %3872 = vmatpush1.msra.mxu0 0.0
      %3873 = vmatprep.subr.mxu0 0.0
      %3874 = vmatpush1.msra.mxu0 0.0
      %3875 = vmatprep.subr.mxu0 0.0
      %3876 = vmatpush1.msra.mxu0 0.0
      %3877 = vmatprep.subr.mxu0 0.0
      %3878 = vmatpush1.msra.mxu0 0.0
      %3879 = vmatprep.subr.mxu0 0.0
      %3880 = vmatpush1.msra.mxu0 0.0
      %3881 = vmatprep.subr.mxu0 0.0
      %3882 = vmatpush1.msra.mxu0 0.0
      %3883 = vmatprep.subr.mxu0 0.0
      %3884 = vmatpush1.msra.mxu0 0.0
      %3885 = vmatprep.subr.mxu0 0.0
      %3886 = vmatpush1.msra.mxu0 0.0
      %3887 = vmatprep.subr.mxu0 0.0
      %3888 = vmatpush1.msra.mxu0 0.0
      %3889 = vmatprep.subr.mxu0 0.0
      %3890 = vmatpush1.msra.mxu0 0.0
      %3891 = vmatprep.subr.mxu0 0.0
      %3892 = vmatpush1.msra.mxu0 0.0
      %3893 = vmatprep.subr.mxu0 0.0
      %3894 = vmatpush1.msra.mxu0 0.0
      %3895 = vmatprep.subr.mxu0 0.0
      %3896 = vmatpush1.msra.mxu0 0.0
      %3897 = vmatprep.subr.mxu0 0.0
      %3898 = vmatpush1.msra.mxu0 0.0
      %3899 = vmatprep.subr.mxu0 0.0
      %3900 = vmatpush1.msra.mxu0 0.0
      %3901 = vmatprep.subr.mxu0 0.0
      %3902 = vmatpush1.msra.mxu0 0.0
      %3903 = vmatprep.subr.mxu0 0.0
      %3904 = vmatpush1.msra.mxu0 0.0
      %3905 = vmatprep.subr.mxu0 0.0
      %3906 = vmatpush1.msra.mxu0 0.0
      %3907 = vmatprep.subr.mxu0 0.0
      %3908 = vmatpush1.msra.mxu0 0.0
      %3909 = vmatprep.subr.mxu0 0.0
      %3910 = vmatpush1.msra.mxu0 0.0
      %3911 = vmatprep.subr.mxu0 0.0
      %3912 = vmatpush1.msra.mxu0 0.0
      %3913 = vmatprep.subr.mxu0 0.0
      %3914 = vmatpush1.msra.mxu0 0.0
      %3915 = vmatprep.subr.mxu0 0.0
      %3916 = vmatpush1.msra.mxu0 0.0
      %3917 = vmatprep.subr.mxu0 0.0
      %3918 = vmatpush1.msra.mxu0 0.0
      %3919 = vmatprep.mubr.f32.mxu0 0.0
      %3920 = vmatmul.mubr.f32.gmra.mrb[0].mxu0 %v3850
      %v3921 = vpop.f32.mrb[0].mxu0
      %v3922 = vadd.f32 0.0, %v3921
      %v3923 = vpop.f32.mrb[0].mxu0
      %3924 = vmatprep.mubr.f32.mxu0 0.0
      %3925 = vmatmul.mubr.f32.gmra.mrb[0].mxu0 %v3853
      %v3926 = vpop.f32.mrb[0].mxu0
      %v3927 = vadd.f32 0.0, %v3926
      %v3928 = vpop.f32.mrb[0].mxu0
      %3929 = vdwg.mxu0
      %v3930 = vadd.f32 %v3836, %v3922
      %v3931 = vadd.f32 %v3837, %v3927
      %v3932 = vld [vmem:[#allocation5 + $0x4] sm:$0xff]
      %v3933 = vld [vmem:[#allocation5 + $0xc] sm:$0xff]
      %s3934 = scalar_lea.vmem %s7, 256
      %v3935 = vld [vmem:[%s3934] sm:$0xff]
      %v3936 = vld [vmem:[%s3934 + $0x8] sm:$0xff]
      %v3937 = vld [vmem:[%s3934 + $0x10] sm:$0xff]
      %v3938 = vld [vmem:[%s3934 + $0x18] sm:$0xff]
      %v3939 = vld [vmem:[%s3934 + $0x20] sm:$0xff]
      %v3940 = vld [vmem:[%s3934 + $0x28] sm:$0xff]
      %v3941 = vld [vmem:[%s3934 + $0x30] sm:$0xff]
      %v3942 = vld [vmem:[%s3934 + $0x38] sm:$0xff]
      %v3944 = vsel %vm3076, %v3932, 0
      %v3947 = vsel %vm3076, %v3933, 0
      %3949 = vmatprep.subr.mxu0 0.0
      %3950 = vmatpush1.msra.mxu0 %v3935
      %3951 = vmatprep.subr.mxu0 0.0
      %3952 = vmatpush1.msra.mxu0 %v3936
      %3953 = vmatprep.subr.mxu0 0.0
      %3954 = vmatpush1.msra.mxu0 %v3937
      %3955 = vmatprep.subr.mxu0 0.0
      %3956 = vmatpush1.msra.mxu0 %v3938
      %3957 = vmatprep.subr.mxu0 0.0
      %3958 = vmatpush1.msra.mxu0 %v3939
      %3959 = vmatprep.subr.mxu0 0.0
      %3960 = vmatpush1.msra.mxu0 %v3940
      %3961 = vmatprep.subr.mxu0 0.0
      %3962 = vmatpush1.msra.mxu0 %v3941
      %3963 = vmatprep.subr.mxu0 0.0
      %3964 = vmatpush1.msra.mxu0 %v3942
      %3965 = vmatprep.subr.mxu0 0.0
      %3966 = vmatpush1.msra.mxu0 0.0
      %3967 = vmatprep.subr.mxu0 0.0
      %3968 = vmatpush1.msra.mxu0 0.0
      %3969 = vmatprep.subr.mxu0 0.0
      %3970 = vmatpush1.msra.mxu0 0.0
      %3971 = vmatprep.subr.mxu0 0.0
      %3972 = vmatpush1.msra.mxu0 0.0
      %3973 = vmatprep.subr.mxu0 0.0
      %3974 = vmatpush1.msra.mxu0 0.0
      %3975 = vmatprep.subr.mxu0 0.0
      %3976 = vmatpush1.msra.mxu0 0.0
      %3977 = vmatprep.subr.mxu0 0.0
      %3978 = vmatpush1.msra.mxu0 0.0
      %3979 = vmatprep.subr.mxu0 0.0
      %3980 = vmatpush1.msra.mxu0 0.0
      %3981 = vmatprep.subr.mxu0 0.0
      %3982 = vmatpush1.msra.mxu0 0.0
      %3983 = vmatprep.subr.mxu0 0.0
      %3984 = vmatpush1.msra.mxu0 0.0
      %3985 = vmatprep.subr.mxu0 0.0
      %3986 = vmatpush1.msra.mxu0 0.0
      %3987 = vmatprep.subr.mxu0 0.0
      %3988 = vmatpush1.msra.mxu0 0.0
      %3989 = vmatprep.subr.mxu0 0.0
      %3990 = vmatpush1.msra.mxu0 0.0
      %3991 = vmatprep.subr.mxu0 0.0
      %3992 = vmatpush1.msra.mxu0 0.0
      %3993 = vmatprep.subr.mxu0 0.0
      %3994 = vmatpush1.msra.mxu0 0.0
      %3995 = vmatprep.subr.mxu0 0.0
      %3996 = vmatpush1.msra.mxu0 0.0
      %3997 = vmatprep.subr.mxu0 0.0
      %3998 = vmatpush1.msra.mxu0 0.0
      %3999 = vmatprep.subr.mxu0 0.0
      %4000 = vmatpush1.msra.mxu0 0.0
      %4001 = vmatprep.subr.mxu0 0.0
      %4002 = vmatpush1.msra.mxu0 0.0
      %4003 = vmatprep.subr.mxu0 0.0
      %4004 = vmatpush1.msra.mxu0 0.0
      %4005 = vmatprep.subr.mxu0 0.0
      %4006 = vmatpush1.msra.mxu0 0.0
      %4007 = vmatprep.subr.mxu0 0.0
      %4008 = vmatpush1.msra.mxu0 0.0
      %4009 = vmatprep.subr.mxu0 0.0
      %4010 = vmatpush1.msra.mxu0 0.0
      %4011 = vmatprep.subr.mxu0 0.0
      %4012 = vmatpush1.msra.mxu0 0.0
      %4013 = vmatprep.mubr.f32.mxu0 0.0
      %4014 = vmatmul.mubr.f32.gmra.mrb[0].mxu0 %v3944
      %v4015 = vpop.f32.mrb[0].mxu0
      %v4016 = vadd.f32 0.0, %v4015
      %v4017 = vpop.f32.mrb[0].mxu0
      %4018 = vmatprep.mubr.f32.mxu0 0.0
      %4019 = vmatmul.mubr.f32.gmra.mrb[0].mxu0 %v3947
      %v4020 = vpop.f32.mrb[0].mxu0
      %v4021 = vadd.f32 0.0, %v4020
      %v4022 = vpop.f32.mrb[0].mxu0
      %4023 = vdwg.mxu0
      %v4024 = vadd.f32 %v3930, %v4016
      %v4025 = vadd.f32 %v3931, %v4021
      %v4026 = vld [vmem:[%s14 + $0x6] sm:$0x1]
      %v4027 = vlaneseq
      %v4028 = vshrl.u32 %v4027, 7
      %v4029 = vsub.s32 0, %v4028
      %v4030 = vrot.slane %v4026, %v4029
      %v4031 = vadd.f32 %v4024, %v4030
      %v4032 = vadd.f32 %v4025, %v4030
      %v4033 = vadd.f32 %v4031, %v2602
      %v4034 = vadd.f32 %v4032, %v2607
      %vm4035 = vcmp.gt.f32.partialorder %v4033, 0.0
      %vm4036 = vcmp.gt.f32.partialorder %v4034, 0.0
      %v4037 = vmul.f32 %v4033, 0.2
      %v4038 = vmul.f32 %v4034, 0.2
      %v4039 = vsel %vm4035, %v4033, %v4037
      %v4040 = vsel %vm4036, %v4034, %v4038
      %v4041 = vld [vmem:[%s12] sm:$0xff]
      %v4042 = vld [vmem:[%s12 + $0x8] sm:$0xff]
      %v4043 = vld [vmem:[%s12 + $0x10] sm:$0xff]
      %v4044 = vld [vmem:[%s12 + $0x18] sm:$0xff]
      %v4045 = vld [vmem:[%s12 + $0x20] sm:$0xff]
      %v4046 = vld [vmem:[%s12 + $0x28] sm:$0xff]
      %v4047 = vld [vmem:[%s12 + $0x30] sm:$0xff]
      %v4048 = vld [vmem:[%s12 + $0x38] sm:$0xff]
      %v4049 = vld [vmem:[%s14 + $0xb] sm:$0x1]
      %v4050 = vlaneseq
      %v4051 = vshrl.u32 %v4050, 7
      %v4052 = vsub.s32 0, %v4051
      %v4053 = vrot.slane %v4049, %v4052
      %v4055 = vsel %vm3076, %v4039, 0
      %v4058 = vsel %vm3076, %v4040, 0
      %4060 = vmatprep.subr.mxu0 0.0
      %4061 = vmatpush1.msra.mxu0 %v4041
      %4062 = vmatprep.subr.mxu0 0.0
      %4063 = vmatpush1.msra.mxu0 %v4042
      %4064 = vmatprep.subr.mxu0 0.0
      %4065 = vmatpush1.msra.mxu0 %v4043
      %4066 = vmatprep.subr.mxu0 0.0
      %4067 = vmatpush1.msra.mxu0 %v4044
      %4068 = vmatprep.subr.mxu0 0.0
      %4069 = vmatpush1.msra.mxu0 %v4045
      %4070 = vmatprep.subr.mxu0 0.0
      %4071 = vmatpush1.msra.mxu0 %v4046
      %4072 = vmatprep.subr.mxu0 0.0
      %4073 = vmatpush1.msra.mxu0 %v4047
      %4074 = vmatprep.subr.mxu0 0.0
      %4075 = vmatpush1.msra.mxu0 %v4048
      %4076 = vmatprep.subr.mxu0 0.0
      %4077 = vmatpush1.msra.mxu0 0.0
      %4078 = vmatprep.subr.mxu0 0.0
      %4079 = vmatpush1.msra.mxu0 0.0
      %4080 = vmatprep.subr.mxu0 0.0
      %4081 = vmatpush1.msra.mxu0 0.0
      %4082 = vmatprep.subr.mxu0 0.0
      %4083 = vmatpush1.msra.mxu0 0.0
      %4084 = vmatprep.subr.mxu0 0.0
      %4085 = vmatpush1.msra.mxu0 0.0
      %4086 = vmatprep.subr.mxu0 0.0
      %4087 = vmatpush1.msra.mxu0 0.0
      %4088 = vmatprep.subr.mxu0 0.0
      %4089 = vmatpush1.msra.mxu0 0.0
      %4090 = vmatprep.subr.mxu0 0.0
      %4091 = vmatpush1.msra.mxu0 0.0
      %4092 = vmatprep.subr.mxu0 0.0
      %4093 = vmatpush1.msra.mxu0 0.0
      %4094 = vmatprep.subr.mxu0 0.0
      %4095 = vmatpush1.msra.mxu0 0.0
      %4096 = vmatprep.subr.mxu0 0.0
      %4097 = vmatpush1.msra.mxu0 0.0
      %4098 = vmatprep.subr.mxu0 0.0
      %4099 = vmatpush1.msra.mxu0 0.0
      %4100 = vmatprep.subr.mxu0 0.0
      %4101 = vmatpush1.msra.mxu0 0.0
      %4102 = vmatprep.subr.mxu0 0.0
      %4103 = vmatpush1.msra.mxu0 0.0
      %4104 = vmatprep.subr.mxu0 0.0
      %4105 = vmatpush1.msra.mxu0 0.0
      %4106 = vmatprep.subr.mxu0 0.0
      %4107 = vmatpush1.msra.mxu0 0.0
      %4108 = vmatprep.subr.mxu0 0.0
      %4109 = vmatpush1.msra.mxu0 0.0
      %4110 = vmatprep.subr.mxu0 0.0
      %4111 = vmatpush1.msra.mxu0 0.0
      %4112 = vmatprep.subr.mxu0 0.0
      %4113 = vmatpush1.msra.mxu0 0.0
      %4114 = vmatprep.subr.mxu0 0.0
      %4115 = vmatpush1.msra.mxu0 0.0
      %4116 = vmatprep.subr.mxu0 0.0
      %4117 = vmatpush1.msra.mxu0 0.0
      %4118 = vmatprep.subr.mxu0 0.0
      %4119 = vmatpush1.msra.mxu0 0.0
      %4120 = vmatprep.subr.mxu0 0.0
      %4121 = vmatpush1.msra.mxu0 0.0
      %4122 = vmatprep.subr.mxu0 0.0
      %4123 = vmatpush1.msra.mxu0 0.0
      %4124 = vmatprep.mubr.f32.mxu0 0.0
      %4125 = vmatmul.mubr.f32.gmra.mrb[0].mxu0 %v4055
      %v4126 = vpop.f32.mrb[0].mxu0
      %v4127 = vadd.f32 %v4053, %v4126
      %v4128 = vpop.f32.mrb[0].mxu0
      %4129 = vmatprep.mubr.f32.mxu0 0.0
      %4130 = vmatmul.mubr.f32.gmra.mrb[0].mxu0 %v4058
      %v4131 = vpop.f32.mrb[0].mxu0
      %v4132 = vadd.f32 %v4053, %v4131
      %v4133 = vpop.f32.mrb[0].mxu0
      %4134 = vdwg.mxu0
      %vm4135 = vcmask 516096
      %4136 = vst.msk [vmem:[#allocation6] sm:$0x1] %vm4135, 0.0
      %4137 = vst.msk [vmem:[#allocation6 + $0x11] sm:$0x1] %vm4135, 0.0
      %4138 = vst.msk [vmem:[#allocation6 + $0x1] sm:$0xff] %vm3076, %v4039
      %4139 = vst.msk [vmem:[#allocation6 + $0x9] sm:$0xff] %vm3076, %v4040
      %v4140 = vld [vmem:[#allocation6] sm:$0xff]
      %v4141 = vld [vmem:[#allocation6 + $0x8] sm:$0xff]
      %v4142 = vld [vmem:[%s9] sm:$0xff]
      %v4143 = vld [vmem:[%s9 + $0x8] sm:$0xff]
      %v4144 = vld [vmem:[%s9 + $0x10] sm:$0xff]
      %v4145 = vld [vmem:[%s9 + $0x18] sm:$0xff]
      %v4146 = vld [vmem:[%s9 + $0x20] sm:$0xff]
      %v4147 = vld [vmem:[%s9 + $0x28] sm:$0xff]
      %v4148 = vld [vmem:[%s9 + $0x30] sm:$0xff]
      %v4149 = vld [vmem:[%s9 + $0x38] sm:$0xff]
      %v4150 = vld [vmem:[#allocation6 + $0x1] sm:$0xff]
      %v4151 = vld [vmem:[#allocation6 + $0x9] sm:$0xff]
      %s4152 = scalar_lea.vmem %s9, 64
      %v4153 = vld [vmem:[%s4152] sm:$0xff]
      %v4154 = vld [vmem:[%s4152 + $0x8] sm:$0xff]
      %v4155 = vld [vmem:[%s4152 + $0x10] sm:$0xff]
      %v4156 = vld [vmem:[%s4152 + $0x18] sm:$0xff]
      %v4157 = vld [vmem:[%s4152 + $0x20] sm:$0xff]
      %v4158 = vld [vmem:[%s4152 + $0x28] sm:$0xff]
      %v4159 = vld [vmem:[%s4152 + $0x30] sm:$0xff]
      %v4160 = vld [vmem:[%s4152 + $0x38] sm:$0xff]
      %v4162 = vsel %vm3076, %v4150, 0
      %v4165 = vsel %vm3076, %v4151, 0
      %4167 = vmatprep.subr.mxu0 0.0
      %4168 = vmatpush1.msra.mxu0 %v4153
      %4169 = vmatprep.subr.mxu0 0.0
      %4170 = vmatpush1.msra.mxu0 %v4154
      %4171 = vmatprep.subr.mxu0 0.0
      %4172 = vmatpush1.msra.mxu0 %v4155
      %4173 = vmatprep.subr.mxu0 0.0
      %4174 = vmatpush1.msra.mxu0 %v4156
      %4175 = vmatprep.subr.mxu0 0.0
      %4176 = vmatpush1.msra.mxu0 %v4157
      %4177 = vmatprep.subr.mxu0 0.0
      %4178 = vmatpush1.msra.mxu0 %v4158
      %4179 = vmatprep.subr.mxu0 0.0
      %4180 = vmatpush1.msra.mxu0 %v4159
      %4181 = vmatprep.subr.mxu0 0.0
      %4182 = vmatpush1.msra.mxu0 %v4160
      %4183 = vmatprep.subr.mxu0 0.0
      %4184 = vmatpush1.msra.mxu0 0.0
      %4185 = vmatprep.subr.mxu0 0.0
      %4186 = vmatpush1.msra.mxu0 0.0
      %4187 = vmatprep.subr.mxu0 0.0
      %4188 = vmatpush1.msra.mxu0 0.0
      %4189 = vmatprep.subr.mxu0 0.0
      %4190 = vmatpush1.msra.mxu0 0.0
      %4191 = vmatprep.subr.mxu0 0.0
      %4192 = vmatpush1.msra.mxu0 0.0
      %4193 = vmatprep.subr.mxu0 0.0
      %4194 = vmatpush1.msra.mxu0 0.0
      %4195 = vmatprep.subr.mxu0 0.0
      %4196 = vmatpush1.msra.mxu0 0.0
      %4197 = vmatprep.subr.mxu0 0.0
      %4198 = vmatpush1.msra.mxu0 0.0
      %4199 = vmatprep.subr.mxu0 0.0
      %4200 = vmatpush1.msra.mxu0 0.0
      %4201 = vmatprep.subr.mxu0 0.0
      %4202 = vmatpush1.msra.mxu0 0.0
      %4203 = vmatprep.subr.mxu0 0.0
      %4204 = vmatpush1.msra.mxu0 0.0
      %4205 = vmatprep.subr.mxu0 0.0
      %4206 = vmatpush1.msra.mxu0 0.0
      %4207 = vmatprep.subr.mxu0 0.0
      %4208 = vmatpush1.msra.mxu0 0.0
      %4209 = vmatprep.subr.mxu0 0.0
      %4210 = vmatpush1.msra.mxu0 0.0
      %4211 = vmatprep.subr.mxu0 0.0
      %4212 = vmatpush1.msra.mxu0 0.0
      %4213 = vmatprep.subr.mxu0 0.0
      %4214 = vmatpush1.msra.mxu0 0.0
      %4215 = vmatprep.subr.mxu0 0.0
      %4216 = vmatpush1.msra.mxu0 0.0
      %4217 = vmatprep.subr.mxu0 0.0
      %4218 = vmatpush1.msra.mxu0 0.0
      %4219 = vmatprep.subr.mxu0 0.0
      %4220 = vmatpush1.msra.mxu0 0.0
      %4221 = vmatprep.subr.mxu0 0.0
      %4222 = vmatpush1.msra.mxu0 0.0
      %4223 = vmatprep.subr.mxu0 0.0
      %4224 = vmatpush1.msra.mxu0 0.0
      %4225 = vmatprep.subr.mxu0 0.0
      %4226 = vmatpush1.msra.mxu0 0.0
      %4227 = vmatprep.subr.mxu0 0.0
      %4228 = vmatpush1.msra.mxu0 0.0
      %4229 = vmatprep.subr.mxu0 0.0
      %4230 = vmatpush1.msra.mxu0 0.0
      %4231 = vmatprep.mubr.f32.mxu0 0.0
      %4232 = vmatmul.mubr.f32.gmra.mrb[0].mxu0 %v4162
      %v4233 = vpop.f32.mrb[0].mxu0
      %v4234 = vadd.f32 0.0, %v4233
      %v4235 = vpop.f32.mrb[0].mxu0
      %4236 = vmatprep.mubr.f32.mxu0 0.0
      %4237 = vmatmul.mubr.f32.gmra.mrb[0].mxu0 %v4165
      %v4238 = vpop.f32.mrb[0].mxu0
      %v4239 = vadd.f32 0.0, %v4238
      %v4240 = vpop.f32.mrb[0].mxu0
      %4241 = vdwg.mxu0
      %v4243 = vsel %vm3076, %v4140, 0
      %v4246 = vsel %vm3076, %v4141, 0
      %4248 = vmatprep.subr.mxu0 0.0
      %4249 = vmatpush1.msra.mxu0 %v4142
      %4250 = vmatprep.subr.mxu0 0.0
      %4251 = vmatpush1.msra.mxu0 %v4143
      %4252 = vmatprep.subr.mxu0 0.0
      %4253 = vmatpush1.msra.mxu0 %v4144
      %4254 = vmatprep.subr.mxu0 0.0
      %4255 = vmatpush1.msra.mxu0 %v4145
      %4256 = vmatprep.subr.mxu0 0.0
      %4257 = vmatpush1.msra.mxu0 %v4146
      %4258 = vmatprep.subr.mxu0 0.0
      %4259 = vmatpush1.msra.mxu0 %v4147
      %4260 = vmatprep.subr.mxu0 0.0
      %4261 = vmatpush1.msra.mxu0 %v4148
      %4262 = vmatprep.subr.mxu0 0.0
      %4263 = vmatpush1.msra.mxu0 %v4149
      %4264 = vmatprep.subr.mxu0 0.0
      %4265 = vmatpush1.msra.mxu0 0.0
      %4266 = vmatprep.subr.mxu0 0.0
      %4267 = vmatpush1.msra.mxu0 0.0
      %4268 = vmatprep.subr.mxu0 0.0
      %4269 = vmatpush1.msra.mxu0 0.0
      %4270 = vmatprep.subr.mxu0 0.0
      %4271 = vmatpush1.msra.mxu0 0.0
      %4272 = vmatprep.subr.mxu0 0.0
      %4273 = vmatpush1.msra.mxu0 0.0
      %4274 = vmatprep.subr.mxu0 0.0
      %4275 = vmatpush1.msra.mxu0 0.0
      %4276 = vmatprep.subr.mxu0 0.0
      %4277 = vmatpush1.msra.mxu0 0.0
      %4278 = vmatprep.subr.mxu0 0.0
      %4279 = vmatpush1.msra.mxu0 0.0
      %4280 = vmatprep.subr.mxu0 0.0
      %4281 = vmatpush1.msra.mxu0 0.0
      %4282 = vmatprep.subr.mxu0 0.0
      %4283 = vmatpush1.msra.mxu0 0.0
      %4284 = vmatprep.subr.mxu0 0.0
      %4285 = vmatpush1.msra.mxu0 0.0
      %4286 = vmatprep.subr.mxu0 0.0
      %4287 = vmatpush1.msra.mxu0 0.0
      %4288 = vmatprep.subr.mxu0 0.0
      %4289 = vmatpush1.msra.mxu0 0.0
      %4290 = vmatprep.subr.mxu0 0.0
      %4291 = vmatpush1.msra.mxu0 0.0
      %4292 = vmatprep.subr.mxu0 0.0
      %4293 = vmatpush1.msra.mxu0 0.0
      %4294 = vmatprep.subr.mxu0 0.0
      %4295 = vmatpush1.msra.mxu0 0.0
      %4296 = vmatprep.subr.mxu0 0.0
      %4297 = vmatpush1.msra.mxu0 0.0
      %4298 = vmatprep.subr.mxu0 0.0
      %4299 = vmatpush1.msra.mxu0 0.0
      %4300 = vmatprep.subr.mxu0 0.0
      %4301 = vmatpush1.msra.mxu0 0.0
      %4302 = vmatprep.subr.mxu0 0.0
      %4303 = vmatpush1.msra.mxu0 0.0
      %4304 = vmatprep.subr.mxu0 0.0
      %4305 = vmatpush1.msra.mxu0 0.0
      %4306 = vmatprep.subr.mxu0 0.0
      %4307 = vmatpush1.msra.mxu0 0.0
      %4308 = vmatprep.subr.mxu0 0.0
      %4309 = vmatpush1.msra.mxu0 0.0
      %4310 = vmatprep.subr.mxu0 0.0
      %4311 = vmatpush1.msra.mxu0 0.0
      %4312 = vmatprep.mubr.f32.mxu0 0.0
      %4313 = vmatmul.mubr.f32.gmra.mrb[0].mxu0 %v4243
      %v4314 = vpop.f32.mrb[0].mxu0
      %v4315 = vadd.f32 %v4234, %v4314
      %v4316 = vpop.f32.mrb[0].mxu0
      %4317 = vmatprep.mubr.f32.mxu0 0.0
      %4318 = vmatmul.mubr.f32.gmra.mrb[0].mxu0 %v4246
      %v4319 = vpop.f32.mrb[0].mxu0
      %v4320 = vadd.f32 %v4239, %v4319
      %v4321 = vpop.f32.mrb[0].mxu0
      %4322 = vdwg.mxu0
      %v4323 = vld [vmem:[#allocation6 + $0x2] sm:$0xff]
      %v4324 = vld [vmem:[#allocation6 + $0xa] sm:$0xff]
      %s4325 = scalar_lea.vmem %s9, 128
      %v4326 = vld [vmem:[%s4325] sm:$0xff]
      %v4327 = vld [vmem:[%s4325 + $0x8] sm:$0xff]
      %v4328 = vld [vmem:[%s4325 + $0x10] sm:$0xff]
      %v4329 = vld [vmem:[%s4325 + $0x18] sm:$0xff]
      %v4330 = vld [vmem:[%s4325 + $0x20] sm:$0xff]
      %v4331 = vld [vmem:[%s4325 + $0x28] sm:$0xff]
      %v4332 = vld [vmem:[%s4325 + $0x30] sm:$0xff]
      %v4333 = vld [vmem:[%s4325 + $0x38] sm:$0xff]
      %v4335 = vsel %vm3076, %v4323, 0
      %v4338 = vsel %vm3076, %v4324, 0
      %4340 = vmatprep.subr.mxu0 0.0
      %4341 = vmatpush1.msra.mxu0 %v4326
      %4342 = vmatprep.subr.mxu0 0.0
      %4343 = vmatpush1.msra.mxu0 %v4327
      %4344 = vmatprep.subr.mxu0 0.0
      %4345 = vmatpush1.msra.mxu0 %v4328
      %4346 = vmatprep.subr.mxu0 0.0
      %4347 = vmatpush1.msra.mxu0 %v4329
      %4348 = vmatprep.subr.mxu0 0.0
      %4349 = vmatpush1.msra.mxu0 %v4330
      %4350 = vmatprep.subr.mxu0 0.0
      %4351 = vmatpush1.msra.mxu0 %v4331
      %4352 = vmatprep.subr.mxu0 0.0
      %4353 = vmatpush1.msra.mxu0 %v4332
      %4354 = vmatprep.subr.mxu0 0.0
      %4355 = vmatpush1.msra.mxu0 %v4333
      %4356 = vmatprep.subr.mxu0 0.0
      %4357 = vmatpush1.msra.mxu0 0.0
      %4358 = vmatprep.subr.mxu0 0.0
      %4359 = vmatpush1.msra.mxu0 0.0
      %4360 = vmatprep.subr.mxu0 0.0
      %4361 = vmatpush1.msra.mxu0 0.0
      %4362 = vmatprep.subr.mxu0 0.0
      %4363 = vmatpush1.msra.mxu0 0.0
      %4364 = vmatprep.subr.mxu0 0.0
      %4365 = vmatpush1.msra.mxu0 0.0
      %4366 = vmatprep.subr.mxu0 0.0
      %4367 = vmatpush1.msra.mxu0 0.0
      %4368 = vmatprep.subr.mxu0 0.0
      %4369 = vmatpush1.msra.mxu0 0.0
      %4370 = vmatprep.subr.mxu0 0.0
      %4371 = vmatpush1.msra.mxu0 0.0
      %4372 = vmatprep.subr.mxu0 0.0
      %4373 = vmatpush1.msra.mxu0 0.0
      %4374 = vmatprep.subr.mxu0 0.0
      %4375 = vmatpush1.msra.mxu0 0.0
      %4376 = vmatprep.subr.mxu0 0.0
      %4377 = vmatpush1.msra.mxu0 0.0
      %4378 = vmatprep.subr.mxu0 0.0
      %4379 = vmatpush1.msra.mxu0 0.0
      %4380 = vmatprep.subr.mxu0 0.0
      %4381 = vmatpush1.msra.mxu0 0.0
      %4382 = vmatprep.subr.mxu0 0.0
      %4383 = vmatpush1.msra.mxu0 0.0
      %4384 = vmatprep.subr.mxu0 0.0
      %4385 = vmatpush1.msra.mxu0 0.0
      %4386 = vmatprep.subr.mxu0 0.0
      %4387 = vmatpush1.msra.mxu0 0.0
      %4388 = vmatprep.subr.mxu0 0.0
      %4389 = vmatpush1.msra.mxu0 0.0
      %4390 = vmatprep.subr.mxu0 0.0
      %4391 = vmatpush1.msra.mxu0 0.0
      %4392 = vmatprep.subr.mxu0 0.0
      %4393 = vmatpush1.msra.mxu0 0.0
      %4394 = vmatprep.subr.mxu0 0.0
      %4395 = vmatpush1.msra.mxu0 0.0
      %4396 = vmatprep.subr.mxu0 0.0
      %4397 = vmatpush1.msra.mxu0 0.0
      %4398 = vmatprep.subr.mxu0 0.0
      %4399 = vmatpush1.msra.mxu0 0.0
      %4400 = vmatprep.subr.mxu0 0.0
      %4401 = vmatpush1.msra.mxu0 0.0
      %4402 = vmatprep.subr.mxu0 0.0
      %4403 = vmatpush1.msra.mxu0 0.0
      %4404 = vmatprep.mubr.f32.mxu0 0.0
      %4405 = vmatmul.mubr.f32.gmra.mrb[0].mxu0 %v4335
      %v4406 = vpop.f32.mrb[0].mxu0
      %v4407 = vadd.f32 0.0, %v4406
      %v4408 = vpop.f32.mrb[0].mxu0
      %4409 = vmatprep.mubr.f32.mxu0 0.0
      %4410 = vmatmul.mubr.f32.gmra.mrb[0].mxu0 %v4338
      %v4411 = vpop.f32.mrb[0].mxu0
      %v4412 = vadd.f32 0.0, %v4411
      %v4413 = vpop.f32.mrb[0].mxu0
      %4414 = vdwg.mxu0
      %v4415 = vadd.f32 %v4315, %v4407
      %v4416 = vadd.f32 %v4320, %v4412
      %v4417 = vld [vmem:[%s14 + $0x8] sm:$0x1]
      %v4418 = vlaneseq
      %v4419 = vshrl.u32 %v4418, 7
      %v4420 = vsub.s32 0, %v4419
      %v4421 = vrot.slane %v4417, %v4420
      %v4422 = vadd.f32 %v4415, %v4421
      %v4423 = vadd.f32 %v4416, %v4421
      %vm4424 = vcmp.gt.f32.partialorder %v4422, 0.0
      %vm4425 = vcmp.gt.f32.partialorder %v4423, 0.0
      %v4426 = vmul.f32 %v4422, 0.2
      %v4427 = vmul.f32 %v4423, 0.2
      %v4428 = vsel %vm4424, %v4422, %v4426
      %v4429 = vsel %vm4425, %v4423, %v4427
      %4430 = vst [vmem:[#allocation7] sm:$0x1] 0.0
      %4431 = vst [vmem:[#allocation7 + $0x11] sm:$0x1] 0.0
      %4432 = vst [vmem:[#allocation7 + $0x1] sm:$0xff] %v4428
      %4433 = vst [vmem:[#allocation7 + $0x9] sm:$0xff] %v4429
      %v4434 = vld [vmem:[#allocation7] sm:$0xff]
      %v4435 = vld [vmem:[#allocation7 + $0x8] sm:$0xff]
      %v4436 = vld [vmem:[%s10] sm:$0xff]
      %v4437 = vld [vmem:[%s10 + $0x8] sm:$0xff]
      %v4438 = vld [vmem:[%s10 + $0x10] sm:$0xff]
      %v4439 = vld [vmem:[%s10 + $0x18] sm:$0xff]
      %v4440 = vld [vmem:[%s10 + $0x20] sm:$0xff]
      %v4441 = vld [vmem:[%s10 + $0x28] sm:$0xff]
      %v4442 = vld [vmem:[%s10 + $0x30] sm:$0xff]
      %v4443 = vld [vmem:[%s10 + $0x38] sm:$0xff]
      %v4444 = vld [vmem:[%s10 + $0x40] sm:$0xff]
      %v4445 = vld [vmem:[%s10 + $0x48] sm:$0xff]
      %v4446 = vld [vmem:[%s10 + $0x50] sm:$0xff]
      %v4447 = vld [vmem:[%s10 + $0x58] sm:$0xff]
      %v4448 = vld [vmem:[%s10 + $0x60] sm:$0xff]
      %v4449 = vld [vmem:[%s10 + $0x68] sm:$0xff]
      %v4450 = vld [vmem:[%s10 + $0x70] sm:$0xff]
      %v4451 = vld [vmem:[%s10 + $0x78] sm:$0xff]
      %v4452 = vld [vmem:[#allocation7 + $0x1] sm:$0xff]
      %v4453 = vld [vmem:[#allocation7 + $0x9] sm:$0xff]
      %s4454 = scalar_lea.vmem %s10, 128
      %v4455 = vld [vmem:[%s4454] sm:$0xff]
      %v4456 = vld [vmem:[%s4454 + $0x8] sm:$0xff]
      %v4457 = vld [vmem:[%s4454 + $0x10] sm:$0xff]
      %v4458 = vld [vmem:[%s4454 + $0x18] sm:$0xff]
      %v4459 = vld [vmem:[%s4454 + $0x20] sm:$0xff]
      %v4460 = vld [vmem:[%s4454 + $0x28] sm:$0xff]
      %v4461 = vld [vmem:[%s4454 + $0x30] sm:$0xff]
      %v4462 = vld [vmem:[%s4454 + $0x38] sm:$0xff]
      %v4463 = vld [vmem:[%s4454 + $0x40] sm:$0xff]
      %v4464 = vld [vmem:[%s4454 + $0x48] sm:$0xff]
      %v4465 = vld [vmem:[%s4454 + $0x50] sm:$0xff]
      %v4466 = vld [vmem:[%s4454 + $0x58] sm:$0xff]
      %v4467 = vld [vmem:[%s4454 + $0x60] sm:$0xff]
      %v4468 = vld [vmem:[%s4454 + $0x68] sm:$0xff]
      %v4469 = vld [vmem:[%s4454 + $0x70] sm:$0xff]
      %v4470 = vld [vmem:[%s4454 + $0x78] sm:$0xff]
      %4471 = vmatprep.subr.mxu0 0.0
      %4472 = vmatpush1.msra.mxu0 %v4455
      %4473 = vmatprep.subr.mxu0 0.0
      %4474 = vmatpush1.msra.mxu0 %v4456
      %4475 = vmatprep.subr.mxu0 0.0
      %4476 = vmatpush1.msra.mxu0 %v4457
      %4477 = vmatprep.subr.mxu0 0.0
      %4478 = vmatpush1.msra.mxu0 %v4458
      %4479 = vmatprep.subr.mxu0 0.0
      %4480 = vmatpush1.msra.mxu0 %v4459
      %4481 = vmatprep.subr.mxu0 0.0
      %4482 = vmatpush1.msra.mxu0 %v4460
      %4483 = vmatprep.subr.mxu0 0.0
      %4484 = vmatpush1.msra.mxu0 %v4461
      %4485 = vmatprep.subr.mxu0 0.0
      %4486 = vmatpush1.msra.mxu0 %v4462
      %4487 = vmatprep.subr.mxu0 0.0
      %4488 = vmatpush1.msra.mxu0 %v4463
      %4489 = vmatprep.subr.mxu0 0.0
      %4490 = vmatpush1.msra.mxu0 %v4464
      %4491 = vmatprep.subr.mxu0 0.0
      %4492 = vmatpush1.msra.mxu0 %v4465
      %4493 = vmatprep.subr.mxu0 0.0
      %4494 = vmatpush1.msra.mxu0 %v4466
      %4495 = vmatprep.subr.mxu0 0.0
      %4496 = vmatpush1.msra.mxu0 %v4467
      %4497 = vmatprep.subr.mxu0 0.0
      %4498 = vmatpush1.msra.mxu0 %v4468
      %4499 = vmatprep.subr.mxu0 0.0
      %4500 = vmatpush1.msra.mxu0 %v4469
      %4501 = vmatprep.subr.mxu0 0.0
      %4502 = vmatpush1.msra.mxu0 %v4470
      %4503 = vmatprep.subr.mxu0 0.0
      %4504 = vmatpush1.msra.mxu0 0.0
      %4505 = vmatprep.subr.mxu0 0.0
      %4506 = vmatpush1.msra.mxu0 0.0
      %4507 = vmatprep.subr.mxu0 0.0
      %4508 = vmatpush1.msra.mxu0 0.0
      %4509 = vmatprep.subr.mxu0 0.0
      %4510 = vmatpush1.msra.mxu0 0.0
      %4511 = vmatprep.subr.mxu0 0.0
      %4512 = vmatpush1.msra.mxu0 0.0
      %4513 = vmatprep.subr.mxu0 0.0
      %4514 = vmatpush1.msra.mxu0 0.0
      %4515 = vmatprep.subr.mxu0 0.0
      %4516 = vmatpush1.msra.mxu0 0.0
      %4517 = vmatprep.subr.mxu0 0.0
      %4518 = vmatpush1.msra.mxu0 0.0
      %4519 = vmatprep.subr.mxu0 0.0
      %4520 = vmatpush1.msra.mxu0 0.0
      %4521 = vmatprep.subr.mxu0 0.0
      %4522 = vmatpush1.msra.mxu0 0.0
      %4523 = vmatprep.subr.mxu0 0.0
      %4524 = vmatpush1.msra.mxu0 0.0
      %4525 = vmatprep.subr.mxu0 0.0
      %4526 = vmatpush1.msra.mxu0 0.0
      %4527 = vmatprep.subr.mxu0 0.0
      %4528 = vmatpush1.msra.mxu0 0.0
      %4529 = vmatprep.subr.mxu0 0.0
      %4530 = vmatpush1.msra.mxu0 0.0
      %4531 = vmatprep.subr.mxu0 0.0
      %4532 = vmatpush1.msra.mxu0 0.0
      %4533 = vmatprep.subr.mxu0 0.0
      %4534 = vmatpush1.msra.mxu0 0.0
      %4535 = vmatprep.mubr.f32.mxu0 0.0
      %4536 = vmatmul.mubr.f32.gmra.mrb[0].mxu0 %v4452
      %v4537 = vpop.f32.mrb[0].mxu0
      %v4538 = vadd.f32 0.0, %v4537
      %v4539 = vpop.f32.mrb[0].mxu0
      %4540 = vmatprep.mubr.f32.mxu0 0.0
      %4541 = vmatmul.mubr.f32.gmra.mrb[0].mxu0 %v4453
      %v4542 = vpop.f32.mrb[0].mxu0
      %v4543 = vadd.f32 0.0, %v4542
      %v4544 = vpop.f32.mrb[0].mxu0
      %4545 = vdwg.mxu0
      %4546 = vmatprep.subr.mxu0 0.0
      %4547 = vmatpush1.msra.mxu0 %v4436
      %4548 = vmatprep.subr.mxu0 0.0
      %4549 = vmatpush1.msra.mxu0 %v4437
      %4550 = vmatprep.subr.mxu0 0.0
      %4551 = vmatpush1.msra.mxu0 %v4438
      %4552 = vmatprep.subr.mxu0 0.0
      %4553 = vmatpush1.msra.mxu0 %v4439
      %4554 = vmatprep.subr.mxu0 0.0
      %4555 = vmatpush1.msra.mxu0 %v4440
      %4556 = vmatprep.subr.mxu0 0.0
      %4557 = vmatpush1.msra.mxu0 %v4441
      %4558 = vmatprep.subr.mxu0 0.0
      %4559 = vmatpush1.msra.mxu0 %v4442
      %4560 = vmatprep.subr.mxu0 0.0
      %4561 = vmatpush1.msra.mxu0 %v4443
      %4562 = vmatprep.subr.mxu0 0.0
      %4563 = vmatpush1.msra.mxu0 %v4444
      %4564 = vmatprep.subr.mxu0 0.0
      %4565 = vmatpush1.msra.mxu0 %v4445
      %4566 = vmatprep.subr.mxu0 0.0
      %4567 = vmatpush1.msra.mxu0 %v4446
      %4568 = vmatprep.subr.mxu0 0.0
      %4569 = vmatpush1.msra.mxu0 %v4447
      %4570 = vmatprep.subr.mxu0 0.0
      %4571 = vmatpush1.msra.mxu0 %v4448
      %4572 = vmatprep.subr.mxu0 0.0
      %4573 = vmatpush1.msra.mxu0 %v4449
      %4574 = vmatprep.subr.mxu0 0.0
      %4575 = vmatpush1.msra.mxu0 %v4450
      %4576 = vmatprep.subr.mxu0 0.0
      %4577 = vmatpush1.msra.mxu0 %v4451
      %4578 = vmatprep.subr.mxu0 0.0
      %4579 = vmatpush1.msra.mxu0 0.0
      %4580 = vmatprep.subr.mxu0 0.0
      %4581 = vmatpush1.msra.mxu0 0.0
      %4582 = vmatprep.subr.mxu0 0.0
      %4583 = vmatpush1.msra.mxu0 0.0
      %4584 = vmatprep.subr.mxu0 0.0
      %4585 = vmatpush1.msra.mxu0 0.0
      %4586 = vmatprep.subr.mxu0 0.0
      %4587 = vmatpush1.msra.mxu0 0.0
      %4588 = vmatprep.subr.mxu0 0.0
      %4589 = vmatpush1.msra.mxu0 0.0
      %4590 = vmatprep.subr.mxu0 0.0
      %4591 = vmatpush1.msra.mxu0 0.0
      %4592 = vmatprep.subr.mxu0 0.0
      %4593 = vmatpush1.msra.mxu0 0.0
      %4594 = vmatprep.subr.mxu0 0.0
      %4595 = vmatpush1.msra.mxu0 0.0
      %4596 = vmatprep.subr.mxu0 0.0
      %4597 = vmatpush1.msra.mxu0 0.0
      %4598 = vmatprep.subr.mxu0 0.0
      %4599 = vmatpush1.msra.mxu0 0.0
      %4600 = vmatprep.subr.mxu0 0.0
      %4601 = vmatpush1.msra.mxu0 0.0
      %4602 = vmatprep.subr.mxu0 0.0
      %4603 = vmatpush1.msra.mxu0 0.0
      %4604 = vmatprep.subr.mxu0 0.0
      %4605 = vmatpush1.msra.mxu0 0.0
      %4606 = vmatprep.subr.mxu0 0.0
      %4607 = vmatpush1.msra.mxu0 0.0
      %4608 = vmatprep.subr.mxu0 0.0
      %4609 = vmatpush1.msra.mxu0 0.0
      %4610 = vmatprep.mubr.f32.mxu0 0.0
      %4611 = vmatmul.mubr.f32.gmra.mrb[0].mxu0 %v4434
      %v4612 = vpop.f32.mrb[0].mxu0
      %v4613 = vadd.f32 %v4538, %v4612
      %v4614 = vpop.f32.mrb[0].mxu0
      %4615 = vmatprep.mubr.f32.mxu0 0.0
      %4616 = vmatmul.mubr.f32.gmra.mrb[0].mxu0 %v4435
      %v4617 = vpop.f32.mrb[0].mxu0
      %v4618 = vadd.f32 %v4543, %v4617
      %v4619 = vpop.f32.mrb[0].mxu0
      %4620 = vdwg.mxu0
      %v4621 = vld [vmem:[#allocation7 + $0x2] sm:$0xff]
      %v4622 = vld [vmem:[#allocation7 + $0xa] sm:$0xff]
      %s4623 = scalar_lea.vmem %s10, 256
      %v4624 = vld [vmem:[%s4623] sm:$0xff]
      %v4625 = vld [vmem:[%s4623 + $0x8] sm:$0xff]
      %v4626 = vld [vmem:[%s4623 + $0x10] sm:$0xff]
      %v4627 = vld [vmem:[%s4623 + $0x18] sm:$0xff]
      %v4628 = vld [vmem:[%s4623 + $0x20] sm:$0xff]
      %v4629 = vld [vmem:[%s4623 + $0x28] sm:$0xff]
      %v4630 = vld [vmem:[%s4623 + $0x30] sm:$0xff]
      %v4631 = vld [vmem:[%s4623 + $0x38] sm:$0xff]
      %v4632 = vld [vmem:[%s4623 + $0x40] sm:$0xff]
      %v4633 = vld [vmem:[%s4623 + $0x48] sm:$0xff]
      %v4634 = vld [vmem:[%s4623 + $0x50] sm:$0xff]
      %v4635 = vld [vmem:[%s4623 + $0x58] sm:$0xff]
      %v4636 = vld [vmem:[%s4623 + $0x60] sm:$0xff]
      %v4637 = vld [vmem:[%s4623 + $0x68] sm:$0xff]
      %v4638 = vld [vmem:[%s4623 + $0x70] sm:$0xff]
      %v4639 = vld [vmem:[%s4623 + $0x78] sm:$0xff]
      %4640 = vmatprep.subr.mxu0 0.0
      %4641 = vmatpush1.msra.mxu0 %v4624
      %4642 = vmatprep.subr.mxu0 0.0
      %4643 = vmatpush1.msra.mxu0 %v4625
      %4644 = vmatprep.subr.mxu0 0.0
      %4645 = vmatpush1.msra.mxu0 %v4626
      %4646 = vmatprep.subr.mxu0 0.0
      %4647 = vmatpush1.msra.mxu0 %v4627
      %4648 = vmatprep.subr.mxu0 0.0
      %4649 = vmatpush1.msra.mxu0 %v4628
      %4650 = vmatprep.subr.mxu0 0.0
      %4651 = vmatpush1.msra.mxu0 %v4629
      %4652 = vmatprep.subr.mxu0 0.0
      %4653 = vmatpush1.msra.mxu0 %v4630
      %4654 = vmatprep.subr.mxu0 0.0
      %4655 = vmatpush1.msra.mxu0 %v4631
      %4656 = vmatprep.subr.mxu0 0.0
      %4657 = vmatpush1.msra.mxu0 %v4632
      %4658 = vmatprep.subr.mxu0 0.0
      %4659 = vmatpush1.msra.mxu0 %v4633
      %4660 = vmatprep.subr.mxu0 0.0
      %4661 = vmatpush1.msra.mxu0 %v4634
      %4662 = vmatprep.subr.mxu0 0.0
      %4663 = vmatpush1.msra.mxu0 %v4635
      %4664 = vmatprep.subr.mxu0 0.0
      %4665 = vmatpush1.msra.mxu0 %v4636
      %4666 = vmatprep.subr.mxu0 0.0
      %4667 = vmatpush1.msra.mxu0 %v4637
      %4668 = vmatprep.subr.mxu0 0.0
      %4669 = vmatpush1.msra.mxu0 %v4638
      %4670 = vmatprep.subr.mxu0 0.0
      %4671 = vmatpush1.msra.mxu0 %v4639
      %4672 = vmatprep.subr.mxu0 0.0
      %4673 = vmatpush1.msra.mxu0 0.0
      %4674 = vmatprep.subr.mxu0 0.0
      %4675 = vmatpush1.msra.mxu0 0.0
      %4676 = vmatprep.subr.mxu0 0.0
      %4677 = vmatpush1.msra.mxu0 0.0
      %4678 = vmatprep.subr.mxu0 0.0
      %4679 = vmatpush1.msra.mxu0 0.0
      %4680 = vmatprep.subr.mxu0 0.0
      %4681 = vmatpush1.msra.mxu0 0.0
      %4682 = vmatprep.subr.mxu0 0.0
      %4683 = vmatpush1.msra.mxu0 0.0
      %4684 = vmatprep.subr.mxu0 0.0
      %4685 = vmatpush1.msra.mxu0 0.0
      %4686 = vmatprep.subr.mxu0 0.0
      %4687 = vmatpush1.msra.mxu0 0.0
      %4688 = vmatprep.subr.mxu0 0.0
      %4689 = vmatpush1.msra.mxu0 0.0
      %4690 = vmatprep.subr.mxu0 0.0
      %4691 = vmatpush1.msra.mxu0 0.0
      %4692 = vmatprep.subr.mxu0 0.0
      %4693 = vmatpush1.msra.mxu0 0.0
      %4694 = vmatprep.subr.mxu0 0.0
      %4695 = vmatpush1.msra.mxu0 0.0
      %4696 = vmatprep.subr.mxu0 0.0
      %4697 = vmatpush1.msra.mxu0 0.0
      %4698 = vmatprep.subr.mxu0 0.0
      %4699 = vmatpush1.msra.mxu0 0.0
      %4700 = vmatprep.subr.mxu0 0.0
      %4701 = vmatpush1.msra.mxu0 0.0
      %4702 = vmatprep.subr.mxu0 0.0
      %4703 = vmatpush1.msra.mxu0 0.0
      %4704 = vmatprep.mubr.f32.mxu0 0.0
      %4705 = vmatmul.mubr.f32.gmra.mrb[0].mxu0 %v4621
      %v4706 = vpop.f32.mrb[0].mxu0
      %v4707 = vadd.f32 0.0, %v4706
      %v4708 = vpop.f32.mrb[0].mxu0
      %4709 = vmatprep.mubr.f32.mxu0 0.0
      %4710 = vmatmul.mubr.f32.gmra.mrb[0].mxu0 %v4622
      %v4711 = vpop.f32.mrb[0].mxu0
      %v4712 = vadd.f32 0.0, %v4711
      %v4713 = vpop.f32.mrb[0].mxu0
      %4714 = vdwg.mxu0
      %v4715 = vadd.f32 %v4613, %v4707
      %v4716 = vadd.f32 %v4618, %v4712
      %v4717 = vld [vmem:[%s14 + $0x9] sm:$0x1]
      %v4718 = vlaneseq
      %v4719 = vshrl.u32 %v4718, 7
      %v4720 = vsub.s32 0, %v4719
      %v4721 = vrot.slane %v4717, %v4720
      %v4722 = vadd.f32 %v4715, %v4721
      %v4723 = vadd.f32 %v4716, %v4721
      %vm4724 = vcmp.gt.f32.partialorder %v4722, 0.0
      %vm4725 = vcmp.gt.f32.partialorder %v4723, 0.0
      %v4726 = vmul.f32 %v4722, 0.2
      %v4727 = vmul.f32 %v4723, 0.2
      %v4728 = vsel %vm4724, %v4722, %v4726
      %v4729 = vsel %vm4725, %v4723, %v4727
      %4730 = vst [vmem:[#allocation7] sm:$0x1] 0.0
      %4731 = vst [vmem:[#allocation7 + $0x11] sm:$0x1] 0.0
      %4732 = vst [vmem:[#allocation7 + $0x1] sm:$0xff] %v4728
      %4733 = vst [vmem:[#allocation7 + $0x9] sm:$0xff] %v4729
      %v4734 = vld [vmem:[#allocation7] sm:$0xff]
      %v4735 = vld [vmem:[#allocation7 + $0x8] sm:$0xff]
      %v4736 = vld [vmem:[%s11] sm:$0xff]
      %v4737 = vld [vmem:[%s11 + $0x8] sm:$0xff]
      %v4738 = vld [vmem:[%s11 + $0x10] sm:$0xff]
      %v4739 = vld [vmem:[%s11 + $0x18] sm:$0xff]
      %v4740 = vld [vmem:[%s11 + $0x20] sm:$0xff]
      %v4741 = vld [vmem:[%s11 + $0x28] sm:$0xff]
      %v4742 = vld [vmem:[%s11 + $0x30] sm:$0xff]
      %v4743 = vld [vmem:[%s11 + $0x38] sm:$0xff]
      %v4744 = vld [vmem:[%s11 + $0x40] sm:$0xff]
      %v4745 = vld [vmem:[%s11 + $0x48] sm:$0xff]
      %v4746 = vld [vmem:[%s11 + $0x50] sm:$0xff]
      %v4747 = vld [vmem:[%s11 + $0x58] sm:$0xff]
      %v4748 = vld [vmem:[%s11 + $0x60] sm:$0xff]
      %v4749 = vld [vmem:[%s11 + $0x68] sm:$0xff]
      %v4750 = vld [vmem:[%s11 + $0x70] sm:$0xff]
      %v4751 = vld [vmem:[%s11 + $0x78] sm:$0xff]
      %v4752 = vld [vmem:[#allocation7 + $0x1] sm:$0xff]
      %v4753 = vld [vmem:[#allocation7 + $0x9] sm:$0xff]
      %s4754 = scalar_lea.vmem %s11, 128
      %v4755 = vld [vmem:[%s4754] sm:$0xff]
      %v4756 = vld [vmem:[%s4754 + $0x8] sm:$0xff]
      %v4757 = vld [vmem:[%s4754 + $0x10] sm:$0xff]
      %v4758 = vld [vmem:[%s4754 + $0x18] sm:$0xff]
      %v4759 = vld [vmem:[%s4754 + $0x20] sm:$0xff]
      %v4760 = vld [vmem:[%s4754 + $0x28] sm:$0xff]
      %v4761 = vld [vmem:[%s4754 + $0x30] sm:$0xff]
      %v4762 = vld [vmem:[%s4754 + $0x38] sm:$0xff]
      %v4763 = vld [vmem:[%s4754 + $0x40] sm:$0xff]
      %v4764 = vld [vmem:[%s4754 + $0x48] sm:$0xff]
      %v4765 = vld [vmem:[%s4754 + $0x50] sm:$0xff]
      %v4766 = vld [vmem:[%s4754 + $0x58] sm:$0xff]
      %v4767 = vld [vmem:[%s4754 + $0x60] sm:$0xff]
      %v4768 = vld [vmem:[%s4754 + $0x68] sm:$0xff]
      %v4769 = vld [vmem:[%s4754 + $0x70] sm:$0xff]
      %v4770 = vld [vmem:[%s4754 + $0x78] sm:$0xff]
      %4771 = vmatprep.subr.mxu0 0.0
      %4772 = vmatpush1.msra.mxu0 %v4755
      %4773 = vmatprep.subr.mxu0 0.0
      %4774 = vmatpush1.msra.mxu0 %v4756
      %4775 = vmatprep.subr.mxu0 0.0
      %4776 = vmatpush1.msra.mxu0 %v4757
      %4777 = vmatprep.subr.mxu0 0.0
      %4778 = vmatpush1.msra.mxu0 %v4758
      %4779 = vmatprep.subr.mxu0 0.0
      %4780 = vmatpush1.msra.mxu0 %v4759
      %4781 = vmatprep.subr.mxu0 0.0
      %4782 = vmatpush1.msra.mxu0 %v4760
      %4783 = vmatprep.subr.mxu0 0.0
      %4784 = vmatpush1.msra.mxu0 %v4761
      %4785 = vmatprep.subr.mxu0 0.0
      %4786 = vmatpush1.msra.mxu0 %v4762
      %4787 = vmatprep.subr.mxu0 0.0
      %4788 = vmatpush1.msra.mxu0 %v4763
      %4789 = vmatprep.subr.mxu0 0.0
      %4790 = vmatpush1.msra.mxu0 %v4764
      %4791 = vmatprep.subr.mxu0 0.0
      %4792 = vmatpush1.msra.mxu0 %v4765
      %4793 = vmatprep.subr.mxu0 0.0
      %4794 = vmatpush1.msra.mxu0 %v4766
      %4795 = vmatprep.subr.mxu0 0.0
      %4796 = vmatpush1.msra.mxu0 %v4767
      %4797 = vmatprep.subr.mxu0 0.0
      %4798 = vmatpush1.msra.mxu0 %v4768
      %4799 = vmatprep.subr.mxu0 0.0
      %4800 = vmatpush1.msra.mxu0 %v4769
      %4801 = vmatprep.subr.mxu0 0.0
      %4802 = vmatpush1.msra.mxu0 %v4770
      %4803 = vmatprep.subr.mxu0 0.0
      %4804 = vmatpush1.msra.mxu0 0.0
      %4805 = vmatprep.subr.mxu0 0.0
      %4806 = vmatpush1.msra.mxu0 0.0
      %4807 = vmatprep.subr.mxu0 0.0
      %4808 = vmatpush1.msra.mxu0 0.0
      %4809 = vmatprep.subr.mxu0 0.0
      %4810 = vmatpush1.msra.mxu0 0.0
      %4811 = vmatprep.subr.mxu0 0.0
      %4812 = vmatpush1.msra.mxu0 0.0
      %4813 = vmatprep.subr.mxu0 0.0
      %4814 = vmatpush1.msra.mxu0 0.0
      %4815 = vmatprep.subr.mxu0 0.0
      %4816 = vmatpush1.msra.mxu0 0.0
      %4817 = vmatprep.subr.mxu0 0.0
      %4818 = vmatpush1.msra.mxu0 0.0
      %4819 = vmatprep.subr.mxu0 0.0
      %4820 = vmatpush1.msra.mxu0 0.0
      %4821 = vmatprep.subr.mxu0 0.0
      %4822 = vmatpush1.msra.mxu0 0.0
      %4823 = vmatprep.subr.mxu0 0.0
      %4824 = vmatpush1.msra.mxu0 0.0
      %4825 = vmatprep.subr.mxu0 0.0
      %4826 = vmatpush1.msra.mxu0 0.0
      %4827 = vmatprep.subr.mxu0 0.0
      %4828 = vmatpush1.msra.mxu0 0.0
      %4829 = vmatprep.subr.mxu0 0.0
      %4830 = vmatpush1.msra.mxu0 0.0
      %4831 = vmatprep.subr.mxu0 0.0
      %4832 = vmatpush1.msra.mxu0 0.0
      %4833 = vmatprep.subr.mxu0 0.0
      %4834 = vmatpush1.msra.mxu0 0.0
      %4835 = vmatprep.mubr.f32.mxu0 0.0
      %4836 = vmatmul.mubr.f32.gmra.mrb[0].mxu0 %v4752
      %v4837 = vpop.f32.mrb[0].mxu0
      %v4838 = vadd.f32 0.0, %v4837
      %v4839 = vpop.f32.mrb[0].mxu0
      %4840 = vmatprep.mubr.f32.mxu0 0.0
      %4841 = vmatmul.mubr.f32.gmra.mrb[0].mxu0 %v4753
      %v4842 = vpop.f32.mrb[0].mxu0
      %v4843 = vadd.f32 0.0, %v4842
      %v4844 = vpop.f32.mrb[0].mxu0
      %4845 = vdwg.mxu0
      %4846 = vmatprep.subr.mxu0 0.0
      %4847 = vmatpush1.msra.mxu0 %v4736
      %4848 = vmatprep.subr.mxu0 0.0
      %4849 = vmatpush1.msra.mxu0 %v4737
      %4850 = vmatprep.subr.mxu0 0.0
      %4851 = vmatpush1.msra.mxu0 %v4738
      %4852 = vmatprep.subr.mxu0 0.0
      %4853 = vmatpush1.msra.mxu0 %v4739
      %4854 = vmatprep.subr.mxu0 0.0
      %4855 = vmatpush1.msra.mxu0 %v4740
      %4856 = vmatprep.subr.mxu0 0.0
      %4857 = vmatpush1.msra.mxu0 %v4741
      %4858 = vmatprep.subr.mxu0 0.0
      %4859 = vmatpush1.msra.mxu0 %v4742
      %4860 = vmatprep.subr.mxu0 0.0
      %4861 = vmatpush1.msra.mxu0 %v4743
      %4862 = vmatprep.subr.mxu0 0.0
      %4863 = vmatpush1.msra.mxu0 %v4744
      %4864 = vmatprep.subr.mxu0 0.0
      %4865 = vmatpush1.msra.mxu0 %v4745
      %4866 = vmatprep.subr.mxu0 0.0
      %4867 = vmatpush1.msra.mxu0 %v4746
      %4868 = vmatprep.subr.mxu0 0.0
      %4869 = vmatpush1.msra.mxu0 %v4747
      %4870 = vmatprep.subr.mxu0 0.0
      %4871 = vmatpush1.msra.mxu0 %v4748
      %4872 = vmatprep.subr.mxu0 0.0
      %4873 = vmatpush1.msra.mxu0 %v4749
      %4874 = vmatprep.subr.mxu0 0.0
      %4875 = vmatpush1.msra.mxu0 %v4750
      %4876 = vmatprep.subr.mxu0 0.0
      %4877 = vmatpush1.msra.mxu0 %v4751
      %4878 = vmatprep.subr.mxu0 0.0
      %4879 = vmatpush1.msra.mxu0 0.0
      %4880 = vmatprep.subr.mxu0 0.0
      %4881 = vmatpush1.msra.mxu0 0.0
      %4882 = vmatprep.subr.mxu0 0.0
      %4883 = vmatpush1.msra.mxu0 0.0
      %4884 = vmatprep.subr.mxu0 0.0
      %4885 = vmatpush1.msra.mxu0 0.0
      %4886 = vmatprep.subr.mxu0 0.0
      %4887 = vmatpush1.msra.mxu0 0.0
      %4888 = vmatprep.subr.mxu0 0.0
      %4889 = vmatpush1.msra.mxu0 0.0
      %4890 = vmatprep.subr.mxu0 0.0
      %4891 = vmatpush1.msra.mxu0 0.0
      %4892 = vmatprep.subr.mxu0 0.0
      %4893 = vmatpush1.msra.mxu0 0.0
      %4894 = vmatprep.subr.mxu0 0.0
      %4895 = vmatpush1.msra.mxu0 0.0
      %4896 = vmatprep.subr.mxu0 0.0
      %4897 = vmatpush1.msra.mxu0 0.0
      %4898 = vmatprep.subr.mxu0 0.0
      %4899 = vmatpush1.msra.mxu0 0.0
      %4900 = vmatprep.subr.mxu0 0.0
      %4901 = vmatpush1.msra.mxu0 0.0
      %4902 = vmatprep.subr.mxu0 0.0
      %4903 = vmatpush1.msra.mxu0 0.0
      %4904 = vmatprep.subr.mxu0 0.0
      %4905 = vmatpush1.msra.mxu0 0.0
      %4906 = vmatprep.subr.mxu0 0.0
      %4907 = vmatpush1.msra.mxu0 0.0
      %4908 = vmatprep.subr.mxu0 0.0
      %4909 = vmatpush1.msra.mxu0 0.0
      %4910 = vmatprep.mubr.f32.mxu0 0.0
      %4911 = vmatmul.mubr.f32.gmra.mrb[0].mxu0 %v4734
      %v4912 = vpop.f32.mrb[0].mxu0
      %v4913 = vadd.f32 %v4838, %v4912
      %v4914 = vpop.f32.mrb[0].mxu0
      %4915 = vmatprep.mubr.f32.mxu0 0.0
      %4916 = vmatmul.mubr.f32.gmra.mrb[0].mxu0 %v4735
      %v4917 = vpop.f32.mrb[0].mxu0
      %v4918 = vadd.f32 %v4843, %v4917
      %v4919 = vpop.f32.mrb[0].mxu0
      %4920 = vdwg.mxu0
      %v4921 = vld [vmem:[#allocation7 + $0x2] sm:$0xff]
      %v4922 = vld [vmem:[#allocation7 + $0xa] sm:$0xff]
      %s4923 = scalar_lea.vmem %s11, 256
      %v4924 = vld [vmem:[%s4923] sm:$0xff]
      %v4925 = vld [vmem:[%s4923 + $0x8] sm:$0xff]
      %v4926 = vld [vmem:[%s4923 + $0x10] sm:$0xff]
      %v4927 = vld [vmem:[%s4923 + $0x18] sm:$0xff]
      %v4928 = vld [vmem:[%s4923 + $0x20] sm:$0xff]
      %v4929 = vld [vmem:[%s4923 + $0x28] sm:$0xff]
      %v4930 = vld [vmem:[%s4923 + $0x30] sm:$0xff]
      %v4931 = vld [vmem:[%s4923 + $0x38] sm:$0xff]
      %v4932 = vld [vmem:[%s4923 + $0x40] sm:$0xff]
      %v4933 = vld [vmem:[%s4923 + $0x48] sm:$0xff]
      %v4934 = vld [vmem:[%s4923 + $0x50] sm:$0xff]
      %v4935 = vld [vmem:[%s4923 + $0x58] sm:$0xff]
      %v4936 = vld [vmem:[%s4923 + $0x60] sm:$0xff]
      %v4937 = vld [vmem:[%s4923 + $0x68] sm:$0xff]
      %v4938 = vld [vmem:[%s4923 + $0x70] sm:$0xff]
      %v4939 = vld [vmem:[%s4923 + $0x78] sm:$0xff]
      %4940 = vmatprep.subr.mxu0 0.0
      %4941 = vmatpush1.msra.mxu0 %v4924
      %4942 = vmatprep.subr.mxu0 0.0
      %4943 = vmatpush1.msra.mxu0 %v4925
      %4944 = vmatprep.subr.mxu0 0.0
      %4945 = vmatpush1.msra.mxu0 %v4926
      %4946 = vmatprep.subr.mxu0 0.0
      %4947 = vmatpush1.msra.mxu0 %v4927
      %4948 = vmatprep.subr.mxu0 0.0
      %4949 = vmatpush1.msra.mxu0 %v4928
      %4950 = vmatprep.subr.mxu0 0.0
      %4951 = vmatpush1.msra.mxu0 %v4929
      %4952 = vmatprep.subr.mxu0 0.0
      %4953 = vmatpush1.msra.mxu0 %v4930
      %4954 = vmatprep.subr.mxu0 0.0
      %4955 = vmatpush1.msra.mxu0 %v4931
      %4956 = vmatprep.subr.mxu0 0.0
      %4957 = vmatpush1.msra.mxu0 %v4932
      %4958 = vmatprep.subr.mxu0 0.0
      %4959 = vmatpush1.msra.mxu0 %v4933
      %4960 = vmatprep.subr.mxu0 0.0
      %4961 = vmatpush1.msra.mxu0 %v4934
      %4962 = vmatprep.subr.mxu0 0.0
      %4963 = vmatpush1.msra.mxu0 %v4935
      %4964 = vmatprep.subr.mxu0 0.0
      %4965 = vmatpush1.msra.mxu0 %v4936
      %4966 = vmatprep.subr.mxu0 0.0
      %4967 = vmatpush1.msra.mxu0 %v4937
      %4968 = vmatprep.subr.mxu0 0.0
      %4969 = vmatpush1.msra.mxu0 %v4938
      %4970 = vmatprep.subr.mxu0 0.0
      %4971 = vmatpush1.msra.mxu0 %v4939
      %4972 = vmatprep.subr.mxu0 0.0
      %4973 = vmatpush1.msra.mxu0 0.0
      %4974 = vmatprep.subr.mxu0 0.0
      %4975 = vmatpush1.msra.mxu0 0.0
      %4976 = vmatprep.subr.mxu0 0.0
      %4977 = vmatpush1.msra.mxu0 0.0
      %4978 = vmatprep.subr.mxu0 0.0
      %4979 = vmatpush1.msra.mxu0 0.0
      %4980 = vmatprep.subr.mxu0 0.0
      %4981 = vmatpush1.msra.mxu0 0.0
      %4982 = vmatprep.subr.mxu0 0.0
      %4983 = vmatpush1.msra.mxu0 0.0
      %4984 = vmatprep.subr.mxu0 0.0
      %4985 = vmatpush1.msra.mxu0 0.0
      %4986 = vmatprep.subr.mxu0 0.0
      %4987 = vmatpush1.msra.mxu0 0.0
      %4988 = vmatprep.subr.mxu0 0.0
      %4989 = vmatpush1.msra.mxu0 0.0
      %4990 = vmatprep.subr.mxu0 0.0
      %4991 = vmatpush1.msra.mxu0 0.0
      %4992 = vmatprep.subr.mxu0 0.0
      %4993 = vmatpush1.msra.mxu0 0.0
      %4994 = vmatprep.subr.mxu0 0.0
      %4995 = vmatpush1.msra.mxu0 0.0
      %4996 = vmatprep.subr.mxu0 0.0
      %4997 = vmatpush1.msra.mxu0 0.0
      %4998 = vmatprep.subr.mxu0 0.0
      %4999 = vmatpush1.msra.mxu0 0.0
      %5000 = vmatprep.subr.mxu0 0.0
      %5001 = vmatpush1.msra.mxu0 0.0
      %5002 = vmatprep.subr.mxu0 0.0
      %5003 = vmatpush1.msra.mxu0 0.0
      %5004 = vmatprep.mubr.f32.mxu0 0.0
      %5005 = vmatmul.mubr.f32.gmra.mrb[0].mxu0 %v4921
      %v5006 = vpop.f32.mrb[0].mxu0
      %v5007 = vadd.f32 0.0, %v5006
      %v5008 = vpop.f32.mrb[0].mxu0
      %5009 = vmatprep.mubr.f32.mxu0 0.0
      %5010 = vmatmul.mubr.f32.gmra.mrb[0].mxu0 %v4922
      %v5011 = vpop.f32.mrb[0].mxu0
      %v5012 = vadd.f32 0.0, %v5011
      %v5013 = vpop.f32.mrb[0].mxu0
      %5014 = vdwg.mxu0
      %v5015 = vadd.f32 %v4913, %v5007
      %v5016 = vadd.f32 %v4918, %v5012
      %v5017 = vld [vmem:[%s14 + $0xa] sm:$0x1]
      %v5018 = vlaneseq
      %v5019 = vshrl.u32 %v5018, 7
      %v5020 = vsub.s32 0, %v5019
      %v5021 = vrot.slane %v5017, %v5020
      %v5022 = vadd.f32 %v5015, %v5021
      %v5023 = vadd.f32 %v5016, %v5021
      %v5024 = vadd.f32 %v5022, %v4127
      %v5025 = vadd.f32 %v5023, %v4132
      %vm5026 = vcmp.gt.f32.partialorder %v5024, 0.0
      %vm5027 = vcmp.gt.f32.partialorder %v5025, 0.0
      %v5028 = vmul.f32 %v5024, 0.2
      %v5029 = vmul.f32 %v5025, 0.2
      %v5030 = vsel %vm5026, %v5024, %v5028
      %v5031 = vsel %vm5027, %v5025, %v5029
      %5032 = vst [vmem:[#allocation7] sm:$0x1] 0.0
      %5033 = vst [vmem:[#allocation7 + $0x11] sm:$0x1] 0.0
      %5034 = vst [vmem:[#allocation7 + $0x1] sm:$0xff] %v5030
      %5035 = vst [vmem:[#allocation7 + $0x9] sm:$0xff] %v5031
      %v5036 = vld [vmem:[#allocation7] sm:$0xff]
      %v5037 = vld [vmem:[#allocation7 + $0x8] sm:$0xff]
      %v5038 = vld [vmem:[%s13] sm:$0xff]
      %v5039 = vld [vmem:[%s13 + $0x8] sm:$0xff]
      %v5040 = vld [vmem:[%s13 + $0x10] sm:$0xff]
      %v5041 = vld [vmem:[%s13 + $0x18] sm:$0xff]
      %v5042 = vld [vmem:[%s13 + $0x20] sm:$0xff]
      %v5043 = vld [vmem:[%s13 + $0x28] sm:$0xff]
      %v5044 = vld [vmem:[%s13 + $0x30] sm:$0xff]
      %v5045 = vld [vmem:[%s13 + $0x38] sm:$0xff]
      %v5046 = vld [vmem:[%s13 + $0x40] sm:$0xff]
      %v5047 = vld [vmem:[%s13 + $0x48] sm:$0xff]
      %v5048 = vld [vmem:[%s13 + $0x50] sm:$0xff]
      %v5049 = vld [vmem:[%s13 + $0x58] sm:$0xff]
      %v5050 = vld [vmem:[%s13 + $0x60] sm:$0xff]
      %v5051 = vld [vmem:[%s13 + $0x68] sm:$0xff]
      %v5052 = vld [vmem:[%s13 + $0x70] sm:$0xff]
      %v5053 = vld [vmem:[%s13 + $0x78] sm:$0xff]
      %v5054 = vld [vmem:[#allocation7 + $0x1] sm:$0xff]
      %v5055 = vld [vmem:[#allocation7 + $0x9] sm:$0xff]
      %s5056 = scalar_lea.vmem %s13, 128
      %v5057 = vld [vmem:[%s5056] sm:$0xff]
      %v5058 = vld [vmem:[%s5056 + $0x8] sm:$0xff]
      %v5059 = vld [vmem:[%s5056 + $0x10] sm:$0xff]
      %v5060 = vld [vmem:[%s5056 + $0x18] sm:$0xff]
      %v5061 = vld [vmem:[%s5056 + $0x20] sm:$0xff]
      %v5062 = vld [vmem:[%s5056 + $0x28] sm:$0xff]
      %v5063 = vld [vmem:[%s5056 + $0x30] sm:$0xff]
      %v5064 = vld [vmem:[%s5056 + $0x38] sm:$0xff]
      %v5065 = vld [vmem:[%s5056 + $0x40] sm:$0xff]
      %v5066 = vld [vmem:[%s5056 + $0x48] sm:$0xff]
      %v5067 = vld [vmem:[%s5056 + $0x50] sm:$0xff]
      %v5068 = vld [vmem:[%s5056 + $0x58] sm:$0xff]
      %v5069 = vld [vmem:[%s5056 + $0x60] sm:$0xff]
      %v5070 = vld [vmem:[%s5056 + $0x68] sm:$0xff]
      %v5071 = vld [vmem:[%s5056 + $0x70] sm:$0xff]
      %v5072 = vld [vmem:[%s5056 + $0x78] sm:$0xff]
      %5073 = vmatprep.subr.mxu0 0.0
      %5074 = vmatpush1.msra.mxu0 %v5057
      %5075 = vmatprep.subr.mxu0 0.0
      %5076 = vmatpush1.msra.mxu0 %v5058
      %5077 = vmatprep.subr.mxu0 0.0
      %5078 = vmatpush1.msra.mxu0 %v5059
      %5079 = vmatprep.subr.mxu0 0.0
      %5080 = vmatpush1.msra.mxu0 %v5060
      %5081 = vmatprep.subr.mxu0 0.0
      %5082 = vmatpush1.msra.mxu0 %v5061
      %5083 = vmatprep.subr.mxu0 0.0
      %5084 = vmatpush1.msra.mxu0 %v5062
      %5085 = vmatprep.subr.mxu0 0.0
      %5086 = vmatpush1.msra.mxu0 %v5063
      %5087 = vmatprep.subr.mxu0 0.0
      %5088 = vmatpush1.msra.mxu0 %v5064
      %5089 = vmatprep.subr.mxu0 0.0
      %5090 = vmatpush1.msra.mxu0 %v5065
      %5091 = vmatprep.subr.mxu0 0.0
      %5092 = vmatpush1.msra.mxu0 %v5066
      %5093 = vmatprep.subr.mxu0 0.0
      %5094 = vmatpush1.msra.mxu0 %v5067
      %5095 = vmatprep.subr.mxu0 0.0
      %5096 = vmatpush1.msra.mxu0 %v5068
      %5097 = vmatprep.subr.mxu0 0.0
      %5098 = vmatpush1.msra.mxu0 %v5069
      %5099 = vmatprep.subr.mxu0 0.0
      %5100 = vmatpush1.msra.mxu0 %v5070
      %5101 = vmatprep.subr.mxu0 0.0
      %5102 = vmatpush1.msra.mxu0 %v5071
      %5103 = vmatprep.subr.mxu0 0.0
      %5104 = vmatpush1.msra.mxu0 %v5072
      %5105 = vmatprep.subr.mxu0 0.0
      %5106 = vmatpush1.msra.mxu0 0.0
      %5107 = vmatprep.subr.mxu0 0.0
      %5108 = vmatpush1.msra.mxu0 0.0
      %5109 = vmatprep.subr.mxu0 0.0
      %5110 = vmatpush1.msra.mxu0 0.0
      %5111 = vmatprep.subr.mxu0 0.0
      %5112 = vmatpush1.msra.mxu0 0.0
      %5113 = vmatprep.subr.mxu0 0.0
      %5114 = vmatpush1.msra.mxu0 0.0
      %5115 = vmatprep.subr.mxu0 0.0
      %5116 = vmatpush1.msra.mxu0 0.0
      %5117 = vmatprep.subr.mxu0 0.0
      %5118 = vmatpush1.msra.mxu0 0.0
      %5119 = vmatprep.subr.mxu0 0.0
      %5120 = vmatpush1.msra.mxu0 0.0
      %5121 = vmatprep.subr.mxu0 0.0
      %5122 = vmatpush1.msra.mxu0 0.0
      %5123 = vmatprep.subr.mxu0 0.0
      %5124 = vmatpush1.msra.mxu0 0.0
      %5125 = vmatprep.subr.mxu0 0.0
      %5126 = vmatpush1.msra.mxu0 0.0
      %5127 = vmatprep.subr.mxu0 0.0
      %5128 = vmatpush1.msra.mxu0 0.0
      %5129 = vmatprep.subr.mxu0 0.0
      %5130 = vmatpush1.msra.mxu0 0.0
      %5131 = vmatprep.subr.mxu0 0.0
      %5132 = vmatpush1.msra.mxu0 0.0
      %5133 = vmatprep.subr.mxu0 0.0
      %5134 = vmatpush1.msra.mxu0 0.0
      %5135 = vmatprep.subr.mxu0 0.0
      %5136 = vmatpush1.msra.mxu0 0.0
      %5137 = vmatprep.mubr.f32.mxu0 0.0
      %5138 = vmatmul.mubr.f32.gmra.mrb[0].mxu0 %v5054
      %v5139 = vpop.f32.mrb[0].mxu0
      %v5140 = vadd.f32 0.0, %v5139
      %v5141 = vpop.f32.mrb[0].mxu0
      %5142 = vmatprep.mubr.f32.mxu0 0.0
      %5143 = vmatmul.mubr.f32.gmra.mrb[0].mxu0 %v5055
      %v5144 = vpop.f32.mrb[0].mxu0
      %v5145 = vadd.f32 0.0, %v5144
      %v5146 = vpop.f32.mrb[0].mxu0
      %5147 = vdwg.mxu0
      %5148 = vmatprep.subr.mxu0 0.0
      %5149 = vmatpush1.msra.mxu0 %v5038
      %5150 = vmatprep.subr.mxu0 0.0
      %5151 = vmatpush1.msra.mxu0 %v5039
      %5152 = vmatprep.subr.mxu0 0.0
      %5153 = vmatpush1.msra.mxu0 %v5040
      %5154 = vmatprep.subr.mxu0 0.0
      %5155 = vmatpush1.msra.mxu0 %v5041
      %5156 = vmatprep.subr.mxu0 0.0
      %5157 = vmatpush1.msra.mxu0 %v5042
      %5158 = vmatprep.subr.mxu0 0.0
      %5159 = vmatpush1.msra.mxu0 %v5043
      %5160 = vmatprep.subr.mxu0 0.0
      %5161 = vmatpush1.msra.mxu0 %v5044
      %5162 = vmatprep.subr.mxu0 0.0
      %5163 = vmatpush1.msra.mxu0 %v5045
      %5164 = vmatprep.subr.mxu0 0.0
      %5165 = vmatpush1.msra.mxu0 %v5046
      %5166 = vmatprep.subr.mxu0 0.0
      %5167 = vmatpush1.msra.mxu0 %v5047
      %5168 = vmatprep.subr.mxu0 0.0
      %5169 = vmatpush1.msra.mxu0 %v5048
      %5170 = vmatprep.subr.mxu0 0.0
      %5171 = vmatpush1.msra.mxu0 %v5049
      %5172 = vmatprep.subr.mxu0 0.0
      %5173 = vmatpush1.msra.mxu0 %v5050
      %5174 = vmatprep.subr.mxu0 0.0
      %5175 = vmatpush1.msra.mxu0 %v5051
      %5176 = vmatprep.subr.mxu0 0.0
      %5177 = vmatpush1.msra.mxu0 %v5052
      %5178 = vmatprep.subr.mxu0 0.0
      %5179 = vmatpush1.msra.mxu0 %v5053
      %5180 = vmatprep.subr.mxu0 0.0
      %5181 = vmatpush1.msra.mxu0 0.0
      %5182 = vmatprep.subr.mxu0 0.0
      %5183 = vmatpush1.msra.mxu0 0.0
      %5184 = vmatprep.subr.mxu0 0.0
      %5185 = vmatpush1.msra.mxu0 0.0
      %5186 = vmatprep.subr.mxu0 0.0
      %5187 = vmatpush1.msra.mxu0 0.0
      %5188 = vmatprep.subr.mxu0 0.0
      %5189 = vmatpush1.msra.mxu0 0.0
      %5190 = vmatprep.subr.mxu0 0.0
      %5191 = vmatpush1.msra.mxu0 0.0
      %5192 = vmatprep.subr.mxu0 0.0
      %5193 = vmatpush1.msra.mxu0 0.0
      %5194 = vmatprep.subr.mxu0 0.0
      %5195 = vmatpush1.msra.mxu0 0.0
      %5196 = vmatprep.subr.mxu0 0.0
      %5197 = vmatpush1.msra.mxu0 0.0
      %5198 = vmatprep.subr.mxu0 0.0
      %5199 = vmatpush1.msra.mxu0 0.0
      %5200 = vmatprep.subr.mxu0 0.0
      %5201 = vmatpush1.msra.mxu0 0.0
      %5202 = vmatprep.subr.mxu0 0.0
      %5203 = vmatpush1.msra.mxu0 0.0
      %5204 = vmatprep.subr.mxu0 0.0
      %5205 = vmatpush1.msra.mxu0 0.0
      %5206 = vmatprep.subr.mxu0 0.0
      %5207 = vmatpush1.msra.mxu0 0.0
      %5208 = vmatprep.subr.mxu0 0.0
      %5209 = vmatpush1.msra.mxu0 0.0
      %5210 = vmatprep.subr.mxu0 0.0
      %5211 = vmatpush1.msra.mxu0 0.0
      %5212 = vmatprep.mubr.f32.mxu0 0.0
      %5213 = vmatmul.mubr.f32.gmra.mrb[0].mxu0 %v5036
      %v5214 = vpop.f32.mrb[0].mxu0
      %v5215 = vadd.f32 %v5140, %v5214
      %v5216 = vpop.f32.mrb[0].mxu0
      %5217 = vmatprep.mubr.f32.mxu0 0.0
      %5218 = vmatmul.mubr.f32.gmra.mrb[0].mxu0 %v5037
      %v5219 = vpop.f32.mrb[0].mxu0
      %v5220 = vadd.f32 %v5145, %v5219
      %v5221 = vpop.f32.mrb[0].mxu0
      %5222 = vdwg.mxu0
      %v5223 = vld [vmem:[#allocation7 + $0x2] sm:$0xff]
      %v5224 = vld [vmem:[#allocation7 + $0xa] sm:$0xff]
      %s5225 = scalar_lea.vmem %s13, 256
      %v5226 = vld [vmem:[%s5225] sm:$0xff]
      %v5227 = vld [vmem:[%s5225 + $0x8] sm:$0xff]
      %v5228 = vld [vmem:[%s5225 + $0x10] sm:$0xff]
      %v5229 = vld [vmem:[%s5225 + $0x18] sm:$0xff]
      %v5230 = vld [vmem:[%s5225 + $0x20] sm:$0xff]
      %v5231 = vld [vmem:[%s5225 + $0x28] sm:$0xff]
      %v5232 = vld [vmem:[%s5225 + $0x30] sm:$0xff]
      %v5233 = vld [vmem:[%s5225 + $0x38] sm:$0xff]
      %v5234 = vld [vmem:[%s5225 + $0x40] sm:$0xff]
      %v5235 = vld [vmem:[%s5225 + $0x48] sm:$0xff]
      %v5236 = vld [vmem:[%s5225 + $0x50] sm:$0xff]
      %v5237 = vld [vmem:[%s5225 + $0x58] sm:$0xff]
      %v5238 = vld [vmem:[%s5225 + $0x60] sm:$0xff]
      %v5239 = vld [vmem:[%s5225 + $0x68] sm:$0xff]
      %v5240 = vld [vmem:[%s5225 + $0x70] sm:$0xff]
      %v5241 = vld [vmem:[%s5225 + $0x78] sm:$0xff]
      %5242 = vmatprep.subr.mxu0 0.0
      %5243 = vmatpush1.msra.mxu0 %v5226
      %5244 = vmatprep.subr.mxu0 0.0
      %5245 = vmatpush1.msra.mxu0 %v5227
      %5246 = vmatprep.subr.mxu0 0.0
      %5247 = vmatpush1.msra.mxu0 %v5228
      %5248 = vmatprep.subr.mxu0 0.0
      %5249 = vmatpush1.msra.mxu0 %v5229
      %5250 = vmatprep.subr.mxu0 0.0
      %5251 = vmatpush1.msra.mxu0 %v5230
      %5252 = vmatprep.subr.mxu0 0.0
      %5253 = vmatpush1.msra.mxu0 %v5231
      %5254 = vmatprep.subr.mxu0 0.0
      %5255 = vmatpush1.msra.mxu0 %v5232
      %5256 = vmatprep.subr.mxu0 0.0
      %5257 = vmatpush1.msra.mxu0 %v5233
      %5258 = vmatprep.subr.mxu0 0.0
      %5259 = vmatpush1.msra.mxu0 %v5234
      %5260 = vmatprep.subr.mxu0 0.0
      %5261 = vmatpush1.msra.mxu0 %v5235
      %5262 = vmatprep.subr.mxu0 0.0
      %5263 = vmatpush1.msra.mxu0 %v5236
      %5264 = vmatprep.subr.mxu0 0.0
      %5265 = vmatpush1.msra.mxu0 %v5237
      %5266 = vmatprep.subr.mxu0 0.0
      %5267 = vmatpush1.msra.mxu0 %v5238
      %5268 = vmatprep.subr.mxu0 0.0
      %5269 = vmatpush1.msra.mxu0 %v5239
      %5270 = vmatprep.subr.mxu0 0.0
      %5271 = vmatpush1.msra.mxu0 %v5240
      %5272 = vmatprep.subr.mxu0 0.0
      %5273 = vmatpush1.msra.mxu0 %v5241
      %5274 = vmatprep.subr.mxu0 0.0
      %5275 = vmatpush1.msra.mxu0 0.0
      %5276 = vmatprep.subr.mxu0 0.0
      %5277 = vmatpush1.msra.mxu0 0.0
      %5278 = vmatprep.subr.mxu0 0.0
      %5279 = vmatpush1.msra.mxu0 0.0
      %5280 = vmatprep.subr.mxu0 0.0
      %5281 = vmatpush1.msra.mxu0 0.0
      %5282 = vmatprep.subr.mxu0 0.0
      %5283 = vmatpush1.msra.mxu0 0.0
      %5284 = vmatprep.subr.mxu0 0.0
      %5285 = vmatpush1.msra.mxu0 0.0
      %5286 = vmatprep.subr.mxu0 0.0
      %5287 = vmatpush1.msra.mxu0 0.0
      %5288 = vmatprep.subr.mxu0 0.0
      %5289 = vmatpush1.msra.mxu0 0.0
      %5290 = vmatprep.subr.mxu0 0.0
      %5291 = vmatpush1.msra.mxu0 0.0
      %5292 = vmatprep.subr.mxu0 0.0
      %5293 = vmatpush1.msra.mxu0 0.0
      %5294 = vmatprep.subr.mxu0 0.0
      %5295 = vmatpush1.msra.mxu0 0.0
      %5296 = vmatprep.subr.mxu0 0.0
      %5297 = vmatpush1.msra.mxu0 0.0
      %5298 = vmatprep.subr.mxu0 0.0
      %5299 = vmatpush1.msra.mxu0 0.0
      %5300 = vmatprep.subr.mxu0 0.0
      %5301 = vmatpush1.msra.mxu0 0.0
      %5302 = vmatprep.subr.mxu0 0.0
      %5303 = vmatpush1.msra.mxu0 0.0
      %5304 = vmatprep.subr.mxu0 0.0
      %5305 = vmatpush1.msra.mxu0 0.0
      %5306 = vmatprep.mubr.f32.mxu0 0.0
      %5307 = vmatmul.mubr.f32.gmra.mrb[0].mxu0 %v5223
      %v5308 = vpop.f32.mrb[0].mxu0
      %v5309 = vadd.f32 0.0, %v5308
      %v5310 = vpop.f32.mrb[0].mxu0
      %5311 = vmatprep.mubr.f32.mxu0 0.0
      %5312 = vmatmul.mubr.f32.gmra.mrb[0].mxu0 %v5224
      %v5313 = vpop.f32.mrb[0].mxu0
      %v5314 = vadd.f32 0.0, %v5313
      %v5315 = vpop.f32.mrb[0].mxu0
      %5316 = vdwg.mxu0
      %v5317 = vadd.f32 %v5215, %v5309
      %v5318 = vadd.f32 %v5220, %v5314
      %v5319 = vld [vmem:[%s14 + $0xc] sm:$0x1]
      %v5320 = vlaneseq
      %v5321 = vshrl.u32 %v5320, 7
      %v5322 = vsub.s32 0, %v5321
      %v5323 = vrot.slane %v5319, %v5322
      %v5324 = vadd.f32 %v5317, %v5323
      %v5325 = vadd.f32 %v5318, %v5323
      %5326 = vst.msk [vmem:[%s494] sm:$0xff] %vm503, %v5324
      %5327 = vst.msk [vmem:[%s494 + $0x8] sm:$0xff] %vm503, %v5325
      %p5328 = scmp.lt.s32.totalorder %s26, 1
      %s5329 = scalar_select %p5328, %s26, 1
      %s5330 = smul.addr %s5329, 2
      %s5331 = smul.addr %s5330, 8
      %s5332 = scalar_lea.vmem %s15, %s5331
      // Predicated region
      $region81: #{restnet_1d_dcnn_apply.1} parent=79 // pred_check
        %p5333 = pneg %p364
      $region82: #{restnet_1d_dcnn_apply.1} parent=79 // pred_check_branch
        %5335 = sbr.rel (%p5333) target = $region84
      $region83: #{restnet_1d_dcnn_apply.1} parent=79 // pred_region
        _
      $region84: #{restnet_1d_dcnn_apply.1} parent=79 // pred_fallthru
        _
    $region80: #{restnet_1d_dcnn_apply.1} parent=5 // pred_fallthru
      _
    %p5336 = scmp.le.s32.totalorder 2, %s21
    // Predicated region
    $region85: #{restnet_1d_dcnn_apply.1} parent=5 // pred_check
      %p5337 = pneg %p5336
    $region86: #{restnet_1d_dcnn_apply.1} parent=5 // pred_check_branch
      %5339 = sbr.rel (%p5337) target = $region88
    $region87: #{restnet_1d_dcnn_apply.1} parent=5 // pred_region
      %s5340 = ssub.s32 %s21, 2
      // Predicated region
      $region89: #{restnet_1d_dcnn_apply.1} parent=87 // pred_check
        %p5341 = pneg %p370
      $region90: #{restnet_1d_dcnn_apply.1} parent=87 // pred_check_branch
        %5343 = sbr.rel (%p5341) target = $region92
      $region91: #{restnet_1d_dcnn_apply.1} parent=87 // pred_region
        %p5344 = scmp.lt.s32.totalorder %s27, 1
        %s5345 = scalar_select %p5344, %s27, 1
        %s5346 = smul.addr %s5345, 2
        %s5347 = smul.addr %s5346, 8
        %s5348 = scalar_lea.vmem %s15, %s5347
      $region92: #{restnet_1d_dcnn_apply.1} parent=87 // pred_fallthru
        _
    $region88: #{restnet_1d_dcnn_apply.1} parent=5 // pred_fallthru
      _
  $region6: #{restnet_1d_dcnn_apply.1} parent=0 // loop_footer
    %s25 = sadd.s32 1, %s21
  $region7: #{restnet_1d_dcnn_apply.1} parent=0 // loop_footer_branch
    %20 = sbr.rel target = $region3
  $region8: #{restnet_1d_dcnn_apply.1} parent=0 // loop_exit
    _

</llo_original>
